<compile_context>
chip_gen: v7x
topology: tpu7x:2x2x1
jax: 0.10.0
libtpu: 0.0.40
codegen_flags: <defaults>
</compile_context>

<pallas_src>
import functools

import jax
import jax.numpy as jnp
from jax.experimental import pallas as pl
from jax.experimental.pallas import tpu as pltpu

EPS = 1e-5                 # torch.nn.LayerNorm default eps
_MAX_UNROLL_DEPTH = 4      # beyond this, the layer loop uses lax.fori_loop

# fixed flattening order of parameter tensors (wrapper and kernel must agree)
ATTN_KEYS_CTX = ("wq", "wkv", "wo", "bo", "gx", "bx", "gc", "bc")
ATTN_KEYS_SELF = ("wqkv", "wo", "bo", "gx", "bx")
FF_KEYS = ("w1", "b1", "w2", "b2", "g", "be")
_MATMUL_WEIGHT_KEYS = {"wq", "wkv", "wqkv", "wo", "w1", "w2"}


# ---------------------------------------------------------------------------
# In-kernel helpers (operate on values, not refs)
# ---------------------------------------------------------------------------
def _layernorm(x, gamma, beta):
    mu = jnp.mean(x, axis=-1, keepdims=True)
    var = jnp.mean(jnp.square(x - mu), axis=-1, keepdims=True)
    return (x - mu) * jax.lax.rsqrt(var + EPS) * gamma + beta


def _gelu_exact(x):
    # torch.nn.functional.gelu default: exact erf formulation
    return 0.5 * x * (1.0 + jax.lax.erf(x * (2.0 ** -0.5)))


def _dot(a, b, cdt):
    """MXU matmul with (optionally bf16) operands and f32 accumulation."""
    return jnp.dot(a.astype(cdt), b.astype(cdt), preferred_element_type=jnp.float32)


def _softmax(sim, exact):
    sim = sim - jnp.max(sim, axis=-1, keepdims=True)
    p = jnp.exp(sim)
    s = jnp.sum(p, axis=-1, keepdims=True)
    if exact:
        return p / s
    return p * pl.reciprocal(s, approx=True)


def _attn_core(q_all, k_all, v_all, wo, bo, *, heads, dh, bblk, npb, mpb, cdt, exact):
    """q_all: (bblk*npb, H*dh); k_all/v_all: (bblk*mpb, H*dh); wo: (H*dh, dq)."""
    scale = dh ** (-0.5)
    batch_outs = []
    for bi in range(bblk):                                  # static unroll (small)
        qb = q_all[bi * npb:(bi + 1) * npb]
        kb = k_all[bi * mpb:(bi + 1) * mpb]
        vb = v_all[bi * mpb:(bi + 1) * mpb]
        head_outs = []
        for h in range(heads):                              # static unroll (small H)
            q = qb[:, h * dh:(h + 1) * dh]
            k = kb[:, h * dh:(h + 1) * dh]
            v = vb[:, h * dh:(h + 1) * dh]
            sim = jax.lax.dot_general(
                q.astype(cdt), k.astype(cdt),
                dimension_numbers=(((1,), (1,)), ((), ())),
                preferred_element_type=jnp.float32) * scale          # (npb, mpb)
            att = _softmax(sim, exact)
            head_outs.append(jnp.dot(att.astype(cdt), v.astype(cdt),
                                     preferred_element_type=jnp.float32))
        o_b = head_outs[0] if heads == 1 else jnp.concatenate(head_outs, axis=-1)
        batch_outs.append(o_b)
    o = batch_outs[0] if bblk == 1 else jnp.concatenate(batch_outs, axis=0)
    return _dot(o, wo, cdt) + bo                            # single output projection


def _cross_attn_block(x, ctx, p, *, heads, dh, bblk, npb, mpb, cdt, exact):
    """PreNorm(x) + PreNorm(ctx) + multi-head cross attention (fused K|V proj)."""
    wq, wkv, wo, bo, gx, bx, gc, bc = p
    xn = _layernorm(x, gx, bx)
    cn = _layernorm(ctx, gc, bc)
    hd = heads * dh
    q_all = _dot(xn, wq, cdt)                               # (bblk*npb, H*dh)
    kv = _dot(cn, wkv, cdt)                                 # (bblk*mpb, 2*H*dh)
    return _attn_core(q_all, kv[:, :hd], kv[:, hd:], wo, bo, heads=heads, dh=dh,
                      bblk=bblk, npb=npb, mpb=mpb, cdt=cdt, exact=exact)


def _self_attn_block(x, p, *, heads, dh, bblk, npb, cdt, exact):
    """PreNorm(x) + multi-head self attention (fused Q|K|V proj)."""
    wqkv, wo, bo, gx, bx = p
    xn = _layernorm(x, gx, bx)
    hd = heads * dh
    qkv = _dot(xn, wqkv, cdt)                               # (bblk*npb, 3*H*dh)
    return _attn_core(qkv[:, :hd], qkv[:, hd:2 * hd], qkv[:, 2 * hd:], wo, bo,
                      heads=heads, dh=dh, bblk=bblk, npb=npb, mpb=npb,
                      cdt=cdt, exact=exact)


def _ff_block(x, p, cdt):
    """PreNorm + (Linear -> GEGLU -> Linear); w1 stored as stacked halves."""
    w1, b1, w2, b2, g, be = p                               # w1: (2, d, hidden)
    xn = _layernorm(x, g, be)
    h_lin = _dot(xn, w1[0], cdt) + b1[0]                    # leading-axis split
    h_gate = _dot(xn, w1[1], cdt) + b1[1]
    y = h_lin * _gelu_exact(h_gate)
    return _dot(y, w2, cdt) + b2


# ---------------------------------------------------------------------------
# Fused Pallas kernel: one grid step == `batch_block` batch elements,
# whole PerceiverIO forward pass
# ---------------------------------------------------------------------------
def _perceiver_kernel(*refs, depth, has_dec_ff, ch, cdh, sh, sdh, cdt, exact):
    o_ref = refs[-1]
    it = iter(refs[:-1])

    def take(k):
        return [next(it) for _ in range(k)]

    data_ref, q_ref, lat_ref = take(3)
    ca = take(len(ATTN_KEYS_CTX))                        # encoder cross attention
    cf = take(len(FF_KEYS))                              # encoder cross FF
    sa = take(len(ATTN_KEYS_SELF)) if depth > 0 else None   # layer-stacked
    sf = take(len(FF_KEYS)) if depth > 0 else None           # layer-stacked
    da = take(len(ATTN_KEYS_CTX))                        # decoder cross attention
    df = take(len(FF_KEYS)) if has_dec_ff else None      # decoder FF
    wlog_ref, blog_ref = take(2)

    bblk, m, dc = data_ref.shape
    _, nq, qd = q_ref.shape
    n, d = lat_ref.shape

    # batch folded into the matmul M dimension (leading-dim merges only)
    data = data_ref[...].reshape(bblk * m, dc)
    q_in = q_ref[...].reshape(bblk * nq, qd)
    lat = lat_ref[...]
    x = lat if bblk == 1 else jnp.concatenate([lat] * bblk, axis=0)   # (bblk*n, d)

    # --- encoder cross attention + FF (with residuals) ---
    x = x + _cross_attn_block(x, data, [r[...] for r in ca], heads=ch, dh=cdh,
                              bblk=bblk, npb=n, mpb=m, cdt=cdt, exact=exact)
    x = x + _ff_block(x, [r[...] for r in cf], cdt)

    # --- latent self-attention stack ---
    if depth > 0:
        def layer(xc, l):
            xc = xc + _self_attn_block(xc, [r[l] for r in sa], heads=sh, dh=sdh,
                                       bblk=bblk, npb=n, cdt=cdt, exact=exact)
            xc = xc + _ff_block(xc, [r[l] for r in sf], cdt)
            return xc

        if depth <= _MAX_UNROLL_DEPTH:
            for l in range(depth):                       # static unroll (shallow)
                x = layer(x, l)
        else:
            # bound vreg live ranges for deep stacks (dynamic leading-axis reads)
            x = jax.lax.fori_loop(0, depth, lambda l, xc: layer(xc, l), x)

    # --- decoder cross attention (NO residual on queries) ---
    lat_out = _cross_attn_block(q_in, x, [r[...] for r in da], heads=ch, dh=cdh,
                                bblk=bblk, npb=nq, mpb=n, cdt=cdt, exact=exact)
    if has_dec_ff:
        lat_out = lat_out + _ff_block(lat_out, [r[...] for r in df], cdt)

    # --- logits projection, stored as a dense 2-D (bblk*nq, od) slab ---
    logits = _dot(lat_out, wlog_ref[...], cdt) + blog_ref[...]
    o_ref[...] = logits.astype(o_ref.dtype)


# ---------------------------------------------------------------------------
# pallas_call wrapper
# ---------------------------------------------------------------------------
def _weight_spec(a):
    zeros = (0,) * a.ndim
    # constant index_map -> no benefit from double buffering; keep 1 buffer
    return pl.BlockSpec(a.shape, lambda i, _z=zeros: _z,
                        pipeline_mode=pl.Buffered(1))


def _pick_batch_block(b, num_latents):
    """Fold batch into M to fill MXU rows, but keep >= 2 grid steps (v7x 2 TCs)."""
    target = -(-128 // max(num_latents, 1))     # batch_block * num_latents >= 128
    cap = max(1, b // 2)                        # keep at least 2 parallel grid steps
    best = 1
    for cand in range(1, min(target, cap) + 1):
        if b % cand == 0:
            best = cand
    return best


def _estimate_cost(*, b, m, dc, nq, qd, n, d, od, ch, cdh, sh, sdh,
                   depth, has_dec_ff, mult=4):
    mm = lambda M, K, N: 2 * M * K * N
    ff = lambda rows, dim: 2 * mm(rows, dim, dim * mult) + mm(rows, dim * mult, dim)
    hdc, hds = ch * cdh, sh * sdh
    fl = 0
    # encoder cross attention + FF
    fl += mm(b * n, d, hdc) + mm(b * m, dc, 2 * hdc)
    fl += b * ch * (mm(n, cdh, m) + mm(n, m, cdh))
    fl += mm(b * n, hdc, d) + ff(b * n, d)
    # latent self-attention stack
    per = (mm(b * n, d, 3 * hds) + b * sh * (mm(n, sdh, n) + mm(n, n, sdh))
           + mm(b * n, hds, d) + ff(b * n, d))
    fl += depth * per
    # decoder cross attention (+ optional FF) + logits
    fl += mm(b * nq, qd, hdc) + mm(b * n, d, 2 * hdc)
    fl += b * ch * (mm(nq, cdh, n) + mm(nq, n, cdh))
    fl += mm(b * nq, hdc, qd)
    if has_dec_ff:
        fl += ff(b * nq, qd)
    fl += mm(b * nq, qd, od)
    # rough transcendental count: softmax exps + GEGLU erfs
    trans = b * (ch * n * m + depth * sh * n * n + ch * nq * n)
    trans += b * n * d * mult * (1 + depth) + (b * nq * qd * mult if has_dec_ff else 0)
    return int(fl), int(trans)


def perceiver_io_forward(params, data, queries, cfg, *,
                         matmul_dtype=jnp.bfloat16, exact_softmax=False,
                         batch_block=None):
    b = data.shape[0]
    data = data.reshape(b, -1, data.shape[-1])          # 'b ... d -> b (...) d'
    queries_shape = queries.shape
    q = queries.reshape(b, -1, queries.shape[-1])

    m, dc = data.shape[1], data.shape[2]
    nq, qd = q.shape[1], q.shape[2]
    n, d = params["latents"].shape
    od = cfg["output_dim"]
    depth = cfg["network_depth"]
    has_dec_ff = params["dec_ff"] is not None

    if batch_block is None:
        batch_block = _pick_batch_block(b, n)
    assert b % batch_block == 0
    steps = b // batch_block

    # cast matmul weights to the MXU dtype; biases / norm params stay f32
    def prep(pdict):
        return {k: (v.astype(matmul_dtype) if k in _MATMUL_WEIGHT_KEYS else v)
                for k, v in pdict.items()}

    flat = [data, q, params["latents"]]
    flat += [prep(params["cross_attn"])[k] for k in ATTN_KEYS_CTX]
    flat += [prep(params["cross_ff"])[k] for k in FF_KEYS]
    if depth > 0:
        flat += [prep(params["self_attn"])[k] for k in ATTN_KEYS_SELF]
        flat += [prep(params["self_ff"])[k] for k in FF_KEYS]
    flat += [prep(params["dec_attn"])[k] for k in ATTN_KEYS_CTX]
    if has_dec_ff:
        flat += [prep(params["dec_ff"])[k] for k in FF_KEYS]
    flat += [params["to_logits_w"].astype(matmul_dtype), params["to_logits_b"]]

    in_specs = [
        pl.BlockSpec((batch_block, m, dc), lambda i: (i, 0, 0)),
        pl.BlockSpec((batch_block, nq, qd), lambda i: (i, 0, 0)),
    ] + [_weight_spec(a) for a in flat[2:]]               # weights: constant index_map

    kernel = functools.partial(
        _perceiver_kernel, depth=depth, has_dec_ff=has_dec_ff,
        ch=cfg["num_cross_att_heads"], cdh=cfg["cross_head_dim"],
        sh=cfg["num_self_att_heads"], sdh=cfg["latent_head_dim"],
        cdt=matmul_dtype, exact=exact_softmax)

    flops, trans = _estimate_cost(b=b, m=m, dc=dc, nq=nq, qd=qd, n=n, d=d, od=od,
                                  ch=cfg["num_cross_att_heads"],
                                  cdh=cfg["cross_head_dim"],
                                  sh=cfg["num_self_att_heads"],
                                  sdh=cfg["latent_head_dim"],
                                  depth=depth, has_dec_ff=has_dec_ff)
    in_bytes = sum(int(a.size) * a.dtype.itemsize for a in flat)
    out_bytes = b * nq * od * 4
    vmem_limit = int(min(64 << 20, max(32 << 20, 2 * (in_bytes + out_bytes) + (4 << 20))))

    out = pl.pallas_call(
        kernel,
        out_shape=jax.ShapeDtypeStruct((b * nq, od), jnp.float32),
        grid=(steps,),
        in_specs=in_specs,
        out_specs=pl.BlockSpec((batch_block * nq, od), lambda i: (i, 0)),
        compiler_params=pltpu.CompilerParams(
            dimension_semantics=("parallel",),
            vmem_limit_bytes=vmem_limit),
        cost_estimate=pl.CostEstimate(flops=flops, transcendentals=trans,
                                      bytes_accessed=in_bytes + out_bytes),
    )(*flat)
    return out.reshape(queries_shape[:-1] + (od,))


# ---------------------------------------------------------------------------
# Parameter init (deterministic, synthetic) — fused-QKV / layer-stacked layout
# ---------------------------------------------------------------------------
def _attn_params(key, query_dim, context_dim, heads, dim_head, *,
                 norm_context, fuse_qkv):
    inner = heads * dim_head
    ks = jax.random.split(key, 3)
    if fuse_qkv:   # self attention: context == query -> one fused Q|K|V weight
        p = {"wqkv": jax.random.normal(ks[0], (query_dim, 3 * inner), jnp.float32) * 0.02}
    else:          # cross attention: fused K|V weight over the context
        p = {"wq": jax.random.normal(ks[0], (query_dim, inner), jnp.float32) * 0.02,
             "wkv": jax.random.normal(ks[1], (context_dim, 2 * inner), jnp.float32) * 0.02}
    p["wo"] = jax.random.normal(ks[2], (inner, query_dim), jnp.float32) * 0.02
    p["bo"] = jnp.zeros((1, query_dim), jnp.float32)
    p["gx"] = jnp.ones((1, query_dim), jnp.float32)
    p["bx"] = jnp.zeros((1, query_dim), jnp.float32)
    if norm_context:
        p["gc"] = jnp.ones((1, context_dim), jnp.float32)
        p["bc"] = jnp.zeros((1, context_dim), jnp.float32)
    return p


def _ff_params(key, dim, mult=4):
    hidden = dim * mult
    k1, k2 = jax.random.split(key, 2)
    return {
        # stacked halves: [0] = linear branch, [1] = GEGLU gate branch
        "w1": jax.random.normal(k1, (2, dim, hidden), jnp.float32) * 0.02,
        "b1": jnp.zeros((2, 1, hidden), jnp.float32),
        "w2": jax.random.normal(k2, (hidden, dim), jnp.float32) * 0.02,
        "b2": jnp.zeros((1, dim), jnp.float32),
        "g": jnp.ones((1, dim), jnp.float32),
        "be": jnp.zeros((1, dim), jnp.float32),
    }


def init_perceiver_io(key, cfg):
    depth = cfg["network_depth"]
    keys = jax.random.split(key, 6 + 2 * max(depth, 1))
    params = {
        "latents": jax.random.normal(
            keys[0], (cfg["num_latents"], cfg["latent_dim"]), jnp.float32),
        "cross_attn": _attn_params(keys[1], cfg["latent_dim"], cfg["input_dim"],
                                   cfg["num_cross_att_heads"], cfg["cross_head_dim"],
                                   norm_context=True, fuse_qkv=False),
        "cross_ff": _ff_params(keys[2], cfg["latent_dim"]),
        "dec_attn": _attn_params(keys[3], cfg["queries_dim"], cfg["latent_dim"],
                                 cfg["num_cross_att_heads"], cfg["cross_head_dim"],
                                 norm_context=True, fuse_qkv=False),
        "dec_ff": _ff_params(keys[4], cfg["queries_dim"]) if cfg["decoder_ff"] else None,
        "to_logits_w": jax.random.normal(
            keys[5], (cfg["queries_dim"], cfg["output_dim"]), jnp.float32) * 0.02,
        "to_logits_b": jnp.zeros((1, cfg["output_dim"]), jnp.float32),
    }
    if depth > 0:
        attn_list = [
            _attn_params(keys[6 + 2 * i], cfg["latent_dim"], cfg["latent_dim"],
                         cfg["num_self_att_heads"], cfg["latent_head_dim"],
                         norm_context=False, fuse_qkv=True)
            for i in range(depth)]
        ff_list = [_ff_params(keys[7 + 2 * i], cfg["latent_dim"]) for i in range(depth)]
        params["self_attn"] = {k: jnp.stack([a[k] for a in attn_list])
                               for k in ATTN_KEYS_SELF}
        params["self_ff"] = {k: jnp.stack([f[k] for f in ff_list]) for k in FF_KEYS}
    return params


# ---------------------------------------------------------------------------
if __name__ == "__main__":
    cfg = dict(
        input_dim=32,
        num_input_axes=1,
        output_dim=16,
        queries_dim=32,
        network_depth=2,
        num_latents=16,
        latent_dim=32,
        num_cross_att_heads=1,
        num_self_att_heads=2,
        cross_head_dim=16,
        latent_head_dim=16,
        fourier_encode_input=False,
        decoder_ff=True,
    )

    root = jax.random.PRNGKey(0)
    k_param, k_data, k_query = jax.random.split(root, 3)

    params = init_perceiver_io(k_param, cfg)
    # batch=4 -> auto batch_block=2, grid=(2,): exercises batch folding while
    # keeping two parallel grid steps for v7x's two TensorCores.
    data = jax.random.normal(k_data, (4, 8, cfg["input_dim"]), jnp.float32)        # (b, seq, d)
    queries = jax.random.normal(k_query, (4, 8, cfg["queries_dim"]), jnp.float32)  # (b, nq, qd)

    fwd = jax.jit(lambda p, d, q: perceiver_io_forward(p, d, q, cfg))
    out = jax.block_until_ready(fwd(params, data, queries))
    assert out.shape == (4, 8, cfg["output_dim"]), out.shape
    assert bool(jnp.all(jnp.isfinite(out)))
    print("KERNEL_OK")
</pallas_src>

<mosaic_0001>
module attributes {stable_mosaic.version = 11 : i64} {
  func.func @_perceiver_kernel(%arg0: i32, %arg1: memref<2x8x32xf32, #tpu.memory_space<vmem>>, %arg2: memref<2x8x32xf32, #tpu.memory_space<vmem>>, %arg3: memref<16x32xf32, #tpu.memory_space<vmem>>, %arg4: memref<32x16xbf16, #tpu.memory_space<vmem>>, %arg5: memref<32x32xbf16, #tpu.memory_space<vmem>>, %arg6: memref<16x32xbf16, #tpu.memory_space<vmem>>, %arg7: memref<1x32xf32, #tpu.memory_space<vmem>>, %arg8: memref<1x32xf32, #tpu.memory_space<vmem>>, %arg9: memref<1x32xf32, #tpu.memory_space<vmem>>, %arg10: memref<1x32xf32, #tpu.memory_space<vmem>>, %arg11: memref<1x32xf32, #tpu.memory_space<vmem>>, %arg12: memref<2x32x128xbf16, #tpu.memory_space<vmem>>, %arg13: memref<2x1x128xf32, #tpu.memory_space<vmem>>, %arg14: memref<128x32xbf16, #tpu.memory_space<vmem>>, %arg15: memref<1x32xf32, #tpu.memory_space<vmem>>, %arg16: memref<1x32xf32, #tpu.memory_space<vmem>>, %arg17: memref<1x32xf32, #tpu.memory_space<vmem>>, %arg18: memref<2x32x96xbf16, #tpu.memory_space<vmem>>, %arg19: memref<2x32x32xbf16, #tpu.memory_space<vmem>>, %arg20: memref<2x1x32xf32, #tpu.memory_space<vmem>>, %arg21: memref<2x1x32xf32, #tpu.memory_space<vmem>>, %arg22: memref<2x1x32xf32, #tpu.memory_space<vmem>>, %arg23: memref<2x2x32x128xbf16, #tpu.memory_space<vmem>>, %arg24: memref<2x2x1x128xf32, #tpu.memory_space<vmem>>, %arg25: memref<2x128x32xbf16, #tpu.memory_space<vmem>>, %arg26: memref<2x1x32xf32, #tpu.memory_space<vmem>>, %arg27: memref<2x1x32xf32, #tpu.memory_space<vmem>>, %arg28: memref<2x1x32xf32, #tpu.memory_space<vmem>>, %arg29: memref<32x16xbf16, #tpu.memory_space<vmem>>, %arg30: memref<32x32xbf16, #tpu.memory_space<vmem>>, %arg31: memref<16x32xbf16, #tpu.memory_space<vmem>>, %arg32: memref<1x32xf32, #tpu.memory_space<vmem>>, %arg33: memref<1x32xf32, #tpu.memory_space<vmem>>, %arg34: memref<1x32xf32, #tpu.memory_space<vmem>>, %arg35: memref<1x32xf32, #tpu.memory_space<vmem>>, %arg36: memref<1x32xf32, #tpu.memory_space<vmem>>, %arg37: memref<2x32x128xbf16, #tpu.memory_space<vmem>>, %arg38: memref<2x1x128xf32, #tpu.memory_space<vmem>>, %arg39: memref<128x32xbf16, #tpu.memory_space<vmem>>, %arg40: memref<1x32xf32, #tpu.memory_space<vmem>>, %arg41: memref<1x32xf32, #tpu.memory_space<vmem>>, %arg42: memref<1x32xf32, #tpu.memory_space<vmem>>, %arg43: memref<32x16xbf16, #tpu.memory_space<vmem>>, %arg44: memref<1x16xf32, #tpu.memory_space<vmem>>, %arg45: memref<16x16xf32, #tpu.memory_space<vmem>>) attributes {dimension_semantics = [#tpu.dimension_semantics<parallel>], iteration_bounds = array<i64: 2>, scalar_prefetch = 0 : i64, scratch_operands = 0 : i64, tpu.core_type = #tpu.core_type<tc>, window_params = [{transform_indices = @transform_0, window_bounds = array<i64: 2, 8, 32>}, {transform_indices = @transform_1, window_bounds = array<i64: 2, 8, 32>}, {pipeline_mode = #tpu.pipeline_mode<synchronous>, transform_indices = @transform_2, window_bounds = array<i64: 16, 32>}, {pipeline_mode = #tpu.pipeline_mode<synchronous>, transform_indices = @transform_3, window_bounds = array<i64: 32, 16>}, {pipeline_mode = #tpu.pipeline_mode<synchronous>, transform_indices = @transform_4, window_bounds = array<i64: 32, 32>}, {pipeline_mode = #tpu.pipeline_mode<synchronous>, transform_indices = @transform_5, window_bounds = array<i64: 16, 32>}, {pipeline_mode = #tpu.pipeline_mode<synchronous>, transform_indices = @transform_6, window_bounds = array<i64: 1, 32>}, {pipeline_mode = #tpu.pipeline_mode<synchronous>, transform_indices = @transform_7, window_bounds = array<i64: 1, 32>}, {pipeline_mode = #tpu.pipeline_mode<synchronous>, transform_indices = @transform_8, window_bounds = array<i64: 1, 32>}, {pipeline_mode = #tpu.pipeline_mode<synchronous>, transform_indices = @transform_9, window_bounds = array<i64: 1, 32>}, {pipeline_mode = #tpu.pipeline_mode<synchronous>, transform_indices = @transform_10, window_bounds = array<i64: 1, 32>}, {pipeline_mode = #tpu.pipeline_mode<synchronous>, transform_indices = @transform_11, window_bounds = array<i64: 2, 32, 128>}, {pipeline_mode = #tpu.pipeline_mode<synchronous>, transform_indices = @transform_12, window_bounds = array<i64: 2, 1, 128>}, {pipeline_mode = #tpu.pipeline_mode<synchronous>, transform_indices = @transform_13, window_bounds = array<i64: 128, 32>}, {pipeline_mode = #tpu.pipeline_mode<synchronous>, transform_indices = @transform_14, window_bounds = array<i64: 1, 32>}, {pipeline_mode = #tpu.pipeline_mode<synchronous>, transform_indices = @transform_15, window_bounds = array<i64: 1, 32>}, {pipeline_mode = #tpu.pipeline_mode<synchronous>, transform_indices = @transform_16, window_bounds = array<i64: 1, 32>}, {pipeline_mode = #tpu.pipeline_mode<synchronous>, transform_indices = @transform_17, window_bounds = array<i64: 2, 32, 96>}, {pipeline_mode = #tpu.pipeline_mode<synchronous>, transform_indices = @transform_18, window_bounds = array<i64: 2, 32, 32>}, {pipeline_mode = #tpu.pipeline_mode<synchronous>, transform_indices = @transform_19, window_bounds = array<i64: 2, 1, 32>}, {pipeline_mode = #tpu.pipeline_mode<synchronous>, transform_indices = @transform_20, window_bounds = array<i64: 2, 1, 32>}, {pipeline_mode = #tpu.pipeline_mode<synchronous>, transform_indices = @transform_21, window_bounds = array<i64: 2, 1, 32>}, {pipeline_mode = #tpu.pipeline_mode<synchronous>, transform_indices = @transform_22, window_bounds = array<i64: 2, 2, 32, 128>}, {pipeline_mode = #tpu.pipeline_mode<synchronous>, transform_indices = @transform_23, window_bounds = array<i64: 2, 2, 1, 128>}, {pipeline_mode = #tpu.pipeline_mode<synchronous>, transform_indices = @transform_24, window_bounds = array<i64: 2, 128, 32>}, {pipeline_mode = #tpu.pipeline_mode<synchronous>, transform_indices = @transform_25, window_bounds = array<i64: 2, 1, 32>}, {pipeline_mode = #tpu.pipeline_mode<synchronous>, transform_indices = @transform_26, window_bounds = array<i64: 2, 1, 32>}, {pipeline_mode = #tpu.pipeline_mode<synchronous>, transform_indices = @transform_27, window_bounds = array<i64: 2, 1, 32>}, {pipeline_mode = #tpu.pipeline_mode<synchronous>, transform_indices = @transform_28, window_bounds = array<i64: 32, 16>}, {pipeline_mode = #tpu.pipeline_mode<synchronous>, transform_indices = @transform_29, window_bounds = array<i64: 32, 32>}, {pipeline_mode = #tpu.pipeline_mode<synchronous>, transform_indices = @transform_30, window_bounds = array<i64: 16, 32>}, {pipeline_mode = #tpu.pipeline_mode<synchronous>, transform_indices = @transform_31, window_bounds = array<i64: 1, 32>}, {pipeline_mode = #tpu.pipeline_mode<synchronous>, transform_indices = @transform_32, window_bounds = array<i64: 1, 32>}, {pipeline_mode = #tpu.pipeline_mode<synchronous>, transform_indices = @transform_33, window_bounds = array<i64: 1, 32>}, {pipeline_mode = #tpu.pipeline_mode<synchronous>, transform_indices = @transform_34, window_bounds = array<i64: 1, 32>}, {pipeline_mode = #tpu.pipeline_mode<synchronous>, transform_indices = @transform_35, window_bounds = array<i64: 1, 32>}, {pipeline_mode = #tpu.pipeline_mode<synchronous>, transform_indices = @transform_36, window_bounds = array<i64: 2, 32, 128>}, {pipeline_mode = #tpu.pipeline_mode<synchronous>, transform_indices = @transform_37, window_bounds = array<i64: 2, 1, 128>}, {pipeline_mode = #tpu.pipeline_mode<synchronous>, transform_indices = @transform_38, window_bounds = array<i64: 128, 32>}, {pipeline_mode = #tpu.pipeline_mode<synchronous>, transform_indices = @transform_39, window_bounds = array<i64: 1, 32>}, {pipeline_mode = #tpu.pipeline_mode<synchronous>, transform_indices = @transform_40, window_bounds = array<i64: 1, 32>}, {pipeline_mode = #tpu.pipeline_mode<synchronous>, transform_indices = @transform_41, window_bounds = array<i64: 1, 32>}, {pipeline_mode = #tpu.pipeline_mode<synchronous>, transform_indices = @transform_42, window_bounds = array<i64: 32, 16>}, {pipeline_mode = #tpu.pipeline_mode<synchronous>, transform_indices = @transform_43, window_bounds = array<i64: 1, 16>}, {transform_indices = @transform_44, window_bounds = array<i64: 16, 16>}]} {
    %c0 = arith.constant 0 : index
    %c0_0 = arith.constant 0 : index
    %c0_1 = arith.constant 0 : index
    %0 = vector.load %arg1[%c0, %c0_0, %c0_1] : memref<2x8x32xf32, #tpu.memory_space<vmem>>, vector<2x8x32xf32>
    %1 = vector.shape_cast %0 : vector<2x8x32xf32> to vector<16x32xf32>
    %c0_2 = arith.constant 0 : index
    %c0_3 = arith.constant 0 : index
    %c0_4 = arith.constant 0 : index
    %2 = vector.load %arg2[%c0_2, %c0_3, %c0_4] : memref<2x8x32xf32, #tpu.memory_space<vmem>>, vector<2x8x32xf32>
    %3 = vector.shape_cast %2 : vector<2x8x32xf32> to vector<16x32xf32>
    %c0_5 = arith.constant 0 : index
    %c0_6 = arith.constant 0 : index
    %4 = vector.load %arg3[%c0_5, %c0_6] : memref<16x32xf32, #tpu.memory_space<vmem>>, vector<16x32xf32>
    %5 = tpu.concatenate %4, %4 in 0 : vector<16x32xf32>, vector<16x32xf32> -> vector<32x32xf32>
    %c0_7 = arith.constant 0 : index
    %c0_8 = arith.constant 0 : index
    %6 = vector.load %arg4[%c0_7, %c0_8] : memref<32x16xbf16, #tpu.memory_space<vmem>>, vector<32x16xbf16>
    %c0_9 = arith.constant 0 : index
    %c0_10 = arith.constant 0 : index
    %7 = vector.load %arg5[%c0_9, %c0_10] : memref<32x32xbf16, #tpu.memory_space<vmem>>, vector<32x32xbf16>
    %c0_11 = arith.constant 0 : index
    %c0_12 = arith.constant 0 : index
    %8 = vector.load %arg6[%c0_11, %c0_12] : memref<16x32xbf16, #tpu.memory_space<vmem>>, vector<16x32xbf16>
    %c0_13 = arith.constant 0 : index
    %c0_14 = arith.constant 0 : index
    %9 = vector.load %arg7[%c0_13, %c0_14] : memref<1x32xf32, #tpu.memory_space<vmem>>, vector<1x32xf32>
    %c0_15 = arith.constant 0 : index
    %c0_16 = arith.constant 0 : index
    %10 = vector.load %arg8[%c0_15, %c0_16] : memref<1x32xf32, #tpu.memory_space<vmem>>, vector<1x32xf32>
    %c0_17 = arith.constant 0 : index
    %c0_18 = arith.constant 0 : index
    %11 = vector.load %arg9[%c0_17, %c0_18] : memref<1x32xf32, #tpu.memory_space<vmem>>, vector<1x32xf32>
    %c0_19 = arith.constant 0 : index
    %c0_20 = arith.constant 0 : index
    %12 = vector.load %arg10[%c0_19, %c0_20] : memref<1x32xf32, #tpu.memory_space<vmem>>, vector<1x32xf32>
    %c0_21 = arith.constant 0 : index
    %c0_22 = arith.constant 0 : index
    %13 = vector.load %arg11[%c0_21, %c0_22] : memref<1x32xf32, #tpu.memory_space<vmem>>, vector<1x32xf32>
    %cst = arith.constant dense<0.000000e+00> : vector<32xf32>
    %14 = vector.multi_reduction <add>, %5, %cst [1] : vector<32x32xf32> to vector<32xf32>
    %15 = vector.shape_cast %14 : vector<32xf32> to vector<32x1xf32>
    %cst_23 = arith.constant 3.200000e+01 : f32
    %16 = vector.broadcast %cst_23 : f32 to vector<32x1xf32>
    %17 = arith.divf %15, %16 : vector<32x1xf32>
    %18 = vector.broadcast %17 : vector<32x1xf32> to vector<32x32xf32>
    %19 = arith.subf %5, %18 : vector<32x32xf32>
    %20 = arith.mulf %19, %19 : vector<32x32xf32>
    %cst_24 = arith.constant dense<0.000000e+00> : vector<32xf32>
    %21 = vector.multi_reduction <add>, %20, %cst_24 [1] : vector<32x32xf32> to vector<32xf32>
    %22 = vector.shape_cast %21 : vector<32xf32> to vector<32x1xf32>
    %cst_25 = arith.constant 3.200000e+01 : f32
    %23 = vector.broadcast %cst_25 : f32 to vector<32x1xf32>
    %24 = arith.divf %22, %23 : vector<32x1xf32>
    %25 = vector.broadcast %17 : vector<32x1xf32> to vector<32x32xf32>
    %26 = arith.subf %5, %25 : vector<32x32xf32>
    %cst_26 = arith.constant 9.99999974E-6 : f32
    %27 = vector.broadcast %cst_26 : f32 to vector<32x1xf32>
    %28 = arith.addf %24, %27 : vector<32x1xf32>
    %29 = math.rsqrt %28 : vector<32x1xf32>
    %30 = vector.broadcast %29 : vector<32x1xf32> to vector<32x32xf32>
    %31 = arith.mulf %26, %30 : vector<32x32xf32>
    %32 = vector.broadcast %10 : vector<1x32xf32> to vector<32x32xf32>
    %33 = arith.mulf %31, %32 : vector<32x32xf32>
    %34 = vector.broadcast %11 : vector<1x32xf32> to vector<32x32xf32>
    %35 = arith.addf %33, %34 : vector<32x32xf32>
    %cst_27 = arith.constant dense<0.000000e+00> : vector<16xf32>
    %36 = vector.multi_reduction <add>, %1, %cst_27 [1] : vector<16x32xf32> to vector<16xf32>
    %37 = vector.shape_cast %36 : vector<16xf32> to vector<16x1xf32>
    %cst_28 = arith.constant 3.200000e+01 : f32
    %38 = vector.broadcast %cst_28 : f32 to vector<16x1xf32>
    %39 = arith.divf %37, %38 : vector<16x1xf32>
    %40 = vector.broadcast %39 : vector<16x1xf32> to vector<16x32xf32>
    %41 = arith.subf %1, %40 : vector<16x32xf32>
    %42 = arith.mulf %41, %41 : vector<16x32xf32>
    %cst_29 = arith.constant dense<0.000000e+00> : vector<16xf32>
    %43 = vector.multi_reduction <add>, %42, %cst_29 [1] : vector<16x32xf32> to vector<16xf32>
    %44 = vector.shape_cast %43 : vector<16xf32> to vector<16x1xf32>
    %cst_30 = arith.constant 3.200000e+01 : f32
    %45 = vector.broadcast %cst_30 : f32 to vector<16x1xf32>
    %46 = arith.divf %44, %45 : vector<16x1xf32>
    %47 = vector.broadcast %39 : vector<16x1xf32> to vector<16x32xf32>
    %48 = arith.subf %1, %47 : vector<16x32xf32>
    %cst_31 = arith.constant 9.99999974E-6 : f32
    %49 = vector.broadcast %cst_31 : f32 to vector<16x1xf32>
    %50 = arith.addf %46, %49 : vector<16x1xf32>
    %51 = math.rsqrt %50 : vector<16x1xf32>
    %52 = vector.broadcast %51 : vector<16x1xf32> to vector<16x32xf32>
    %53 = arith.mulf %48, %52 : vector<16x32xf32>
    %54 = vector.broadcast %12 : vector<1x32xf32> to vector<16x32xf32>
    %55 = arith.mulf %53, %54 : vector<16x32xf32>
    %56 = vector.broadcast %13 : vector<1x32xf32> to vector<16x32xf32>
    %57 = arith.addf %55, %56 : vector<16x32xf32>
    %58 = arith.truncf %35 : vector<32x32xf32> to vector<32x32xbf16>
    %cst_32 = arith.constant dense<0.000000e+00> : vector<32x16xf32>
    %59 = tpu.matmul %58, %6, %cst_32 {dimension_numbers = #tpu.dot_dimension_numbers<[1], [0], [0], [1], [0, 0, 1, 1], [], []>} : vector<32x32xbf16>, vector<32x16xbf16>, vector<32x16xf32> -> vector<32x16xf32>
    %60 = arith.truncf %57 : vector<16x32xf32> to vector<16x32xbf16>
    %cst_33 = arith.constant dense<0.000000e+00> : vector<16x32xf32>
    %61 = tpu.matmul %60, %7, %cst_33 {dimension_numbers = #tpu.dot_dimension_numbers<[1], [0], [0], [1], [0, 0, 1, 1], [], []>} : vector<16x32xbf16>, vector<32x32xbf16>, vector<16x32xf32> -> vector<16x32xf32>
    %62 = vector.extract_strided_slice %61 {offsets = [0, 0], sizes = [16, 16], strides = [1, 1]} : vector<16x32xf32> to vector<16x16xf32>
    %63 = vector.extract_strided_slice %61 {offsets = [0, 16], sizes = [16, 16], strides = [1, 1]} : vector<16x32xf32> to vector<16x16xf32>
    %64 = vector.extract_strided_slice %59 {offsets = [0, 0], sizes = [16, 16], strides = [1, 1]} : vector<32x16xf32> to vector<16x16xf32>
    %65 = vector.extract_strided_slice %62 {offsets = [0, 0], sizes = [8, 16], strides = [1, 1]} : vector<16x16xf32> to vector<8x16xf32>
    %66 = vector.extract_strided_slice %63 {offsets = [0, 0], sizes = [8, 16], strides = [1, 1]} : vector<16x16xf32> to vector<8x16xf32>
    %67 = arith.truncf %64 : vector<16x16xf32> to vector<16x16xbf16>
    %68 = arith.truncf %65 : vector<8x16xf32> to vector<8x16xbf16>
    %cst_34 = arith.constant dense<0.000000e+00> : vector<16x8xf32>
    %69 = tpu.matmul %67, %68, %cst_34 {dimension_numbers = #tpu.dot_dimension_numbers<[1], [1], [0], [0], [0, 0, 1, 0], [], []>} : vector<16x16xbf16>, vector<8x16xbf16>, vector<16x8xf32> -> vector<16x8xf32>
    %cst_35 = arith.constant 2.500000e-01 : f32
    %70 = vector.broadcast %cst_35 : f32 to vector<16x8xf32>
    %71 = arith.mulf %69, %70 : vector<16x8xf32>
    %cst_36 = arith.constant dense<0xFF800000> : vector<16xf32>
    %72 = vector.multi_reduction <maximumf>, %71, %cst_36 [1] : vector<16x8xf32> to vector<16xf32>
    %73 = vector.shape_cast %72 : vector<16xf32> to vector<16x1xf32>
    %74 = vector.broadcast %73 : vector<16x1xf32> to vector<16x8xf32>
    %75 = arith.subf %71, %74 : vector<16x8xf32>
    %76 = math.exp %75 : vector<16x8xf32>
    %cst_37 = arith.constant dense<0.000000e+00> : vector<16xf32>
    %77 = vector.multi_reduction <add>, %76, %cst_37 [1] : vector<16x8xf32> to vector<16xf32>
    %78 = vector.shape_cast %77 : vector<16xf32> to vector<16x1xf32>
    %79 = tpu.reciprocal %78 {approx = true} : vector<16x1xf32> -> vector<16x1xf32>
    %80 = vector.broadcast %79 : vector<16x1xf32> to vector<16x8xf32>
    %81 = arith.mulf %76, %80 : vector<16x8xf32>
    %82 = arith.truncf %81 : vector<16x8xf32> to vector<16x8xbf16>
    %83 = arith.truncf %66 : vector<8x16xf32> to vector<8x16xbf16>
    %cst_38 = arith.constant dense<0.000000e+00> : vector<16x16xf32>
    %84 = tpu.matmul %82, %83, %cst_38 {dimension_numbers = #tpu.dot_dimension_numbers<[1], [0], [0], [1], [0, 0, 1, 1], [], []>} : vector<16x8xbf16>, vector<8x16xbf16>, vector<16x16xf32> -> vector<16x16xf32>
    %85 = vector.extract_strided_slice %59 {offsets = [16, 0], sizes = [16, 16], strides = [1, 1]} : vector<32x16xf32> to vector<16x16xf32>
    %86 = vector.extract_strided_slice %62 {offsets = [8, 0], sizes = [8, 16], strides = [1, 1]} : vector<16x16xf32> to vector<8x16xf32>
    %87 = vector.extract_strided_slice %63 {offsets = [8, 0], sizes = [8, 16], strides = [1, 1]} : vector<16x16xf32> to vector<8x16xf32>
    %88 = arith.truncf %85 : vector<16x16xf32> to vector<16x16xbf16>
    %89 = arith.truncf %86 : vector<8x16xf32> to vector<8x16xbf16>
    %cst_39 = arith.constant dense<0.000000e+00> : vector<16x8xf32>
    %90 = tpu.matmul %88, %89, %cst_39 {dimension_numbers = #tpu.dot_dimension_numbers<[1], [1], [0], [0], [0, 0, 1, 0], [], []>} : vector<16x16xbf16>, vector<8x16xbf16>, vector<16x8xf32> -> vector<16x8xf32>
    %cst_40 = arith.constant 2.500000e-01 : f32
    %91 = vector.broadcast %cst_40 : f32 to vector<16x8xf32>
    %92 = arith.mulf %90, %91 : vector<16x8xf32>
    %cst_41 = arith.constant dense<0xFF800000> : vector<16xf32>
    %93 = vector.multi_reduction <maximumf>, %92, %cst_41 [1] : vector<16x8xf32> to vector<16xf32>
    %94 = vector.shape_cast %93 : vector<16xf32> to vector<16x1xf32>
    %95 = vector.broadcast %94 : vector<16x1xf32> to vector<16x8xf32>
    %96 = arith.subf %92, %95 : vector<16x8xf32>
    %97 = math.exp %96 : vector<16x8xf32>
    %cst_42 = arith.constant dense<0.000000e+00> : vector<16xf32>
    %98 = vector.multi_reduction <add>, %97, %cst_42 [1] : vector<16x8xf32> to vector<16xf32>
    %99 = vector.shape_cast %98 : vector<16xf32> to vector<16x1xf32>
    %100 = tpu.reciprocal %99 {approx = true} : vector<16x1xf32> -> vector<16x1xf32>
    %101 = vector.broadcast %100 : vector<16x1xf32> to vector<16x8xf32>
    %102 = arith.mulf %97, %101 : vector<16x8xf32>
    %103 = arith.truncf %102 : vector<16x8xf32> to vector<16x8xbf16>
    %104 = arith.truncf %87 : vector<8x16xf32> to vector<8x16xbf16>
    %cst_43 = arith.constant dense<0.000000e+00> : vector<16x16xf32>
    %105 = tpu.matmul %103, %104, %cst_43 {dimension_numbers = #tpu.dot_dimension_numbers<[1], [0], [0], [1], [0, 0, 1, 1], [], []>} : vector<16x8xbf16>, vector<8x16xbf16>, vector<16x16xf32> -> vector<16x16xf32>
    %106 = tpu.concatenate %84, %105 in 0 : vector<16x16xf32>, vector<16x16xf32> -> vector<32x16xf32>
    %107 = arith.truncf %106 : vector<32x16xf32> to vector<32x16xbf16>
    %cst_44 = arith.constant dense<0.000000e+00> : vector<32x32xf32>
    %108 = tpu.matmul %107, %8, %cst_44 {dimension_numbers = #tpu.dot_dimension_numbers<[1], [0], [0], [1], [0, 0, 1, 1], [], []>} : vector<32x16xbf16>, vector<16x32xbf16>, vector<32x32xf32> -> vector<32x32xf32>
    %109 = vector.broadcast %9 : vector<1x32xf32> to vector<32x32xf32>
    %110 = arith.addf %108, %109 : vector<32x32xf32>
    %111 = arith.addf %5, %110 : vector<32x32xf32>
    %c0_45 = arith.constant 0 : index
    %c0_46 = arith.constant 0 : index
    %c0_47 = arith.constant 0 : index
    %112 = vector.load %arg12[%c0_45, %c0_46, %c0_47] : memref<2x32x128xbf16, #tpu.memory_space<vmem>>, vector<2x32x128xbf16>
    %c0_48 = arith.constant 0 : index
    %c0_49 = arith.constant 0 : index
    %c0_50 = arith.constant 0 : index
    %113 = vector.load %arg13[%c0_48, %c0_49, %c0_50] : memref<2x1x128xf32, #tpu.memory_space<vmem>>, vector<2x1x128xf32>
    %c0_51 = arith.constant 0 : index
    %c0_52 = arith.constant 0 : index
    %114 = vector.load %arg14[%c0_51, %c0_52] : memref<128x32xbf16, #tpu.memory_space<vmem>>, vector<128x32xbf16>
    %c0_53 = arith.constant 0 : index
    %c0_54 = arith.constant 0 : index
    %115 = vector.load %arg15[%c0_53, %c0_54] : memref<1x32xf32, #tpu.memory_space<vmem>>, vector<1x32xf32>
    %c0_55 = arith.constant 0 : index
    %c0_56 = arith.constant 0 : index
    %116 = vector.load %arg16[%c0_55, %c0_56] : memref<1x32xf32, #tpu.memory_space<vmem>>, vector<1x32xf32>
    %c0_57 = arith.constant 0 : index
    %c0_58 = arith.constant 0 : index
    %117 = vector.load %arg17[%c0_57, %c0_58] : memref<1x32xf32, #tpu.memory_space<vmem>>, vector<1x32xf32>
    %cst_59 = arith.constant dense<0.000000e+00> : vector<32xf32>
    %118 = vector.multi_reduction <add>, %111, %cst_59 [1] : vector<32x32xf32> to vector<32xf32>
    %119 = vector.shape_cast %118 : vector<32xf32> to vector<32x1xf32>
    %cst_60 = arith.constant 3.200000e+01 : f32
    %120 = vector.broadcast %cst_60 : f32 to vector<32x1xf32>
    %121 = arith.divf %119, %120 : vector<32x1xf32>
    %122 = vector.broadcast %121 : vector<32x1xf32> to vector<32x32xf32>
    %123 = arith.subf %111, %122 : vector<32x32xf32>
    %124 = arith.mulf %123, %123 : vector<32x32xf32>
    %cst_61 = arith.constant dense<0.000000e+00> : vector<32xf32>
    %125 = vector.multi_reduction <add>, %124, %cst_61 [1] : vector<32x32xf32> to vector<32xf32>
    %126 = vector.shape_cast %125 : vector<32xf32> to vector<32x1xf32>
    %cst_62 = arith.constant 3.200000e+01 : f32
    %127 = vector.broadcast %cst_62 : f32 to vector<32x1xf32>
    %128 = arith.divf %126, %127 : vector<32x1xf32>
    %129 = vector.broadcast %121 : vector<32x1xf32> to vector<32x32xf32>
    %130 = arith.subf %111, %129 : vector<32x32xf32>
    %cst_63 = arith.constant 9.99999974E-6 : f32
    %131 = vector.broadcast %cst_63 : f32 to vector<32x1xf32>
    %132 = arith.addf %128, %131 : vector<32x1xf32>
    %133 = math.rsqrt %132 : vector<32x1xf32>
    %134 = vector.broadcast %133 : vector<32x1xf32> to vector<32x32xf32>
    %135 = arith.mulf %130, %134 : vector<32x32xf32>
    %136 = vector.broadcast %116 : vector<1x32xf32> to vector<32x32xf32>
    %137 = arith.mulf %135, %136 : vector<32x32xf32>
    %138 = vector.broadcast %117 : vector<1x32xf32> to vector<32x32xf32>
    %139 = arith.addf %137, %138 : vector<32x32xf32>
    %140 = vector.extract_strided_slice %112 {offsets = [0, 0, 0], sizes = [1, 32, 128], strides = [1, 1, 1]} : vector<2x32x128xbf16> to vector<1x32x128xbf16>
    %141 = vector.shape_cast %140 : vector<1x32x128xbf16> to vector<32x128xbf16>
    %142 = arith.truncf %139 : vector<32x32xf32> to vector<32x32xbf16>
    %cst_64 = arith.constant dense<0.000000e+00> : vector<32x128xf32>
    %143 = tpu.matmul %142, %141, %cst_64 {dimension_numbers = #tpu.dot_dimension_numbers<[1], [0], [0], [1], [0, 0, 1, 1], [], []>} : vector<32x32xbf16>, vector<32x128xbf16>, vector<32x128xf32> -> vector<32x128xf32>
    %144 = vector.extract_strided_slice %113 {offsets = [0, 0, 0], sizes = [1, 1, 128], strides = [1, 1, 1]} : vector<2x1x128xf32> to vector<1x1x128xf32>
    %145 = vector.shape_cast %144 : vector<1x1x128xf32> to vector<1x128xf32>
    %146 = vector.broadcast %145 : vector<1x128xf32> to vector<32x128xf32>
    %147 = arith.addf %143, %146 : vector<32x128xf32>
    %148 = vector.extract_strided_slice %112 {offsets = [1, 0, 0], sizes = [1, 32, 128], strides = [1, 1, 1]} : vector<2x32x128xbf16> to vector<1x32x128xbf16>
    %149 = vector.shape_cast %148 : vector<1x32x128xbf16> to vector<32x128xbf16>
    %150 = arith.truncf %139 : vector<32x32xf32> to vector<32x32xbf16>
    %cst_65 = arith.constant dense<0.000000e+00> : vector<32x128xf32>
    %151 = tpu.matmul %150, %149, %cst_65 {dimension_numbers = #tpu.dot_dimension_numbers<[1], [0], [0], [1], [0, 0, 1, 1], [], []>} : vector<32x32xbf16>, vector<32x128xbf16>, vector<32x128xf32> -> vector<32x128xf32>
    %152 = vector.extract_strided_slice %113 {offsets = [1, 0, 0], sizes = [1, 1, 128], strides = [1, 1, 1]} : vector<2x1x128xf32> to vector<1x1x128xf32>
    %153 = vector.shape_cast %152 : vector<1x1x128xf32> to vector<1x128xf32>
    %154 = vector.broadcast %153 : vector<1x128xf32> to vector<32x128xf32>
    %155 = arith.addf %151, %154 : vector<32x128xf32>
    %cst_66 = arith.constant 5.000000e-01 : f32
    %156 = vector.broadcast %cst_66 : f32 to vector<32x128xf32>
    %157 = arith.mulf %156, %155 : vector<32x128xf32>
    %cst_67 = arith.constant 0.707106769 : f32
    %158 = vector.broadcast %cst_67 : f32 to vector<32x128xf32>
    %159 = arith.mulf %155, %158 : vector<32x128xf32>
    %160 = math.erf %159 : vector<32x128xf32>
    %cst_68 = arith.constant 1.000000e+00 : f32
    %161 = vector.broadcast %cst_68 : f32 to vector<32x128xf32>
    %162 = arith.addf %161, %160 : vector<32x128xf32>
    %163 = arith.mulf %157, %162 : vector<32x128xf32>
    %164 = arith.mulf %147, %163 : vector<32x128xf32>
    %165 = arith.truncf %164 : vector<32x128xf32> to vector<32x128xbf16>
    %cst_69 = arith.constant dense<0.000000e+00> : vector<32x32xf32>
    %166 = tpu.matmul %165, %114, %cst_69 {dimension_numbers = #tpu.dot_dimension_numbers<[1], [0], [0], [1], [0, 0, 1, 1], [], []>} : vector<32x128xbf16>, vector<128x32xbf16>, vector<32x32xf32> -> vector<32x32xf32>
    %167 = vector.broadcast %115 : vector<1x32xf32> to vector<32x32xf32>
    %168 = arith.addf %166, %167 : vector<32x32xf32>
    %169 = arith.addf %111, %168 : vector<32x32xf32>
    %c0_70 = arith.constant 0 : index
    %c0_71 = arith.constant 0 : index
    %c0_72 = arith.constant 0 : index
    %170 = vector.load %arg18[%c0_70, %c0_71, %c0_72] : memref<2x32x96xbf16, #tpu.memory_space<vmem>>, vector<1x32x96xbf16>
    %171 = vector.shape_cast %170 : vector<1x32x96xbf16> to vector<32x96xbf16>
    %c0_73 = arith.constant 0 : index
    %c0_74 = arith.constant 0 : index
    %c0_75 = arith.constant 0 : index
    %172 = vector.load %arg19[%c0_73, %c0_74, %c0_75] : memref<2x32x32xbf16, #tpu.memory_space<vmem>>, vector<1x32x32xbf16>
    %173 = vector.shape_cast %172 : vector<1x32x32xbf16> to vector<32x32xbf16>
    %c0_76 = arith.constant 0 : index
    %c0_77 = arith.constant 0 : index
    %c0_78 = arith.constant 0 : index
    %174 = vector.load %arg20[%c0_76, %c0_77, %c0_78] : memref<2x1x32xf32, #tpu.memory_space<vmem>>, vector<1x1x32xf32>
    %175 = vector.shape_cast %174 : vector<1x1x32xf32> to vector<1x32xf32>
    %c0_79 = arith.constant 0 : index
    %c0_80 = arith.constant 0 : index
    %c0_81 = arith.constant 0 : index
    %176 = vector.load %arg21[%c0_79, %c0_80, %c0_81] : memref<2x1x32xf32, #tpu.memory_space<vmem>>, vector<1x1x32xf32>
    %177 = vector.shape_cast %176 : vector<1x1x32xf32> to vector<1x32xf32>
    %c0_82 = arith.constant 0 : index
    %c0_83 = arith.constant 0 : index
    %c0_84 = arith.constant 0 : index
    %178 = vector.load %arg22[%c0_82, %c0_83, %c0_84] : memref<2x1x32xf32, #tpu.memory_space<vmem>>, vector<1x1x32xf32>
    %179 = vector.shape_cast %178 : vector<1x1x32xf32> to vector<1x32xf32>
    %cst_85 = arith.constant dense<0.000000e+00> : vector<32xf32>
    %180 = vector.multi_reduction <add>, %169, %cst_85 [1] : vector<32x32xf32> to vector<32xf32>
    %181 = vector.shape_cast %180 : vector<32xf32> to vector<32x1xf32>
    %cst_86 = arith.constant 3.200000e+01 : f32
    %182 = vector.broadcast %cst_86 : f32 to vector<32x1xf32>
    %183 = arith.divf %181, %182 : vector<32x1xf32>
    %184 = vector.broadcast %183 : vector<32x1xf32> to vector<32x32xf32>
    %185 = arith.subf %169, %184 : vector<32x32xf32>
    %186 = arith.mulf %185, %185 : vector<32x32xf32>
    %cst_87 = arith.constant dense<0.000000e+00> : vector<32xf32>
    %187 = vector.multi_reduction <add>, %186, %cst_87 [1] : vector<32x32xf32> to vector<32xf32>
    %188 = vector.shape_cast %187 : vector<32xf32> to vector<32x1xf32>
    %cst_88 = arith.constant 3.200000e+01 : f32
    %189 = vector.broadcast %cst_88 : f32 to vector<32x1xf32>
    %190 = arith.divf %188, %189 : vector<32x1xf32>
    %191 = vector.broadcast %183 : vector<32x1xf32> to vector<32x32xf32>
    %192 = arith.subf %169, %191 : vector<32x32xf32>
    %cst_89 = arith.constant 9.99999974E-6 : f32
    %193 = vector.broadcast %cst_89 : f32 to vector<32x1xf32>
    %194 = arith.addf %190, %193 : vector<32x1xf32>
    %195 = math.rsqrt %194 : vector<32x1xf32>
    %196 = vector.broadcast %195 : vector<32x1xf32> to vector<32x32xf32>
    %197 = arith.mulf %192, %196 : vector<32x32xf32>
    %198 = vector.broadcast %177 : vector<1x32xf32> to vector<32x32xf32>
    %199 = arith.mulf %197, %198 : vector<32x32xf32>
    %200 = vector.broadcast %179 : vector<1x32xf32> to vector<32x32xf32>
    %201 = arith.addf %199, %200 : vector<32x32xf32>
    %202 = arith.truncf %201 : vector<32x32xf32> to vector<32x32xbf16>
    %cst_90 = arith.constant dense<0.000000e+00> : vector<32x96xf32>
    %203 = tpu.matmul %202, %171, %cst_90 {dimension_numbers = #tpu.dot_dimension_numbers<[1], [0], [0], [1], [0, 0, 1, 1], [], []>} : vector<32x32xbf16>, vector<32x96xbf16>, vector<32x96xf32> -> vector<32x96xf32>
    %204 = vector.extract_strided_slice %203 {offsets = [0, 0], sizes = [32, 32], strides = [1, 1]} : vector<32x96xf32> to vector<32x32xf32>
    %205 = vector.extract_strided_slice %203 {offsets = [0, 32], sizes = [32, 32], strides = [1, 1]} : vector<32x96xf32> to vector<32x32xf32>
    %206 = vector.extract_strided_slice %203 {offsets = [0, 64], sizes = [32, 32], strides = [1, 1]} : vector<32x96xf32> to vector<32x32xf32>
    %207 = vector.extract_strided_slice %204 {offsets = [0, 0], sizes = [16, 32], strides = [1, 1]} : vector<32x32xf32> to vector<16x32xf32>
    %208 = vector.extract_strided_slice %205 {offsets = [0, 0], sizes = [16, 32], strides = [1, 1]} : vector<32x32xf32> to vector<16x32xf32>
    %209 = vector.extract_strided_slice %206 {offsets = [0, 0], sizes = [16, 32], strides = [1, 1]} : vector<32x32xf32> to vector<16x32xf32>
    %210 = vector.extract_strided_slice %207 {offsets = [0, 0], sizes = [16, 16], strides = [1, 1]} : vector<16x32xf32> to vector<16x16xf32>
    %211 = vector.extract_strided_slice %208 {offsets = [0, 0], sizes = [16, 16], strides = [1, 1]} : vector<16x32xf32> to vector<16x16xf32>
    %212 = vector.extract_strided_slice %209 {offsets = [0, 0], sizes = [16, 16], strides = [1, 1]} : vector<16x32xf32> to vector<16x16xf32>
    %213 = arith.truncf %210 : vector<16x16xf32> to vector<16x16xbf16>
    %214 = arith.truncf %211 : vector<16x16xf32> to vector<16x16xbf16>
    %cst_91 = arith.constant dense<0.000000e+00> : vector<16x16xf32>
    %215 = tpu.matmul %213, %214, %cst_91 {dimension_numbers = #tpu.dot_dimension_numbers<[1], [1], [0], [0], [0, 0, 1, 0], [], []>} : vector<16x16xbf16>, vector<16x16xbf16>, vector<16x16xf32> -> vector<16x16xf32>
    %cst_92 = arith.constant 2.500000e-01 : f32
    %216 = vector.broadcast %cst_92 : f32 to vector<16x16xf32>
    %217 = arith.mulf %215, %216 : vector<16x16xf32>
    %cst_93 = arith.constant dense<0xFF800000> : vector<16xf32>
    %218 = vector.multi_reduction <maximumf>, %217, %cst_93 [1] : vector<16x16xf32> to vector<16xf32>
    %219 = vector.shape_cast %218 : vector<16xf32> to vector<16x1xf32>
    %220 = vector.broadcast %219 : vector<16x1xf32> to vector<16x16xf32>
    %221 = arith.subf %217, %220 : vector<16x16xf32>
    %222 = math.exp %221 : vector<16x16xf32>
    %cst_94 = arith.constant dense<0.000000e+00> : vector<16xf32>
    %223 = vector.multi_reduction <add>, %222, %cst_94 [1] : vector<16x16xf32> to vector<16xf32>
    %224 = vector.shape_cast %223 : vector<16xf32> to vector<16x1xf32>
    %225 = tpu.reciprocal %224 {approx = true} : vector<16x1xf32> -> vector<16x1xf32>
    %226 = vector.broadcast %225 : vector<16x1xf32> to vector<16x16xf32>
    %227 = arith.mulf %222, %226 : vector<16x16xf32>
    %228 = arith.truncf %227 : vector<16x16xf32> to vector<16x16xbf16>
    %229 = arith.truncf %212 : vector<16x16xf32> to vector<16x16xbf16>
    %cst_95 = arith.constant dense<0.000000e+00> : vector<16x16xf32>
    %230 = tpu.matmul %228, %229, %cst_95 {dimension_numbers = #tpu.dot_dimension_numbers<[1], [0], [0], [1], [0, 0, 1, 1], [], []>} : vector<16x16xbf16>, vector<16x16xbf16>, vector<16x16xf32> -> vector<16x16xf32>
    %231 = vector.extract_strided_slice %207 {offsets = [0, 16], sizes = [16, 16], strides = [1, 1]} : vector<16x32xf32> to vector<16x16xf32>
    %232 = vector.extract_strided_slice %208 {offsets = [0, 16], sizes = [16, 16], strides = [1, 1]} : vector<16x32xf32> to vector<16x16xf32>
    %233 = vector.extract_strided_slice %209 {offsets = [0, 16], sizes = [16, 16], strides = [1, 1]} : vector<16x32xf32> to vector<16x16xf32>
    %234 = arith.truncf %231 : vector<16x16xf32> to vector<16x16xbf16>
    %235 = arith.truncf %232 : vector<16x16xf32> to vector<16x16xbf16>
    %cst_96 = arith.constant dense<0.000000e+00> : vector<16x16xf32>
    %236 = tpu.matmul %234, %235, %cst_96 {dimension_numbers = #tpu.dot_dimension_numbers<[1], [1], [0], [0], [0, 0, 1, 0], [], []>} : vector<16x16xbf16>, vector<16x16xbf16>, vector<16x16xf32> -> vector<16x16xf32>
    %cst_97 = arith.constant 2.500000e-01 : f32
    %237 = vector.broadcast %cst_97 : f32 to vector<16x16xf32>
    %238 = arith.mulf %236, %237 : vector<16x16xf32>
    %cst_98 = arith.constant dense<0xFF800000> : vector<16xf32>
    %239 = vector.multi_reduction <maximumf>, %238, %cst_98 [1] : vector<16x16xf32> to vector<16xf32>
    %240 = vector.shape_cast %239 : vector<16xf32> to vector<16x1xf32>
    %241 = vector.broadcast %240 : vector<16x1xf32> to vector<16x16xf32>
    %242 = arith.subf %238, %241 : vector<16x16xf32>
    %243 = math.exp %242 : vector<16x16xf32>
    %cst_99 = arith.constant dense<0.000000e+00> : vector<16xf32>
    %244 = vector.multi_reduction <add>, %243, %cst_99 [1] : vector<16x16xf32> to vector<16xf32>
    %245 = vector.shape_cast %244 : vector<16xf32> to vector<16x1xf32>
    %246 = tpu.reciprocal %245 {approx = true} : vector<16x1xf32> -> vector<16x1xf32>
    %247 = vector.broadcast %246 : vector<16x1xf32> to vector<16x16xf32>
    %248 = arith.mulf %243, %247 : vector<16x16xf32>
    %249 = arith.truncf %248 : vector<16x16xf32> to vector<16x16xbf16>
    %250 = arith.truncf %233 : vector<16x16xf32> to vector<16x16xbf16>
    %cst_100 = arith.constant dense<0.000000e+00> : vector<16x16xf32>
    %251 = tpu.matmul %249, %250, %cst_100 {dimension_numbers = #tpu.dot_dimension_numbers<[1], [0], [0], [1], [0, 0, 1, 1], [], []>} : vector<16x16xbf16>, vector<16x16xbf16>, vector<16x16xf32> -> vector<16x16xf32>
    %252 = tpu.concatenate %230, %251 in 1 : vector<16x16xf32>, vector<16x16xf32> -> vector<16x32xf32>
    %253 = vector.extract_strided_slice %204 {offsets = [16, 0], sizes = [16, 32], strides = [1, 1]} : vector<32x32xf32> to vector<16x32xf32>
    %254 = vector.extract_strided_slice %205 {offsets = [16, 0], sizes = [16, 32], strides = [1, 1]} : vector<32x32xf32> to vector<16x32xf32>
    %255 = vector.extract_strided_slice %206 {offsets = [16, 0], sizes = [16, 32], strides = [1, 1]} : vector<32x32xf32> to vector<16x32xf32>
    %256 = vector.extract_strided_slice %253 {offsets = [0, 0], sizes = [16, 16], strides = [1, 1]} : vector<16x32xf32> to vector<16x16xf32>
    %257 = vector.extract_strided_slice %254 {offsets = [0, 0], sizes = [16, 16], strides = [1, 1]} : vector<16x32xf32> to vector<16x16xf32>
    %258 = vector.extract_strided_slice %255 {offsets = [0, 0], sizes = [16, 16], strides = [1, 1]} : vector<16x32xf32> to vector<16x16xf32>
    %259 = arith.truncf %256 : vector<16x16xf32> to vector<16x16xbf16>
    %260 = arith.truncf %257 : vector<16x16xf32> to vector<16x16xbf16>
    %cst_101 = arith.constant dense<0.000000e+00> : vector<16x16xf32>
    %261 = tpu.matmul %259, %260, %cst_101 {dimension_numbers = #tpu.dot_dimension_numbers<[1], [1], [0], [0], [0, 0, 1, 0], [], []>} : vector<16x16xbf16>, vector<16x16xbf16>, vector<16x16xf32> -> vector<16x16xf32>
    %cst_102 = arith.constant 2.500000e-01 : f32
    %262 = vector.broadcast %cst_102 : f32 to vector<16x16xf32>
    %263 = arith.mulf %261, %262 : vector<16x16xf32>
    %cst_103 = arith.constant dense<0xFF800000> : vector<16xf32>
    %264 = vector.multi_reduction <maximumf>, %263, %cst_103 [1] : vector<16x16xf32> to vector<16xf32>
    %265 = vector.shape_cast %264 : vector<16xf32> to vector<16x1xf32>
    %266 = vector.broadcast %265 : vector<16x1xf32> to vector<16x16xf32>
    %267 = arith.subf %263, %266 : vector<16x16xf32>
    %268 = math.exp %267 : vector<16x16xf32>
    %cst_104 = arith.constant dense<0.000000e+00> : vector<16xf32>
    %269 = vector.multi_reduction <add>, %268, %cst_104 [1] : vector<16x16xf32> to vector<16xf32>
    %270 = vector.shape_cast %269 : vector<16xf32> to vector<16x1xf32>
    %271 = tpu.reciprocal %270 {approx = true} : vector<16x1xf32> -> vector<16x1xf32>
    %272 = vector.broadcast %271 : vector<16x1xf32> to vector<16x16xf32>
    %273 = arith.mulf %268, %272 : vector<16x16xf32>
    %274 = arith.truncf %273 : vector<16x16xf32> to vector<16x16xbf16>
    %275 = arith.truncf %258 : vector<16x16xf32> to vector<16x16xbf16>
    %cst_105 = arith.constant dense<0.000000e+00> : vector<16x16xf32>
    %276 = tpu.matmul %274, %275, %cst_105 {dimension_numbers = #tpu.dot_dimension_numbers<[1], [0], [0], [1], [0, 0, 1, 1], [], []>} : vector<16x16xbf16>, vector<16x16xbf16>, vector<16x16xf32> -> vector<16x16xf32>
    %277 = vector.extract_strided_slice %253 {offsets = [0, 16], sizes = [16, 16], strides = [1, 1]} : vector<16x32xf32> to vector<16x16xf32>
    %278 = vector.extract_strided_slice %254 {offsets = [0, 16], sizes = [16, 16], strides = [1, 1]} : vector<16x32xf32> to vector<16x16xf32>
    %279 = vector.extract_strided_slice %255 {offsets = [0, 16], sizes = [16, 16], strides = [1, 1]} : vector<16x32xf32> to vector<16x16xf32>
    %280 = arith.truncf %277 : vector<16x16xf32> to vector<16x16xbf16>
    %281 = arith.truncf %278 : vector<16x16xf32> to vector<16x16xbf16>
    %cst_106 = arith.constant dense<0.000000e+00> : vector<16x16xf32>
    %282 = tpu.matmul %280, %281, %cst_106 {dimension_numbers = #tpu.dot_dimension_numbers<[1], [1], [0], [0], [0, 0, 1, 0], [], []>} : vector<16x16xbf16>, vector<16x16xbf16>, vector<16x16xf32> -> vector<16x16xf32>
    %cst_107 = arith.constant 2.500000e-01 : f32
    %283 = vector.broadcast %cst_107 : f32 to vector<16x16xf32>
    %284 = arith.mulf %282, %283 : vector<16x16xf32>
    %cst_108 = arith.constant dense<0xFF800000> : vector<16xf32>
    %285 = vector.multi_reduction <maximumf>, %284, %cst_108 [1] : vector<16x16xf32> to vector<16xf32>
    %286 = vector.shape_cast %285 : vector<16xf32> to vector<16x1xf32>
    %287 = vector.broadcast %286 : vector<16x1xf32> to vector<16x16xf32>
    %288 = arith.subf %284, %287 : vector<16x16xf32>
    %289 = math.exp %288 : vector<16x16xf32>
    %cst_109 = arith.constant dense<0.000000e+00> : vector<16xf32>
    %290 = vector.multi_reduction <add>, %289, %cst_109 [1] : vector<16x16xf32> to vector<16xf32>
    %291 = vector.shape_cast %290 : vector<16xf32> to vector<16x1xf32>
    %292 = tpu.reciprocal %291 {approx = true} : vector<16x1xf32> -> vector<16x1xf32>
    %293 = vector.broadcast %292 : vector<16x1xf32> to vector<16x16xf32>
    %294 = arith.mulf %289, %293 : vector<16x16xf32>
    %295 = arith.truncf %294 : vector<16x16xf32> to vector<16x16xbf16>
    %296 = arith.truncf %279 : vector<16x16xf32> to vector<16x16xbf16>
    %cst_110 = arith.constant dense<0.000000e+00> : vector<16x16xf32>
    %297 = tpu.matmul %295, %296, %cst_110 {dimension_numbers = #tpu.dot_dimension_numbers<[1], [0], [0], [1], [0, 0, 1, 1], [], []>} : vector<16x16xbf16>, vector<16x16xbf16>, vector<16x16xf32> -> vector<16x16xf32>
    %298 = tpu.concatenate %276, %297 in 1 : vector<16x16xf32>, vector<16x16xf32> -> vector<16x32xf32>
    %299 = tpu.concatenate %252, %298 in 0 : vector<16x32xf32>, vector<16x32xf32> -> vector<32x32xf32>
    %300 = arith.truncf %299 : vector<32x32xf32> to vector<32x32xbf16>
    %cst_111 = arith.constant dense<0.000000e+00> : vector<32x32xf32>
    %301 = tpu.matmul %300, %173, %cst_111 {dimension_numbers = #tpu.dot_dimension_numbers<[1], [0], [0], [1], [0, 0, 1, 1], [], []>} : vector<32x32xbf16>, vector<32x32xbf16>, vector<32x32xf32> -> vector<32x32xf32>
    %302 = vector.broadcast %175 : vector<1x32xf32> to vector<32x32xf32>
    %303 = arith.addf %301, %302 : vector<32x32xf32>
    %304 = arith.addf %169, %303 : vector<32x32xf32>
    %c0_112 = arith.constant 0 : index
    %c0_113 = arith.constant 0 : index
    %c0_114 = arith.constant 0 : index
    %c0_115 = arith.constant 0 : index
    %305 = vector.load %arg23[%c0_112, %c0_113, %c0_114, %c0_115] : memref<2x2x32x128xbf16, #tpu.memory_space<vmem>>, vector<1x2x32x128xbf16>
    %306 = vector.shape_cast %305 : vector<1x2x32x128xbf16> to vector<2x32x128xbf16>
    %c0_116 = arith.constant 0 : index
    %c0_117 = arith.constant 0 : index
    %c0_118 = arith.constant 0 : index
    %c0_119 = arith.constant 0 : index
    %307 = vector.load %arg24[%c0_116, %c0_117, %c0_118, %c0_119] : memref<2x2x1x128xf32, #tpu.memory_space<vmem>>, vector<1x2x1x128xf32>
    %308 = vector.shape_cast %307 : vector<1x2x1x128xf32> to vector<2x1x128xf32>
    %c0_120 = arith.constant 0 : index
    %c0_121 = arith.constant 0 : index
    %c0_122 = arith.constant 0 : index
    %309 = vector.load %arg25[%c0_120, %c0_121, %c0_122] : memref<2x128x32xbf16, #tpu.memory_space<vmem>>, vector<1x128x32xbf16>
    %310 = vector.shape_cast %309 : vector<1x128x32xbf16> to vector<128x32xbf16>
    %c0_123 = arith.constant 0 : index
    %c0_124 = arith.constant 0 : index
    %c0_125 = arith.constant 0 : index
    %311 = vector.load %arg26[%c0_123, %c0_124, %c0_125] : memref<2x1x32xf32, #tpu.memory_space<vmem>>, vector<1x1x32xf32>
    %312 = vector.shape_cast %311 : vector<1x1x32xf32> to vector<1x32xf32>
    %c0_126 = arith.constant 0 : index
    %c0_127 = arith.constant 0 : index
    %c0_128 = arith.constant 0 : index
    %313 = vector.load %arg27[%c0_126, %c0_127, %c0_128] : memref<2x1x32xf32, #tpu.memory_space<vmem>>, vector<1x1x32xf32>
    %314 = vector.shape_cast %313 : vector<1x1x32xf32> to vector<1x32xf32>
    %c0_129 = arith.constant 0 : index
    %c0_130 = arith.constant 0 : index
    %c0_131 = arith.constant 0 : index
    %315 = vector.load %arg28[%c0_129, %c0_130, %c0_131] : memref<2x1x32xf32, #tpu.memory_space<vmem>>, vector<1x1x32xf32>
    %316 = vector.shape_cast %315 : vector<1x1x32xf32> to vector<1x32xf32>
    %cst_132 = arith.constant dense<0.000000e+00> : vector<32xf32>
    %317 = vector.multi_reduction <add>, %304, %cst_132 [1] : vector<32x32xf32> to vector<32xf32>
    %318 = vector.shape_cast %317 : vector<32xf32> to vector<32x1xf32>
    %cst_133 = arith.constant 3.200000e+01 : f32
    %319 = vector.broadcast %cst_133 : f32 to vector<32x1xf32>
    %320 = arith.divf %318, %319 : vector<32x1xf32>
    %321 = vector.broadcast %320 : vector<32x1xf32> to vector<32x32xf32>
    %322 = arith.subf %304, %321 : vector<32x32xf32>
    %323 = arith.mulf %322, %322 : vector<32x32xf32>
    %cst_134 = arith.constant dense<0.000000e+00> : vector<32xf32>
    %324 = vector.multi_reduction <add>, %323, %cst_134 [1] : vector<32x32xf32> to vector<32xf32>
    %325 = vector.shape_cast %324 : vector<32xf32> to vector<32x1xf32>
    %cst_135 = arith.constant 3.200000e+01 : f32
    %326 = vector.broadcast %cst_135 : f32 to vector<32x1xf32>
    %327 = arith.divf %325, %326 : vector<32x1xf32>
    %328 = vector.broadcast %320 : vector<32x1xf32> to vector<32x32xf32>
    %329 = arith.subf %304, %328 : vector<32x32xf32>
    %cst_136 = arith.constant 9.99999974E-6 : f32
    %330 = vector.broadcast %cst_136 : f32 to vector<32x1xf32>
    %331 = arith.addf %327, %330 : vector<32x1xf32>
    %332 = math.rsqrt %331 : vector<32x1xf32>
    %333 = vector.broadcast %332 : vector<32x1xf32> to vector<32x32xf32>
    %334 = arith.mulf %329, %333 : vector<32x32xf32>
    %335 = vector.broadcast %314 : vector<1x32xf32> to vector<32x32xf32>
    %336 = arith.mulf %334, %335 : vector<32x32xf32>
    %337 = vector.broadcast %316 : vector<1x32xf32> to vector<32x32xf32>
    %338 = arith.addf %336, %337 : vector<32x32xf32>
    %339 = vector.extract_strided_slice %306 {offsets = [0, 0, 0], sizes = [1, 32, 128], strides = [1, 1, 1]} : vector<2x32x128xbf16> to vector<1x32x128xbf16>
    %340 = vector.shape_cast %339 : vector<1x32x128xbf16> to vector<32x128xbf16>
    %341 = arith.truncf %338 : vector<32x32xf32> to vector<32x32xbf16>
    %cst_137 = arith.constant dense<0.000000e+00> : vector<32x128xf32>
    %342 = tpu.matmul %341, %340, %cst_137 {dimension_numbers = #tpu.dot_dimension_numbers<[1], [0], [0], [1], [0, 0, 1, 1], [], []>} : vector<32x32xbf16>, vector<32x128xbf16>, vector<32x128xf32> -> vector<32x128xf32>
    %343 = vector.extract_strided_slice %308 {offsets = [0, 0, 0], sizes = [1, 1, 128], strides = [1, 1, 1]} : vector<2x1x128xf32> to vector<1x1x128xf32>
    %344 = vector.shape_cast %343 : vector<1x1x128xf32> to vector<1x128xf32>
    %345 = vector.broadcast %344 : vector<1x128xf32> to vector<32x128xf32>
    %346 = arith.addf %342, %345 : vector<32x128xf32>
    %347 = vector.extract_strided_slice %306 {offsets = [1, 0, 0], sizes = [1, 32, 128], strides = [1, 1, 1]} : vector<2x32x128xbf16> to vector<1x32x128xbf16>
    %348 = vector.shape_cast %347 : vector<1x32x128xbf16> to vector<32x128xbf16>
    %349 = arith.truncf %338 : vector<32x32xf32> to vector<32x32xbf16>
    %cst_138 = arith.constant dense<0.000000e+00> : vector<32x128xf32>
    %350 = tpu.matmul %349, %348, %cst_138 {dimension_numbers = #tpu.dot_dimension_numbers<[1], [0], [0], [1], [0, 0, 1, 1], [], []>} : vector<32x32xbf16>, vector<32x128xbf16>, vector<32x128xf32> -> vector<32x128xf32>
    %351 = vector.extract_strided_slice %308 {offsets = [1, 0, 0], sizes = [1, 1, 128], strides = [1, 1, 1]} : vector<2x1x128xf32> to vector<1x1x128xf32>
    %352 = vector.shape_cast %351 : vector<1x1x128xf32> to vector<1x128xf32>
    %353 = vector.broadcast %352 : vector<1x128xf32> to vector<32x128xf32>
    %354 = arith.addf %350, %353 : vector<32x128xf32>
    %cst_139 = arith.constant 5.000000e-01 : f32
    %355 = vector.broadcast %cst_139 : f32 to vector<32x128xf32>
    %356 = arith.mulf %355, %354 : vector<32x128xf32>
    %cst_140 = arith.constant 0.707106769 : f32
    %357 = vector.broadcast %cst_140 : f32 to vector<32x128xf32>
    %358 = arith.mulf %354, %357 : vector<32x128xf32>
    %359 = math.erf %358 : vector<32x128xf32>
    %cst_141 = arith.constant 1.000000e+00 : f32
    %360 = vector.broadcast %cst_141 : f32 to vector<32x128xf32>
    %361 = arith.addf %360, %359 : vector<32x128xf32>
    %362 = arith.mulf %356, %361 : vector<32x128xf32>
    %363 = arith.mulf %346, %362 : vector<32x128xf32>
    %364 = arith.truncf %363 : vector<32x128xf32> to vector<32x128xbf16>
    %cst_142 = arith.constant dense<0.000000e+00> : vector<32x32xf32>
    %365 = tpu.matmul %364, %310, %cst_142 {dimension_numbers = #tpu.dot_dimension_numbers<[1], [0], [0], [1], [0, 0, 1, 1], [], []>} : vector<32x128xbf16>, vector<128x32xbf16>, vector<32x32xf32> -> vector<32x32xf32>
    %366 = vector.broadcast %312 : vector<1x32xf32> to vector<32x32xf32>
    %367 = arith.addf %365, %366 : vector<32x32xf32>
    %368 = arith.addf %304, %367 : vector<32x32xf32>
    %c1 = arith.constant 1 : index
    %c0_143 = arith.constant 0 : index
    %c0_144 = arith.constant 0 : index
    %369 = vector.load %arg18[%c1, %c0_143, %c0_144] : memref<2x32x96xbf16, #tpu.memory_space<vmem>>, vector<1x32x96xbf16>
    %370 = vector.shape_cast %369 : vector<1x32x96xbf16> to vector<32x96xbf16>
    %c1_145 = arith.constant 1 : index
    %c0_146 = arith.constant 0 : index
    %c0_147 = arith.constant 0 : index
    %371 = vector.load %arg19[%c1_145, %c0_146, %c0_147] : memref<2x32x32xbf16, #tpu.memory_space<vmem>>, vector<1x32x32xbf16>
    %372 = vector.shape_cast %371 : vector<1x32x32xbf16> to vector<32x32xbf16>
    %c1_148 = arith.constant 1 : index
    %c0_149 = arith.constant 0 : index
    %c0_150 = arith.constant 0 : index
    %373 = vector.load %arg20[%c1_148, %c0_149, %c0_150] : memref<2x1x32xf32, #tpu.memory_space<vmem>>, vector<1x1x32xf32>
    %374 = vector.shape_cast %373 : vector<1x1x32xf32> to vector<1x32xf32>
    %c1_151 = arith.constant 1 : index
    %c0_152 = arith.constant 0 : index
    %c0_153 = arith.constant 0 : index
    %375 = vector.load %arg21[%c1_151, %c0_152, %c0_153] : memref<2x1x32xf32, #tpu.memory_space<vmem>>, vector<1x1x32xf32>
    %376 = vector.shape_cast %375 : vector<1x1x32xf32> to vector<1x32xf32>
    %c1_154 = arith.constant 1 : index
    %c0_155 = arith.constant 0 : index
    %c0_156 = arith.constant 0 : index
    %377 = vector.load %arg22[%c1_154, %c0_155, %c0_156] : memref<2x1x32xf32, #tpu.memory_space<vmem>>, vector<1x1x32xf32>
    %378 = vector.shape_cast %377 : vector<1x1x32xf32> to vector<1x32xf32>
    %cst_157 = arith.constant dense<0.000000e+00> : vector<32xf32>
    %379 = vector.multi_reduction <add>, %368, %cst_157 [1] : vector<32x32xf32> to vector<32xf32>
    %380 = vector.shape_cast %379 : vector<32xf32> to vector<32x1xf32>
    %cst_158 = arith.constant 3.200000e+01 : f32
    %381 = vector.broadcast %cst_158 : f32 to vector<32x1xf32>
    %382 = arith.divf %380, %381 : vector<32x1xf32>
    %383 = vector.broadcast %382 : vector<32x1xf32> to vector<32x32xf32>
    %384 = arith.subf %368, %383 : vector<32x32xf32>
    %385 = arith.mulf %384, %384 : vector<32x32xf32>
    %cst_159 = arith.constant dense<0.000000e+00> : vector<32xf32>
    %386 = vector.multi_reduction <add>, %385, %cst_159 [1] : vector<32x32xf32> to vector<32xf32>
    %387 = vector.shape_cast %386 : vector<32xf32> to vector<32x1xf32>
    %cst_160 = arith.constant 3.200000e+01 : f32
    %388 = vector.broadcast %cst_160 : f32 to vector<32x1xf32>
    %389 = arith.divf %387, %388 : vector<32x1xf32>
    %390 = vector.broadcast %382 : vector<32x1xf32> to vector<32x32xf32>
    %391 = arith.subf %368, %390 : vector<32x32xf32>
    %cst_161 = arith.constant 9.99999974E-6 : f32
    %392 = vector.broadcast %cst_161 : f32 to vector<32x1xf32>
    %393 = arith.addf %389, %392 : vector<32x1xf32>
    %394 = math.rsqrt %393 : vector<32x1xf32>
    %395 = vector.broadcast %394 : vector<32x1xf32> to vector<32x32xf32>
    %396 = arith.mulf %391, %395 : vector<32x32xf32>
    %397 = vector.broadcast %376 : vector<1x32xf32> to vector<32x32xf32>
    %398 = arith.mulf %396, %397 : vector<32x32xf32>
    %399 = vector.broadcast %378 : vector<1x32xf32> to vector<32x32xf32>
    %400 = arith.addf %398, %399 : vector<32x32xf32>
    %401 = arith.truncf %400 : vector<32x32xf32> to vector<32x32xbf16>
    %cst_162 = arith.constant dense<0.000000e+00> : vector<32x96xf32>
    %402 = tpu.matmul %401, %370, %cst_162 {dimension_numbers = #tpu.dot_dimension_numbers<[1], [0], [0], [1], [0, 0, 1, 1], [], []>} : vector<32x32xbf16>, vector<32x96xbf16>, vector<32x96xf32> -> vector<32x96xf32>
    %403 = vector.extract_strided_slice %402 {offsets = [0, 0], sizes = [32, 32], strides = [1, 1]} : vector<32x96xf32> to vector<32x32xf32>
    %404 = vector.extract_strided_slice %402 {offsets = [0, 32], sizes = [32, 32], strides = [1, 1]} : vector<32x96xf32> to vector<32x32xf32>
    %405 = vector.extract_strided_slice %402 {offsets = [0, 64], sizes = [32, 32], strides = [1, 1]} : vector<32x96xf32> to vector<32x32xf32>
    %406 = vector.extract_strided_slice %403 {offsets = [0, 0], sizes = [16, 32], strides = [1, 1]} : vector<32x32xf32> to vector<16x32xf32>
    %407 = vector.extract_strided_slice %404 {offsets = [0, 0], sizes = [16, 32], strides = [1, 1]} : vector<32x32xf32> to vector<16x32xf32>
    %408 = vector.extract_strided_slice %405 {offsets = [0, 0], sizes = [16, 32], strides = [1, 1]} : vector<32x32xf32> to vector<16x32xf32>
    %409 = vector.extract_strided_slice %406 {offsets = [0, 0], sizes = [16, 16], strides = [1, 1]} : vector<16x32xf32> to vector<16x16xf32>
    %410 = vector.extract_strided_slice %407 {offsets = [0, 0], sizes = [16, 16], strides = [1, 1]} : vector<16x32xf32> to vector<16x16xf32>
    %411 = vector.extract_strided_slice %408 {offsets = [0, 0], sizes = [16, 16], strides = [1, 1]} : vector<16x32xf32> to vector<16x16xf32>
    %412 = arith.truncf %409 : vector<16x16xf32> to vector<16x16xbf16>
    %413 = arith.truncf %410 : vector<16x16xf32> to vector<16x16xbf16>
    %cst_163 = arith.constant dense<0.000000e+00> : vector<16x16xf32>
    %414 = tpu.matmul %412, %413, %cst_163 {dimension_numbers = #tpu.dot_dimension_numbers<[1], [1], [0], [0], [0, 0, 1, 0], [], []>} : vector<16x16xbf16>, vector<16x16xbf16>, vector<16x16xf32> -> vector<16x16xf32>
    %cst_164 = arith.constant 2.500000e-01 : f32
    %415 = vector.broadcast %cst_164 : f32 to vector<16x16xf32>
    %416 = arith.mulf %414, %415 : vector<16x16xf32>
    %cst_165 = arith.constant dense<0xFF800000> : vector<16xf32>
    %417 = vector.multi_reduction <maximumf>, %416, %cst_165 [1] : vector<16x16xf32> to vector<16xf32>
    %418 = vector.shape_cast %417 : vector<16xf32> to vector<16x1xf32>
    %419 = vector.broadcast %418 : vector<16x1xf32> to vector<16x16xf32>
    %420 = arith.subf %416, %419 : vector<16x16xf32>
    %421 = math.exp %420 : vector<16x16xf32>
    %cst_166 = arith.constant dense<0.000000e+00> : vector<16xf32>
    %422 = vector.multi_reduction <add>, %421, %cst_166 [1] : vector<16x16xf32> to vector<16xf32>
    %423 = vector.shape_cast %422 : vector<16xf32> to vector<16x1xf32>
    %424 = tpu.reciprocal %423 {approx = true} : vector<16x1xf32> -> vector<16x1xf32>
    %425 = vector.broadcast %424 : vector<16x1xf32> to vector<16x16xf32>
    %426 = arith.mulf %421, %425 : vector<16x16xf32>
    %427 = arith.truncf %426 : vector<16x16xf32> to vector<16x16xbf16>
    %428 = arith.truncf %411 : vector<16x16xf32> to vector<16x16xbf16>
    %cst_167 = arith.constant dense<0.000000e+00> : vector<16x16xf32>
    %429 = tpu.matmul %427, %428, %cst_167 {dimension_numbers = #tpu.dot_dimension_numbers<[1], [0], [0], [1], [0, 0, 1, 1], [], []>} : vector<16x16xbf16>, vector<16x16xbf16>, vector<16x16xf32> -> vector<16x16xf32>
    %430 = vector.extract_strided_slice %406 {offsets = [0, 16], sizes = [16, 16], strides = [1, 1]} : vector<16x32xf32> to vector<16x16xf32>
    %431 = vector.extract_strided_slice %407 {offsets = [0, 16], sizes = [16, 16], strides = [1, 1]} : vector<16x32xf32> to vector<16x16xf32>
    %432 = vector.extract_strided_slice %408 {offsets = [0, 16], sizes = [16, 16], strides = [1, 1]} : vector<16x32xf32> to vector<16x16xf32>
    %433 = arith.truncf %430 : vector<16x16xf32> to vector<16x16xbf16>
    %434 = arith.truncf %431 : vector<16x16xf32> to vector<16x16xbf16>
    %cst_168 = arith.constant dense<0.000000e+00> : vector<16x16xf32>
    %435 = tpu.matmul %433, %434, %cst_168 {dimension_numbers = #tpu.dot_dimension_numbers<[1], [1], [0], [0], [0, 0, 1, 0], [], []>} : vector<16x16xbf16>, vector<16x16xbf16>, vector<16x16xf32> -> vector<16x16xf32>
    %cst_169 = arith.constant 2.500000e-01 : f32
    %436 = vector.broadcast %cst_169 : f32 to vector<16x16xf32>
    %437 = arith.mulf %435, %436 : vector<16x16xf32>
    %cst_170 = arith.constant dense<0xFF800000> : vector<16xf32>
    %438 = vector.multi_reduction <maximumf>, %437, %cst_170 [1] : vector<16x16xf32> to vector<16xf32>
    %439 = vector.shape_cast %438 : vector<16xf32> to vector<16x1xf32>
    %440 = vector.broadcast %439 : vector<16x1xf32> to vector<16x16xf32>
    %441 = arith.subf %437, %440 : vector<16x16xf32>
    %442 = math.exp %441 : vector<16x16xf32>
    %cst_171 = arith.constant dense<0.000000e+00> : vector<16xf32>
    %443 = vector.multi_reduction <add>, %442, %cst_171 [1] : vector<16x16xf32> to vector<16xf32>
    %444 = vector.shape_cast %443 : vector<16xf32> to vector<16x1xf32>
    %445 = tpu.reciprocal %444 {approx = true} : vector<16x1xf32> -> vector<16x1xf32>
    %446 = vector.broadcast %445 : vector<16x1xf32> to vector<16x16xf32>
    %447 = arith.mulf %442, %446 : vector<16x16xf32>
    %448 = arith.truncf %447 : vector<16x16xf32> to vector<16x16xbf16>
    %449 = arith.truncf %432 : vector<16x16xf32> to vector<16x16xbf16>
    %cst_172 = arith.constant dense<0.000000e+00> : vector<16x16xf32>
    %450 = tpu.matmul %448, %449, %cst_172 {dimension_numbers = #tpu.dot_dimension_numbers<[1], [0], [0], [1], [0, 0, 1, 1], [], []>} : vector<16x16xbf16>, vector<16x16xbf16>, vector<16x16xf32> -> vector<16x16xf32>
    %451 = tpu.concatenate %429, %450 in 1 : vector<16x16xf32>, vector<16x16xf32> -> vector<16x32xf32>
    %452 = vector.extract_strided_slice %403 {offsets = [16, 0], sizes = [16, 32], strides = [1, 1]} : vector<32x32xf32> to vector<16x32xf32>
    %453 = vector.extract_strided_slice %404 {offsets = [16, 0], sizes = [16, 32], strides = [1, 1]} : vector<32x32xf32> to vector<16x32xf32>
    %454 = vector.extract_strided_slice %405 {offsets = [16, 0], sizes = [16, 32], strides = [1, 1]} : vector<32x32xf32> to vector<16x32xf32>
    %455 = vector.extract_strided_slice %452 {offsets = [0, 0], sizes = [16, 16], strides = [1, 1]} : vector<16x32xf32> to vector<16x16xf32>
    %456 = vector.extract_strided_slice %453 {offsets = [0, 0], sizes = [16, 16], strides = [1, 1]} : vector<16x32xf32> to vector<16x16xf32>
    %457 = vector.extract_strided_slice %454 {offsets = [0, 0], sizes = [16, 16], strides = [1, 1]} : vector<16x32xf32> to vector<16x16xf32>
    %458 = arith.truncf %455 : vector<16x16xf32> to vector<16x16xbf16>
    %459 = arith.truncf %456 : vector<16x16xf32> to vector<16x16xbf16>
    %cst_173 = arith.constant dense<0.000000e+00> : vector<16x16xf32>
    %460 = tpu.matmul %458, %459, %cst_173 {dimension_numbers = #tpu.dot_dimension_numbers<[1], [1], [0], [0], [0, 0, 1, 0], [], []>} : vector<16x16xbf16>, vector<16x16xbf16>, vector<16x16xf32> -> vector<16x16xf32>
    %cst_174 = arith.constant 2.500000e-01 : f32
    %461 = vector.broadcast %cst_174 : f32 to vector<16x16xf32>
    %462 = arith.mulf %460, %461 : vector<16x16xf32>
    %cst_175 = arith.constant dense<0xFF800000> : vector<16xf32>
    %463 = vector.multi_reduction <maximumf>, %462, %cst_175 [1] : vector<16x16xf32> to vector<16xf32>
    %464 = vector.shape_cast %463 : vector<16xf32> to vector<16x1xf32>
    %465 = vector.broadcast %464 : vector<16x1xf32> to vector<16x16xf32>
    %466 = arith.subf %462, %465 : vector<16x16xf32>
    %467 = math.exp %466 : vector<16x16xf32>
    %cst_176 = arith.constant dense<0.000000e+00> : vector<16xf32>
    %468 = vector.multi_reduction <add>, %467, %cst_176 [1] : vector<16x16xf32> to vector<16xf32>
    %469 = vector.shape_cast %468 : vector<16xf32> to vector<16x1xf32>
    %470 = tpu.reciprocal %469 {approx = true} : vector<16x1xf32> -> vector<16x1xf32>
    %471 = vector.broadcast %470 : vector<16x1xf32> to vector<16x16xf32>
    %472 = arith.mulf %467, %471 : vector<16x16xf32>
    %473 = arith.truncf %472 : vector<16x16xf32> to vector<16x16xbf16>
    %474 = arith.truncf %457 : vector<16x16xf32> to vector<16x16xbf16>
    %cst_177 = arith.constant dense<0.000000e+00> : vector<16x16xf32>
    %475 = tpu.matmul %473, %474, %cst_177 {dimension_numbers = #tpu.dot_dimension_numbers<[1], [0], [0], [1], [0, 0, 1, 1], [], []>} : vector<16x16xbf16>, vector<16x16xbf16>, vector<16x16xf32> -> vector<16x16xf32>
    %476 = vector.extract_strided_slice %452 {offsets = [0, 16], sizes = [16, 16], strides = [1, 1]} : vector<16x32xf32> to vector<16x16xf32>
    %477 = vector.extract_strided_slice %453 {offsets = [0, 16], sizes = [16, 16], strides = [1, 1]} : vector<16x32xf32> to vector<16x16xf32>
    %478 = vector.extract_strided_slice %454 {offsets = [0, 16], sizes = [16, 16], strides = [1, 1]} : vector<16x32xf32> to vector<16x16xf32>
    %479 = arith.truncf %476 : vector<16x16xf32> to vector<16x16xbf16>
    %480 = arith.truncf %477 : vector<16x16xf32> to vector<16x16xbf16>
    %cst_178 = arith.constant dense<0.000000e+00> : vector<16x16xf32>
    %481 = tpu.matmul %479, %480, %cst_178 {dimension_numbers = #tpu.dot_dimension_numbers<[1], [1], [0], [0], [0, 0, 1, 0], [], []>} : vector<16x16xbf16>, vector<16x16xbf16>, vector<16x16xf32> -> vector<16x16xf32>
    %cst_179 = arith.constant 2.500000e-01 : f32
    %482 = vector.broadcast %cst_179 : f32 to vector<16x16xf32>
    %483 = arith.mulf %481, %482 : vector<16x16xf32>
    %cst_180 = arith.constant dense<0xFF800000> : vector<16xf32>
    %484 = vector.multi_reduction <maximumf>, %483, %cst_180 [1] : vector<16x16xf32> to vector<16xf32>
    %485 = vector.shape_cast %484 : vector<16xf32> to vector<16x1xf32>
    %486 = vector.broadcast %485 : vector<16x1xf32> to vector<16x16xf32>
    %487 = arith.subf %483, %486 : vector<16x16xf32>
    %488 = math.exp %487 : vector<16x16xf32>
    %cst_181 = arith.constant dense<0.000000e+00> : vector<16xf32>
    %489 = vector.multi_reduction <add>, %488, %cst_181 [1] : vector<16x16xf32> to vector<16xf32>
    %490 = vector.shape_cast %489 : vector<16xf32> to vector<16x1xf32>
    %491 = tpu.reciprocal %490 {approx = true} : vector<16x1xf32> -> vector<16x1xf32>
    %492 = vector.broadcast %491 : vector<16x1xf32> to vector<16x16xf32>
    %493 = arith.mulf %488, %492 : vector<16x16xf32>
    %494 = arith.truncf %493 : vector<16x16xf32> to vector<16x16xbf16>
    %495 = arith.truncf %478 : vector<16x16xf32> to vector<16x16xbf16>
    %cst_182 = arith.constant dense<0.000000e+00> : vector<16x16xf32>
    %496 = tpu.matmul %494, %495, %cst_182 {dimension_numbers = #tpu.dot_dimension_numbers<[1], [0], [0], [1], [0, 0, 1, 1], [], []>} : vector<16x16xbf16>, vector<16x16xbf16>, vector<16x16xf32> -> vector<16x16xf32>
    %497 = tpu.concatenate %475, %496 in 1 : vector<16x16xf32>, vector<16x16xf32> -> vector<16x32xf32>
    %498 = tpu.concatenate %451, %497 in 0 : vector<16x32xf32>, vector<16x32xf32> -> vector<32x32xf32>
    %499 = arith.truncf %498 : vector<32x32xf32> to vector<32x32xbf16>
    %cst_183 = arith.constant dense<0.000000e+00> : vector<32x32xf32>
    %500 = tpu.matmul %499, %372, %cst_183 {dimension_numbers = #tpu.dot_dimension_numbers<[1], [0], [0], [1], [0, 0, 1, 1], [], []>} : vector<32x32xbf16>, vector<32x32xbf16>, vector<32x32xf32> -> vector<32x32xf32>
    %501 = vector.broadcast %374 : vector<1x32xf32> to vector<32x32xf32>
    %502 = arith.addf %500, %501 : vector<32x32xf32>
    %503 = arith.addf %368, %502 : vector<32x32xf32>
    %c1_184 = arith.constant 1 : index
    %c0_185 = arith.constant 0 : index
    %c0_186 = arith.constant 0 : index
    %c0_187 = arith.constant 0 : index
    %504 = vector.load %arg23[%c1_184, %c0_185, %c0_186, %c0_187] : memref<2x2x32x128xbf16, #tpu.memory_space<vmem>>, vector<1x2x32x128xbf16>
    %505 = vector.shape_cast %504 : vector<1x2x32x128xbf16> to vector<2x32x128xbf16>
    %c1_188 = arith.constant 1 : index
    %c0_189 = arith.constant 0 : index
    %c0_190 = arith.constant 0 : index
    %c0_191 = arith.constant 0 : index
    %506 = vector.load %arg24[%c1_188, %c0_189, %c0_190, %c0_191] : memref<2x2x1x128xf32, #tpu.memory_space<vmem>>, vector<1x2x1x128xf32>
    %507 = vector.shape_cast %506 : vector<1x2x1x128xf32> to vector<2x1x128xf32>
    %c1_192 = arith.constant 1 : index
    %c0_193 = arith.constant 0 : index
    %c0_194 = arith.constant 0 : index
    %508 = vector.load %arg25[%c1_192, %c0_193, %c0_194] : memref<2x128x32xbf16, #tpu.memory_space<vmem>>, vector<1x128x32xbf16>
    %509 = vector.shape_cast %508 : vector<1x128x32xbf16> to vector<128x32xbf16>
    %c1_195 = arith.constant 1 : index
    %c0_196 = arith.constant 0 : index
    %c0_197 = arith.constant 0 : index
    %510 = vector.load %arg26[%c1_195, %c0_196, %c0_197] : memref<2x1x32xf32, #tpu.memory_space<vmem>>, vector<1x1x32xf32>
    %511 = vector.shape_cast %510 : vector<1x1x32xf32> to vector<1x32xf32>
    %c1_198 = arith.constant 1 : index
    %c0_199 = arith.constant 0 : index
    %c0_200 = arith.constant 0 : index
    %512 = vector.load %arg27[%c1_198, %c0_199, %c0_200] : memref<2x1x32xf32, #tpu.memory_space<vmem>>, vector<1x1x32xf32>
    %513 = vector.shape_cast %512 : vector<1x1x32xf32> to vector<1x32xf32>
    %c1_201 = arith.constant 1 : index
    %c0_202 = arith.constant 0 : index
    %c0_203 = arith.constant 0 : index
    %514 = vector.load %arg28[%c1_201, %c0_202, %c0_203] : memref<2x1x32xf32, #tpu.memory_space<vmem>>, vector<1x1x32xf32>
    %515 = vector.shape_cast %514 : vector<1x1x32xf32> to vector<1x32xf32>
    %cst_204 = arith.constant dense<0.000000e+00> : vector<32xf32>
    %516 = vector.multi_reduction <add>, %503, %cst_204 [1] : vector<32x32xf32> to vector<32xf32>
    %517 = vector.shape_cast %516 : vector<32xf32> to vector<32x1xf32>
    %cst_205 = arith.constant 3.200000e+01 : f32
    %518 = vector.broadcast %cst_205 : f32 to vector<32x1xf32>
    %519 = arith.divf %517, %518 : vector<32x1xf32>
    %520 = vector.broadcast %519 : vector<32x1xf32> to vector<32x32xf32>
    %521 = arith.subf %503, %520 : vector<32x32xf32>
    %522 = arith.mulf %521, %521 : vector<32x32xf32>
    %cst_206 = arith.constant dense<0.000000e+00> : vector<32xf32>
    %523 = vector.multi_reduction <add>, %522, %cst_206 [1] : vector<32x32xf32> to vector<32xf32>
    %524 = vector.shape_cast %523 : vector<32xf32> to vector<32x1xf32>
    %cst_207 = arith.constant 3.200000e+01 : f32
    %525 = vector.broadcast %cst_207 : f32 to vector<32x1xf32>
    %526 = arith.divf %524, %525 : vector<32x1xf32>
    %527 = vector.broadcast %519 : vector<32x1xf32> to vector<32x32xf32>
    %528 = arith.subf %503, %527 : vector<32x32xf32>
    %cst_208 = arith.constant 9.99999974E-6 : f32
    %529 = vector.broadcast %cst_208 : f32 to vector<32x1xf32>
    %530 = arith.addf %526, %529 : vector<32x1xf32>
    %531 = math.rsqrt %530 : vector<32x1xf32>
    %532 = vector.broadcast %531 : vector<32x1xf32> to vector<32x32xf32>
    %533 = arith.mulf %528, %532 : vector<32x32xf32>
    %534 = vector.broadcast %513 : vector<1x32xf32> to vector<32x32xf32>
    %535 = arith.mulf %533, %534 : vector<32x32xf32>
    %536 = vector.broadcast %515 : vector<1x32xf32> to vector<32x32xf32>
    %537 = arith.addf %535, %536 : vector<32x32xf32>
    %538 = vector.extract_strided_slice %505 {offsets = [0, 0, 0], sizes = [1, 32, 128], strides = [1, 1, 1]} : vector<2x32x128xbf16> to vector<1x32x128xbf16>
    %539 = vector.shape_cast %538 : vector<1x32x128xbf16> to vector<32x128xbf16>
    %540 = arith.truncf %537 : vector<32x32xf32> to vector<32x32xbf16>
    %cst_209 = arith.constant dense<0.000000e+00> : vector<32x128xf32>
    %541 = tpu.matmul %540, %539, %cst_209 {dimension_numbers = #tpu.dot_dimension_numbers<[1], [0], [0], [1], [0, 0, 1, 1], [], []>} : vector<32x32xbf16>, vector<32x128xbf16>, vector<32x128xf32> -> vector<32x128xf32>
    %542 = vector.extract_strided_slice %507 {offsets = [0, 0, 0], sizes = [1, 1, 128], strides = [1, 1, 1]} : vector<2x1x128xf32> to vector<1x1x128xf32>
    %543 = vector.shape_cast %542 : vector<1x1x128xf32> to vector<1x128xf32>
    %544 = vector.broadcast %543 : vector<1x128xf32> to vector<32x128xf32>
    %545 = arith.addf %541, %544 : vector<32x128xf32>
    %546 = vector.extract_strided_slice %505 {offsets = [1, 0, 0], sizes = [1, 32, 128], strides = [1, 1, 1]} : vector<2x32x128xbf16> to vector<1x32x128xbf16>
    %547 = vector.shape_cast %546 : vector<1x32x128xbf16> to vector<32x128xbf16>
    %548 = arith.truncf %537 : vector<32x32xf32> to vector<32x32xbf16>
    %cst_210 = arith.constant dense<0.000000e+00> : vector<32x128xf32>
    %549 = tpu.matmul %548, %547, %cst_210 {dimension_numbers = #tpu.dot_dimension_numbers<[1], [0], [0], [1], [0, 0, 1, 1], [], []>} : vector<32x32xbf16>, vector<32x128xbf16>, vector<32x128xf32> -> vector<32x128xf32>
    %550 = vector.extract_strided_slice %507 {offsets = [1, 0, 0], sizes = [1, 1, 128], strides = [1, 1, 1]} : vector<2x1x128xf32> to vector<1x1x128xf32>
    %551 = vector.shape_cast %550 : vector<1x1x128xf32> to vector<1x128xf32>
    %552 = vector.broadcast %551 : vector<1x128xf32> to vector<32x128xf32>
    %553 = arith.addf %549, %552 : vector<32x128xf32>
    %cst_211 = arith.constant 5.000000e-01 : f32
    %554 = vector.broadcast %cst_211 : f32 to vector<32x128xf32>
    %555 = arith.mulf %554, %553 : vector<32x128xf32>
    %cst_212 = arith.constant 0.707106769 : f32
    %556 = vector.broadcast %cst_212 : f32 to vector<32x128xf32>
    %557 = arith.mulf %553, %556 : vector<32x128xf32>
    %558 = math.erf %557 : vector<32x128xf32>
    %cst_213 = arith.constant 1.000000e+00 : f32
    %559 = vector.broadcast %cst_213 : f32 to vector<32x128xf32>
    %560 = arith.addf %559, %558 : vector<32x128xf32>
    %561 = arith.mulf %555, %560 : vector<32x128xf32>
    %562 = arith.mulf %545, %561 : vector<32x128xf32>
    %563 = arith.truncf %562 : vector<32x128xf32> to vector<32x128xbf16>
    %cst_214 = arith.constant dense<0.000000e+00> : vector<32x32xf32>
    %564 = tpu.matmul %563, %509, %cst_214 {dimension_numbers = #tpu.dot_dimension_numbers<[1], [0], [0], [1], [0, 0, 1, 1], [], []>} : vector<32x128xbf16>, vector<128x32xbf16>, vector<32x32xf32> -> vector<32x32xf32>
    %565 = vector.broadcast %511 : vector<1x32xf32> to vector<32x32xf32>
    %566 = arith.addf %564, %565 : vector<32x32xf32>
    %567 = arith.addf %503, %566 : vector<32x32xf32>
    %c0_215 = arith.constant 0 : index
    %c0_216 = arith.constant 0 : index
    %568 = vector.load %arg29[%c0_215, %c0_216] : memref<32x16xbf16, #tpu.memory_space<vmem>>, vector<32x16xbf16>
    %c0_217 = arith.constant 0 : index
    %c0_218 = arith.constant 0 : index
    %569 = vector.load %arg30[%c0_217, %c0_218] : memref<32x32xbf16, #tpu.memory_space<vmem>>, vector<32x32xbf16>
    %c0_219 = arith.constant 0 : index
    %c0_220 = arith.constant 0 : index
    %570 = vector.load %arg31[%c0_219, %c0_220] : memref<16x32xbf16, #tpu.memory_space<vmem>>, vector<16x32xbf16>
    %c0_221 = arith.constant 0 : index
    %c0_222 = arith.constant 0 : index
    %571 = vector.load %arg32[%c0_221, %c0_222] : memref<1x32xf32, #tpu.memory_space<vmem>>, vector<1x32xf32>
    %c0_223 = arith.constant 0 : index
    %c0_224 = arith.constant 0 : index
    %572 = vector.load %arg33[%c0_223, %c0_224] : memref<1x32xf32, #tpu.memory_space<vmem>>, vector<1x32xf32>
    %c0_225 = arith.constant 0 : index
    %c0_226 = arith.constant 0 : index
    %573 = vector.load %arg34[%c0_225, %c0_226] : memref<1x32xf32, #tpu.memory_space<vmem>>, vector<1x32xf32>
    %c0_227 = arith.constant 0 : index
    %c0_228 = arith.constant 0 : index
    %574 = vector.load %arg35[%c0_227, %c0_228] : memref<1x32xf32, #tpu.memory_space<vmem>>, vector<1x32xf32>
    %c0_229 = arith.constant 0 : index
    %c0_230 = arith.constant 0 : index
    %575 = vector.load %arg36[%c0_229, %c0_230] : memref<1x32xf32, #tpu.memory_space<vmem>>, vector<1x32xf32>
    %cst_231 = arith.constant dense<0.000000e+00> : vector<16xf32>
    %576 = vector.multi_reduction <add>, %3, %cst_231 [1] : vector<16x32xf32> to vector<16xf32>
    %577 = vector.shape_cast %576 : vector<16xf32> to vector<16x1xf32>
    %cst_232 = arith.constant 3.200000e+01 : f32
    %578 = vector.broadcast %cst_232 : f32 to vector<16x1xf32>
    %579 = arith.divf %577, %578 : vector<16x1xf32>
    %580 = vector.broadcast %579 : vector<16x1xf32> to vector<16x32xf32>
    %581 = arith.subf %3, %580 : vector<16x32xf32>
    %582 = arith.mulf %581, %581 : vector<16x32xf32>
    %cst_233 = arith.constant dense<0.000000e+00> : vector<16xf32>
    %583 = vector.multi_reduction <add>, %582, %cst_233 [1] : vector<16x32xf32> to vector<16xf32>
    %584 = vector.shape_cast %583 : vector<16xf32> to vector<16x1xf32>
    %cst_234 = arith.constant 3.200000e+01 : f32
    %585 = vector.broadcast %cst_234 : f32 to vector<16x1xf32>
    %586 = arith.divf %584, %585 : vector<16x1xf32>
    %587 = vector.broadcast %579 : vector<16x1xf32> to vector<16x32xf32>
    %588 = arith.subf %3, %587 : vector<16x32xf32>
    %cst_235 = arith.constant 9.99999974E-6 : f32
    %589 = vector.broadcast %cst_235 : f32 to vector<16x1xf32>
    %590 = arith.addf %586, %589 : vector<16x1xf32>
    %591 = math.rsqrt %590 : vector<16x1xf32>
    %592 = vector.broadcast %591 : vector<16x1xf32> to vector<16x32xf32>
    %593 = arith.mulf %588, %592 : vector<16x32xf32>
    %594 = vector.broadcast %572 : vector<1x32xf32> to vector<16x32xf32>
    %595 = arith.mulf %593, %594 : vector<16x32xf32>
    %596 = vector.broadcast %573 : vector<1x32xf32> to vector<16x32xf32>
    %597 = arith.addf %595, %596 : vector<16x32xf32>
    %cst_236 = arith.constant dense<0.000000e+00> : vector<32xf32>
    %598 = vector.multi_reduction <add>, %567, %cst_236 [1] : vector<32x32xf32> to vector<32xf32>
    %599 = vector.shape_cast %598 : vector<32xf32> to vector<32x1xf32>
    %cst_237 = arith.constant 3.200000e+01 : f32
    %600 = vector.broadcast %cst_237 : f32 to vector<32x1xf32>
    %601 = arith.divf %599, %600 : vector<32x1xf32>
    %602 = vector.broadcast %601 : vector<32x1xf32> to vector<32x32xf32>
    %603 = arith.subf %567, %602 : vector<32x32xf32>
    %604 = arith.mulf %603, %603 : vector<32x32xf32>
    %cst_238 = arith.constant dense<0.000000e+00> : vector<32xf32>
    %605 = vector.multi_reduction <add>, %604, %cst_238 [1] : vector<32x32xf32> to vector<32xf32>
    %606 = vector.shape_cast %605 : vector<32xf32> to vector<32x1xf32>
    %cst_239 = arith.constant 3.200000e+01 : f32
    %607 = vector.broadcast %cst_239 : f32 to vector<32x1xf32>
    %608 = arith.divf %606, %607 : vector<32x1xf32>
    %609 = vector.broadcast %601 : vector<32x1xf32> to vector<32x32xf32>
    %610 = arith.subf %567, %609 : vector<32x32xf32>
    %cst_240 = arith.constant 9.99999974E-6 : f32
    %611 = vector.broadcast %cst_240 : f32 to vector<32x1xf32>
    %612 = arith.addf %608, %611 : vector<32x1xf32>
    %613 = math.rsqrt %612 : vector<32x1xf32>
    %614 = vector.broadcast %613 : vector<32x1xf32> to vector<32x32xf32>
    %615 = arith.mulf %610, %614 : vector<32x32xf32>
    %616 = vector.broadcast %574 : vector<1x32xf32> to vector<32x32xf32>
    %617 = arith.mulf %615, %616 : vector<32x32xf32>
    %618 = vector.broadcast %575 : vector<1x32xf32> to vector<32x32xf32>
    %619 = arith.addf %617, %618 : vector<32x32xf32>
    %620 = arith.truncf %597 : vector<16x32xf32> to vector<16x32xbf16>
    %cst_241 = arith.constant dense<0.000000e+00> : vector<16x16xf32>
    %621 = tpu.matmul %620, %568, %cst_241 {dimension_numbers = #tpu.dot_dimension_numbers<[1], [0], [0], [1], [0, 0, 1, 1], [], []>} : vector<16x32xbf16>, vector<32x16xbf16>, vector<16x16xf32> -> vector<16x16xf32>
    %622 = arith.truncf %619 : vector<32x32xf32> to vector<32x32xbf16>
    %cst_242 = arith.constant dense<0.000000e+00> : vector<32x32xf32>
    %623 = tpu.matmul %622, %569, %cst_242 {dimension_numbers = #tpu.dot_dimension_numbers<[1], [0], [0], [1], [0, 0, 1, 1], [], []>} : vector<32x32xbf16>, vector<32x32xbf16>, vector<32x32xf32> -> vector<32x32xf32>
    %624 = vector.extract_strided_slice %623 {offsets = [0, 0], sizes = [32, 16], strides = [1, 1]} : vector<32x32xf32> to vector<32x16xf32>
    %625 = vector.extract_strided_slice %623 {offsets = [0, 16], sizes = [32, 16], strides = [1, 1]} : vector<32x32xf32> to vector<32x16xf32>
    %626 = vector.extract_strided_slice %621 {offsets = [0, 0], sizes = [8, 16], strides = [1, 1]} : vector<16x16xf32> to vector<8x16xf32>
    %627 = vector.extract_strided_slice %624 {offsets = [0, 0], sizes = [16, 16], strides = [1, 1]} : vector<32x16xf32> to vector<16x16xf32>
    %628 = vector.extract_strided_slice %625 {offsets = [0, 0], sizes = [16, 16], strides = [1, 1]} : vector<32x16xf32> to vector<16x16xf32>
    %629 = arith.truncf %626 : vector<8x16xf32> to vector<8x16xbf16>
    %630 = arith.truncf %627 : vector<16x16xf32> to vector<16x16xbf16>
    %cst_243 = arith.constant dense<0.000000e+00> : vector<8x16xf32>
    %631 = tpu.matmul %629, %630, %cst_243 {dimension_numbers = #tpu.dot_dimension_numbers<[1], [1], [0], [0], [0, 0, 1, 0], [], []>} : vector<8x16xbf16>, vector<16x16xbf16>, vector<8x16xf32> -> vector<8x16xf32>
    %cst_244 = arith.constant 2.500000e-01 : f32
    %632 = vector.broadcast %cst_244 : f32 to vector<8x16xf32>
    %633 = arith.mulf %631, %632 : vector<8x16xf32>
    %cst_245 = arith.constant dense<0xFF800000> : vector<8xf32>
    %634 = vector.multi_reduction <maximumf>, %633, %cst_245 [1] : vector<8x16xf32> to vector<8xf32>
    %635 = vector.shape_cast %634 : vector<8xf32> to vector<8x1xf32>
    %636 = vector.broadcast %635 : vector<8x1xf32> to vector<8x16xf32>
    %637 = arith.subf %633, %636 : vector<8x16xf32>
    %638 = math.exp %637 : vector<8x16xf32>
    %cst_246 = arith.constant dense<0.000000e+00> : vector<8xf32>
    %639 = vector.multi_reduction <add>, %638, %cst_246 [1] : vector<8x16xf32> to vector<8xf32>
    %640 = vector.shape_cast %639 : vector<8xf32> to vector<8x1xf32>
    %641 = tpu.reciprocal %640 {approx = true} : vector<8x1xf32> -> vector<8x1xf32>
    %642 = vector.broadcast %641 : vector<8x1xf32> to vector<8x16xf32>
    %643 = arith.mulf %638, %642 : vector<8x16xf32>
    %644 = arith.truncf %643 : vector<8x16xf32> to vector<8x16xbf16>
    %645 = arith.truncf %628 : vector<16x16xf32> to vector<16x16xbf16>
    %cst_247 = arith.constant dense<0.000000e+00> : vector<8x16xf32>
    %646 = tpu.matmul %644, %645, %cst_247 {dimension_numbers = #tpu.dot_dimension_numbers<[1], [0], [0], [1], [0, 0, 1, 1], [], []>} : vector<8x16xbf16>, vector<16x16xbf16>, vector<8x16xf32> -> vector<8x16xf32>
    %647 = vector.extract_strided_slice %621 {offsets = [8, 0], sizes = [8, 16], strides = [1, 1]} : vector<16x16xf32> to vector<8x16xf32>
    %648 = vector.extract_strided_slice %624 {offsets = [16, 0], sizes = [16, 16], strides = [1, 1]} : vector<32x16xf32> to vector<16x16xf32>
    %649 = vector.extract_strided_slice %625 {offsets = [16, 0], sizes = [16, 16], strides = [1, 1]} : vector<32x16xf32> to vector<16x16xf32>
    %650 = arith.truncf %647 : vector<8x16xf32> to vector<8x16xbf16>
    %651 = arith.truncf %648 : vector<16x16xf32> to vector<16x16xbf16>
    %cst_248 = arith.constant dense<0.000000e+00> : vector<8x16xf32>
    %652 = tpu.matmul %650, %651, %cst_248 {dimension_numbers = #tpu.dot_dimension_numbers<[1], [1], [0], [0], [0, 0, 1, 0], [], []>} : vector<8x16xbf16>, vector<16x16xbf16>, vector<8x16xf32> -> vector<8x16xf32>
    %cst_249 = arith.constant 2.500000e-01 : f32
    %653 = vector.broadcast %cst_249 : f32 to vector<8x16xf32>
    %654 = arith.mulf %652, %653 : vector<8x16xf32>
    %cst_250 = arith.constant dense<0xFF800000> : vector<8xf32>
    %655 = vector.multi_reduction <maximumf>, %654, %cst_250 [1] : vector<8x16xf32> to vector<8xf32>
    %656 = vector.shape_cast %655 : vector<8xf32> to vector<8x1xf32>
    %657 = vector.broadcast %656 : vector<8x1xf32> to vector<8x16xf32>
    %658 = arith.subf %654, %657 : vector<8x16xf32>
    %659 = math.exp %658 : vector<8x16xf32>
    %cst_251 = arith.constant dense<0.000000e+00> : vector<8xf32>
    %660 = vector.multi_reduction <add>, %659, %cst_251 [1] : vector<8x16xf32> to vector<8xf32>
    %661 = vector.shape_cast %660 : vector<8xf32> to vector<8x1xf32>
    %662 = tpu.reciprocal %661 {approx = true} : vector<8x1xf32> -> vector<8x1xf32>
    %663 = vector.broadcast %662 : vector<8x1xf32> to vector<8x16xf32>
    %664 = arith.mulf %659, %663 : vector<8x16xf32>
    %665 = arith.truncf %664 : vector<8x16xf32> to vector<8x16xbf16>
    %666 = arith.truncf %649 : vector<16x16xf32> to vector<16x16xbf16>
    %cst_252 = arith.constant dense<0.000000e+00> : vector<8x16xf32>
    %667 = tpu.matmul %665, %666, %cst_252 {dimension_numbers = #tpu.dot_dimension_numbers<[1], [0], [0], [1], [0, 0, 1, 1], [], []>} : vector<8x16xbf16>, vector<16x16xbf16>, vector<8x16xf32> -> vector<8x16xf32>
    %668 = tpu.concatenate %646, %667 in 0 : vector<8x16xf32>, vector<8x16xf32> -> vector<16x16xf32>
    %669 = arith.truncf %668 : vector<16x16xf32> to vector<16x16xbf16>
    %cst_253 = arith.constant dense<0.000000e+00> : vector<16x32xf32>
    %670 = tpu.matmul %669, %570, %cst_253 {dimension_numbers = #tpu.dot_dimension_numbers<[1], [0], [0], [1], [0, 0, 1, 1], [], []>} : vector<16x16xbf16>, vector<16x32xbf16>, vector<16x32xf32> -> vector<16x32xf32>
    %671 = vector.broadcast %571 : vector<1x32xf32> to vector<16x32xf32>
    %672 = arith.addf %670, %671 : vector<16x32xf32>
    %c0_254 = arith.constant 0 : index
    %c0_255 = arith.constant 0 : index
    %c0_256 = arith.constant 0 : index
    %673 = vector.load %arg37[%c0_254, %c0_255, %c0_256] : memref<2x32x128xbf16, #tpu.memory_space<vmem>>, vector<2x32x128xbf16>
    %c0_257 = arith.constant 0 : index
    %c0_258 = arith.constant 0 : index
    %c0_259 = arith.constant 0 : index
    %674 = vector.load %arg38[%c0_257, %c0_258, %c0_259] : memref<2x1x128xf32, #tpu.memory_space<vmem>>, vector<2x1x128xf32>
    %c0_260 = arith.constant 0 : index
    %c0_261 = arith.constant 0 : index
    %675 = vector.load %arg39[%c0_260, %c0_261] : memref<128x32xbf16, #tpu.memory_space<vmem>>, vector<128x32xbf16>
    %c0_262 = arith.constant 0 : index
    %c0_263 = arith.constant 0 : index
    %676 = vector.load %arg40[%c0_262, %c0_263] : memref<1x32xf32, #tpu.memory_space<vmem>>, vector<1x32xf32>
    %c0_264 = arith.constant 0 : index
    %c0_265 = arith.constant 0 : index
    %677 = vector.load %arg41[%c0_264, %c0_265] : memref<1x32xf32, #tpu.memory_space<vmem>>, vector<1x32xf32>
    %c0_266 = arith.constant 0 : index
    %c0_267 = arith.constant 0 : index
    %678 = vector.load %arg42[%c0_266, %c0_267] : memref<1x32xf32, #tpu.memory_space<vmem>>, vector<1x32xf32>
    %cst_268 = arith.constant dense<0.000000e+00> : vector<16xf32>
    %679 = vector.multi_reduction <add>, %672, %cst_268 [1] : vector<16x32xf32> to vector<16xf32>
    %680 = vector.shape_cast %679 : vector<16xf32> to vector<16x1xf32>
    %cst_269 = arith.constant 3.200000e+01 : f32
    %681 = vector.broadcast %cst_269 : f32 to vector<16x1xf32>
    %682 = arith.divf %680, %681 : vector<16x1xf32>
    %683 = vector.broadcast %682 : vector<16x1xf32> to vector<16x32xf32>
    %684 = arith.subf %672, %683 : vector<16x32xf32>
    %685 = arith.mulf %684, %684 : vector<16x32xf32>
    %cst_270 = arith.constant dense<0.000000e+00> : vector<16xf32>
    %686 = vector.multi_reduction <add>, %685, %cst_270 [1] : vector<16x32xf32> to vector<16xf32>
    %687 = vector.shape_cast %686 : vector<16xf32> to vector<16x1xf32>
    %cst_271 = arith.constant 3.200000e+01 : f32
    %688 = vector.broadcast %cst_271 : f32 to vector<16x1xf32>
    %689 = arith.divf %687, %688 : vector<16x1xf32>
    %690 = vector.broadcast %682 : vector<16x1xf32> to vector<16x32xf32>
    %691 = arith.subf %672, %690 : vector<16x32xf32>
    %cst_272 = arith.constant 9.99999974E-6 : f32
    %692 = vector.broadcast %cst_272 : f32 to vector<16x1xf32>
    %693 = arith.addf %689, %692 : vector<16x1xf32>
    %694 = math.rsqrt %693 : vector<16x1xf32>
    %695 = vector.broadcast %694 : vector<16x1xf32> to vector<16x32xf32>
    %696 = arith.mulf %691, %695 : vector<16x32xf32>
    %697 = vector.broadcast %677 : vector<1x32xf32> to vector<16x32xf32>
    %698 = arith.mulf %696, %697 : vector<16x32xf32>
    %699 = vector.broadcast %678 : vector<1x32xf32> to vector<16x32xf32>
    %700 = arith.addf %698, %699 : vector<16x32xf32>
    %701 = vector.extract_strided_slice %673 {offsets = [0, 0, 0], sizes = [1, 32, 128], strides = [1, 1, 1]} : vector<2x32x128xbf16> to vector<1x32x128xbf16>
    %702 = vector.shape_cast %701 : vector<1x32x128xbf16> to vector<32x128xbf16>
    %703 = arith.truncf %700 : vector<16x32xf32> to vector<16x32xbf16>
    %cst_273 = arith.constant dense<0.000000e+00> : vector<16x128xf32>
    %704 = tpu.matmul %703, %702, %cst_273 {dimension_numbers = #tpu.dot_dimension_numbers<[1], [0], [0], [1], [0, 0, 1, 1], [], []>} : vector<16x32xbf16>, vector<32x128xbf16>, vector<16x128xf32> -> vector<16x128xf32>
    %705 = vector.extract_strided_slice %674 {offsets = [0, 0, 0], sizes = [1, 1, 128], strides = [1, 1, 1]} : vector<2x1x128xf32> to vector<1x1x128xf32>
    %706 = vector.shape_cast %705 : vector<1x1x128xf32> to vector<1x128xf32>
    %707 = vector.broadcast %706 : vector<1x128xf32> to vector<16x128xf32>
    %708 = arith.addf %704, %707 : vector<16x128xf32>
    %709 = vector.extract_strided_slice %673 {offsets = [1, 0, 0], sizes = [1, 32, 128], strides = [1, 1, 1]} : vector<2x32x128xbf16> to vector<1x32x128xbf16>
    %710 = vector.shape_cast %709 : vector<1x32x128xbf16> to vector<32x128xbf16>
    %711 = arith.truncf %700 : vector<16x32xf32> to vector<16x32xbf16>
    %cst_274 = arith.constant dense<0.000000e+00> : vector<16x128xf32>
    %712 = tpu.matmul %711, %710, %cst_274 {dimension_numbers = #tpu.dot_dimension_numbers<[1], [0], [0], [1], [0, 0, 1, 1], [], []>} : vector<16x32xbf16>, vector<32x128xbf16>, vector<16x128xf32> -> vector<16x128xf32>
    %713 = vector.extract_strided_slice %674 {offsets = [1, 0, 0], sizes = [1, 1, 128], strides = [1, 1, 1]} : vector<2x1x128xf32> to vector<1x1x128xf32>
    %714 = vector.shape_cast %713 : vector<1x1x128xf32> to vector<1x128xf32>
    %715 = vector.broadcast %714 : vector<1x128xf32> to vector<16x128xf32>
    %716 = arith.addf %712, %715 : vector<16x128xf32>
    %cst_275 = arith.constant 5.000000e-01 : f32
    %717 = vector.broadcast %cst_275 : f32 to vector<16x128xf32>
    %718 = arith.mulf %717, %716 : vector<16x128xf32>
    %cst_276 = arith.constant 0.707106769 : f32
    %719 = vector.broadcast %cst_276 : f32 to vector<16x128xf32>
    %720 = arith.mulf %716, %719 : vector<16x128xf32>
    %721 = math.erf %720 : vector<16x128xf32>
    %cst_277 = arith.constant 1.000000e+00 : f32
    %722 = vector.broadcast %cst_277 : f32 to vector<16x128xf32>
    %723 = arith.addf %722, %721 : vector<16x128xf32>
    %724 = arith.mulf %718, %723 : vector<16x128xf32>
    %725 = arith.mulf %708, %724 : vector<16x128xf32>
    %726 = arith.truncf %725 : vector<16x128xf32> to vector<16x128xbf16>
    %cst_278 = arith.constant dense<0.000000e+00> : vector<16x32xf32>
    %727 = tpu.matmul %726, %675, %cst_278 {dimension_numbers = #tpu.dot_dimension_numbers<[1], [0], [0], [1], [0, 0, 1, 1], [], []>} : vector<16x128xbf16>, vector<128x32xbf16>, vector<16x32xf32> -> vector<16x32xf32>
    %728 = vector.broadcast %676 : vector<1x32xf32> to vector<16x32xf32>
    %729 = arith.addf %727, %728 : vector<16x32xf32>
    %730 = arith.addf %672, %729 : vector<16x32xf32>
    %c0_279 = arith.constant 0 : index
    %c0_280 = arith.constant 0 : index
    %731 = vector.load %arg43[%c0_279, %c0_280] : memref<32x16xbf16, #tpu.memory_space<vmem>>, vector<32x16xbf16>
    %732 = arith.truncf %730 : vector<16x32xf32> to vector<16x32xbf16>
    %cst_281 = arith.constant dense<0.000000e+00> : vector<16x16xf32>
    %733 = tpu.matmul %732, %731, %cst_281 {dimension_numbers = #tpu.dot_dimension_numbers<[1], [0], [0], [1], [0, 0, 1, 1], [], []>} : vector<16x32xbf16>, vector<32x16xbf16>, vector<16x16xf32> -> vector<16x16xf32>
    %c0_282 = arith.constant 0 : index
    %c0_283 = arith.constant 0 : index
    %734 = vector.load %arg44[%c0_282, %c0_283] : memref<1x16xf32, #tpu.memory_space<vmem>>, vector<1x16xf32>
    %735 = vector.broadcast %734 : vector<1x16xf32> to vector<16x16xf32>
    %736 = arith.addf %733, %735 : vector<16x16xf32>
    %c0_284 = arith.constant 0 : index
    %c0_285 = arith.constant 0 : index
    %737 = vector.load %arg45[%c0_284, %c0_285] : memref<16x16xf32, #tpu.memory_space<vmem>>, vector<16x16xf32>
    tpu.vector_store %arg45[%c0_284, %c0_285], %736 {strides = array<i32>} : memref<16x16xf32, #tpu.memory_space<vmem>>, vector<16x16xf32>,
    return
  }
  func.func @transform_0(%arg0: i32) -> (i32, i32, i32) {
    %c0_i32 = arith.constant 0 : i32
    %c0_i32_0 = arith.constant 0 : i32
    %c0_i32_1 = arith.constant 0 : i32
    return %arg0, %c0_i32, %c0_i32_0 : i32, i32, i32
  }
  func.func @transform_1(%arg0: i32) -> (i32, i32, i32) {
    %c0_i32 = arith.constant 0 : i32
    %c0_i32_0 = arith.constant 0 : i32
    %c0_i32_1 = arith.constant 0 : i32
    return %arg0, %c0_i32, %c0_i32_0 : i32, i32, i32
  }
  func.func @transform_2(%arg0: i32) -> (i32, i32) {
    %c0_i32 = arith.constant 0 : i32
    %c0_i32_0 = arith.constant 0 : i32
    %c0_i32_1 = arith.constant 0 : i32
    return %c0_i32, %c0_i32_0 : i32, i32
  }
  func.func @transform_3(%arg0: i32) -> (i32, i32) {
    %c0_i32 = arith.constant 0 : i32
    %c0_i32_0 = arith.constant 0 : i32
    %c0_i32_1 = arith.constant 0 : i32
    return %c0_i32, %c0_i32_0 : i32, i32
  }
  func.func @transform_4(%arg0: i32) -> (i32, i32) {
    %c0_i32 = arith.constant 0 : i32
    %c0_i32_0 = arith.constant 0 : i32
    %c0_i32_1 = arith.constant 0 : i32
    return %c0_i32, %c0_i32_0 : i32, i32
  }
  func.func @transform_5(%arg0: i32) -> (i32, i32) {
    %c0_i32 = arith.constant 0 : i32
    %c0_i32_0 = arith.constant 0 : i32
    %c0_i32_1 = arith.constant 0 : i32
    return %c0_i32, %c0_i32_0 : i32, i32
  }
  func.func @transform_6(%arg0: i32) -> (i32, i32) {
    %c0_i32 = arith.constant 0 : i32
    %c0_i32_0 = arith.constant 0 : i32
    %c0_i32_1 = arith.constant 0 : i32
    return %c0_i32, %c0_i32_0 : i32, i32
  }
  func.func @transform_7(%arg0: i32) -> (i32, i32) {
    %c0_i32 = arith.constant 0 : i32
    %c0_i32_0 = arith.constant 0 : i32
    %c0_i32_1 = arith.constant 0 : i32
    return %c0_i32, %c0_i32_0 : i32, i32
  }
  func.func @transform_8(%arg0: i32) -> (i32, i32) {
    %c0_i32 = arith.constant 0 : i32
    %c0_i32_0 = arith.constant 0 : i32
    %c0_i32_1 = arith.constant 0 : i32
    return %c0_i32, %c0_i32_0 : i32, i32
  }
  func.func @transform_9(%arg0: i32) -> (i32, i32) {
    %c0_i32 = arith.constant 0 : i32
    %c0_i32_0 = arith.constant 0 : i32
    %c0_i32_1 = arith.constant 0 : i32
    return %c0_i32, %c0_i32_0 : i32, i32
  }
  func.func @transform_10(%arg0: i32) -> (i32, i32) {
    %c0_i32 = arith.constant 0 : i32
    %c0_i32_0 = arith.constant 0 : i32
    %c0_i32_1 = arith.constant 0 : i32
    return %c0_i32, %c0_i32_0 : i32, i32
  }
  func.func @transform_11(%arg0: i32) -> (i32, i32, i32) {
    %c0_i32 = arith.constant 0 : i32
    %c0_i32_0 = arith.constant 0 : i32
    %c0_i32_1 = arith.constant 0 : i32
    %c0_i32_2 = arith.constant 0 : i32
    return %c0_i32, %c0_i32_0, %c0_i32_1 : i32, i32, i32
  }
  func.func @transform_12(%arg0: i32) -> (i32, i32, i32) {
    %c0_i32 = arith.constant 0 : i32
    %c0_i32_0 = arith.constant 0 : i32
    %c0_i32_1 = arith.constant 0 : i32
    %c0_i32_2 = arith.constant 0 : i32
    return %c0_i32, %c0_i32_0, %c0_i32_1 : i32, i32, i32
  }
  func.func @transform_13(%arg0: i32) -> (i32, i32) {
    %c0_i32 = arith.constant 0 : i32
    %c0_i32_0 = arith.constant 0 : i32
    %c0_i32_1 = arith.constant 0 : i32
    return %c0_i32, %c0_i32_0 : i32, i32
  }
  func.func @transform_14(%arg0: i32) -> (i32, i32) {
    %c0_i32 = arith.constant 0 : i32
    %c0_i32_0 = arith.constant 0 : i32
    %c0_i32_1 = arith.constant 0 : i32
    return %c0_i32, %c0_i32_0 : i32, i32
  }
  func.func @transform_15(%arg0: i32) -> (i32, i32) {
    %c0_i32 = arith.constant 0 : i32
    %c0_i32_0 = arith.constant 0 : i32
    %c0_i32_1 = arith.constant 0 : i32
    return %c0_i32, %c0_i32_0 : i32, i32
  }
  func.func @transform_16(%arg0: i32) -> (i32, i32) {
    %c0_i32 = arith.constant 0 : i32
    %c0_i32_0 = arith.constant 0 : i32
    %c0_i32_1 = arith.constant 0 : i32
    return %c0_i32, %c0_i32_0 : i32, i32
  }
  func.func @transform_17(%arg0: i32) -> (i32, i32, i32) {
    %c0_i32 = arith.constant 0 : i32
    %c0_i32_0 = arith.constant 0 : i32
    %c0_i32_1 = arith.constant 0 : i32
    %c0_i32_2 = arith.constant 0 : i32
    return %c0_i32, %c0_i32_0, %c0_i32_1 : i32, i32, i32
  }
  func.func @transform_18(%arg0: i32) -> (i32, i32, i32) {
    %c0_i32 = arith.constant 0 : i32
    %c0_i32_0 = arith.constant 0 : i32
    %c0_i32_1 = arith.constant 0 : i32
    %c0_i32_2 = arith.constant 0 : i32
    return %c0_i32, %c0_i32_0, %c0_i32_1 : i32, i32, i32
  }
  func.func @transform_19(%arg0: i32) -> (i32, i32, i32) {
    %c0_i32 = arith.constant 0 : i32
    %c0_i32_0 = arith.constant 0 : i32
    %c0_i32_1 = arith.constant 0 : i32
    %c0_i32_2 = arith.constant 0 : i32
    return %c0_i32, %c0_i32_0, %c0_i32_1 : i32, i32, i32
  }
  func.func @transform_20(%arg0: i32) -> (i32, i32, i32) {
    %c0_i32 = arith.constant 0 : i32
    %c0_i32_0 = arith.constant 0 : i32
    %c0_i32_1 = arith.constant 0 : i32
    %c0_i32_2 = arith.constant 0 : i32
    return %c0_i32, %c0_i32_0, %c0_i32_1 : i32, i32, i32
  }
  func.func @transform_21(%arg0: i32) -> (i32, i32, i32) {
    %c0_i32 = arith.constant 0 : i32
    %c0_i32_0 = arith.constant 0 : i32
    %c0_i32_1 = arith.constant 0 : i32
    %c0_i32_2 = arith.constant 0 : i32
    return %c0_i32, %c0_i32_0, %c0_i32_1 : i32, i32, i32
  }
  func.func @transform_22(%arg0: i32) -> (i32, i32, i32, i32) {
    %c0_i32 = arith.constant 0 : i32
    %c0_i32_0 = arith.constant 0 : i32
    %c0_i32_1 = arith.constant 0 : i32
    %c0_i32_2 = arith.constant 0 : i32
    %c0_i32_3 = arith.constant 0 : i32
    return %c0_i32, %c0_i32_0, %c0_i32_1, %c0_i32_2 : i32, i32, i32, i32
  }
  func.func @transform_23(%arg0: i32) -> (i32, i32, i32, i32) {
    %c0_i32 = arith.constant 0 : i32
    %c0_i32_0 = arith.constant 0 : i32
    %c0_i32_1 = arith.constant 0 : i32
    %c0_i32_2 = arith.constant 0 : i32
    %c0_i32_3 = arith.constant 0 : i32
    return %c0_i32, %c0_i32_0, %c0_i32_1, %c0_i32_2 : i32, i32, i32, i32
  }
  func.func @transform_24(%arg0: i32) -> (i32, i32, i32) {
    %c0_i32 = arith.constant 0 : i32
    %c0_i32_0 = arith.constant 0 : i32
    %c0_i32_1 = arith.constant 0 : i32
    %c0_i32_2 = arith.constant 0 : i32
    return %c0_i32, %c0_i32_0, %c0_i32_1 : i32, i32, i32
  }
  func.func @transform_25(%arg0: i32) -> (i32, i32, i32) {
    %c0_i32 = arith.constant 0 : i32
    %c0_i32_0 = arith.constant 0 : i32
    %c0_i32_1 = arith.constant 0 : i32
    %c0_i32_2 = arith.constant 0 : i32
    return %c0_i32, %c0_i32_0, %c0_i32_1 : i32, i32, i32
  }
  func.func @transform_26(%arg0: i32) -> (i32, i32, i32) {
    %c0_i32 = arith.constant 0 : i32
    %c0_i32_0 = arith.constant 0 : i32
    %c0_i32_1 = arith.constant 0 : i32
    %c0_i32_2 = arith.constant 0 : i32
    return %c0_i32, %c0_i32_0, %c0_i32_1 : i32, i32, i32
  }
  func.func @transform_27(%arg0: i32) -> (i32, i32, i32) {
    %c0_i32 = arith.constant 0 : i32
    %c0_i32_0 = arith.constant 0 : i32
    %c0_i32_1 = arith.constant 0 : i32
    %c0_i32_2 = arith.constant 0 : i32
    return %c0_i32, %c0_i32_0, %c0_i32_1 : i32, i32, i32
  }
  func.func @transform_28(%arg0: i32) -> (i32, i32) {
    %c0_i32 = arith.constant 0 : i32
    %c0_i32_0 = arith.constant 0 : i32
    %c0_i32_1 = arith.constant 0 : i32
    return %c0_i32, %c0_i32_0 : i32, i32
  }
  func.func @transform_29(%arg0: i32) -> (i32, i32) {
    %c0_i32 = arith.constant 0 : i32
    %c0_i32_0 = arith.constant 0 : i32
    %c0_i32_1 = arith.constant 0 : i32
    return %c0_i32, %c0_i32_0 : i32, i32
  }
  func.func @transform_30(%arg0: i32) -> (i32, i32) {
    %c0_i32 = arith.constant 0 : i32
    %c0_i32_0 = arith.constant 0 : i32
    %c0_i32_1 = arith.constant 0 : i32
    return %c0_i32, %c0_i32_0 : i32, i32
  }
  func.func @transform_31(%arg0: i32) -> (i32, i32) {
    %c0_i32 = arith.constant 0 : i32
    %c0_i32_0 = arith.constant 0 : i32
    %c0_i32_1 = arith.constant 0 : i32
    return %c0_i32, %c0_i32_0 : i32, i32
  }
  func.func @transform_32(%arg0: i32) -> (i32, i32) {
    %c0_i32 = arith.constant 0 : i32
    %c0_i32_0 = arith.constant 0 : i32
    %c0_i32_1 = arith.constant 0 : i32
    return %c0_i32, %c0_i32_0 : i32, i32
  }
  func.func @transform_33(%arg0: i32) -> (i32, i32) {
    %c0_i32 = arith.constant 0 : i32
    %c0_i32_0 = arith.constant 0 : i32
    %c0_i32_1 = arith.constant 0 : i32
    return %c0_i32, %c0_i32_0 : i32, i32
  }
  func.func @transform_34(%arg0: i32) -> (i32, i32) {
    %c0_i32 = arith.constant 0 : i32
    %c0_i32_0 = arith.constant 0 : i32
    %c0_i32_1 = arith.constant 0 : i32
    return %c0_i32, %c0_i32_0 : i32, i32
  }
  func.func @transform_35(%arg0: i32) -> (i32, i32) {
    %c0_i32 = arith.constant 0 : i32
    %c0_i32_0 = arith.constant 0 : i32
    %c0_i32_1 = arith.constant 0 : i32
    return %c0_i32, %c0_i32_0 : i32, i32
  }
  func.func @transform_36(%arg0: i32) -> (i32, i32, i32) {
    %c0_i32 = arith.constant 0 : i32
    %c0_i32_0 = arith.constant 0 : i32
    %c0_i32_1 = arith.constant 0 : i32
    %c0_i32_2 = arith.constant 0 : i32
    return %c0_i32, %c0_i32_0, %c0_i32_1 : i32, i32, i32
  }
  func.func @transform_37(%arg0: i32) -> (i32, i32, i32) {
    %c0_i32 = arith.constant 0 : i32
    %c0_i32_0 = arith.constant 0 : i32
    %c0_i32_1 = arith.constant 0 : i32
    %c0_i32_2 = arith.constant 0 : i32
    return %c0_i32, %c0_i32_0, %c0_i32_1 : i32, i32, i32
  }
  func.func @transform_38(%arg0: i32) -> (i32, i32) {
    %c0_i32 = arith.constant 0 : i32
    %c0_i32_0 = arith.constant 0 : i32
    %c0_i32_1 = arith.constant 0 : i32
    return %c0_i32, %c0_i32_0 : i32, i32
  }
  func.func @transform_39(%arg0: i32) -> (i32, i32) {
    %c0_i32 = arith.constant 0 : i32
    %c0_i32_0 = arith.constant 0 : i32
    %c0_i32_1 = arith.constant 0 : i32
    return %c0_i32, %c0_i32_0 : i32, i32
  }
  func.func @transform_40(%arg0: i32) -> (i32, i32) {
    %c0_i32 = arith.constant 0 : i32
    %c0_i32_0 = arith.constant 0 : i32
    %c0_i32_1 = arith.constant 0 : i32
    return %c0_i32, %c0_i32_0 : i32, i32
  }
  func.func @transform_41(%arg0: i32) -> (i32, i32) {
    %c0_i32 = arith.constant 0 : i32
    %c0_i32_0 = arith.constant 0 : i32
    %c0_i32_1 = arith.constant 0 : i32
    return %c0_i32, %c0_i32_0 : i32, i32
  }
  func.func @transform_42(%arg0: i32) -> (i32, i32) {
    %c0_i32 = arith.constant 0 : i32
    %c0_i32_0 = arith.constant 0 : i32
    %c0_i32_1 = arith.constant 0 : i32
    return %c0_i32, %c0_i32_0 : i32, i32
  }
  func.func @transform_43(%arg0: i32) -> (i32, i32) {
    %c0_i32 = arith.constant 0 : i32
    %c0_i32_0 = arith.constant 0 : i32
    %c0_i32_1 = arith.constant 0 : i32
    return %c0_i32, %c0_i32_0 : i32, i32
  }
  func.func @transform_44(%arg0: i32) -> (i32, i32) {
    %c0_i32 = arith.constant 0 : i32
    %c0_i32_0 = arith.constant 0 : i32
    return %arg0, %c0_i32 : i32, i32
  }
}

</mosaic_0001>

<llo_original>
// kernel: _lambda_.1
$region0: #{_lambda_.1}
  #allocation0 [shape = 'u32[]', space=smem, size = 0x4, offset = 0x4, fixed_abs, tag = 'smem constant byte address 0x4 - core index']
  #allocation1 [shape = 'u32[144,128]{1,0:T(1,128)}', space=vmem, size = 0x12000, scoped, tag = 'internal scratch']
  %s0 = inlined_call_operand.smem [shape: u32[45], index: -1, kind: input, shape index: {}]
  %s1 = sld [smem:[%s0]]
  %s2 = scalar_lea.smem %s0, 1
  %s3 = sld [smem:[%s2]]
  %s4 = scalar_lea.smem %s0, 2
  %s5 = sld [smem:[%s4]]
  %s6 = scalar_lea.smem %s0, 3
  %s7 = sld [smem:[%s6]]
  %s8 = scalar_lea.smem %s0, 4
  %s9 = sld [smem:[%s8]]
  %s10 = scalar_lea.smem %s0, 5
  %s11 = sld [smem:[%s10]]
  %s12 = scalar_lea.smem %s0, 6
  %s13 = sld [smem:[%s12]]
  %s14 = scalar_lea.smem %s0, 7
  %s15 = sld [smem:[%s14]]
  %s16 = scalar_lea.smem %s0, 8
  %s17 = sld [smem:[%s16]]
  %s18 = scalar_lea.smem %s0, 9
  %s19 = sld [smem:[%s18]]
  %s20 = scalar_lea.smem %s0, 10
  %s21 = sld [smem:[%s20]]
  %s22 = scalar_lea.smem %s0, 11
  %s23 = sld [smem:[%s22]]
  %s24 = scalar_lea.smem %s0, 12
  %s25 = sld [smem:[%s24]]
  %s26 = scalar_lea.smem %s0, 13
  %s27 = sld [smem:[%s26]]
  %s28 = scalar_lea.smem %s0, 14
  %s29 = sld [smem:[%s28]]
  %s30 = scalar_lea.smem %s0, 15
  %s31 = sld [smem:[%s30]]
  %s32 = scalar_lea.smem %s0, 16
  %s33 = sld [smem:[%s32]]
  %s34 = scalar_lea.smem %s0, 17
  %s35 = sld [smem:[%s34]]
  %s36 = scalar_lea.smem %s0, 18
  %s37 = sld [smem:[%s36]]
  %s38 = scalar_lea.smem %s0, 19
  %s39 = sld [smem:[%s38]]
  %s40 = scalar_lea.smem %s0, 20
  %s41 = sld [smem:[%s40]]
  %s42 = scalar_lea.smem %s0, 21
  %s43 = sld [smem:[%s42]]
  %s44 = scalar_lea.smem %s0, 22
  %s45 = sld [smem:[%s44]]
  %s46 = scalar_lea.smem %s0, 23
  %s47 = sld [smem:[%s46]]
  %s48 = scalar_lea.smem %s0, 24
  %s49 = sld [smem:[%s48]]
  %s50 = scalar_lea.smem %s0, 25
  %s51 = sld [smem:[%s50]]
  %s52 = scalar_lea.smem %s0, 26
  %s53 = sld [smem:[%s52]]
  %s54 = scalar_lea.smem %s0, 27
  %s55 = sld [smem:[%s54]]
  %s56 = scalar_lea.smem %s0, 28
  %s57 = sld [smem:[%s56]]
  %s58 = scalar_lea.smem %s0, 29
  %s59 = sld [smem:[%s58]]
  %s60 = scalar_lea.smem %s0, 30
  %s61 = sld [smem:[%s60]]
  %s62 = scalar_lea.smem %s0, 31
  %s63 = sld [smem:[%s62]]
  %s64 = scalar_lea.smem %s0, 32
  %s65 = sld [smem:[%s64]]
  %s66 = scalar_lea.smem %s0, 33
  %s67 = sld [smem:[%s66]]
  %s68 = scalar_lea.smem %s0, 34
  %s69 = sld [smem:[%s68]]
  %s70 = scalar_lea.smem %s0, 35
  %s71 = sld [smem:[%s70]]
  %s72 = scalar_lea.smem %s0, 36
  %s73 = sld [smem:[%s72]]
  %s74 = scalar_lea.smem %s0, 37
  %s75 = sld [smem:[%s74]]
  %s76 = scalar_lea.smem %s0, 38
  %s77 = sld [smem:[%s76]]
  %s78 = scalar_lea.smem %s0, 39
  %s79 = sld [smem:[%s78]]
  %s80 = scalar_lea.smem %s0, 40
  %s81 = sld [smem:[%s80]]
  %s82 = scalar_lea.smem %s0, 41
  %s83 = sld [smem:[%s82]]
  %s84 = scalar_lea.smem %s0, 42
  %s85 = sld [smem:[%s84]]
  %s86 = scalar_lea.smem %s0, 43
  %s87 = sld [smem:[%s86]]
  %s88 = scalar_lea.smem %s0, 44
  %s89 = sld [smem:[%s88]]
  %s90 = sld [smem:[#allocation0]]
  $region209: #{_lambda_.1} parent=0
    _
  %s92 = ssub.s32 1, %s90
  %s93 = scalar_select 0, %s92, %s90
  $region1: #{_lambda_.1} parent=0
    #allocation2 [shape = 'u8[16384]{0}', space=vmem, size = 0x4000, scoped, tag = 'output window, operand 0']
    #allocation3 [shape = 's32[2]{0}', space=sflag, size = 0x8, scoped, tag = 'scoped memory for _lambda_.1']
    %94 = vsyncpa [#allocation3], 0
    %s95 = scalar_lea.sflag [#allocation3], 1
    %96 = vsyncpa %s95, 0
    loop: start=0, step=1, limit=4
    $region2: #{_lambda_.1} parent=1 // loop_pre_header
      _
    $region3: #{_lambda_.1} parent=1 // loop_header
      %s98 = sphi 0, %s102
      %p99 = scmp.ge.s32.totalorder %s98, 4
      %s108 = sphi 0, %s110
      %s111 = sphi 0, %s108
      %s112 = sphi 0, %s111
      %s128 = sphi 0, %s112
      %s134 = sphi 0, %s136
      %s137 = sphi 0, %s134
      %s138 = sphi 0, %s137
      %s154 = sphi 0, %s138
      %s158 = sphi 0, %s158
      %s160 = sphi 0, %s158
      %s161 = sphi 0, %s160
      %s175 = sphi 0, %s161
      %s179 = sphi 0, %s179
      %s181 = sphi 0, %s179
      %s182 = sphi 0, %s181
      %s196 = sphi 0, %s182
      %s200 = sphi 0, %s200
      %s202 = sphi 0, %s200
      %s203 = sphi 0, %s202
      %s217 = sphi 0, %s203
      %s221 = sphi 0, %s221
      %s223 = sphi 0, %s221
      %s224 = sphi 0, %s223
      %s238 = sphi 0, %s224
      %s242 = sphi 0, %s242
      %s244 = sphi 0, %s242
      %s245 = sphi 0, %s244
      %s259 = sphi 0, %s245
      %s263 = sphi 0, %s263
      %s265 = sphi 0, %s263
      %s266 = sphi 0, %s265
      %s280 = sphi 0, %s266
      %s284 = sphi 0, %s284
      %s286 = sphi 0, %s284
      %s287 = sphi 0, %s286
      %s301 = sphi 0, %s287
      %s305 = sphi 0, %s305
      %s307 = sphi 0, %s305
      %s308 = sphi 0, %s307
      %s322 = sphi 0, %s308
      %s326 = sphi 0, %s326
      %s328 = sphi 0, %s326
      %s329 = sphi 0, %s328
      %s343 = sphi 0, %s329
      %s347 = sphi 0, %s347
      %s349 = sphi 0, %s347
      %s350 = sphi 0, %s349
      %s364 = sphi 0, %s350
      %s368 = sphi 0, %s368
      %s370 = sphi 0, %s368
      %s371 = sphi 0, %s370
      %s385 = sphi 0, %s371
      %s389 = sphi 0, %s389
      %s391 = sphi 0, %s389
      %s392 = sphi 0, %s391
      %s406 = sphi 0, %s392
      %s410 = sphi 0, %s410
      %s412 = sphi 0, %s410
      %s413 = sphi 0, %s412
      %s427 = sphi 0, %s413
      %s431 = sphi 0, %s431
      %s433 = sphi 0, %s431
      %s434 = sphi 0, %s433
      %s448 = sphi 0, %s434
      %s452 = sphi 0, %s452
      %s454 = sphi 0, %s452
      %s455 = sphi 0, %s454
      %s469 = sphi 0, %s455
      %s473 = sphi 0, %s473
      %s475 = sphi 0, %s473
      %s476 = sphi 0, %s475
      %s490 = sphi 0, %s476
      %s494 = sphi 0, %s494
      %s496 = sphi 0, %s494
      %s497 = sphi 0, %s496
      %s511 = sphi 0, %s497
      %s515 = sphi 0, %s515
      %s517 = sphi 0, %s515
      %s518 = sphi 0, %s517
      %s532 = sphi 0, %s518
      %s536 = sphi 0, %s536
      %s538 = sphi 0, %s536
      %s539 = sphi 0, %s538
      %s553 = sphi 0, %s539
      %s557 = sphi 0, %s557
      %s559 = sphi 0, %s557
      %s560 = sphi 0, %s559
      %s574 = sphi 0, %s560
      %s578 = sphi 0, %s578
      %s580 = sphi 0, %s578
      %s581 = sphi 0, %s580
      %s595 = sphi 0, %s581
      %s599 = sphi 0, %s599
      %s601 = sphi 0, %s599
      %s602 = sphi 0, %s601
      %s616 = sphi 0, %s602
      %s620 = sphi 0, %s620
      %s622 = sphi 0, %s620
      %s623 = sphi 0, %s622
      %s637 = sphi 0, %s623
      %s641 = sphi 0, %s641
      %s643 = sphi 0, %s641
      %s644 = sphi 0, %s643
      %s658 = sphi 0, %s644
      %s662 = sphi 0, %s662
      %s664 = sphi 0, %s662
      %s665 = sphi 0, %s664
      %s679 = sphi 0, %s665
      %s683 = sphi 0, %s683
      %s685 = sphi 0, %s683
      %s686 = sphi 0, %s685
      %s700 = sphi 0, %s686
      %s704 = sphi 0, %s704
      %s706 = sphi 0, %s704
      %s707 = sphi 0, %s706
      %s721 = sphi 0, %s707
      %s725 = sphi 0, %s725
      %s727 = sphi 0, %s725
      %s728 = sphi 0, %s727
      %s742 = sphi 0, %s728
      %s746 = sphi 0, %s746
      %s748 = sphi 0, %s746
      %s749 = sphi 0, %s748
      %s763 = sphi 0, %s749
      %s767 = sphi 0, %s767
      %s769 = sphi 0, %s767
      %s770 = sphi 0, %s769
      %s784 = sphi 0, %s770
      %s788 = sphi 0, %s788
      %s790 = sphi 0, %s788
      %s791 = sphi 0, %s790
      %s805 = sphi 0, %s791
      %s809 = sphi 0, %s809
      %s811 = sphi 0, %s809
      %s812 = sphi 0, %s811
      %s826 = sphi 0, %s812
      %s830 = sphi 0, %s830
      %s832 = sphi 0, %s830
      %s833 = sphi 0, %s832
      %s847 = sphi 0, %s833
      %s851 = sphi 0, %s851
      %s853 = sphi 0, %s851
      %s854 = sphi 0, %s853
      %s868 = sphi 0, %s854
      %s872 = sphi 0, %s872
      %s874 = sphi 0, %s872
      %s875 = sphi 0, %s874
      %s889 = sphi 0, %s875
      %s893 = sphi 0, %s893
      %s895 = sphi 0, %s893
      %s896 = sphi 0, %s895
      %s910 = sphi 0, %s896
      %s914 = sphi 0, %s914
      %s916 = sphi 0, %s914
      %s917 = sphi 0, %s916
      %s931 = sphi 0, %s917
      %s935 = sphi 0, %s935
      %s937 = sphi 0, %s935
      %s938 = sphi 0, %s937
      %s952 = sphi 0, %s938
      %s956 = sphi 0, %s956
      %s958 = sphi 0, %s956
      %s959 = sphi 0, %s958
      %s973 = sphi 0, %s959
      %s977 = sphi 0, %s977
      %s979 = sphi 0, %s977
      %s980 = sphi 0, %s979
      %s994 = sphi 0, %s980
      %s998 = sphi 0, %s998
      %s1000 = sphi 0, %s998
      %s1001 = sphi 0, %s1000
      %s1015 = sphi 0, %s1001
      %s1019 = sphi 0, %s1019
      %s1021 = sphi 0, %s1019
      %s1022 = sphi 0, %s1021
      %s1036 = sphi 0, %s1022
      %s1042 = sphi 0, %s1044
      %s1045 = sphi 0, %s1042
      %s1046 = sphi 0, %s1045
      %s1062 = sphi 0, %s1046
    $region4: #{_lambda_.1} parent=1 // loop_header_branch
      %101 = sbr.rel (%p99) target = $region8
    $region5: #{_lambda_.1} parent=1 // loop_body
      %s103 = ssub.s32 %s98, 1
      %s104 = ssub.s32 %s98, 2
      %s105 = sadd.s32 %s98, 1
      %s106 = ssub.s32 %s98, %s105
      %p107 = scmp.eq.s32.totalorder %s106, 0
      %s109 = sadd.s32 %s108, 1
      %s110 = scalar_select %p107, %s108, %s109
      %p113 = pneg %p107
      %p114 = scmp.eq.s32.totalorder %s98, 1
      %p115 = por %p113, %p114
      %p116 = scmp.ne.s32.totalorder %s108, %s111
      %p117 = scmp.eq.s32.totalorder %s98, 0
      %p118 = por %p116, %p117
      %p119 = scmp.ne.s32.totalorder %s108, %s111
      %p120 = scmp.eq.s32.totalorder %s103, 1
      %p121 = por %p119, %p120
      %p122 = scmp.ne.s32.totalorder %s111, %s112
      %p123 = scmp.eq.s32.totalorder %s103, 0
      %p124 = por %p122, %p123
      %p125 = scmp.ne.s32.totalorder %s111, %s112
      %p126 = scmp.eq.s32.totalorder %s104, 1
      %p127 = por %p125, %p126
      %p129 = scmp.ne.s32.totalorder %s112, %s128
      %p130 = scmp.eq.s32.totalorder %s104, 0
      %p131 = por %p129, %p130
      %s132 = ssub.s32 %s98, %s105
      %p133 = scmp.eq.s32.totalorder %s132, 0
      %s135 = sadd.s32 %s134, 1
      %s136 = scalar_select %p133, %s134, %s135
      %p139 = pneg %p133
      %p140 = scmp.eq.s32.totalorder %s98, 1
      %p141 = por %p139, %p140
      %p142 = scmp.ne.s32.totalorder %s134, %s137
      %p143 = scmp.eq.s32.totalorder %s98, 0
      %p144 = por %p142, %p143
      %p145 = scmp.ne.s32.totalorder %s134, %s137
      %p146 = scmp.eq.s32.totalorder %s103, 1
      %p147 = por %p145, %p146
      %p148 = scmp.ne.s32.totalorder %s137, %s138
      %p149 = scmp.eq.s32.totalorder %s103, 0
      %p150 = por %p148, %p149
      %p151 = scmp.ne.s32.totalorder %s137, %s138
      %p152 = scmp.eq.s32.totalorder %s104, 1
      %p153 = por %p151, %p152
      %p155 = scmp.ne.s32.totalorder %s138, %s154
      %p156 = scmp.eq.s32.totalorder %s104, 0
      %p157 = por %p155, %p156
      %s159 = sadd.s32 %s158, 1
      %p162 = scmp.eq.s32.totalorder %s98, 1
      %p163 = scmp.ne.s32.totalorder %s158, %s160
      %p164 = scmp.eq.s32.totalorder %s98, 0
      %p165 = por %p163, %p164
      %p166 = scmp.ne.s32.totalorder %s158, %s160
      %p167 = scmp.eq.s32.totalorder %s103, 1
      %p168 = por %p166, %p167
      %p169 = scmp.ne.s32.totalorder %s160, %s161
      %p170 = scmp.eq.s32.totalorder %s103, 0
      %p171 = por %p169, %p170
      %p172 = scmp.ne.s32.totalorder %s160, %s161
      %p173 = scmp.eq.s32.totalorder %s104, 1
      %p174 = por %p172, %p173
      %p176 = scmp.ne.s32.totalorder %s161, %s175
      %p177 = scmp.eq.s32.totalorder %s104, 0
      %p178 = por %p176, %p177
      %s180 = sadd.s32 %s179, 1
      %p183 = scmp.eq.s32.totalorder %s98, 1
      %p184 = scmp.ne.s32.totalorder %s179, %s181
      %p185 = scmp.eq.s32.totalorder %s98, 0
      %p186 = por %p184, %p185
      %p187 = scmp.ne.s32.totalorder %s179, %s181
      %p188 = scmp.eq.s32.totalorder %s103, 1
      %p189 = por %p187, %p188
      %p190 = scmp.ne.s32.totalorder %s181, %s182
      %p191 = scmp.eq.s32.totalorder %s103, 0
      %p192 = por %p190, %p191
      %p193 = scmp.ne.s32.totalorder %s181, %s182
      %p194 = scmp.eq.s32.totalorder %s104, 1
      %p195 = por %p193, %p194
      %p197 = scmp.ne.s32.totalorder %s182, %s196
      %p198 = scmp.eq.s32.totalorder %s104, 0
      %p199 = por %p197, %p198
      %s201 = sadd.s32 %s200, 1
      %p204 = scmp.eq.s32.totalorder %s98, 1
      %p205 = scmp.ne.s32.totalorder %s200, %s202
      %p206 = scmp.eq.s32.totalorder %s98, 0
      %p207 = por %p205, %p206
      %p208 = scmp.ne.s32.totalorder %s200, %s202
      %p209 = scmp.eq.s32.totalorder %s103, 1
      %p210 = por %p208, %p209
      %p211 = scmp.ne.s32.totalorder %s202, %s203
      %p212 = scmp.eq.s32.totalorder %s103, 0
      %p213 = por %p211, %p212
      %p214 = scmp.ne.s32.totalorder %s202, %s203
      %p215 = scmp.eq.s32.totalorder %s104, 1
      %p216 = por %p214, %p215
      %p218 = scmp.ne.s32.totalorder %s203, %s217
      %p219 = scmp.eq.s32.totalorder %s104, 0
      %p220 = por %p218, %p219
      %s222 = sadd.s32 %s221, 1
      %p225 = scmp.eq.s32.totalorder %s98, 1
      %p226 = scmp.ne.s32.totalorder %s221, %s223
      %p227 = scmp.eq.s32.totalorder %s98, 0
      %p228 = por %p226, %p227
      %p229 = scmp.ne.s32.totalorder %s221, %s223
      %p230 = scmp.eq.s32.totalorder %s103, 1
      %p231 = por %p229, %p230
      %p232 = scmp.ne.s32.totalorder %s223, %s224
      %p233 = scmp.eq.s32.totalorder %s103, 0
      %p234 = por %p232, %p233
      %p235 = scmp.ne.s32.totalorder %s223, %s224
      %p236 = scmp.eq.s32.totalorder %s104, 1
      %p237 = por %p235, %p236
      %p239 = scmp.ne.s32.totalorder %s224, %s238
      %p240 = scmp.eq.s32.totalorder %s104, 0
      %p241 = por %p239, %p240
      %s243 = sadd.s32 %s242, 1
      %p246 = scmp.eq.s32.totalorder %s98, 1
      %p247 = scmp.ne.s32.totalorder %s242, %s244
      %p248 = scmp.eq.s32.totalorder %s98, 0
      %p249 = por %p247, %p248
      %p250 = scmp.ne.s32.totalorder %s242, %s244
      %p251 = scmp.eq.s32.totalorder %s103, 1
      %p252 = por %p250, %p251
      %p253 = scmp.ne.s32.totalorder %s244, %s245
      %p254 = scmp.eq.s32.totalorder %s103, 0
      %p255 = por %p253, %p254
      %p256 = scmp.ne.s32.totalorder %s244, %s245
      %p257 = scmp.eq.s32.totalorder %s104, 1
      %p258 = por %p256, %p257
      %p260 = scmp.ne.s32.totalorder %s245, %s259
      %p261 = scmp.eq.s32.totalorder %s104, 0
      %p262 = por %p260, %p261
      %s264 = sadd.s32 %s263, 1
      %p267 = scmp.eq.s32.totalorder %s98, 1
      %p268 = scmp.ne.s32.totalorder %s263, %s265
      %p269 = scmp.eq.s32.totalorder %s98, 0
      %p270 = por %p268, %p269
      %p271 = scmp.ne.s32.totalorder %s263, %s265
      %p272 = scmp.eq.s32.totalorder %s103, 1
      %p273 = por %p271, %p272
      %p274 = scmp.ne.s32.totalorder %s265, %s266
      %p275 = scmp.eq.s32.totalorder %s103, 0
      %p276 = por %p274, %p275
      %p277 = scmp.ne.s32.totalorder %s265, %s266
      %p278 = scmp.eq.s32.totalorder %s104, 1
      %p279 = por %p277, %p278
      %p281 = scmp.ne.s32.totalorder %s266, %s280
      %p282 = scmp.eq.s32.totalorder %s104, 0
      %p283 = por %p281, %p282
      %s285 = sadd.s32 %s284, 1
      %p288 = scmp.eq.s32.totalorder %s98, 1
      %p289 = scmp.ne.s32.totalorder %s284, %s286
      %p290 = scmp.eq.s32.totalorder %s98, 0
      %p291 = por %p289, %p290
      %p292 = scmp.ne.s32.totalorder %s284, %s286
      %p293 = scmp.eq.s32.totalorder %s103, 1
      %p294 = por %p292, %p293
      %p295 = scmp.ne.s32.totalorder %s286, %s287
      %p296 = scmp.eq.s32.totalorder %s103, 0
      %p297 = por %p295, %p296
      %p298 = scmp.ne.s32.totalorder %s286, %s287
      %p299 = scmp.eq.s32.totalorder %s104, 1
      %p300 = por %p298, %p299
      %p302 = scmp.ne.s32.totalorder %s287, %s301
      %p303 = scmp.eq.s32.totalorder %s104, 0
      %p304 = por %p302, %p303
      %s306 = sadd.s32 %s305, 1
      %p309 = scmp.eq.s32.totalorder %s98, 1
      %p310 = scmp.ne.s32.totalorder %s305, %s307
      %p311 = scmp.eq.s32.totalorder %s98, 0
      %p312 = por %p310, %p311
      %p313 = scmp.ne.s32.totalorder %s305, %s307
      %p314 = scmp.eq.s32.totalorder %s103, 1
      %p315 = por %p313, %p314
      %p316 = scmp.ne.s32.totalorder %s307, %s308
      %p317 = scmp.eq.s32.totalorder %s103, 0
      %p318 = por %p316, %p317
      %p319 = scmp.ne.s32.totalorder %s307, %s308
      %p320 = scmp.eq.s32.totalorder %s104, 1
      %p321 = por %p319, %p320
      %p323 = scmp.ne.s32.totalorder %s308, %s322
      %p324 = scmp.eq.s32.totalorder %s104, 0
      %p325 = por %p323, %p324
      %s327 = sadd.s32 %s326, 1
      %p330 = scmp.eq.s32.totalorder %s98, 1
      %p331 = scmp.ne.s32.totalorder %s326, %s328
      %p332 = scmp.eq.s32.totalorder %s98, 0
      %p333 = por %p331, %p332
      %p334 = scmp.ne.s32.totalorder %s326, %s328
      %p335 = scmp.eq.s32.totalorder %s103, 1
      %p336 = por %p334, %p335
      %p337 = scmp.ne.s32.totalorder %s328, %s329
      %p338 = scmp.eq.s32.totalorder %s103, 0
      %p339 = por %p337, %p338
      %p340 = scmp.ne.s32.totalorder %s328, %s329
      %p341 = scmp.eq.s32.totalorder %s104, 1
      %p342 = por %p340, %p341
      %p344 = scmp.ne.s32.totalorder %s329, %s343
      %p345 = scmp.eq.s32.totalorder %s104, 0
      %p346 = por %p344, %p345
      %s348 = sadd.s32 %s347, 1
      %p351 = scmp.eq.s32.totalorder %s98, 1
      %p352 = scmp.ne.s32.totalorder %s347, %s349
      %p353 = scmp.eq.s32.totalorder %s98, 0
      %p354 = por %p352, %p353
      %p355 = scmp.ne.s32.totalorder %s347, %s349
      %p356 = scmp.eq.s32.totalorder %s103, 1
      %p357 = por %p355, %p356
      %p358 = scmp.ne.s32.totalorder %s349, %s350
      %p359 = scmp.eq.s32.totalorder %s103, 0
      %p360 = por %p358, %p359
      %p361 = scmp.ne.s32.totalorder %s349, %s350
      %p362 = scmp.eq.s32.totalorder %s104, 1
      %p363 = por %p361, %p362
      %p365 = scmp.ne.s32.totalorder %s350, %s364
      %p366 = scmp.eq.s32.totalorder %s104, 0
      %p367 = por %p365, %p366
      %s369 = sadd.s32 %s368, 1
      %p372 = scmp.eq.s32.totalorder %s98, 1
      %p373 = scmp.ne.s32.totalorder %s368, %s370
      %p374 = scmp.eq.s32.totalorder %s98, 0
      %p375 = por %p373, %p374
      %p376 = scmp.ne.s32.totalorder %s368, %s370
      %p377 = scmp.eq.s32.totalorder %s103, 1
      %p378 = por %p376, %p377
      %p379 = scmp.ne.s32.totalorder %s370, %s371
      %p380 = scmp.eq.s32.totalorder %s103, 0
      %p381 = por %p379, %p380
      %p382 = scmp.ne.s32.totalorder %s370, %s371
      %p383 = scmp.eq.s32.totalorder %s104, 1
      %p384 = por %p382, %p383
      %p386 = scmp.ne.s32.totalorder %s371, %s385
      %p387 = scmp.eq.s32.totalorder %s104, 0
      %p388 = por %p386, %p387
      %s390 = sadd.s32 %s389, 1
      %p393 = scmp.eq.s32.totalorder %s98, 1
      %p394 = scmp.ne.s32.totalorder %s389, %s391
      %p395 = scmp.eq.s32.totalorder %s98, 0
      %p396 = por %p394, %p395
      %p397 = scmp.ne.s32.totalorder %s389, %s391
      %p398 = scmp.eq.s32.totalorder %s103, 1
      %p399 = por %p397, %p398
      %p400 = scmp.ne.s32.totalorder %s391, %s392
      %p401 = scmp.eq.s32.totalorder %s103, 0
      %p402 = por %p400, %p401
      %p403 = scmp.ne.s32.totalorder %s391, %s392
      %p404 = scmp.eq.s32.totalorder %s104, 1
      %p405 = por %p403, %p404
      %p407 = scmp.ne.s32.totalorder %s392, %s406
      %p408 = scmp.eq.s32.totalorder %s104, 0
      %p409 = por %p407, %p408
      %s411 = sadd.s32 %s410, 1
      %p414 = scmp.eq.s32.totalorder %s98, 1
      %p415 = scmp.ne.s32.totalorder %s410, %s412
      %p416 = scmp.eq.s32.totalorder %s98, 0
      %p417 = por %p415, %p416
      %p418 = scmp.ne.s32.totalorder %s410, %s412
      %p419 = scmp.eq.s32.totalorder %s103, 1
      %p420 = por %p418, %p419
      %p421 = scmp.ne.s32.totalorder %s412, %s413
      %p422 = scmp.eq.s32.totalorder %s103, 0
      %p423 = por %p421, %p422
      %p424 = scmp.ne.s32.totalorder %s412, %s413
      %p425 = scmp.eq.s32.totalorder %s104, 1
      %p426 = por %p424, %p425
      %p428 = scmp.ne.s32.totalorder %s413, %s427
      %p429 = scmp.eq.s32.totalorder %s104, 0
      %p430 = por %p428, %p429
      %s432 = sadd.s32 %s431, 1
      %p435 = scmp.eq.s32.totalorder %s98, 1
      %p436 = scmp.ne.s32.totalorder %s431, %s433
      %p437 = scmp.eq.s32.totalorder %s98, 0
      %p438 = por %p436, %p437
      %p439 = scmp.ne.s32.totalorder %s431, %s433
      %p440 = scmp.eq.s32.totalorder %s103, 1
      %p441 = por %p439, %p440
      %p442 = scmp.ne.s32.totalorder %s433, %s434
      %p443 = scmp.eq.s32.totalorder %s103, 0
      %p444 = por %p442, %p443
      %p445 = scmp.ne.s32.totalorder %s433, %s434
      %p446 = scmp.eq.s32.totalorder %s104, 1
      %p447 = por %p445, %p446
      %p449 = scmp.ne.s32.totalorder %s434, %s448
      %p450 = scmp.eq.s32.totalorder %s104, 0
      %p451 = por %p449, %p450
      %s453 = sadd.s32 %s452, 1
      %p456 = scmp.eq.s32.totalorder %s98, 1
      %p457 = scmp.ne.s32.totalorder %s452, %s454
      %p458 = scmp.eq.s32.totalorder %s98, 0
      %p459 = por %p457, %p458
      %p460 = scmp.ne.s32.totalorder %s452, %s454
      %p461 = scmp.eq.s32.totalorder %s103, 1
      %p462 = por %p460, %p461
      %p463 = scmp.ne.s32.totalorder %s454, %s455
      %p464 = scmp.eq.s32.totalorder %s103, 0
      %p465 = por %p463, %p464
      %p466 = scmp.ne.s32.totalorder %s454, %s455
      %p467 = scmp.eq.s32.totalorder %s104, 1
      %p468 = por %p466, %p467
      %p470 = scmp.ne.s32.totalorder %s455, %s469
      %p471 = scmp.eq.s32.totalorder %s104, 0
      %p472 = por %p470, %p471
      %s474 = sadd.s32 %s473, 1
      %p477 = scmp.eq.s32.totalorder %s98, 1
      %p478 = scmp.ne.s32.totalorder %s473, %s475
      %p479 = scmp.eq.s32.totalorder %s98, 0
      %p480 = por %p478, %p479
      %p481 = scmp.ne.s32.totalorder %s473, %s475
      %p482 = scmp.eq.s32.totalorder %s103, 1
      %p483 = por %p481, %p482
      %p484 = scmp.ne.s32.totalorder %s475, %s476
      %p485 = scmp.eq.s32.totalorder %s103, 0
      %p486 = por %p484, %p485
      %p487 = scmp.ne.s32.totalorder %s475, %s476
      %p488 = scmp.eq.s32.totalorder %s104, 1
      %p489 = por %p487, %p488
      %p491 = scmp.ne.s32.totalorder %s476, %s490
      %p492 = scmp.eq.s32.totalorder %s104, 0
      %p493 = por %p491, %p492
      %s495 = sadd.s32 %s494, 1
      %p498 = scmp.eq.s32.totalorder %s98, 1
      %p499 = scmp.ne.s32.totalorder %s494, %s496
      %p500 = scmp.eq.s32.totalorder %s98, 0
      %p501 = por %p499, %p500
      %p502 = scmp.ne.s32.totalorder %s494, %s496
      %p503 = scmp.eq.s32.totalorder %s103, 1
      %p504 = por %p502, %p503
      %p505 = scmp.ne.s32.totalorder %s496, %s497
      %p506 = scmp.eq.s32.totalorder %s103, 0
      %p507 = por %p505, %p506
      %p508 = scmp.ne.s32.totalorder %s496, %s497
      %p509 = scmp.eq.s32.totalorder %s104, 1
      %p510 = por %p508, %p509
      %p512 = scmp.ne.s32.totalorder %s497, %s511
      %p513 = scmp.eq.s32.totalorder %s104, 0
      %p514 = por %p512, %p513
      %s516 = sadd.s32 %s515, 1
      %p519 = scmp.eq.s32.totalorder %s98, 1
      %p520 = scmp.ne.s32.totalorder %s515, %s517
      %p521 = scmp.eq.s32.totalorder %s98, 0
      %p522 = por %p520, %p521
      %p523 = scmp.ne.s32.totalorder %s515, %s517
      %p524 = scmp.eq.s32.totalorder %s103, 1
      %p525 = por %p523, %p524
      %p526 = scmp.ne.s32.totalorder %s517, %s518
      %p527 = scmp.eq.s32.totalorder %s103, 0
      %p528 = por %p526, %p527
      %p529 = scmp.ne.s32.totalorder %s517, %s518
      %p530 = scmp.eq.s32.totalorder %s104, 1
      %p531 = por %p529, %p530
      %p533 = scmp.ne.s32.totalorder %s518, %s532
      %p534 = scmp.eq.s32.totalorder %s104, 0
      %p535 = por %p533, %p534
      %s537 = sadd.s32 %s536, 1
      %p540 = scmp.eq.s32.totalorder %s98, 1
      %p541 = scmp.ne.s32.totalorder %s536, %s538
      %p542 = scmp.eq.s32.totalorder %s98, 0
      %p543 = por %p541, %p542
      %p544 = scmp.ne.s32.totalorder %s536, %s538
      %p545 = scmp.eq.s32.totalorder %s103, 1
      %p546 = por %p544, %p545
      %p547 = scmp.ne.s32.totalorder %s538, %s539
      %p548 = scmp.eq.s32.totalorder %s103, 0
      %p549 = por %p547, %p548
      %p550 = scmp.ne.s32.totalorder %s538, %s539
      %p551 = scmp.eq.s32.totalorder %s104, 1
      %p552 = por %p550, %p551
      %p554 = scmp.ne.s32.totalorder %s539, %s553
      %p555 = scmp.eq.s32.totalorder %s104, 0
      %p556 = por %p554, %p555
      %s558 = sadd.s32 %s557, 1
      %p561 = scmp.eq.s32.totalorder %s98, 1
      %p562 = scmp.ne.s32.totalorder %s557, %s559
      %p563 = scmp.eq.s32.totalorder %s98, 0
      %p564 = por %p562, %p563
      %p565 = scmp.ne.s32.totalorder %s557, %s559
      %p566 = scmp.eq.s32.totalorder %s103, 1
      %p567 = por %p565, %p566
      %p568 = scmp.ne.s32.totalorder %s559, %s560
      %p569 = scmp.eq.s32.totalorder %s103, 0
      %p570 = por %p568, %p569
      %p571 = scmp.ne.s32.totalorder %s559, %s560
      %p572 = scmp.eq.s32.totalorder %s104, 1
      %p573 = por %p571, %p572
      %p575 = scmp.ne.s32.totalorder %s560, %s574
      %p576 = scmp.eq.s32.totalorder %s104, 0
      %p577 = por %p575, %p576
      %s579 = sadd.s32 %s578, 1
      %p582 = scmp.eq.s32.totalorder %s98, 1
      %p583 = scmp.ne.s32.totalorder %s578, %s580
      %p584 = scmp.eq.s32.totalorder %s98, 0
      %p585 = por %p583, %p584
      %p586 = scmp.ne.s32.totalorder %s578, %s580
      %p587 = scmp.eq.s32.totalorder %s103, 1
      %p588 = por %p586, %p587
      %p589 = scmp.ne.s32.totalorder %s580, %s581
      %p590 = scmp.eq.s32.totalorder %s103, 0
      %p591 = por %p589, %p590
      %p592 = scmp.ne.s32.totalorder %s580, %s581
      %p593 = scmp.eq.s32.totalorder %s104, 1
      %p594 = por %p592, %p593
      %p596 = scmp.ne.s32.totalorder %s581, %s595
      %p597 = scmp.eq.s32.totalorder %s104, 0
      %p598 = por %p596, %p597
      %s600 = sadd.s32 %s599, 1
      %p603 = scmp.eq.s32.totalorder %s98, 1
      %p604 = scmp.ne.s32.totalorder %s599, %s601
      %p605 = scmp.eq.s32.totalorder %s98, 0
      %p606 = por %p604, %p605
      %p607 = scmp.ne.s32.totalorder %s599, %s601
      %p608 = scmp.eq.s32.totalorder %s103, 1
      %p609 = por %p607, %p608
      %p610 = scmp.ne.s32.totalorder %s601, %s602
      %p611 = scmp.eq.s32.totalorder %s103, 0
      %p612 = por %p610, %p611
      %p613 = scmp.ne.s32.totalorder %s601, %s602
      %p614 = scmp.eq.s32.totalorder %s104, 1
      %p615 = por %p613, %p614
      %p617 = scmp.ne.s32.totalorder %s602, %s616
      %p618 = scmp.eq.s32.totalorder %s104, 0
      %p619 = por %p617, %p618
      %s621 = sadd.s32 %s620, 1
      %p624 = scmp.eq.s32.totalorder %s98, 1
      %p625 = scmp.ne.s32.totalorder %s620, %s622
      %p626 = scmp.eq.s32.totalorder %s98, 0
      %p627 = por %p625, %p626
      %p628 = scmp.ne.s32.totalorder %s620, %s622
      %p629 = scmp.eq.s32.totalorder %s103, 1
      %p630 = por %p628, %p629
      %p631 = scmp.ne.s32.totalorder %s622, %s623
      %p632 = scmp.eq.s32.totalorder %s103, 0
      %p633 = por %p631, %p632
      %p634 = scmp.ne.s32.totalorder %s622, %s623
      %p635 = scmp.eq.s32.totalorder %s104, 1
      %p636 = por %p634, %p635
      %p638 = scmp.ne.s32.totalorder %s623, %s637
      %p639 = scmp.eq.s32.totalorder %s104, 0
      %p640 = por %p638, %p639
      %s642 = sadd.s32 %s641, 1
      %p645 = scmp.eq.s32.totalorder %s98, 1
      %p646 = scmp.ne.s32.totalorder %s641, %s643
      %p647 = scmp.eq.s32.totalorder %s98, 0
      %p648 = por %p646, %p647
      %p649 = scmp.ne.s32.totalorder %s641, %s643
      %p650 = scmp.eq.s32.totalorder %s103, 1
      %p651 = por %p649, %p650
      %p652 = scmp.ne.s32.totalorder %s643, %s644
      %p653 = scmp.eq.s32.totalorder %s103, 0
      %p654 = por %p652, %p653
      %p655 = scmp.ne.s32.totalorder %s643, %s644
      %p656 = scmp.eq.s32.totalorder %s104, 1
      %p657 = por %p655, %p656
      %p659 = scmp.ne.s32.totalorder %s644, %s658
      %p660 = scmp.eq.s32.totalorder %s104, 0
      %p661 = por %p659, %p660
      %s663 = sadd.s32 %s662, 1
      %p666 = scmp.eq.s32.totalorder %s98, 1
      %p667 = scmp.ne.s32.totalorder %s662, %s664
      %p668 = scmp.eq.s32.totalorder %s98, 0
      %p669 = por %p667, %p668
      %p670 = scmp.ne.s32.totalorder %s662, %s664
      %p671 = scmp.eq.s32.totalorder %s103, 1
      %p672 = por %p670, %p671
      %p673 = scmp.ne.s32.totalorder %s664, %s665
      %p674 = scmp.eq.s32.totalorder %s103, 0
      %p675 = por %p673, %p674
      %p676 = scmp.ne.s32.totalorder %s664, %s665
      %p677 = scmp.eq.s32.totalorder %s104, 1
      %p678 = por %p676, %p677
      %p680 = scmp.ne.s32.totalorder %s665, %s679
      %p681 = scmp.eq.s32.totalorder %s104, 0
      %p682 = por %p680, %p681
      %s684 = sadd.s32 %s683, 1
      %p687 = scmp.eq.s32.totalorder %s98, 1
      %p688 = scmp.ne.s32.totalorder %s683, %s685
      %p689 = scmp.eq.s32.totalorder %s98, 0
      %p690 = por %p688, %p689
      %p691 = scmp.ne.s32.totalorder %s683, %s685
      %p692 = scmp.eq.s32.totalorder %s103, 1
      %p693 = por %p691, %p692
      %p694 = scmp.ne.s32.totalorder %s685, %s686
      %p695 = scmp.eq.s32.totalorder %s103, 0
      %p696 = por %p694, %p695
      %p697 = scmp.ne.s32.totalorder %s685, %s686
      %p698 = scmp.eq.s32.totalorder %s104, 1
      %p699 = por %p697, %p698
      %p701 = scmp.ne.s32.totalorder %s686, %s700
      %p702 = scmp.eq.s32.totalorder %s104, 0
      %p703 = por %p701, %p702
      %s705 = sadd.s32 %s704, 1
      %p708 = scmp.eq.s32.totalorder %s98, 1
      %p709 = scmp.ne.s32.totalorder %s704, %s706
      %p710 = scmp.eq.s32.totalorder %s98, 0
      %p711 = por %p709, %p710
      %p712 = scmp.ne.s32.totalorder %s704, %s706
      %p713 = scmp.eq.s32.totalorder %s103, 1
      %p714 = por %p712, %p713
      %p715 = scmp.ne.s32.totalorder %s706, %s707
      %p716 = scmp.eq.s32.totalorder %s103, 0
      %p717 = por %p715, %p716
      %p718 = scmp.ne.s32.totalorder %s706, %s707
      %p719 = scmp.eq.s32.totalorder %s104, 1
      %p720 = por %p718, %p719
      %p722 = scmp.ne.s32.totalorder %s707, %s721
      %p723 = scmp.eq.s32.totalorder %s104, 0
      %p724 = por %p722, %p723
      %s726 = sadd.s32 %s725, 1
      %p729 = scmp.eq.s32.totalorder %s98, 1
      %p730 = scmp.ne.s32.totalorder %s725, %s727
      %p731 = scmp.eq.s32.totalorder %s98, 0
      %p732 = por %p730, %p731
      %p733 = scmp.ne.s32.totalorder %s725, %s727
      %p734 = scmp.eq.s32.totalorder %s103, 1
      %p735 = por %p733, %p734
      %p736 = scmp.ne.s32.totalorder %s727, %s728
      %p737 = scmp.eq.s32.totalorder %s103, 0
      %p738 = por %p736, %p737
      %p739 = scmp.ne.s32.totalorder %s727, %s728
      %p740 = scmp.eq.s32.totalorder %s104, 1
      %p741 = por %p739, %p740
      %p743 = scmp.ne.s32.totalorder %s728, %s742
      %p744 = scmp.eq.s32.totalorder %s104, 0
      %p745 = por %p743, %p744
      %s747 = sadd.s32 %s746, 1
      %p750 = scmp.eq.s32.totalorder %s98, 1
      %p751 = scmp.ne.s32.totalorder %s746, %s748
      %p752 = scmp.eq.s32.totalorder %s98, 0
      %p753 = por %p751, %p752
      %p754 = scmp.ne.s32.totalorder %s746, %s748
      %p755 = scmp.eq.s32.totalorder %s103, 1
      %p756 = por %p754, %p755
      %p757 = scmp.ne.s32.totalorder %s748, %s749
      %p758 = scmp.eq.s32.totalorder %s103, 0
      %p759 = por %p757, %p758
      %p760 = scmp.ne.s32.totalorder %s748, %s749
      %p761 = scmp.eq.s32.totalorder %s104, 1
      %p762 = por %p760, %p761
      %p764 = scmp.ne.s32.totalorder %s749, %s763
      %p765 = scmp.eq.s32.totalorder %s104, 0
      %p766 = por %p764, %p765
      %s768 = sadd.s32 %s767, 1
      %p771 = scmp.eq.s32.totalorder %s98, 1
      %p772 = scmp.ne.s32.totalorder %s767, %s769
      %p773 = scmp.eq.s32.totalorder %s98, 0
      %p774 = por %p772, %p773
      %p775 = scmp.ne.s32.totalorder %s767, %s769
      %p776 = scmp.eq.s32.totalorder %s103, 1
      %p777 = por %p775, %p776
      %p778 = scmp.ne.s32.totalorder %s769, %s770
      %p779 = scmp.eq.s32.totalorder %s103, 0
      %p780 = por %p778, %p779
      %p781 = scmp.ne.s32.totalorder %s769, %s770
      %p782 = scmp.eq.s32.totalorder %s104, 1
      %p783 = por %p781, %p782
      %p785 = scmp.ne.s32.totalorder %s770, %s784
      %p786 = scmp.eq.s32.totalorder %s104, 0
      %p787 = por %p785, %p786
      %s789 = sadd.s32 %s788, 1
      %p792 = scmp.eq.s32.totalorder %s98, 1
      %p793 = scmp.ne.s32.totalorder %s788, %s790
      %p794 = scmp.eq.s32.totalorder %s98, 0
      %p795 = por %p793, %p794
      %p796 = scmp.ne.s32.totalorder %s788, %s790
      %p797 = scmp.eq.s32.totalorder %s103, 1
      %p798 = por %p796, %p797
      %p799 = scmp.ne.s32.totalorder %s790, %s791
      %p800 = scmp.eq.s32.totalorder %s103, 0
      %p801 = por %p799, %p800
      %p802 = scmp.ne.s32.totalorder %s790, %s791
      %p803 = scmp.eq.s32.totalorder %s104, 1
      %p804 = por %p802, %p803
      %p806 = scmp.ne.s32.totalorder %s791, %s805
      %p807 = scmp.eq.s32.totalorder %s104, 0
      %p808 = por %p806, %p807
      %s810 = sadd.s32 %s809, 1
      %p813 = scmp.eq.s32.totalorder %s98, 1
      %p814 = scmp.ne.s32.totalorder %s809, %s811
      %p815 = scmp.eq.s32.totalorder %s98, 0
      %p816 = por %p814, %p815
      %p817 = scmp.ne.s32.totalorder %s809, %s811
      %p818 = scmp.eq.s32.totalorder %s103, 1
      %p819 = por %p817, %p818
      %p820 = scmp.ne.s32.totalorder %s811, %s812
      %p821 = scmp.eq.s32.totalorder %s103, 0
      %p822 = por %p820, %p821
      %p823 = scmp.ne.s32.totalorder %s811, %s812
      %p824 = scmp.eq.s32.totalorder %s104, 1
      %p825 = por %p823, %p824
      %p827 = scmp.ne.s32.totalorder %s812, %s826
      %p828 = scmp.eq.s32.totalorder %s104, 0
      %p829 = por %p827, %p828
      %s831 = sadd.s32 %s830, 1
      %p834 = scmp.eq.s32.totalorder %s98, 1
      %p835 = scmp.ne.s32.totalorder %s830, %s832
      %p836 = scmp.eq.s32.totalorder %s98, 0
      %p837 = por %p835, %p836
      %p838 = scmp.ne.s32.totalorder %s830, %s832
      %p839 = scmp.eq.s32.totalorder %s103, 1
      %p840 = por %p838, %p839
      %p841 = scmp.ne.s32.totalorder %s832, %s833
      %p842 = scmp.eq.s32.totalorder %s103, 0
      %p843 = por %p841, %p842
      %p844 = scmp.ne.s32.totalorder %s832, %s833
      %p845 = scmp.eq.s32.totalorder %s104, 1
      %p846 = por %p844, %p845
      %p848 = scmp.ne.s32.totalorder %s833, %s847
      %p849 = scmp.eq.s32.totalorder %s104, 0
      %p850 = por %p848, %p849
      %s852 = sadd.s32 %s851, 1
      %p855 = scmp.eq.s32.totalorder %s98, 1
      %p856 = scmp.ne.s32.totalorder %s851, %s853
      %p857 = scmp.eq.s32.totalorder %s98, 0
      %p858 = por %p856, %p857
      %p859 = scmp.ne.s32.totalorder %s851, %s853
      %p860 = scmp.eq.s32.totalorder %s103, 1
      %p861 = por %p859, %p860
      %p862 = scmp.ne.s32.totalorder %s853, %s854
      %p863 = scmp.eq.s32.totalorder %s103, 0
      %p864 = por %p862, %p863
      %p865 = scmp.ne.s32.totalorder %s853, %s854
      %p866 = scmp.eq.s32.totalorder %s104, 1
      %p867 = por %p865, %p866
      %p869 = scmp.ne.s32.totalorder %s854, %s868
      %p870 = scmp.eq.s32.totalorder %s104, 0
      %p871 = por %p869, %p870
      %s873 = sadd.s32 %s872, 1
      %p876 = scmp.eq.s32.totalorder %s98, 1
      %p877 = scmp.ne.s32.totalorder %s872, %s874
      %p878 = scmp.eq.s32.totalorder %s98, 0
      %p879 = por %p877, %p878
      %p880 = scmp.ne.s32.totalorder %s872, %s874
      %p881 = scmp.eq.s32.totalorder %s103, 1
      %p882 = por %p880, %p881
      %p883 = scmp.ne.s32.totalorder %s874, %s875
      %p884 = scmp.eq.s32.totalorder %s103, 0
      %p885 = por %p883, %p884
      %p886 = scmp.ne.s32.totalorder %s874, %s875
      %p887 = scmp.eq.s32.totalorder %s104, 1
      %p888 = por %p886, %p887
      %p890 = scmp.ne.s32.totalorder %s875, %s889
      %p891 = scmp.eq.s32.totalorder %s104, 0
      %p892 = por %p890, %p891
      %s894 = sadd.s32 %s893, 1
      %p897 = scmp.eq.s32.totalorder %s98, 1
      %p898 = scmp.ne.s32.totalorder %s893, %s895
      %p899 = scmp.eq.s32.totalorder %s98, 0
      %p900 = por %p898, %p899
      %p901 = scmp.ne.s32.totalorder %s893, %s895
      %p902 = scmp.eq.s32.totalorder %s103, 1
      %p903 = por %p901, %p902
      %p904 = scmp.ne.s32.totalorder %s895, %s896
      %p905 = scmp.eq.s32.totalorder %s103, 0
      %p906 = por %p904, %p905
      %p907 = scmp.ne.s32.totalorder %s895, %s896
      %p908 = scmp.eq.s32.totalorder %s104, 1
      %p909 = por %p907, %p908
      %p911 = scmp.ne.s32.totalorder %s896, %s910
      %p912 = scmp.eq.s32.totalorder %s104, 0
      %p913 = por %p911, %p912
      %s915 = sadd.s32 %s914, 1
      %p918 = scmp.eq.s32.totalorder %s98, 1
      %p919 = scmp.ne.s32.totalorder %s914, %s916
      %p920 = scmp.eq.s32.totalorder %s98, 0
      %p921 = por %p919, %p920
      %p922 = scmp.ne.s32.totalorder %s914, %s916
      %p923 = scmp.eq.s32.totalorder %s103, 1
      %p924 = por %p922, %p923
      %p925 = scmp.ne.s32.totalorder %s916, %s917
      %p926 = scmp.eq.s32.totalorder %s103, 0
      %p927 = por %p925, %p926
      %p928 = scmp.ne.s32.totalorder %s916, %s917
      %p929 = scmp.eq.s32.totalorder %s104, 1
      %p930 = por %p928, %p929
      %p932 = scmp.ne.s32.totalorder %s917, %s931
      %p933 = scmp.eq.s32.totalorder %s104, 0
      %p934 = por %p932, %p933
      %s936 = sadd.s32 %s935, 1
      %p939 = scmp.eq.s32.totalorder %s98, 1
      %p940 = scmp.ne.s32.totalorder %s935, %s937
      %p941 = scmp.eq.s32.totalorder %s98, 0
      %p942 = por %p940, %p941
      %p943 = scmp.ne.s32.totalorder %s935, %s937
      %p944 = scmp.eq.s32.totalorder %s103, 1
      %p945 = por %p943, %p944
      %p946 = scmp.ne.s32.totalorder %s937, %s938
      %p947 = scmp.eq.s32.totalorder %s103, 0
      %p948 = por %p946, %p947
      %p949 = scmp.ne.s32.totalorder %s937, %s938
      %p950 = scmp.eq.s32.totalorder %s104, 1
      %p951 = por %p949, %p950
      %p953 = scmp.ne.s32.totalorder %s938, %s952
      %p954 = scmp.eq.s32.totalorder %s104, 0
      %p955 = por %p953, %p954
      %s957 = sadd.s32 %s956, 1
      %p960 = scmp.eq.s32.totalorder %s98, 1
      %p961 = scmp.ne.s32.totalorder %s956, %s958
      %p962 = scmp.eq.s32.totalorder %s98, 0
      %p963 = por %p961, %p962
      %p964 = scmp.ne.s32.totalorder %s956, %s958
      %p965 = scmp.eq.s32.totalorder %s103, 1
      %p966 = por %p964, %p965
      %p967 = scmp.ne.s32.totalorder %s958, %s959
      %p968 = scmp.eq.s32.totalorder %s103, 0
      %p969 = por %p967, %p968
      %p970 = scmp.ne.s32.totalorder %s958, %s959
      %p971 = scmp.eq.s32.totalorder %s104, 1
      %p972 = por %p970, %p971
      %p974 = scmp.ne.s32.totalorder %s959, %s973
      %p975 = scmp.eq.s32.totalorder %s104, 0
      %p976 = por %p974, %p975
      %s978 = sadd.s32 %s977, 1
      %p981 = scmp.eq.s32.totalorder %s98, 1
      %p982 = scmp.ne.s32.totalorder %s977, %s979
      %p983 = scmp.eq.s32.totalorder %s98, 0
      %p984 = por %p982, %p983
      %p985 = scmp.ne.s32.totalorder %s977, %s979
      %p986 = scmp.eq.s32.totalorder %s103, 1
      %p987 = por %p985, %p986
      %p988 = scmp.ne.s32.totalorder %s979, %s980
      %p989 = scmp.eq.s32.totalorder %s103, 0
      %p990 = por %p988, %p989
      %p991 = scmp.ne.s32.totalorder %s979, %s980
      %p992 = scmp.eq.s32.totalorder %s104, 1
      %p993 = por %p991, %p992
      %p995 = scmp.ne.s32.totalorder %s980, %s994
      %p996 = scmp.eq.s32.totalorder %s104, 0
      %p997 = por %p995, %p996
      %s999 = sadd.s32 %s998, 1
      %p1002 = scmp.eq.s32.totalorder %s98, 1
      %p1003 = scmp.ne.s32.totalorder %s998, %s1000
      %p1004 = scmp.eq.s32.totalorder %s98, 0
      %p1005 = por %p1003, %p1004
      %p1006 = scmp.ne.s32.totalorder %s998, %s1000
      %p1007 = scmp.eq.s32.totalorder %s103, 1
      %p1008 = por %p1006, %p1007
      %p1009 = scmp.ne.s32.totalorder %s1000, %s1001
      %p1010 = scmp.eq.s32.totalorder %s103, 0
      %p1011 = por %p1009, %p1010
      %p1012 = scmp.ne.s32.totalorder %s1000, %s1001
      %p1013 = scmp.eq.s32.totalorder %s104, 1
      %p1014 = por %p1012, %p1013
      %p1016 = scmp.ne.s32.totalorder %s1001, %s1015
      %p1017 = scmp.eq.s32.totalorder %s104, 0
      %p1018 = por %p1016, %p1017
      %s1020 = sadd.s32 %s1019, 1
      %p1023 = scmp.eq.s32.totalorder %s98, 1
      %p1024 = scmp.ne.s32.totalorder %s1019, %s1021
      %p1025 = scmp.eq.s32.totalorder %s98, 0
      %p1026 = por %p1024, %p1025
      %p1027 = scmp.ne.s32.totalorder %s1019, %s1021
      %p1028 = scmp.eq.s32.totalorder %s103, 1
      %p1029 = por %p1027, %p1028
      %p1030 = scmp.ne.s32.totalorder %s1021, %s1022
      %p1031 = scmp.eq.s32.totalorder %s103, 0
      %p1032 = por %p1030, %p1031
      %p1033 = scmp.ne.s32.totalorder %s1021, %s1022
      %p1034 = scmp.eq.s32.totalorder %s104, 1
      %p1035 = por %p1033, %p1034
      %p1037 = scmp.ne.s32.totalorder %s1022, %s1036
      %p1038 = scmp.eq.s32.totalorder %s104, 0
      %p1039 = por %p1037, %p1038
      %s1040 = ssub.s32 %s98, %s105
      %p1041 = scmp.eq.s32.totalorder %s1040, 0
      %s1043 = sadd.s32 %s1042, 1
      %s1044 = scalar_select %p1041, %s1042, %s1043
      %p1047 = pneg %p1041
      %p1048 = scmp.eq.s32.totalorder %s98, 1
      %p1049 = por %p1047, %p1048
      %p1050 = scmp.ne.s32.totalorder %s1042, %s1045
      %p1051 = scmp.eq.s32.totalorder %s98, 0
      %p1052 = por %p1050, %p1051
      %p1053 = scmp.ne.s32.totalorder %s1042, %s1045
      %p1054 = scmp.eq.s32.totalorder %s103, 1
      %p1055 = por %p1053, %p1054
      %p1056 = scmp.ne.s32.totalorder %s1045, %s1046
      %p1057 = scmp.eq.s32.totalorder %s103, 0
      %p1058 = por %p1056, %p1057
      %p1059 = scmp.ne.s32.totalorder %s1045, %s1046
      %p1060 = scmp.eq.s32.totalorder %s104, 1
      %p1061 = por %p1059, %p1060
      %p1063 = scmp.ne.s32.totalorder %s1046, %s1062
      %p1064 = scmp.eq.s32.totalorder %s104, 0
      %p1065 = por %p1063, %p1064
      %p1066 = scmp.le.s32.totalorder 1, %s98
      %p1067 = scmp.lt.s32.totalorder %s98, 3
      %p1068 = pnand %p1066, %p1067
      %p1069 = pneg %p1068
      // Predicated region
      $region9: #{_lambda_.1} parent=5 // pred_check
        _
      $region10: #{_lambda_.1} parent=5 // pred_check_branch
        %1071 = sbr.rel (%p1068) target = $region12
      $region11: #{_lambda_.1} parent=5 // pred_region
        %s1072 = ssub.s32 %s98, 1
        // Predicated region
        $region13: #{_lambda_.1} parent=11 // pred_check
          %p1073 = pneg %p171
        $region14: #{_lambda_.1} parent=11 // pred_check_branch
          %1075 = sbr.rel (%p1073) target = $region16
        $region15: #{_lambda_.1} parent=11 // pred_region
          _
        $region16: #{_lambda_.1} parent=11 // pred_fallthru
          _
        // Predicated region
        $region17: #{_lambda_.1} parent=11 // pred_check
          %p1076 = pneg %p192
        $region18: #{_lambda_.1} parent=11 // pred_check_branch
          %1078 = sbr.rel (%p1076) target = $region20
        $region19: #{_lambda_.1} parent=11 // pred_region
          _
        $region20: #{_lambda_.1} parent=11 // pred_fallthru
          _
        // Predicated region
        $region21: #{_lambda_.1} parent=11 // pred_check
          %p1079 = pneg %p213
        $region22: #{_lambda_.1} parent=11 // pred_check_branch
          %1081 = sbr.rel (%p1079) target = $region24
        $region23: #{_lambda_.1} parent=11 // pred_region
          _
        $region24: #{_lambda_.1} parent=11 // pred_fallthru
          _
        // Predicated region
        $region25: #{_lambda_.1} parent=11 // pred_check
          %p1082 = pneg %p234
        $region26: #{_lambda_.1} parent=11 // pred_check_branch
          %1084 = sbr.rel (%p1082) target = $region28
        $region27: #{_lambda_.1} parent=11 // pred_region
          _
        $region28: #{_lambda_.1} parent=11 // pred_fallthru
          _
        // Predicated region
        $region29: #{_lambda_.1} parent=11 // pred_check
          %p1085 = pneg %p255
        $region30: #{_lambda_.1} parent=11 // pred_check_branch
          %1087 = sbr.rel (%p1085) target = $region32
        $region31: #{_lambda_.1} parent=11 // pred_region
          _
        $region32: #{_lambda_.1} parent=11 // pred_fallthru
          _
        // Predicated region
        $region33: #{_lambda_.1} parent=11 // pred_check
          %p1088 = pneg %p276
        $region34: #{_lambda_.1} parent=11 // pred_check_branch
          %1090 = sbr.rel (%p1088) target = $region36
        $region35: #{_lambda_.1} parent=11 // pred_region
          _
        $region36: #{_lambda_.1} parent=11 // pred_fallthru
          _
        // Predicated region
        $region37: #{_lambda_.1} parent=11 // pred_check
          %p1091 = pneg %p297
        $region38: #{_lambda_.1} parent=11 // pred_check_branch
          %1093 = sbr.rel (%p1091) target = $region40
        $region39: #{_lambda_.1} parent=11 // pred_region
          _
        $region40: #{_lambda_.1} parent=11 // pred_fallthru
          _
        // Predicated region
        $region41: #{_lambda_.1} parent=11 // pred_check
          %p1094 = pneg %p318
        $region42: #{_lambda_.1} parent=11 // pred_check_branch
          %1096 = sbr.rel (%p1094) target = $region44
        $region43: #{_lambda_.1} parent=11 // pred_region
          _
        $region44: #{_lambda_.1} parent=11 // pred_fallthru
          _
        // Predicated region
        $region45: #{_lambda_.1} parent=11 // pred_check
          %p1097 = pneg %p339
        $region46: #{_lambda_.1} parent=11 // pred_check_branch
          %1099 = sbr.rel (%p1097) target = $region48
        $region47: #{_lambda_.1} parent=11 // pred_region
          _
        $region48: #{_lambda_.1} parent=11 // pred_fallthru
          _
        // Predicated region
        $region49: #{_lambda_.1} parent=11 // pred_check
          %p1100 = pneg %p360
        $region50: #{_lambda_.1} parent=11 // pred_check_branch
          %1102 = sbr.rel (%p1100) target = $region52
        $region51: #{_lambda_.1} parent=11 // pred_region
          _
        $region52: #{_lambda_.1} parent=11 // pred_fallthru
          _
        // Predicated region
        $region53: #{_lambda_.1} parent=11 // pred_check
          %p1103 = pneg %p381
        $region54: #{_lambda_.1} parent=11 // pred_check_branch
          %1105 = sbr.rel (%p1103) target = $region56
        $region55: #{_lambda_.1} parent=11 // pred_region
          _
        $region56: #{_lambda_.1} parent=11 // pred_fallthru
          _
        // Predicated region
        $region57: #{_lambda_.1} parent=11 // pred_check
          %p1106 = pneg %p402
        $region58: #{_lambda_.1} parent=11 // pred_check_branch
          %1108 = sbr.rel (%p1106) target = $region60
        $region59: #{_lambda_.1} parent=11 // pred_region
          _
        $region60: #{_lambda_.1} parent=11 // pred_fallthru
          _
        // Predicated region
        $region61: #{_lambda_.1} parent=11 // pred_check
          %p1109 = pneg %p423
        $region62: #{_lambda_.1} parent=11 // pred_check_branch
          %1111 = sbr.rel (%p1109) target = $region64
        $region63: #{_lambda_.1} parent=11 // pred_region
          _
        $region64: #{_lambda_.1} parent=11 // pred_fallthru
          _
        // Predicated region
        $region65: #{_lambda_.1} parent=11 // pred_check
          %p1112 = pneg %p444
        $region66: #{_lambda_.1} parent=11 // pred_check_branch
          %1114 = sbr.rel (%p1112) target = $region68
        $region67: #{_lambda_.1} parent=11 // pred_region
          _
        $region68: #{_lambda_.1} parent=11 // pred_fallthru
          _
        // Predicated region
        $region69: #{_lambda_.1} parent=11 // pred_check
          %p1115 = pneg %p465
        $region70: #{_lambda_.1} parent=11 // pred_check_branch
          %1117 = sbr.rel (%p1115) target = $region72
        $region71: #{_lambda_.1} parent=11 // pred_region
          _
        $region72: #{_lambda_.1} parent=11 // pred_fallthru
          _
        // Predicated region
        $region73: #{_lambda_.1} parent=11 // pred_check
          %p1118 = pneg %p486
        $region74: #{_lambda_.1} parent=11 // pred_check_branch
          %1120 = sbr.rel (%p1118) target = $region76
        $region75: #{_lambda_.1} parent=11 // pred_region
          _
        $region76: #{_lambda_.1} parent=11 // pred_fallthru
          _
        // Predicated region
        $region77: #{_lambda_.1} parent=11 // pred_check
          %p1121 = pneg %p507
        $region78: #{_lambda_.1} parent=11 // pred_check_branch
          %1123 = sbr.rel (%p1121) target = $region80
        $region79: #{_lambda_.1} parent=11 // pred_region
          _
        $region80: #{_lambda_.1} parent=11 // pred_fallthru
          _
        // Predicated region
        $region81: #{_lambda_.1} parent=11 // pred_check
          %p1124 = pneg %p528
        $region82: #{_lambda_.1} parent=11 // pred_check_branch
          %1126 = sbr.rel (%p1124) target = $region84
        $region83: #{_lambda_.1} parent=11 // pred_region
          _
        $region84: #{_lambda_.1} parent=11 // pred_fallthru
          _
        // Predicated region
        $region85: #{_lambda_.1} parent=11 // pred_check
          %p1127 = pneg %p549
        $region86: #{_lambda_.1} parent=11 // pred_check_branch
          %1129 = sbr.rel (%p1127) target = $region88
        $region87: #{_lambda_.1} parent=11 // pred_region
          _
        $region88: #{_lambda_.1} parent=11 // pred_fallthru
          _
        // Predicated region
        $region89: #{_lambda_.1} parent=11 // pred_check
          %p1130 = pneg %p570
        $region90: #{_lambda_.1} parent=11 // pred_check_branch
          %1132 = sbr.rel (%p1130) target = $region92
        $region91: #{_lambda_.1} parent=11 // pred_region
          _
        $region92: #{_lambda_.1} parent=11 // pred_fallthru
          _
        // Predicated region
        $region93: #{_lambda_.1} parent=11 // pred_check
          %p1133 = pneg %p591
        $region94: #{_lambda_.1} parent=11 // pred_check_branch
          %1135 = sbr.rel (%p1133) target = $region96
        $region95: #{_lambda_.1} parent=11 // pred_region
          _
        $region96: #{_lambda_.1} parent=11 // pred_fallthru
          _
        // Predicated region
        $region97: #{_lambda_.1} parent=11 // pred_check
          %p1136 = pneg %p612
        $region98: #{_lambda_.1} parent=11 // pred_check_branch
          %1138 = sbr.rel (%p1136) target = $region100
        $region99: #{_lambda_.1} parent=11 // pred_region
          _
        $region100: #{_lambda_.1} parent=11 // pred_fallthru
          _
        // Predicated region
        $region101: #{_lambda_.1} parent=11 // pred_check
          %p1139 = pneg %p633
        $region102: #{_lambda_.1} parent=11 // pred_check_branch
          %1141 = sbr.rel (%p1139) target = $region104
        $region103: #{_lambda_.1} parent=11 // pred_region
          _
        $region104: #{_lambda_.1} parent=11 // pred_fallthru
          _
        // Predicated region
        $region105: #{_lambda_.1} parent=11 // pred_check
          %p1142 = pneg %p654
        $region106: #{_lambda_.1} parent=11 // pred_check_branch
          %1144 = sbr.rel (%p1142) target = $region108
        $region107: #{_lambda_.1} parent=11 // pred_region
          _
        $region108: #{_lambda_.1} parent=11 // pred_fallthru
          _
        // Predicated region
        $region109: #{_lambda_.1} parent=11 // pred_check
          %p1145 = pneg %p675
        $region110: #{_lambda_.1} parent=11 // pred_check_branch
          %1147 = sbr.rel (%p1145) target = $region112
        $region111: #{_lambda_.1} parent=11 // pred_region
          _
        $region112: #{_lambda_.1} parent=11 // pred_fallthru
          _
        // Predicated region
        $region113: #{_lambda_.1} parent=11 // pred_check
          %p1148 = pneg %p696
        $region114: #{_lambda_.1} parent=11 // pred_check_branch
          %1150 = sbr.rel (%p1148) target = $region116
        $region115: #{_lambda_.1} parent=11 // pred_region
          _
        $region116: #{_lambda_.1} parent=11 // pred_fallthru
          _
        // Predicated region
        $region117: #{_lambda_.1} parent=11 // pred_check
          %p1151 = pneg %p717
        $region118: #{_lambda_.1} parent=11 // pred_check_branch
          %1153 = sbr.rel (%p1151) target = $region120
        $region119: #{_lambda_.1} parent=11 // pred_region
          _
        $region120: #{_lambda_.1} parent=11 // pred_fallthru
          _
        // Predicated region
        $region121: #{_lambda_.1} parent=11 // pred_check
          %p1154 = pneg %p738
        $region122: #{_lambda_.1} parent=11 // pred_check_branch
          %1156 = sbr.rel (%p1154) target = $region124
        $region123: #{_lambda_.1} parent=11 // pred_region
          _
        $region124: #{_lambda_.1} parent=11 // pred_fallthru
          _
        // Predicated region
        $region125: #{_lambda_.1} parent=11 // pred_check
          %p1157 = pneg %p759
        $region126: #{_lambda_.1} parent=11 // pred_check_branch
          %1159 = sbr.rel (%p1157) target = $region128
        $region127: #{_lambda_.1} parent=11 // pred_region
          _
        $region128: #{_lambda_.1} parent=11 // pred_fallthru
          _
        // Predicated region
        $region129: #{_lambda_.1} parent=11 // pred_check
          %p1160 = pneg %p780
        $region130: #{_lambda_.1} parent=11 // pred_check_branch
          %1162 = sbr.rel (%p1160) target = $region132
        $region131: #{_lambda_.1} parent=11 // pred_region
          _
        $region132: #{_lambda_.1} parent=11 // pred_fallthru
          _
        // Predicated region
        $region133: #{_lambda_.1} parent=11 // pred_check
          %p1163 = pneg %p801
        $region134: #{_lambda_.1} parent=11 // pred_check_branch
          %1165 = sbr.rel (%p1163) target = $region136
        $region135: #{_lambda_.1} parent=11 // pred_region
          _
        $region136: #{_lambda_.1} parent=11 // pred_fallthru
          _
        // Predicated region
        $region137: #{_lambda_.1} parent=11 // pred_check
          %p1166 = pneg %p822
        $region138: #{_lambda_.1} parent=11 // pred_check_branch
          %1168 = sbr.rel (%p1166) target = $region140
        $region139: #{_lambda_.1} parent=11 // pred_region
          _
        $region140: #{_lambda_.1} parent=11 // pred_fallthru
          _
        // Predicated region
        $region141: #{_lambda_.1} parent=11 // pred_check
          %p1169 = pneg %p843
        $region142: #{_lambda_.1} parent=11 // pred_check_branch
          %1171 = sbr.rel (%p1169) target = $region144
        $region143: #{_lambda_.1} parent=11 // pred_region
          _
        $region144: #{_lambda_.1} parent=11 // pred_fallthru
          _
        // Predicated region
        $region145: #{_lambda_.1} parent=11 // pred_check
          %p1172 = pneg %p864
        $region146: #{_lambda_.1} parent=11 // pred_check_branch
          %1174 = sbr.rel (%p1172) target = $region148
        $region147: #{_lambda_.1} parent=11 // pred_region
          _
        $region148: #{_lambda_.1} parent=11 // pred_fallthru
          _
        // Predicated region
        $region149: #{_lambda_.1} parent=11 // pred_check
          %p1175 = pneg %p885
        $region150: #{_lambda_.1} parent=11 // pred_check_branch
          %1177 = sbr.rel (%p1175) target = $region152
        $region151: #{_lambda_.1} parent=11 // pred_region
          _
        $region152: #{_lambda_.1} parent=11 // pred_fallthru
          _
        // Predicated region
        $region153: #{_lambda_.1} parent=11 // pred_check
          %p1178 = pneg %p906
        $region154: #{_lambda_.1} parent=11 // pred_check_branch
          %1180 = sbr.rel (%p1178) target = $region156
        $region155: #{_lambda_.1} parent=11 // pred_region
          _
        $region156: #{_lambda_.1} parent=11 // pred_fallthru
          _
        // Predicated region
        $region157: #{_lambda_.1} parent=11 // pred_check
          %p1181 = pneg %p927
        $region158: #{_lambda_.1} parent=11 // pred_check_branch
          %1183 = sbr.rel (%p1181) target = $region160
        $region159: #{_lambda_.1} parent=11 // pred_region
          _
        $region160: #{_lambda_.1} parent=11 // pred_fallthru
          _
        // Predicated region
        $region161: #{_lambda_.1} parent=11 // pred_check
          %p1184 = pneg %p948
        $region162: #{_lambda_.1} parent=11 // pred_check_branch
          %1186 = sbr.rel (%p1184) target = $region164
        $region163: #{_lambda_.1} parent=11 // pred_region
          _
        $region164: #{_lambda_.1} parent=11 // pred_fallthru
          _
        // Predicated region
        $region165: #{_lambda_.1} parent=11 // pred_check
          %p1187 = pneg %p969
        $region166: #{_lambda_.1} parent=11 // pred_check_branch
          %1189 = sbr.rel (%p1187) target = $region168
        $region167: #{_lambda_.1} parent=11 // pred_region
          _
        $region168: #{_lambda_.1} parent=11 // pred_fallthru
          _
        // Predicated region
        $region169: #{_lambda_.1} parent=11 // pred_check
          %p1190 = pneg %p990
        $region170: #{_lambda_.1} parent=11 // pred_check_branch
          %1192 = sbr.rel (%p1190) target = $region172
        $region171: #{_lambda_.1} parent=11 // pred_region
          _
        $region172: #{_lambda_.1} parent=11 // pred_fallthru
          _
        // Predicated region
        $region173: #{_lambda_.1} parent=11 // pred_check
          %p1193 = pneg %p1011
        $region174: #{_lambda_.1} parent=11 // pred_check_branch
          %1195 = sbr.rel (%p1193) target = $region176
        $region175: #{_lambda_.1} parent=11 // pred_region
          _
        $region176: #{_lambda_.1} parent=11 // pred_fallthru
          _
        // Predicated region
        $region177: #{_lambda_.1} parent=11 // pred_check
          %p1196 = pneg %p1032
        $region178: #{_lambda_.1} parent=11 // pred_check_branch
          %1198 = sbr.rel (%p1196) target = $region180
        $region179: #{_lambda_.1} parent=11 // pred_region
          _
        $region180: #{_lambda_.1} parent=11 // pred_fallthru
          _
      $region12: #{_lambda_.1} parent=5 // pred_fallthru
        _
      %p1199 = scmp.lt.s32.totalorder %s98, 2
      // Predicated region
      $region181: #{_lambda_.1} parent=5 // pred_check
        %p1200 = pneg %p1199
      $region182: #{_lambda_.1} parent=5 // pred_check_branch
        %1202 = sbr.rel (%p1200) target = $region184
      $region183: #{_lambda_.1} parent=5 // pred_region
        // Predicated region
        $region185: #{_lambda_.1} parent=183 // pred_check
          %p1203 = pneg %p118
        $region186: #{_lambda_.1} parent=183 // pred_check_branch
          %1205 = sbr.rel (%p1203) target = $region188
        $region187: #{_lambda_.1} parent=183 // pred_region
          %s1206 = smul.u32 2, %s98
          %p1207 = scmp.lt.s32.totalorder %s1206, 3
          %s1208 = scalar_select %p1207, %s1206, 3
          %s1209 = smul.addr %s1208, 8
          %s1210 = scalar_lea.vmem %s1, %s1209
          %s1211 = smul.u32 2, %s98
        $region188: #{_lambda_.1} parent=183 // pred_fallthru
          _
        // Predicated region
        $region189: #{_lambda_.1} parent=183 // pred_check
          %p1212 = pneg %p144
        $region190: #{_lambda_.1} parent=183 // pred_check_branch
          %1214 = sbr.rel (%p1212) target = $region192
        $region191: #{_lambda_.1} parent=183 // pred_region
          %s1215 = smul.u32 2, %s98
          %p1216 = scmp.lt.s32.totalorder %s1215, 3
          %s1217 = scalar_select %p1216, %s1215, 3
          %s1218 = smul.addr %s1217, 8
          %s1219 = scalar_lea.vmem %s3, %s1218
          %s1220 = smul.u32 2, %s98
        $region192: #{_lambda_.1} parent=183 // pred_fallthru
          _
      $region184: #{_lambda_.1} parent=5 // pred_fallthru
        _
      %p1221 = scmp.le.s32.totalorder 1, %s98
      %p1222 = scmp.lt.s32.totalorder %s98, 3
      %p1223 = pnand %p1221, %p1222
      %p1224 = pneg %p1223
      // Predicated region
      $region193: #{_lambda_.1} parent=5 // pred_check
        _
      $region194: #{_lambda_.1} parent=5 // pred_check_branch
        %1226 = sbr.rel (%p1223) target = $region196
      $region195: #{_lambda_.1} parent=5 // pred_region
        %s1227 = ssub.s32 %s98, 1
        %s1228 = smul.u32 2, %s103
        %p1229 = scmp.lt.s32.totalorder %s1228, 3
        %s1230 = scalar_select %p1229, %s1228, 3
        %s1231 = smul.addr %s1230, 8
        %s1232 = scalar_lea.vmem %s1, %s1231
        %p1233 = pneg %p124
        %p1234 = pneg %p121
        %s1235 = smul.u32 2, %s103
        %p1236 = scmp.lt.s32.totalorder %s1235, 3
        %s1237 = scalar_select %p1236, %s1235, 3
        %s1238 = smul.addr %s1237, 8
        %s1239 = scalar_lea.vmem %s3, %s1238
        %p1240 = pneg %p150
        %p1241 = pneg %p147
        %p1242 = pneg %p171
        %p1243 = pneg %p168
        %p1244 = pneg %p192
        %p1245 = pneg %p189
        %p1246 = pneg %p213
        %p1247 = pneg %p210
        %p1248 = pneg %p234
        %p1249 = pneg %p231
        %p1250 = pneg %p255
        %p1251 = pneg %p252
        %p1252 = pneg %p276
        %p1253 = pneg %p273
        %p1254 = pneg %p297
        %p1255 = pneg %p294
        %p1256 = pneg %p318
        %p1257 = pneg %p315
        %p1258 = pneg %p339
        %p1259 = pneg %p336
        %p1260 = pneg %p360
        %p1261 = pneg %p357
        %p1262 = pneg %p381
        %p1263 = pneg %p378
        %p1264 = pneg %p402
        %p1265 = pneg %p399
        %p1266 = pneg %p423
        %p1267 = pneg %p420
        %p1268 = pneg %p444
        %p1269 = pneg %p441
        %p1270 = pneg %p465
        %p1271 = pneg %p462
        %p1272 = pneg %p486
        %p1273 = pneg %p483
        %p1274 = pneg %p507
        %p1275 = pneg %p504
        %p1276 = pneg %p528
        %p1277 = pneg %p525
        %p1278 = pneg %p549
        %p1279 = pneg %p546
        %p1280 = pneg %p570
        %p1281 = pneg %p567
        %p1282 = pneg %p591
        %p1283 = pneg %p588
        %p1284 = pneg %p612
        %p1285 = pneg %p609
        %p1286 = pneg %p633
        %p1287 = pneg %p630
        %p1288 = pneg %p654
        %p1289 = pneg %p651
        %p1290 = pneg %p675
        %p1291 = pneg %p672
        %p1292 = pneg %p696
        %p1293 = pneg %p693
        %p1294 = pneg %p717
        %p1295 = pneg %p714
        %p1296 = pneg %p738
        %p1297 = pneg %p735
        %p1298 = pneg %p759
        %p1299 = pneg %p756
        %p1300 = pneg %p780
        %p1301 = pneg %p777
        %p1302 = pneg %p801
        %p1303 = pneg %p798
        %p1304 = pneg %p822
        %p1305 = pneg %p819
        %p1306 = pneg %p843
        %p1307 = pneg %p840
        %p1308 = pneg %p864
        %p1309 = pneg %p861
        %p1310 = pneg %p885
        %p1311 = pneg %p882
        %p1312 = pneg %p906
        %p1313 = pneg %p903
        %p1314 = pneg %p927
        %p1315 = pneg %p924
        %p1316 = pneg %p948
        %p1317 = pneg %p945
        %p1318 = pneg %p969
        %p1319 = pneg %p966
        %p1320 = pneg %p990
        %p1321 = pneg %p987
        %p1322 = pneg %p1011
        %p1323 = pneg %p1008
        %p1324 = pneg %p1032
        %p1325 = pneg %p1029
        %p1326 = pneg %p1058
        %p1327 = pneg %p1055
        %s1328 = sand.u32 %s1045, 1
        %s1329 = scalar_lea.sflag [#allocation3], %s1328
        %s1330 = sand.u32 %s1045, 1
        %s1331 = smul.addr %s1330, 16
        %s1332 = scalar_lea.vmem [#allocation2], %s1331
        %s1333 = smul.u32 2, %s103
        %p1334 = scmp.lt.s32.totalorder %s1333, 3
        %s1335 = scalar_select %p1334, %s1333, 3
        %s1336 = smul.addr %s1335, 8
        %s1337 = scalar_lea.vmem %s1, %s1336
        %s1338 = smul.u32 2, %s103
        %s1339 = smul.u32 2, %s103
        %p1340 = scmp.lt.s32.totalorder %s1339, 3
        %s1341 = scalar_select %p1340, %s1339, 3
        %s1342 = smul.addr %s1341, 8
        %s1343 = scalar_lea.vmem %s3, %s1342
        %s1344 = smul.u32 2, %s103
        %s1345 = smul.u32 2, %s103
        %v1347 = vld [vmem:[%s1337] sm:$0xff]
        %v1348 = vld [vmem:[%s1337 + $0x8] sm:$0xff]
        %v1349 = vld [vmem:[%s1343] sm:$0xff]
        %v1350 = vld [vmem:[%s1343 + $0x8] sm:$0xff]
        %v1351 = vld [vmem:[%s5] sm:$0xff]
        %v1352 = vld [vmem:[%s5 + $0x8] sm:$0xff]
        %v1353 = vld [vmem:[%s7] sm:$0xf]
        %v1354 = vld [vmem:[%s7 + $0x4] sm:$0xf]
        %v1355 = vld [vmem:[%s7 + $0x8] sm:$0xf]
        %v1356 = vld [vmem:[%s7 + $0xc] sm:$0xf]
        %v1357 = vld [vmem:[%s9] sm:$0xf]
        %v1358 = vld [vmem:[%s9 + $0x4] sm:$0xf]
        %v1359 = vld [vmem:[%s9 + $0x8] sm:$0xf]
        %v1360 = vld [vmem:[%s9 + $0xc] sm:$0xf]
        %v1361 = vld [vmem:[%s11] sm:$0xf]
        %v1362 = vld [vmem:[%s11 + $0x4] sm:$0xf]
        %v1363 = vld [vmem:[%s13] sm:$0x1]
        %v1364 = vld [vmem:[%s15] sm:$0x1]
        %v1365 = vld [vmem:[%s17] sm:$0x1]
        %v1366 = vld [vmem:[%s19] sm:$0x1]
        %v1367 = vld [vmem:[%s21] sm:$0x1]
        %vm1368 = vcmask 261120
        %v1369 = vsel %vm1368, %v1351, 0.0
        %1370 = vadd.xlane.f32.xlu0 %v1369
        %v1371 = vpop.xlane.xlu0 %1370
        %v1372 = vsel %vm1368, %v1352, 0.0
        %1373 = vadd.xlane.f32.xlu0 %v1372
        %v1374 = vpop.xlane.xlu0 %1373
        %v1375 = vrcp.pop 32.0
        %v1376 = vmul.f32 %v1371, %v1375
        %v1377 = vmul.f32 %v1374, %v1375
        %v1378 = vsub.f32 %v1351, %v1376
        %v1379 = vsub.f32 %v1352, %v1377
        %v1380 = vmul.f32 %v1378, %v1378
        %v1381 = vmul.f32 %v1379, %v1379
        %v1382 = vsel %vm1368, %v1380, 0.0
        %1383 = vadd.xlane.f32.xlu0 %v1382
        %v1384 = vpop.xlane.xlu0 %1383
        %v1385 = vsel %vm1368, %v1381, 0.0
        %1386 = vadd.xlane.f32.xlu0 %v1385
        %v1387 = vpop.xlane.xlu0 %1386
        %v1388 = vmul.f32 %v1384, %v1375
        %v1389 = vmul.f32 %v1387, %v1375
        %v1390 = vadd.f32 %v1388, 1e-05
        %v1391 = vadd.f32 %v1389, 1e-05
        %v1392 = vrsqrt.pop %v1390
        %v1393 = vrsqrt.pop %v1391
        %v1394 = vmul.f32 %v1378, %v1392
        %v1395 = vmul.f32 %v1379, %v1393
        %v1397 = vlaneseq
        %v1398 = vshrl.u32 %v1397, 7
        %v1399 = vsub.s32 0, %v1398
        %v1400 = vrot.slane %v1364, %v1399
        %v1402 = vmul.f32 %v1394, %v1400
        %v1403 = vmul.f32 %v1395, %v1400
        %v1405 = vlaneseq
        %v1406 = vshrl.u32 %v1405, 7
        %v1407 = vsub.s32 0, %v1406
        %v1408 = vrot.slane %v1365, %v1407
        %v1410 = vadd.f32 %v1402, %v1408
        %v1411 = vadd.f32 %v1403, %v1408
        %v1412 = vsel %vm1368, %v1347, 0.0
        %1413 = vadd.xlane.f32.xlu0 %v1412
        %v1414 = vpop.xlane.xlu0 %1413
        %v1415 = vsel %vm1368, %v1348, 0.0
        %1416 = vadd.xlane.f32.xlu0 %v1415
        %v1417 = vpop.xlane.xlu0 %1416
        %v1418 = vmul.f32 %v1414, %v1375
        %v1419 = vmul.f32 %v1417, %v1375
        %v1420 = vsub.f32 %v1347, %v1418
        %v1421 = vsub.f32 %v1348, %v1419
        %v1422 = vmul.f32 %v1420, %v1420
        %v1423 = vmul.f32 %v1421, %v1421
        %v1424 = vsel %vm1368, %v1422, 0.0
        %1425 = vadd.xlane.f32.xlu0 %v1424
        %v1426 = vpop.xlane.xlu0 %1425
        %v1427 = vsel %vm1368, %v1423, 0.0
        %1428 = vadd.xlane.f32.xlu0 %v1427
        %v1429 = vpop.xlane.xlu0 %1428
        %v1430 = vmul.f32 %v1426, %v1375
        %v1431 = vmul.f32 %v1429, %v1375
        %v1432 = vadd.f32 %v1430, 1e-05
        %v1433 = vadd.f32 %v1431, 1e-05
        %v1434 = vrsqrt.pop %v1432
        %v1435 = vrsqrt.pop %v1433
        %v1436 = vmul.f32 %v1420, %v1434
        %v1437 = vmul.f32 %v1421, %v1435
        %v1439 = vlaneseq
        %v1440 = vshrl.u32 %v1439, 7
        %v1441 = vsub.s32 0, %v1440
        %v1442 = vrot.slane %v1366, %v1441
        %v1444 = vmul.f32 %v1436, %v1442
        %v1445 = vmul.f32 %v1437, %v1442
        %v1447 = vlaneseq
        %v1448 = vshrl.u32 %v1447, 7
        %v1449 = vsub.s32 0, %v1448
        %v1450 = vrot.slane %v1367, %v1449
        %v1452 = vadd.f32 %v1444, %v1450
        %v1453 = vadd.f32 %v1445, %v1450
        %v1454 = vpack.c.bf16 %v1411, %v1410
        %v1459 = vunpack.c.l.b16 %v1353
        %v1460 = vunpack.c.l.b16 %v1354
        %v1461 = vunpack.c.l.b16 %v1355
        %v1462 = vunpack.c.l.b16 %v1356
        %v1463 = vpack.c.b16 %v1460, %v1459
        %v1464 = vpack.c.b16 %v1462, %v1461
        %v1468 = vsel %vm1368, %v1454, 0
        %1470 = vmatprep.subr.bf16.mxu0 0
        %1471 = vmatpush1.bf16.msra.mxu0 %v1463
        %1472 = vmatprep.subr.bf16.mxu0 0
        %1473 = vmatpush1.bf16.msra.mxu0 %v1464
        %1474 = vmatprep.subr.bf16.mxu0 0
        %1475 = vmatpush1.bf16.msra.mxu0 0
        %1476 = vmatprep.subr.bf16.mxu0 0
        %1477 = vmatpush1.bf16.msra.mxu0 0
        %1478 = vmatprep.subr.bf16.mxu0 0
        %1479 = vmatpush1.bf16.msra.mxu0 0
        %1480 = vmatprep.subr.bf16.mxu0 0
        %1481 = vmatpush1.bf16.msra.mxu0 0
        %1482 = vmatprep.subr.bf16.mxu0 0
        %1483 = vmatpush1.bf16.msra.mxu0 0
        %1484 = vmatprep.subr.bf16.mxu0 0
        %1485 = vmatpush1.bf16.msra.mxu0 0
        %1486 = vmatprep.subr.bf16.mxu0 0
        %1487 = vmatpush1.bf16.msra.mxu0 0
        %1488 = vmatprep.subr.bf16.mxu0 0
        %1489 = vmatpush1.bf16.msra.mxu0 0
        %1490 = vmatprep.subr.bf16.mxu0 0
        %1491 = vmatpush1.bf16.msra.mxu0 0
        %1492 = vmatprep.subr.bf16.mxu0 0
        %1493 = vmatpush1.bf16.msra.mxu0 0
        %1494 = vmatprep.subr.bf16.mxu0 0
        %1495 = vmatpush1.bf16.msra.mxu0 0
        %1496 = vmatprep.subr.bf16.mxu0 0
        %1497 = vmatpush1.bf16.msra.mxu0 0
        %1498 = vmatprep.subr.bf16.mxu0 0
        %1499 = vmatpush1.bf16.msra.mxu0 0
        %1500 = vmatprep.subr.bf16.mxu0 0
        %1501 = vmatpush1.bf16.msra.mxu0 0
        %1502 = vmatprep.mubr.bf16.mxu0 0
        %1503 = vmatmul.mubr.bf16.gmra.mrb[0].mxu0 %v1468
        %v1504 = vpop.f32.mrb[0].mxu0
        %v1505 = vadd.f32 0.0, %v1504
        %v1506 = vpop.f32.mrb[0].mxu0
        %v1507 = vpop.f32.mrb[0].mxu0
        %v1508 = vadd.f32 0.0, %v1507
        %v1509 = vpop.f32.mrb[0].mxu0
        %1510 = vmatprep.mubr.bf16.mxu0 0
        %1511 = vmatmul.mubr.bf16.gmra.mrb[0].mxu0 %v1468
        %v1512 = vpop.f32.mrb[0].mxu0
        %v1513 = vadd.f32 0.0, %v1512
        %v1514 = vpop.f32.mrb[0].mxu0
        %v1515 = vpop.f32.mrb[0].mxu0
        %v1516 = vadd.f32 0.0, %v1515
        %v1517 = vpop.f32.mrb[0].mxu0
        %1518 = vdwg.mxu0
        %v1519 = vpack.c.bf16 %v1453, %v1452
        %v1524 = vunpack.c.l.b16 %v1357
        %v1525 = vunpack.c.l.b16 %v1358
        %v1526 = vunpack.c.l.b16 %v1359
        %v1527 = vunpack.c.l.b16 %v1360
        %v1528 = vpack.c.b16 %v1525, %v1524
        %v1529 = vpack.c.b16 %v1527, %v1526
        %v1533 = vsel %vm1368, %v1519, 0
        %1535 = vmatprep.subr.bf16.mxu0 0
        %1536 = vmatpush1.bf16.msra.mxu0 %v1528
        %1537 = vmatprep.subr.bf16.mxu0 0
        %1538 = vmatpush1.bf16.msra.mxu0 %v1529
        %1539 = vmatprep.subr.bf16.mxu0 0
        %1540 = vmatpush1.bf16.msra.mxu0 0
        %1541 = vmatprep.subr.bf16.mxu0 0
        %1542 = vmatpush1.bf16.msra.mxu0 0
        %1543 = vmatprep.subr.bf16.mxu0 0
        %1544 = vmatpush1.bf16.msra.mxu0 0
        %1545 = vmatprep.subr.bf16.mxu0 0
        %1546 = vmatpush1.bf16.msra.mxu0 0
        %1547 = vmatprep.subr.bf16.mxu0 0
        %1548 = vmatpush1.bf16.msra.mxu0 0
        %1549 = vmatprep.subr.bf16.mxu0 0
        %1550 = vmatpush1.bf16.msra.mxu0 0
        %1551 = vmatprep.subr.bf16.mxu0 0
        %1552 = vmatpush1.bf16.msra.mxu0 0
        %1553 = vmatprep.subr.bf16.mxu0 0
        %1554 = vmatpush1.bf16.msra.mxu0 0
        %1555 = vmatprep.subr.bf16.mxu0 0
        %1556 = vmatpush1.bf16.msra.mxu0 0
        %1557 = vmatprep.subr.bf16.mxu0 0
        %1558 = vmatpush1.bf16.msra.mxu0 0
        %1559 = vmatprep.subr.bf16.mxu0 0
        %1560 = vmatpush1.bf16.msra.mxu0 0
        %1561 = vmatprep.subr.bf16.mxu0 0
        %1562 = vmatpush1.bf16.msra.mxu0 0
        %1563 = vmatprep.subr.bf16.mxu0 0
        %1564 = vmatpush1.bf16.msra.mxu0 0
        %1565 = vmatprep.subr.bf16.mxu0 0
        %1566 = vmatpush1.bf16.msra.mxu0 0
        %1567 = vmatprep.mubr.bf16.mxu0 0
        %1568 = vmatmul.mubr.bf16.gmra.mrb[0].mxu0 %v1533
        %v1569 = vpop.f32.mrb[0].mxu0
        %v1570 = vadd.f32 0.0, %v1569
        %v1571 = vpop.f32.mrb[0].mxu0
        %v1572 = vpop.f32.mrb[0].mxu0
        %v1573 = vadd.f32 0.0, %v1572
        %v1574 = vpop.f32.mrb[0].mxu0
        %1575 = vdwg.mxu0
        %v1576 = vpack.c.bf16 %v1508, %v1505
        %v1577 = vpack.c.bf16 %v1570, %v1570
        %vm1578 = vcmask 130048
        %v1580 = vsel %vm1578, %v1576, 0
        %v1583 = vsel %vm1578, %v1577, 0
        %1585 = vmatprep.subr.bf16.mxu0 0
        %1586 = vmatpush1.bf16.xpose.msra.mxu0 %v1583
        %1587 = vmatprep.subr.bf16.mxu0 0
        %1588 = vmatpush1.bf16.xpose.msra.mxu0 0
        %1589 = vmatprep.subr.bf16.mxu0 0
        %1590 = vmatpush1.bf16.xpose.msra.mxu0 0
        %1591 = vmatprep.subr.bf16.mxu0 0
        %1592 = vmatpush1.bf16.xpose.msra.mxu0 0
        %1593 = vmatprep.subr.bf16.mxu0 0
        %1594 = vmatpush1.bf16.xpose.msra.mxu0 0
        %1595 = vmatprep.subr.bf16.mxu0 0
        %1596 = vmatpush1.bf16.xpose.msra.mxu0 0
        %1597 = vmatprep.subr.bf16.mxu0 0
        %1598 = vmatpush1.bf16.xpose.msra.mxu0 0
        %1599 = vmatprep.subr.bf16.mxu0 0
        %1600 = vmatpush1.bf16.xpose.msra.mxu0 0
        %1601 = vmatprep.subr.bf16.mxu0 0
        %1602 = vmatpush1.bf16.xpose.msra.mxu0 0
        %1603 = vmatprep.subr.bf16.mxu0 0
        %1604 = vmatpush1.bf16.xpose.msra.mxu0 0
        %1605 = vmatprep.subr.bf16.mxu0 0
        %1606 = vmatpush1.bf16.xpose.msra.mxu0 0
        %1607 = vmatprep.subr.bf16.mxu0 0
        %1608 = vmatpush1.bf16.xpose.msra.mxu0 0
        %1609 = vmatprep.subr.bf16.mxu0 0
        %1610 = vmatpush1.bf16.xpose.msra.mxu0 0
        %1611 = vmatprep.subr.bf16.mxu0 0
        %1612 = vmatpush1.bf16.xpose.msra.mxu0 0
        %1613 = vmatprep.subr.bf16.mxu0 0
        %1614 = vmatpush1.bf16.xpose.msra.mxu0 0
        %1615 = vmatprep.subr.bf16.mxu0 0
        %1616 = vmatpush1.bf16.xpose.msra.mxu0 0
        %1617 = vmatprep.mubr.bf16.mxu0 0
        %1618 = vmatmul.mubr.bf16.gmra.mrb[0].mxu0 %v1580
        %v1619 = vpop.f32.mrb[0].mxu0
        %v1620 = vadd.f32 0.0, %v1619
        %v1621 = vpop.f32.mrb[0].mxu0
        %v1622 = vpop.f32.mrb[0].mxu0
        %v1623 = vadd.f32 0.0, %v1622
        %v1624 = vpop.f32.mrb[0].mxu0
        %1625 = vdwg.mxu0
        %v1626 = vmul.f32 %v1620, 0.25
        %v1627 = vmul.f32 %v1623, 0.25
        %vm1628 = vcmask 64512
        %v1629 = vsel %vm1628, %v1626, -inf
        %1630 = vmax.xlane.f32.xlu0 %v1629
        %v1631 = vpop.xlane.xlu0 %1630
        %v1632 = vsel %vm1628, %v1627, -inf
        %1633 = vmax.xlane.f32.xlu0 %v1632
        %v1634 = vpop.xlane.xlu0 %1633
        %v1635 = vsub.f32 %v1626, %v1631
        %v1636 = vsub.f32 %v1627, %v1634
        %v1637 = vmul.f32 %v1635, 1.442695
        %v1638 = vpow.pop %v1637
        %v1639 = vmul.f32 %v1636, 1.442695
        %v1640 = vpow.pop %v1639
        %v1641 = vsel %vm1628, %v1638, 0.0
        %1642 = vadd.xlane.f32.xlu0 %v1641
        %v1643 = vpop.xlane.xlu0 %1642
        %v1644 = vsel %vm1628, %v1640, 0.0
        %1645 = vadd.xlane.f32.xlu0 %v1644
        %v1646 = vpop.xlane.xlu0 %1645
        %v1647 = vrcp.pop %v1643
        %v1648 = vrcp.pop %v1646
        %v1649 = vmul.f32 %v1638, %v1647
        %v1650 = vmul.f32 %v1640, %v1648
        %v1651 = vpack.c.bf16 %v1650, %v1649
        %1653 = vrot.lane.b32.xlu0 %v1577, 112
        %v1654 = vpop.permute.xlu0 %1653
        %v1656 = vsel %vm1628, %v1651, 0
        %vm1658 = vcmask 1043456
        %v1660 = vsel %vm1658, %v1654, 0
        %1662 = vmatprep.subr.bf16.mxu0 0
        %1663 = vmatpush1.bf16.msra.mxu0 %v1660
        %1664 = vmatprep.subr.bf16.mxu0 0
        %1665 = vmatpush1.bf16.msra.mxu0 0
        %1666 = vmatprep.subr.bf16.mxu0 0
        %1667 = vmatpush1.bf16.msra.mxu0 0
        %1668 = vmatprep.subr.bf16.mxu0 0
        %1669 = vmatpush1.bf16.msra.mxu0 0
        %1670 = vmatprep.subr.bf16.mxu0 0
        %1671 = vmatpush1.bf16.msra.mxu0 0
        %1672 = vmatprep.subr.bf16.mxu0 0
        %1673 = vmatpush1.bf16.msra.mxu0 0
        %1674 = vmatprep.subr.bf16.mxu0 0
        %1675 = vmatpush1.bf16.msra.mxu0 0
        %1676 = vmatprep.subr.bf16.mxu0 0
        %1677 = vmatpush1.bf16.msra.mxu0 0
        %1678 = vmatprep.subr.bf16.mxu0 0
        %1679 = vmatpush1.bf16.msra.mxu0 0
        %1680 = vmatprep.subr.bf16.mxu0 0
        %1681 = vmatpush1.bf16.msra.mxu0 0
        %1682 = vmatprep.subr.bf16.mxu0 0
        %1683 = vmatpush1.bf16.msra.mxu0 0
        %1684 = vmatprep.subr.bf16.mxu0 0
        %1685 = vmatpush1.bf16.msra.mxu0 0
        %1686 = vmatprep.subr.bf16.mxu0 0
        %1687 = vmatpush1.bf16.msra.mxu0 0
        %1688 = vmatprep.subr.bf16.mxu0 0
        %1689 = vmatpush1.bf16.msra.mxu0 0
        %1690 = vmatprep.subr.bf16.mxu0 0
        %1691 = vmatpush1.bf16.msra.mxu0 0
        %1692 = vmatprep.subr.bf16.mxu0 0
        %1693 = vmatpush1.bf16.msra.mxu0 0
        %1694 = vmatprep.mubr.bf16.mxu0 0
        %1695 = vmatmul.mubr.bf16.gmra.mrb[0].mxu0 %v1656
        %v1696 = vpop.f32.mrb[0].mxu0
        %v1697 = vadd.f32 0.0, %v1696
        %v1698 = vpop.f32.mrb[0].mxu0
        %v1699 = vpop.f32.mrb[0].mxu0
        %v1700 = vadd.f32 0.0, %v1699
        %v1701 = vpop.f32.mrb[0].mxu0
        %1702 = vdwg.mxu0
        %v1703 = vpack.c.bf16 %v1516, %v1513
        %v1704 = vpack.c.bf16 %v1573, %v1573
        %v1706 = vsel %vm1578, %v1703, 0
        %v1709 = vsel %vm1578, %v1704, 0
        %1711 = vmatprep.subr.bf16.mxu0 0
        %1712 = vmatpush1.bf16.xpose.msra.mxu0 %v1709
        %1713 = vmatprep.subr.bf16.mxu0 0
        %1714 = vmatpush1.bf16.xpose.msra.mxu0 0
        %1715 = vmatprep.subr.bf16.mxu0 0
        %1716 = vmatpush1.bf16.xpose.msra.mxu0 0
        %1717 = vmatprep.subr.bf16.mxu0 0
        %1718 = vmatpush1.bf16.xpose.msra.mxu0 0
        %1719 = vmatprep.subr.bf16.mxu0 0
        %1720 = vmatpush1.bf16.xpose.msra.mxu0 0
        %1721 = vmatprep.subr.bf16.mxu0 0
        %1722 = vmatpush1.bf16.xpose.msra.mxu0 0
        %1723 = vmatprep.subr.bf16.mxu0 0
        %1724 = vmatpush1.bf16.xpose.msra.mxu0 0
        %1725 = vmatprep.subr.bf16.mxu0 0
        %1726 = vmatpush1.bf16.xpose.msra.mxu0 0
        %1727 = vmatprep.subr.bf16.mxu0 0
        %1728 = vmatpush1.bf16.xpose.msra.mxu0 0
        %1729 = vmatprep.subr.bf16.mxu0 0
        %1730 = vmatpush1.bf16.xpose.msra.mxu0 0
        %1731 = vmatprep.subr.bf16.mxu0 0
        %1732 = vmatpush1.bf16.xpose.msra.mxu0 0
        %1733 = vmatprep.subr.bf16.mxu0 0
        %1734 = vmatpush1.bf16.xpose.msra.mxu0 0
        %1735 = vmatprep.subr.bf16.mxu0 0
        %1736 = vmatpush1.bf16.xpose.msra.mxu0 0
        %1737 = vmatprep.subr.bf16.mxu0 0
        %1738 = vmatpush1.bf16.xpose.msra.mxu0 0
        %1739 = vmatprep.subr.bf16.mxu0 0
        %1740 = vmatpush1.bf16.xpose.msra.mxu0 0
        %1741 = vmatprep.subr.bf16.mxu0 0
        %1742 = vmatpush1.bf16.xpose.msra.mxu0 0
        %1743 = vmatprep.mubr.bf16.mxu0 0
        %1744 = vmatmul.mubr.bf16.gmra.mrb[0].mxu0 %v1706
        %v1745 = vpop.f32.mrb[0].mxu0
        %v1746 = vadd.f32 0.0, %v1745
        %v1747 = vpop.f32.mrb[0].mxu0
        %v1748 = vpop.f32.mrb[0].mxu0
        %v1749 = vadd.f32 0.0, %v1748
        %v1750 = vpop.f32.mrb[0].mxu0
        %1751 = vdwg.mxu0
        %v1752 = vmul.f32 %v1746, 0.25
        %v1753 = vmul.f32 %v1749, 0.25
        %v1754 = vsel %vm1628, %v1752, -inf
        %1755 = vmax.xlane.f32.xlu0 %v1754
        %v1756 = vpop.xlane.xlu0 %1755
        %v1757 = vsel %vm1628, %v1753, -inf
        %1758 = vmax.xlane.f32.xlu0 %v1757
        %v1759 = vpop.xlane.xlu0 %1758
        %v1760 = vsub.f32 %v1752, %v1756
        %v1761 = vsub.f32 %v1753, %v1759
        %v1762 = vmul.f32 %v1760, 1.442695
        %v1763 = vpow.pop %v1762
        %v1764 = vmul.f32 %v1761, 1.442695
        %v1765 = vpow.pop %v1764
        %v1766 = vsel %vm1628, %v1763, 0.0
        %1767 = vadd.xlane.f32.xlu0 %v1766
        %v1768 = vpop.xlane.xlu0 %1767
        %v1769 = vsel %vm1628, %v1765, 0.0
        %1770 = vadd.xlane.f32.xlu0 %v1769
        %v1771 = vpop.xlane.xlu0 %1770
        %v1772 = vrcp.pop %v1768
        %v1773 = vrcp.pop %v1771
        %v1774 = vmul.f32 %v1763, %v1772
        %v1775 = vmul.f32 %v1765, %v1773
        %v1776 = vpack.c.bf16 %v1775, %v1774
        %1778 = vrot.lane.b32.xlu0 %v1704, 112
        %v1779 = vpop.permute.xlu0 %1778
        %v1781 = vsel %vm1628, %v1776, 0
        %v1784 = vsel %vm1658, %v1779, 0
        %1786 = vmatprep.subr.bf16.mxu0 0
        %1787 = vmatpush1.bf16.msra.mxu0 %v1784
        %1788 = vmatprep.subr.bf16.mxu0 0
        %1789 = vmatpush1.bf16.msra.mxu0 0
        %1790 = vmatprep.subr.bf16.mxu0 0
        %1791 = vmatpush1.bf16.msra.mxu0 0
        %1792 = vmatprep.subr.bf16.mxu0 0
        %1793 = vmatpush1.bf16.msra.mxu0 0
        %1794 = vmatprep.subr.bf16.mxu0 0
        %1795 = vmatpush1.bf16.msra.mxu0 0
        %1796 = vmatprep.subr.bf16.mxu0 0
        %1797 = vmatpush1.bf16.msra.mxu0 0
        %1798 = vmatprep.subr.bf16.mxu0 0
        %1799 = vmatpush1.bf16.msra.mxu0 0
        %1800 = vmatprep.subr.bf16.mxu0 0
        %1801 = vmatpush1.bf16.msra.mxu0 0
        %1802 = vmatprep.subr.bf16.mxu0 0
        %1803 = vmatpush1.bf16.msra.mxu0 0
        %1804 = vmatprep.subr.bf16.mxu0 0
        %1805 = vmatpush1.bf16.msra.mxu0 0
        %1806 = vmatprep.subr.bf16.mxu0 0
        %1807 = vmatpush1.bf16.msra.mxu0 0
        %1808 = vmatprep.subr.bf16.mxu0 0
        %1809 = vmatpush1.bf16.msra.mxu0 0
        %1810 = vmatprep.subr.bf16.mxu0 0
        %1811 = vmatpush1.bf16.msra.mxu0 0
        %1812 = vmatprep.subr.bf16.mxu0 0
        %1813 = vmatpush1.bf16.msra.mxu0 0
        %1814 = vmatprep.subr.bf16.mxu0 0
        %1815 = vmatpush1.bf16.msra.mxu0 0
        %1816 = vmatprep.subr.bf16.mxu0 0
        %1817 = vmatpush1.bf16.msra.mxu0 0
        %1818 = vmatprep.mubr.bf16.mxu0 0
        %1819 = vmatmul.mubr.bf16.gmra.mrb[0].mxu0 %v1781
        %v1820 = vpop.f32.mrb[0].mxu0
        %v1821 = vadd.f32 0.0, %v1820
        %v1822 = vpop.f32.mrb[0].mxu0
        %v1823 = vpop.f32.mrb[0].mxu0
        %v1824 = vadd.f32 0.0, %v1823
        %v1825 = vpop.f32.mrb[0].mxu0
        %1826 = vdwg.mxu0
        %v1827 = vpack.c.bf16 %v1700, %v1697
        %v1828 = vpack.c.bf16 %v1824, %v1821
        %v1830 = vlaneseq
        %v1831 = vshrl.u32 %v1830, 7
        %v1832 = vsub.s32 0, %v1831
        %v1833 = vrot.slane %v1363, %v1832
        %v1837 = vunpack.c.l.b16 %v1361
        %v1838 = vunpack.c.l.b16 %v1362
        %v1839 = vpack.c.b16 %v1838, %v1837
        %v1842 = vsel %vm1578, %v1827, 0
        %v1845 = vsel %vm1578, %v1828, 0
        %1847 = vmatprep.subr.bf16.mxu0 0
        %1848 = vmatpush1.bf16.msra.mxu0 %v1839
        %1849 = vmatprep.subr.bf16.mxu0 0
        %1850 = vmatpush1.bf16.msra.mxu0 0
        %1851 = vmatprep.subr.bf16.mxu0 0
        %1852 = vmatpush1.bf16.msra.mxu0 0
        %1853 = vmatprep.subr.bf16.mxu0 0
        %1854 = vmatpush1.bf16.msra.mxu0 0
        %1855 = vmatprep.subr.bf16.mxu0 0
        %1856 = vmatpush1.bf16.msra.mxu0 0
        %1857 = vmatprep.subr.bf16.mxu0 0
        %1858 = vmatpush1.bf16.msra.mxu0 0
        %1859 = vmatprep.subr.bf16.mxu0 0
        %1860 = vmatpush1.bf16.msra.mxu0 0
        %1861 = vmatprep.subr.bf16.mxu0 0
        %1862 = vmatpush1.bf16.msra.mxu0 0
        %1863 = vmatprep.subr.bf16.mxu0 0
        %1864 = vmatpush1.bf16.msra.mxu0 0
        %1865 = vmatprep.subr.bf16.mxu0 0
        %1866 = vmatpush1.bf16.msra.mxu0 0
        %1867 = vmatprep.subr.bf16.mxu0 0
        %1868 = vmatpush1.bf16.msra.mxu0 0
        %1869 = vmatprep.subr.bf16.mxu0 0
        %1870 = vmatpush1.bf16.msra.mxu0 0
        %1871 = vmatprep.subr.bf16.mxu0 0
        %1872 = vmatpush1.bf16.msra.mxu0 0
        %1873 = vmatprep.subr.bf16.mxu0 0
        %1874 = vmatpush1.bf16.msra.mxu0 0
        %1875 = vmatprep.subr.bf16.mxu0 0
        %1876 = vmatpush1.bf16.msra.mxu0 0
        %1877 = vmatprep.subr.bf16.mxu0 0
        %1878 = vmatpush1.bf16.msra.mxu0 0
        %1879 = vmatprep.mubr.bf16.mxu0 0
        %1880 = vmatmul.mubr.bf16.gmra.mrb[0].mxu0 %v1842
        %v1881 = vpop.f32.mrb[0].mxu0
        %v1882 = vadd.f32 %v1833, %v1881
        %v1883 = vpop.f32.mrb[0].mxu0
        %v1884 = vpop.f32.mrb[0].mxu0
        %v1885 = vadd.f32 %v1833, %v1884
        %v1886 = vpop.f32.mrb[0].mxu0
        %1887 = vmatprep.mubr.bf16.mxu0 0
        %1888 = vmatmul.mubr.bf16.gmra.mrb[0].mxu0 %v1845
        %v1889 = vpop.f32.mrb[0].mxu0
        %v1890 = vadd.f32 %v1833, %v1889
        %v1891 = vpop.f32.mrb[0].mxu0
        %v1892 = vpop.f32.mrb[0].mxu0
        %v1893 = vadd.f32 %v1833, %v1892
        %v1894 = vpop.f32.mrb[0].mxu0
        %1895 = vdwg.mxu0
        %v1896 = vadd.f32 %v1351, %v1882
        %v1897 = vadd.f32 %v1352, %v1885
        %v1898 = vadd.f32 %v1351, %v1890
        %v1899 = vadd.f32 %v1352, %v1893
        %v1900 = vld [vmem:[%s23] sm:$0xf]
        %v1901 = vld [vmem:[%s23 + $0x4] sm:$0xf]
        %v1902 = vld [vmem:[%s23 + $0x8] sm:$0xf]
        %v1903 = vld [vmem:[%s23 + $0xc] sm:$0xf]
        %v1904 = vld [vmem:[%s23 + $0x10] sm:$0xf]
        %v1905 = vld [vmem:[%s23 + $0x14] sm:$0xf]
        %v1906 = vld [vmem:[%s23 + $0x18] sm:$0xf]
        %v1907 = vld [vmem:[%s23 + $0x1c] sm:$0xf]
        %v1908 = vld [vmem:[%s25] sm:$0x1]
        %v1909 = vld [vmem:[%s25 + $0x1] sm:$0x1]
        %v1910 = vld [vmem:[%s27] sm:$0xf]
        %v1911 = vld [vmem:[%s27 + $0x4] sm:$0xf]
        %v1912 = vld [vmem:[%s27 + $0x8] sm:$0xf]
        %v1913 = vld [vmem:[%s27 + $0xc] sm:$0xf]
        %v1914 = vld [vmem:[%s27 + $0x10] sm:$0xf]
        %v1915 = vld [vmem:[%s27 + $0x14] sm:$0xf]
        %v1916 = vld [vmem:[%s27 + $0x18] sm:$0xf]
        %v1917 = vld [vmem:[%s27 + $0x1c] sm:$0xf]
        %v1918 = vld [vmem:[%s27 + $0x20] sm:$0xf]
        %v1919 = vld [vmem:[%s27 + $0x24] sm:$0xf]
        %v1920 = vld [vmem:[%s27 + $0x28] sm:$0xf]
        %v1921 = vld [vmem:[%s27 + $0x2c] sm:$0xf]
        %v1922 = vld [vmem:[%s27 + $0x30] sm:$0xf]
        %v1923 = vld [vmem:[%s27 + $0x34] sm:$0xf]
        %v1924 = vld [vmem:[%s27 + $0x38] sm:$0xf]
        %v1925 = vld [vmem:[%s27 + $0x3c] sm:$0xf]
        %v1926 = vld [vmem:[%s29] sm:$0x1]
        %v1927 = vld [vmem:[%s31] sm:$0x1]
        %v1928 = vld [vmem:[%s33] sm:$0x1]
        %v1929 = vsel %vm1368, %v1896, 0.0
        %1930 = vadd.xlane.f32.xlu0 %v1929
        %v1931 = vpop.xlane.xlu0 %1930
        %v1932 = vsel %vm1368, %v1897, 0.0
        %1933 = vadd.xlane.f32.xlu0 %v1932
        %v1934 = vpop.xlane.xlu0 %1933
        %v1935 = vsel %vm1368, %v1898, 0.0
        %1936 = vadd.xlane.f32.xlu0 %v1935
        %v1937 = vpop.xlane.xlu0 %1936
        %v1938 = vsel %vm1368, %v1899, 0.0
        %1939 = vadd.xlane.f32.xlu0 %v1938
        %v1940 = vpop.xlane.xlu0 %1939
        %v1941 = vmul.f32 %v1931, %v1375
        %v1942 = vmul.f32 %v1934, %v1375
        %v1943 = vmul.f32 %v1937, %v1375
        %v1944 = vmul.f32 %v1940, %v1375
        %v1945 = vsub.f32 %v1896, %v1941
        %v1946 = vsub.f32 %v1897, %v1942
        %v1947 = vsub.f32 %v1898, %v1943
        %v1948 = vsub.f32 %v1899, %v1944
        %v1949 = vmul.f32 %v1945, %v1945
        %v1950 = vmul.f32 %v1946, %v1946
        %v1951 = vmul.f32 %v1947, %v1947
        %v1952 = vmul.f32 %v1948, %v1948
        %v1953 = vsel %vm1368, %v1949, 0.0
        %1954 = vadd.xlane.f32.xlu0 %v1953
        %v1955 = vpop.xlane.xlu0 %1954
        %v1956 = vsel %vm1368, %v1950, 0.0
        %1957 = vadd.xlane.f32.xlu0 %v1956
        %v1958 = vpop.xlane.xlu0 %1957
        %v1959 = vsel %vm1368, %v1951, 0.0
        %1960 = vadd.xlane.f32.xlu0 %v1959
        %v1961 = vpop.xlane.xlu0 %1960
        %v1962 = vsel %vm1368, %v1952, 0.0
        %1963 = vadd.xlane.f32.xlu0 %v1962
        %v1964 = vpop.xlane.xlu0 %1963
        %v1965 = vmul.f32 %v1955, %v1375
        %v1966 = vmul.f32 %v1958, %v1375
        %v1967 = vmul.f32 %v1961, %v1375
        %v1968 = vmul.f32 %v1964, %v1375
        %v1969 = vadd.f32 %v1965, 1e-05
        %v1970 = vadd.f32 %v1966, 1e-05
        %v1971 = vadd.f32 %v1967, 1e-05
        %v1972 = vadd.f32 %v1968, 1e-05
        %v1973 = vrsqrt.pop %v1969
        %v1974 = vrsqrt.pop %v1970
        %v1975 = vrsqrt.pop %v1971
        %v1976 = vrsqrt.pop %v1972
        %v1977 = vmul.f32 %v1945, %v1973
        %v1978 = vmul.f32 %v1946, %v1974
        %v1979 = vmul.f32 %v1947, %v1975
        %v1980 = vmul.f32 %v1948, %v1976
        %v1982 = vlaneseq
        %v1983 = vshrl.u32 %v1982, 7
        %v1984 = vsub.s32 0, %v1983
        %v1985 = vrot.slane %v1927, %v1984
        %v1987 = vmul.f32 %v1977, %v1985
        %v1988 = vmul.f32 %v1978, %v1985
        %v1989 = vmul.f32 %v1979, %v1985
        %v1990 = vmul.f32 %v1980, %v1985
        %v1992 = vlaneseq
        %v1993 = vshrl.u32 %v1992, 7
        %v1994 = vsub.s32 0, %v1993
        %v1995 = vrot.slane %v1928, %v1994
        %v1997 = vadd.f32 %v1987, %v1995
        %v1998 = vadd.f32 %v1988, %v1995
        %v1999 = vadd.f32 %v1989, %v1995
        %v2000 = vadd.f32 %v1990, %v1995
        %v2001 = vpack.c.bf16 %v1998, %v1997
        %v2002 = vpack.c.bf16 %v2000, %v1999
        %v2004 = vlaneseq
        %v2005 = vshrl.u32 %v2004, 7
        %v2006 = vsub.s32 0, %v2005
        %v2007 = vrot.slane %v1908, %v2006
        %v2013 = vunpack.c.l.b16 %v1900
        %v2014 = vunpack.c.l.b16 %v1901
        %v2015 = vunpack.c.l.b16 %v1902
        %v2016 = vunpack.c.l.b16 %v1903
        %v2017 = vpack.c.b16 %v2014, %v2013
        %v2018 = vpack.c.b16 %v2016, %v2015
        %v2022 = vsel %vm1368, %v2001, 0
        %v2025 = vsel %vm1368, %v2002, 0
        %2027 = vmatprep.subr.bf16.mxu0 0
        %2028 = vmatpush1.bf16.msra.mxu0 %v2017
        %2029 = vmatprep.subr.bf16.mxu0 0
        %2030 = vmatpush1.bf16.msra.mxu0 %v2018
        %2031 = vmatprep.subr.bf16.mxu0 0
        %2032 = vmatpush1.bf16.msra.mxu0 0
        %2033 = vmatprep.subr.bf16.mxu0 0
        %2034 = vmatpush1.bf16.msra.mxu0 0
        %2035 = vmatprep.subr.bf16.mxu0 0
        %2036 = vmatpush1.bf16.msra.mxu0 0
        %2037 = vmatprep.subr.bf16.mxu0 0
        %2038 = vmatpush1.bf16.msra.mxu0 0
        %2039 = vmatprep.subr.bf16.mxu0 0
        %2040 = vmatpush1.bf16.msra.mxu0 0
        %2041 = vmatprep.subr.bf16.mxu0 0
        %2042 = vmatpush1.bf16.msra.mxu0 0
        %2043 = vmatprep.subr.bf16.mxu0 0
        %2044 = vmatpush1.bf16.msra.mxu0 0
        %2045 = vmatprep.subr.bf16.mxu0 0
        %2046 = vmatpush1.bf16.msra.mxu0 0
        %2047 = vmatprep.subr.bf16.mxu0 0
        %2048 = vmatpush1.bf16.msra.mxu0 0
        %2049 = vmatprep.subr.bf16.mxu0 0
        %2050 = vmatpush1.bf16.msra.mxu0 0
        %2051 = vmatprep.subr.bf16.mxu0 0
        %2052 = vmatpush1.bf16.msra.mxu0 0
        %2053 = vmatprep.subr.bf16.mxu0 0
        %2054 = vmatpush1.bf16.msra.mxu0 0
        %2055 = vmatprep.subr.bf16.mxu0 0
        %2056 = vmatpush1.bf16.msra.mxu0 0
        %2057 = vmatprep.subr.bf16.mxu0 0
        %2058 = vmatpush1.bf16.msra.mxu0 0
        %2059 = vmatprep.mubr.bf16.mxu0 0
        %2060 = vmatmul.mubr.bf16.gmra.mrb[0].mxu0 %v2022
        %v2061 = vpop.f32.mrb[0].mxu0
        %v2062 = vadd.f32 %v2007, %v2061
        %v2063 = vpop.f32.mrb[0].mxu0
        %v2064 = vpop.f32.mrb[0].mxu0
        %v2065 = vadd.f32 %v2007, %v2064
        %v2066 = vpop.f32.mrb[0].mxu0
        %2067 = vmatprep.mubr.bf16.mxu0 0
        %2068 = vmatmul.mubr.bf16.gmra.mrb[0].mxu0 %v2025
        %v2069 = vpop.f32.mrb[0].mxu0
        %v2070 = vadd.f32 %v2007, %v2069
        %v2071 = vpop.f32.mrb[0].mxu0
        %v2072 = vpop.f32.mrb[0].mxu0
        %v2073 = vadd.f32 %v2007, %v2072
        %v2074 = vpop.f32.mrb[0].mxu0
        %2075 = vdwg.mxu0
        %v2077 = vlaneseq
        %v2078 = vshrl.u32 %v2077, 7
        %v2079 = vsub.s32 0, %v2078
        %v2080 = vrot.slane %v1909, %v2079
        %v2086 = vunpack.c.l.b16 %v1904
        %v2087 = vunpack.c.l.b16 %v1905
        %v2088 = vunpack.c.l.b16 %v1906
        %v2089 = vunpack.c.l.b16 %v1907
        %v2090 = vpack.c.b16 %v2087, %v2086
        %v2091 = vpack.c.b16 %v2089, %v2088
        %2094 = vmatprep.subr.bf16.mxu0 0
        %2095 = vmatpush1.bf16.msra.mxu0 %v2090
        %2096 = vmatprep.subr.bf16.mxu0 0
        %2097 = vmatpush1.bf16.msra.mxu0 %v2091
        %2098 = vmatprep.subr.bf16.mxu0 0
        %2099 = vmatpush1.bf16.msra.mxu0 0
        %2100 = vmatprep.subr.bf16.mxu0 0
        %2101 = vmatpush1.bf16.msra.mxu0 0
        %2102 = vmatprep.subr.bf16.mxu0 0
        %2103 = vmatpush1.bf16.msra.mxu0 0
        %2104 = vmatprep.subr.bf16.mxu0 0
        %2105 = vmatpush1.bf16.msra.mxu0 0
        %2106 = vmatprep.subr.bf16.mxu0 0
        %2107 = vmatpush1.bf16.msra.mxu0 0
        %2108 = vmatprep.subr.bf16.mxu0 0
        %2109 = vmatpush1.bf16.msra.mxu0 0
        %2110 = vmatprep.subr.bf16.mxu0 0
        %2111 = vmatpush1.bf16.msra.mxu0 0
        %2112 = vmatprep.subr.bf16.mxu0 0
        %2113 = vmatpush1.bf16.msra.mxu0 0
        %2114 = vmatprep.subr.bf16.mxu0 0
        %2115 = vmatpush1.bf16.msra.mxu0 0
        %2116 = vmatprep.subr.bf16.mxu0 0
        %2117 = vmatpush1.bf16.msra.mxu0 0
        %2118 = vmatprep.subr.bf16.mxu0 0
        %2119 = vmatpush1.bf16.msra.mxu0 0
        %2120 = vmatprep.subr.bf16.mxu0 0
        %2121 = vmatpush1.bf16.msra.mxu0 0
        %2122 = vmatprep.subr.bf16.mxu0 0
        %2123 = vmatpush1.bf16.msra.mxu0 0
        %2124 = vmatprep.subr.bf16.mxu0 0
        %2125 = vmatpush1.bf16.msra.mxu0 0
        %2126 = vmatprep.mubr.bf16.mxu0 0
        %2127 = vmatmul.mubr.bf16.gmra.mrb[0].mxu0 %v2022
        %v2128 = vpop.f32.mrb[0].mxu0
        %v2129 = vadd.f32 %v2080, %v2128
        %v2130 = vpop.f32.mrb[0].mxu0
        %v2131 = vpop.f32.mrb[0].mxu0
        %v2132 = vadd.f32 %v2080, %v2131
        %v2133 = vpop.f32.mrb[0].mxu0
        %2134 = vmatprep.mubr.bf16.mxu0 0
        %2135 = vmatmul.mubr.bf16.gmra.mrb[0].mxu0 %v2025
        %v2136 = vpop.f32.mrb[0].mxu0
        %v2137 = vadd.f32 %v2080, %v2136
        %v2138 = vpop.f32.mrb[0].mxu0
        %v2139 = vpop.f32.mrb[0].mxu0
        %v2140 = vadd.f32 %v2080, %v2139
        %v2141 = vpop.f32.mrb[0].mxu0
        %2142 = vdwg.mxu0
        %v2143 = vmul.f32 %v2129, 0.5
        %v2144 = vmul.f32 %v2132, 0.5
        %v2145 = vmul.f32 %v2137, 0.5
        %v2146 = vmul.f32 %v2140, 0.5
        %v2147 = vmul.f32 %v2129, 0.70710677
        %v2148 = vmul.f32 %v2132, 0.70710677
        %v2149 = vmul.f32 %v2137, 0.70710677
        %v2150 = vmul.f32 %v2140, 0.70710677
        %v2151 = verf.f32.pop %v2147
        %v2152 = verf.f32.pop %v2148
        %v2153 = verf.f32.pop %v2149
        %v2154 = verf.f32.pop %v2150
        %v2155 = vadd.f32 %v2151, 1.0
        %v2156 = vadd.f32 %v2152, 1.0
        %v2157 = vadd.f32 %v2153, 1.0
        %v2158 = vadd.f32 %v2154, 1.0
        %v2159 = vmul.f32 %v2143, %v2155
        %v2160 = vmul.f32 %v2144, %v2156
        %v2161 = vmul.f32 %v2145, %v2157
        %v2162 = vmul.f32 %v2146, %v2158
        %v2163 = vmul.f32 %v2062, %v2159
        %v2164 = vmul.f32 %v2065, %v2160
        %v2165 = vmul.f32 %v2070, %v2161
        %v2166 = vmul.f32 %v2073, %v2162
        %v2167 = vpack.c.bf16 %v2164, %v2163
        %v2168 = vpack.c.bf16 %v2166, %v2165
        %v2170 = vlaneseq
        %v2171 = vshrl.u32 %v2170, 7
        %v2172 = vsub.s32 0, %v2171
        %v2173 = vrot.slane %v1926, %v2172
        %v2191 = vunpack.c.l.b16 %v1910
        %v2192 = vunpack.c.l.b16 %v1911
        %v2193 = vunpack.c.l.b16 %v1912
        %v2194 = vunpack.c.l.b16 %v1913
        %v2195 = vunpack.c.l.b16 %v1914
        %v2196 = vunpack.c.l.b16 %v1915
        %v2197 = vunpack.c.l.b16 %v1916
        %v2198 = vunpack.c.l.b16 %v1917
        %v2199 = vunpack.c.l.b16 %v1918
        %v2200 = vunpack.c.l.b16 %v1919
        %v2201 = vunpack.c.l.b16 %v1920
        %v2202 = vunpack.c.l.b16 %v1921
        %v2203 = vunpack.c.l.b16 %v1922
        %v2204 = vunpack.c.l.b16 %v1923
        %v2205 = vunpack.c.l.b16 %v1924
        %v2206 = vunpack.c.l.b16 %v1925
        %v2207 = vpack.c.b16 %v2192, %v2191
        %v2208 = vpack.c.b16 %v2194, %v2193
        %v2209 = vpack.c.b16 %v2196, %v2195
        %v2210 = vpack.c.b16 %v2198, %v2197
        %v2211 = vpack.c.b16 %v2200, %v2199
        %v2212 = vpack.c.b16 %v2202, %v2201
        %v2213 = vpack.c.b16 %v2204, %v2203
        %v2214 = vpack.c.b16 %v2206, %v2205
        %2223 = vmatprep.subr.bf16.mxu0 0
        %2224 = vmatpush1.bf16.msra.mxu0 %v2207
        %2225 = vmatprep.subr.bf16.mxu0 0
        %2226 = vmatpush1.bf16.msra.mxu0 %v2208
        %2227 = vmatprep.subr.bf16.mxu0 0
        %2228 = vmatpush1.bf16.msra.mxu0 %v2209
        %2229 = vmatprep.subr.bf16.mxu0 0
        %2230 = vmatpush1.bf16.msra.mxu0 %v2210
        %2231 = vmatprep.subr.bf16.mxu0 0
        %2232 = vmatpush1.bf16.msra.mxu0 %v2211
        %2233 = vmatprep.subr.bf16.mxu0 0
        %2234 = vmatpush1.bf16.msra.mxu0 %v2212
        %2235 = vmatprep.subr.bf16.mxu0 0
        %2236 = vmatpush1.bf16.msra.mxu0 %v2213
        %2237 = vmatprep.subr.bf16.mxu0 0
        %2238 = vmatpush1.bf16.msra.mxu0 %v2214
        %2239 = vmatprep.subr.bf16.mxu0 0
        %2240 = vmatpush1.bf16.msra.mxu0 0
        %2241 = vmatprep.subr.bf16.mxu0 0
        %2242 = vmatpush1.bf16.msra.mxu0 0
        %2243 = vmatprep.subr.bf16.mxu0 0
        %2244 = vmatpush1.bf16.msra.mxu0 0
        %2245 = vmatprep.subr.bf16.mxu0 0
        %2246 = vmatpush1.bf16.msra.mxu0 0
        %2247 = vmatprep.subr.bf16.mxu0 0
        %2248 = vmatpush1.bf16.msra.mxu0 0
        %2249 = vmatprep.subr.bf16.mxu0 0
        %2250 = vmatpush1.bf16.msra.mxu0 0
        %2251 = vmatprep.subr.bf16.mxu0 0
        %2252 = vmatpush1.bf16.msra.mxu0 0
        %2253 = vmatprep.subr.bf16.mxu0 0
        %2254 = vmatpush1.bf16.msra.mxu0 0
        %2255 = vmatprep.mubr.bf16.mxu0 0
        %2256 = vmatmul.mubr.bf16.gmra.mrb[0].mxu0 %v2167
        %v2257 = vpop.f32.mrb[0].mxu0
        %v2258 = vadd.f32 %v2173, %v2257
        %v2259 = vpop.f32.mrb[0].mxu0
        %v2260 = vpop.f32.mrb[0].mxu0
        %v2261 = vadd.f32 %v2173, %v2260
        %v2262 = vpop.f32.mrb[0].mxu0
        %2263 = vmatprep.mubr.bf16.mxu0 0
        %2264 = vmatmul.mubr.bf16.gmra.mrb[0].mxu0 %v2168
        %v2265 = vpop.f32.mrb[0].mxu0
        %v2266 = vadd.f32 %v2173, %v2265
        %v2267 = vpop.f32.mrb[0].mxu0
        %v2268 = vpop.f32.mrb[0].mxu0
        %v2269 = vadd.f32 %v2173, %v2268
        %v2270 = vpop.f32.mrb[0].mxu0
        %2271 = vdwg.mxu0
        %v2272 = vadd.f32 %v1896, %v2258
        %v2273 = vadd.f32 %v1897, %v2261
        %v2274 = vadd.f32 %v1898, %v2266
        %v2275 = vadd.f32 %v1899, %v2269
        %v2276 = vld [vmem:[%s35] sm:$0xf]
        %v2277 = vld [vmem:[%s35 + $0x4] sm:$0xf]
        %v2278 = vld [vmem:[%s35 + $0x8] sm:$0xf]
        %v2279 = vld [vmem:[%s35 + $0xc] sm:$0xf]
        %v2280 = vld [vmem:[%s37] sm:$0xf]
        %v2281 = vld [vmem:[%s37 + $0x4] sm:$0xf]
        %v2282 = vld [vmem:[%s37 + $0x8] sm:$0xf]
        %v2283 = vld [vmem:[%s37 + $0xc] sm:$0xf]
        %v2284 = vld [vmem:[%s39] sm:$0x1]
        %v2285 = vld [vmem:[%s41] sm:$0x1]
        %v2286 = vld [vmem:[%s43] sm:$0x1]
        %v2287 = vsel %vm1368, %v2272, 0.0
        %2288 = vadd.xlane.f32.xlu0 %v2287
        %v2289 = vpop.xlane.xlu0 %2288
        %v2290 = vsel %vm1368, %v2273, 0.0
        %2291 = vadd.xlane.f32.xlu0 %v2290
        %v2292 = vpop.xlane.xlu0 %2291
        %v2293 = vsel %vm1368, %v2274, 0.0
        %2294 = vadd.xlane.f32.xlu0 %v2293
        %v2295 = vpop.xlane.xlu0 %2294
        %v2296 = vsel %vm1368, %v2275, 0.0
        %2297 = vadd.xlane.f32.xlu0 %v2296
        %v2298 = vpop.xlane.xlu0 %2297
        %v2299 = vmul.f32 %v2289, %v1375
        %v2300 = vmul.f32 %v2292, %v1375
        %v2301 = vmul.f32 %v2295, %v1375
        %v2302 = vmul.f32 %v2298, %v1375
        %v2303 = vsub.f32 %v2272, %v2299
        %v2304 = vsub.f32 %v2273, %v2300
        %v2305 = vsub.f32 %v2274, %v2301
        %v2306 = vsub.f32 %v2275, %v2302
        %v2307 = vmul.f32 %v2303, %v2303
        %v2308 = vmul.f32 %v2304, %v2304
        %v2309 = vmul.f32 %v2305, %v2305
        %v2310 = vmul.f32 %v2306, %v2306
        %v2311 = vsel %vm1368, %v2307, 0.0
        %2312 = vadd.xlane.f32.xlu0 %v2311
        %v2313 = vpop.xlane.xlu0 %2312
        %v2314 = vsel %vm1368, %v2308, 0.0
        %2315 = vadd.xlane.f32.xlu0 %v2314
        %v2316 = vpop.xlane.xlu0 %2315
        %v2317 = vsel %vm1368, %v2309, 0.0
        %2318 = vadd.xlane.f32.xlu0 %v2317
        %v2319 = vpop.xlane.xlu0 %2318
        %v2320 = vsel %vm1368, %v2310, 0.0
        %2321 = vadd.xlane.f32.xlu0 %v2320
        %v2322 = vpop.xlane.xlu0 %2321
        %v2323 = vmul.f32 %v2313, %v1375
        %v2324 = vmul.f32 %v2316, %v1375
        %v2325 = vmul.f32 %v2319, %v1375
        %v2326 = vmul.f32 %v2322, %v1375
        %v2327 = vadd.f32 %v2323, 1e-05
        %v2328 = vadd.f32 %v2324, 1e-05
        %v2329 = vadd.f32 %v2325, 1e-05
        %v2330 = vadd.f32 %v2326, 1e-05
        %v2331 = vrsqrt.pop %v2327
        %v2332 = vrsqrt.pop %v2328
        %v2333 = vrsqrt.pop %v2329
        %v2334 = vrsqrt.pop %v2330
        %v2335 = vmul.f32 %v2303, %v2331
        %v2336 = vmul.f32 %v2304, %v2332
        %v2337 = vmul.f32 %v2305, %v2333
        %v2338 = vmul.f32 %v2306, %v2334
        %v2340 = vlaneseq
        %v2341 = vshrl.u32 %v2340, 7
        %v2342 = vsub.s32 0, %v2341
        %v2343 = vrot.slane %v2285, %v2342
        %v2345 = vmul.f32 %v2335, %v2343
        %v2346 = vmul.f32 %v2336, %v2343
        %v2347 = vmul.f32 %v2337, %v2343
        %v2348 = vmul.f32 %v2338, %v2343
        %v2350 = vlaneseq
        %v2351 = vshrl.u32 %v2350, 7
        %v2352 = vsub.s32 0, %v2351
        %v2353 = vrot.slane %v2286, %v2352
        %v2355 = vadd.f32 %v2345, %v2353
        %v2356 = vadd.f32 %v2346, %v2353
        %v2357 = vadd.f32 %v2347, %v2353
        %v2358 = vadd.f32 %v2348, %v2353
        %v2359 = vpack.c.bf16 %v2356, %v2355
        %v2360 = vpack.c.bf16 %v2358, %v2357
        %v2365 = vunpack.c.l.b16 %v2276
        %v2366 = vunpack.c.l.b16 %v2277
        %v2367 = vunpack.c.l.b16 %v2278
        %v2368 = vunpack.c.l.b16 %v2279
        %v2369 = vpack.c.b16 %v2366, %v2365
        %v2370 = vpack.c.b16 %v2368, %v2367
        %v2374 = vsel %vm1368, %v2359, 0
        %v2377 = vsel %vm1368, %v2360, 0
        %2379 = vmatprep.subr.bf16.mxu0 0
        %2380 = vmatpush1.bf16.msra.mxu0 %v2369
        %2381 = vmatprep.subr.bf16.mxu0 0
        %2382 = vmatpush1.bf16.msra.mxu0 %v2370
        %2383 = vmatprep.subr.bf16.mxu0 0
        %2384 = vmatpush1.bf16.msra.mxu0 0
        %2385 = vmatprep.subr.bf16.mxu0 0
        %2386 = vmatpush1.bf16.msra.mxu0 0
        %2387 = vmatprep.subr.bf16.mxu0 0
        %2388 = vmatpush1.bf16.msra.mxu0 0
        %2389 = vmatprep.subr.bf16.mxu0 0
        %2390 = vmatpush1.bf16.msra.mxu0 0
        %2391 = vmatprep.subr.bf16.mxu0 0
        %2392 = vmatpush1.bf16.msra.mxu0 0
        %2393 = vmatprep.subr.bf16.mxu0 0
        %2394 = vmatpush1.bf16.msra.mxu0 0
        %2395 = vmatprep.subr.bf16.mxu0 0
        %2396 = vmatpush1.bf16.msra.mxu0 0
        %2397 = vmatprep.subr.bf16.mxu0 0
        %2398 = vmatpush1.bf16.msra.mxu0 0
        %2399 = vmatprep.subr.bf16.mxu0 0
        %2400 = vmatpush1.bf16.msra.mxu0 0
        %2401 = vmatprep.subr.bf16.mxu0 0
        %2402 = vmatpush1.bf16.msra.mxu0 0
        %2403 = vmatprep.subr.bf16.mxu0 0
        %2404 = vmatpush1.bf16.msra.mxu0 0
        %2405 = vmatprep.subr.bf16.mxu0 0
        %2406 = vmatpush1.bf16.msra.mxu0 0
        %2407 = vmatprep.subr.bf16.mxu0 0
        %2408 = vmatpush1.bf16.msra.mxu0 0
        %2409 = vmatprep.subr.bf16.mxu0 0
        %2410 = vmatpush1.bf16.msra.mxu0 0
        %2411 = vmatprep.mubr.bf16.mxu0 0
        %2412 = vmatmul.mubr.bf16.gmra.mrb[0].mxu0 %v2374
        %v2413 = vpop.f32.mrb[0].mxu0
        %v2414 = vadd.f32 0.0, %v2413
        %v2415 = vpop.f32.mrb[0].mxu0
        %v2416 = vpop.f32.mrb[0].mxu0
        %v2417 = vadd.f32 0.0, %v2416
        %v2418 = vpop.f32.mrb[0].mxu0
        %2419 = vmatprep.mubr.bf16.mxu0 0
        %2420 = vmatmul.mubr.bf16.gmra.mrb[0].mxu0 %v2377
        %v2421 = vpop.f32.mrb[0].mxu0
        %v2422 = vadd.f32 0.0, %v2421
        %v2423 = vpop.f32.mrb[0].mxu0
        %v2424 = vpop.f32.mrb[0].mxu0
        %v2425 = vadd.f32 0.0, %v2424
        %v2426 = vpop.f32.mrb[0].mxu0
        %2427 = vdwg.mxu0
        %v2428 = vpack.c.bf16 %v2417, %v2414
        %2430 = vrot.lane.b32.xlu0 %v2428, 96
        %v2431 = vpop.permute.xlu0 %2430
        %v2433 = vsel %vm1578, %v2428, 0
        %v2436 = vsel %vm1578, %v2431, 0
        %2438 = vmatprep.subr.bf16.mxu0 0
        %2439 = vmatpush1.bf16.xpose.msra.mxu0 %v2436
        %2440 = vmatprep.subr.bf16.mxu0 0
        %2441 = vmatpush1.bf16.xpose.msra.mxu0 0
        %2442 = vmatprep.subr.bf16.mxu0 0
        %2443 = vmatpush1.bf16.xpose.msra.mxu0 0
        %2444 = vmatprep.subr.bf16.mxu0 0
        %2445 = vmatpush1.bf16.xpose.msra.mxu0 0
        %2446 = vmatprep.subr.bf16.mxu0 0
        %2447 = vmatpush1.bf16.xpose.msra.mxu0 0
        %2448 = vmatprep.subr.bf16.mxu0 0
        %2449 = vmatpush1.bf16.xpose.msra.mxu0 0
        %2450 = vmatprep.subr.bf16.mxu0 0
        %2451 = vmatpush1.bf16.xpose.msra.mxu0 0
        %2452 = vmatprep.subr.bf16.mxu0 0
        %2453 = vmatpush1.bf16.xpose.msra.mxu0 0
        %2454 = vmatprep.subr.bf16.mxu0 0
        %2455 = vmatpush1.bf16.xpose.msra.mxu0 0
        %2456 = vmatprep.subr.bf16.mxu0 0
        %2457 = vmatpush1.bf16.xpose.msra.mxu0 0
        %2458 = vmatprep.subr.bf16.mxu0 0
        %2459 = vmatpush1.bf16.xpose.msra.mxu0 0
        %2460 = vmatprep.subr.bf16.mxu0 0
        %2461 = vmatpush1.bf16.xpose.msra.mxu0 0
        %2462 = vmatprep.subr.bf16.mxu0 0
        %2463 = vmatpush1.bf16.xpose.msra.mxu0 0
        %2464 = vmatprep.subr.bf16.mxu0 0
        %2465 = vmatpush1.bf16.xpose.msra.mxu0 0
        %2466 = vmatprep.subr.bf16.mxu0 0
        %2467 = vmatpush1.bf16.xpose.msra.mxu0 0
        %2468 = vmatprep.subr.bf16.mxu0 0
        %2469 = vmatpush1.bf16.xpose.msra.mxu0 0
        %2470 = vmatprep.mubr.bf16.mxu0 0
        %2471 = vmatmul.mubr.bf16.gmra.mrb[0].mxu0 %v2433
        %v2472 = vpop.f32.mrb[0].mxu0
        %v2473 = vadd.f32 0.0, %v2472
        %v2474 = vpop.f32.mrb[0].mxu0
        %v2475 = vpop.f32.mrb[0].mxu0
        %v2476 = vadd.f32 0.0, %v2475
        %v2477 = vpop.f32.mrb[0].mxu0
        %2478 = vdwg.mxu0
        %v2479 = vmul.f32 %v2473, 0.25
        %v2480 = vmul.f32 %v2476, 0.25
        %v2481 = vsel %vm1578, %v2479, -inf
        %2482 = vmax.xlane.f32.xlu0 %v2481
        %v2483 = vpop.xlane.xlu0 %2482
        %v2484 = vsel %vm1578, %v2480, -inf
        %2485 = vmax.xlane.f32.xlu0 %v2484
        %v2486 = vpop.xlane.xlu0 %2485
        %v2487 = vsub.f32 %v2479, %v2483
        %v2488 = vsub.f32 %v2480, %v2486
        %v2489 = vmul.f32 %v2487, 1.442695
        %v2490 = vpow.pop %v2489
        %v2491 = vmul.f32 %v2488, 1.442695
        %v2492 = vpow.pop %v2491
        %v2493 = vsel %vm1578, %v2490, 0.0
        %2494 = vadd.xlane.f32.xlu0 %v2493
        %v2495 = vpop.xlane.xlu0 %2494
        %v2496 = vsel %vm1578, %v2492, 0.0
        %2497 = vadd.xlane.f32.xlu0 %v2496
        %v2498 = vpop.xlane.xlu0 %2497
        %v2499 = vrcp.pop %v2495
        %v2500 = vrcp.pop %v2498
        %v2501 = vmul.f32 %v2490, %v2499
        %v2502 = vmul.f32 %v2492, %v2500
        %v2503 = vpack.c.bf16 %v2502, %v2501
        %2504 = vrot.lane.b32.xlu0 %v2428, 64
        %v2505 = vpop.permute.xlu0 %2504
        %v2508 = vsel %vm1578, %v2503, 0
        %2510 = vmatprep.subr.bf16.mxu0 0
        %2511 = vmatpush1.bf16.msra.mxu0 %v2505
        %2512 = vmatprep.subr.bf16.mxu0 0
        %2513 = vmatpush1.bf16.msra.mxu0 0
        %2514 = vmatprep.subr.bf16.mxu0 0
        %2515 = vmatpush1.bf16.msra.mxu0 0
        %2516 = vmatprep.subr.bf16.mxu0 0
        %2517 = vmatpush1.bf16.msra.mxu0 0
        %2518 = vmatprep.subr.bf16.mxu0 0
        %2519 = vmatpush1.bf16.msra.mxu0 0
        %2520 = vmatprep.subr.bf16.mxu0 0
        %2521 = vmatpush1.bf16.msra.mxu0 0
        %2522 = vmatprep.subr.bf16.mxu0 0
        %2523 = vmatpush1.bf16.msra.mxu0 0
        %2524 = vmatprep.subr.bf16.mxu0 0
        %2525 = vmatpush1.bf16.msra.mxu0 0
        %2526 = vmatprep.subr.bf16.mxu0 0
        %2527 = vmatpush1.bf16.msra.mxu0 0
        %2528 = vmatprep.subr.bf16.mxu0 0
        %2529 = vmatpush1.bf16.msra.mxu0 0
        %2530 = vmatprep.subr.bf16.mxu0 0
        %2531 = vmatpush1.bf16.msra.mxu0 0
        %2532 = vmatprep.subr.bf16.mxu0 0
        %2533 = vmatpush1.bf16.msra.mxu0 0
        %2534 = vmatprep.subr.bf16.mxu0 0
        %2535 = vmatpush1.bf16.msra.mxu0 0
        %2536 = vmatprep.subr.bf16.mxu0 0
        %2537 = vmatpush1.bf16.msra.mxu0 0
        %2538 = vmatprep.subr.bf16.mxu0 0
        %2539 = vmatpush1.bf16.msra.mxu0 0
        %2540 = vmatprep.subr.bf16.mxu0 0
        %2541 = vmatpush1.bf16.msra.mxu0 0
        %2542 = vmatprep.mubr.bf16.mxu0 0
        %2543 = vmatmul.mubr.bf16.gmra.mrb[0].mxu0 %v2508
        %v2544 = vpop.f32.mrb[0].mxu0
        %v2545 = vadd.f32 0.0, %v2544
        %v2546 = vpop.f32.mrb[0].mxu0
        %v2547 = vpop.f32.mrb[0].mxu0
        %v2548 = vadd.f32 0.0, %v2547
        %v2549 = vpop.f32.mrb[0].mxu0
        %2550 = vdwg.mxu0
        %2551 = vrot.lane.b32.xlu0 %v2428, 112
        %v2552 = vpop.permute.xlu0 %2551
        %2553 = vrot.lane.b32.xlu0 %v2428, 80
        %v2554 = vpop.permute.xlu0 %2553
        %v2556 = vsel %vm1578, %v2552, 0
        %v2559 = vsel %vm1578, %v2554, 0
        %2561 = vmatprep.subr.bf16.mxu0 0
        %2562 = vmatpush1.bf16.xpose.msra.mxu0 %v2559
        %2563 = vmatprep.subr.bf16.mxu0 0
        %2564 = vmatpush1.bf16.xpose.msra.mxu0 0
        %2565 = vmatprep.subr.bf16.mxu0 0
        %2566 = vmatpush1.bf16.xpose.msra.mxu0 0
        %2567 = vmatprep.subr.bf16.mxu0 0
        %2568 = vmatpush1.bf16.xpose.msra.mxu0 0
        %2569 = vmatprep.subr.bf16.mxu0 0
        %2570 = vmatpush1.bf16.xpose.msra.mxu0 0
        %2571 = vmatprep.subr.bf16.mxu0 0
        %2572 = vmatpush1.bf16.xpose.msra.mxu0 0
        %2573 = vmatprep.subr.bf16.mxu0 0
        %2574 = vmatpush1.bf16.xpose.msra.mxu0 0
        %2575 = vmatprep.subr.bf16.mxu0 0
        %2576 = vmatpush1.bf16.xpose.msra.mxu0 0
        %2577 = vmatprep.subr.bf16.mxu0 0
        %2578 = vmatpush1.bf16.xpose.msra.mxu0 0
        %2579 = vmatprep.subr.bf16.mxu0 0
        %2580 = vmatpush1.bf16.xpose.msra.mxu0 0
        %2581 = vmatprep.subr.bf16.mxu0 0
        %2582 = vmatpush1.bf16.xpose.msra.mxu0 0
        %2583 = vmatprep.subr.bf16.mxu0 0
        %2584 = vmatpush1.bf16.xpose.msra.mxu0 0
        %2585 = vmatprep.subr.bf16.mxu0 0
        %2586 = vmatpush1.bf16.xpose.msra.mxu0 0
        %2587 = vmatprep.subr.bf16.mxu0 0
        %2588 = vmatpush1.bf16.xpose.msra.mxu0 0
        %2589 = vmatprep.subr.bf16.mxu0 0
        %2590 = vmatpush1.bf16.xpose.msra.mxu0 0
        %2591 = vmatprep.subr.bf16.mxu0 0
        %2592 = vmatpush1.bf16.xpose.msra.mxu0 0
        %2593 = vmatprep.mubr.bf16.mxu0 0
        %2594 = vmatmul.mubr.bf16.gmra.mrb[0].mxu0 %v2556
        %v2595 = vpop.f32.mrb[0].mxu0
        %v2596 = vadd.f32 0.0, %v2595
        %v2597 = vpop.f32.mrb[0].mxu0
        %v2598 = vpop.f32.mrb[0].mxu0
        %v2599 = vadd.f32 0.0, %v2598
        %v2600 = vpop.f32.mrb[0].mxu0
        %2601 = vdwg.mxu0
        %v2602 = vmul.f32 %v2596, 0.25
        %v2603 = vmul.f32 %v2599, 0.25
        %v2604 = vsel %vm1578, %v2602, -inf
        %2605 = vmax.xlane.f32.xlu0 %v2604
        %v2606 = vpop.xlane.xlu0 %2605
        %v2607 = vsel %vm1578, %v2603, -inf
        %2608 = vmax.xlane.f32.xlu0 %v2607
        %v2609 = vpop.xlane.xlu0 %2608
        %v2610 = vsub.f32 %v2602, %v2606
        %v2611 = vsub.f32 %v2603, %v2609
        %v2612 = vmul.f32 %v2610, 1.442695
        %v2613 = vpow.pop %v2612
        %v2614 = vmul.f32 %v2611, 1.442695
        %v2615 = vpow.pop %v2614
        %v2616 = vsel %vm1578, %v2613, 0.0
        %2617 = vadd.xlane.f32.xlu0 %v2616
        %v2618 = vpop.xlane.xlu0 %2617
        %v2619 = vsel %vm1578, %v2615, 0.0
        %2620 = vadd.xlane.f32.xlu0 %v2619
        %v2621 = vpop.xlane.xlu0 %2620
        %v2622 = vrcp.pop %v2618
        %v2623 = vrcp.pop %v2621
        %v2624 = vmul.f32 %v2613, %v2622
        %v2625 = vmul.f32 %v2615, %v2623
        %v2626 = vpack.c.bf16 %v2625, %v2624
        %2627 = vrot.lane.b32.xlu0 %v2428, 48
        %v2628 = vpop.permute.xlu0 %2627
        %v2631 = vsel %vm1578, %v2626, 0
        %2633 = vmatprep.subr.bf16.mxu0 0
        %2634 = vmatpush1.bf16.msra.mxu0 %v2628
        %2635 = vmatprep.subr.bf16.mxu0 0
        %2636 = vmatpush1.bf16.msra.mxu0 0
        %2637 = vmatprep.subr.bf16.mxu0 0
        %2638 = vmatpush1.bf16.msra.mxu0 0
        %2639 = vmatprep.subr.bf16.mxu0 0
        %2640 = vmatpush1.bf16.msra.mxu0 0
        %2641 = vmatprep.subr.bf16.mxu0 0
        %2642 = vmatpush1.bf16.msra.mxu0 0
        %2643 = vmatprep.subr.bf16.mxu0 0
        %2644 = vmatpush1.bf16.msra.mxu0 0
        %2645 = vmatprep.subr.bf16.mxu0 0
        %2646 = vmatpush1.bf16.msra.mxu0 0
        %2647 = vmatprep.subr.bf16.mxu0 0
        %2648 = vmatpush1.bf16.msra.mxu0 0
        %2649 = vmatprep.subr.bf16.mxu0 0
        %2650 = vmatpush1.bf16.msra.mxu0 0
        %2651 = vmatprep.subr.bf16.mxu0 0
        %2652 = vmatpush1.bf16.msra.mxu0 0
        %2653 = vmatprep.subr.bf16.mxu0 0
        %2654 = vmatpush1.bf16.msra.mxu0 0
        %2655 = vmatprep.subr.bf16.mxu0 0
        %2656 = vmatpush1.bf16.msra.mxu0 0
        %2657 = vmatprep.subr.bf16.mxu0 0
        %2658 = vmatpush1.bf16.msra.mxu0 0
        %2659 = vmatprep.subr.bf16.mxu0 0
        %2660 = vmatpush1.bf16.msra.mxu0 0
        %2661 = vmatprep.subr.bf16.mxu0 0
        %2662 = vmatpush1.bf16.msra.mxu0 0
        %2663 = vmatprep.subr.bf16.mxu0 0
        %2664 = vmatpush1.bf16.msra.mxu0 0
        %2665 = vmatprep.mubr.bf16.mxu0 0
        %2666 = vmatmul.mubr.bf16.gmra.mrb[0].mxu0 %v2631
        %v2667 = vpop.f32.mrb[0].mxu0
        %v2668 = vadd.f32 0.0, %v2667
        %v2669 = vpop.f32.mrb[0].mxu0
        %v2670 = vpop.f32.mrb[0].mxu0
        %v2671 = vadd.f32 0.0, %v2670
        %v2672 = vpop.f32.mrb[0].mxu0
        %2673 = vdwg.mxu0
        %2676 = vrot.lane.b32.xlu0 %v2668, 16
        %v2677 = vpop.permute.xlu0 %2676
        %2678 = vrot.lane.b32.xlu0 %v2671, 16
        %v2679 = vpop.permute.xlu0 %2678
        %v2682 = vsel %vm1578, %v2545, %v2677
        %v2683 = vsel %vm1578, %v2548, %v2679
        %v2684 = vpack.c.bf16 %v2425, %v2422
        %2686 = vrot.lane.b32.xlu0 %v2684, 96
        %v2687 = vpop.permute.xlu0 %2686
        %v2689 = vsel %vm1578, %v2684, 0
        %v2692 = vsel %vm1578, %v2687, 0
        %2694 = vmatprep.subr.bf16.mxu0 0
        %2695 = vmatpush1.bf16.xpose.msra.mxu0 %v2692
        %2696 = vmatprep.subr.bf16.mxu0 0
        %2697 = vmatpush1.bf16.xpose.msra.mxu0 0
        %2698 = vmatprep.subr.bf16.mxu0 0
        %2699 = vmatpush1.bf16.xpose.msra.mxu0 0
        %2700 = vmatprep.subr.bf16.mxu0 0
        %2701 = vmatpush1.bf16.xpose.msra.mxu0 0
        %2702 = vmatprep.subr.bf16.mxu0 0
        %2703 = vmatpush1.bf16.xpose.msra.mxu0 0
        %2704 = vmatprep.subr.bf16.mxu0 0
        %2705 = vmatpush1.bf16.xpose.msra.mxu0 0
        %2706 = vmatprep.subr.bf16.mxu0 0
        %2707 = vmatpush1.bf16.xpose.msra.mxu0 0
        %2708 = vmatprep.subr.bf16.mxu0 0
        %2709 = vmatpush1.bf16.xpose.msra.mxu0 0
        %2710 = vmatprep.subr.bf16.mxu0 0
        %2711 = vmatpush1.bf16.xpose.msra.mxu0 0
        %2712 = vmatprep.subr.bf16.mxu0 0
        %2713 = vmatpush1.bf16.xpose.msra.mxu0 0
        %2714 = vmatprep.subr.bf16.mxu0 0
        %2715 = vmatpush1.bf16.xpose.msra.mxu0 0
        %2716 = vmatprep.subr.bf16.mxu0 0
        %2717 = vmatpush1.bf16.xpose.msra.mxu0 0
        %2718 = vmatprep.subr.bf16.mxu0 0
        %2719 = vmatpush1.bf16.xpose.msra.mxu0 0
        %2720 = vmatprep.subr.bf16.mxu0 0
        %2721 = vmatpush1.bf16.xpose.msra.mxu0 0
        %2722 = vmatprep.subr.bf16.mxu0 0
        %2723 = vmatpush1.bf16.xpose.msra.mxu0 0
        %2724 = vmatprep.subr.bf16.mxu0 0
        %2725 = vmatpush1.bf16.xpose.msra.mxu0 0
        %2726 = vmatprep.mubr.bf16.mxu0 0
        %2727 = vmatmul.mubr.bf16.gmra.mrb[0].mxu0 %v2689
        %v2728 = vpop.f32.mrb[0].mxu0
        %v2729 = vadd.f32 0.0, %v2728
        %v2730 = vpop.f32.mrb[0].mxu0
        %v2731 = vpop.f32.mrb[0].mxu0
        %v2732 = vadd.f32 0.0, %v2731
        %v2733 = vpop.f32.mrb[0].mxu0
        %2734 = vdwg.mxu0
        %v2735 = vmul.f32 %v2729, 0.25
        %v2736 = vmul.f32 %v2732, 0.25
        %v2737 = vsel %vm1578, %v2735, -inf
        %2738 = vmax.xlane.f32.xlu0 %v2737
        %v2739 = vpop.xlane.xlu0 %2738
        %v2740 = vsel %vm1578, %v2736, -inf
        %2741 = vmax.xlane.f32.xlu0 %v2740
        %v2742 = vpop.xlane.xlu0 %2741
        %v2743 = vsub.f32 %v2735, %v2739
        %v2744 = vsub.f32 %v2736, %v2742
        %v2745 = vmul.f32 %v2743, 1.442695
        %v2746 = vpow.pop %v2745
        %v2747 = vmul.f32 %v2744, 1.442695
        %v2748 = vpow.pop %v2747
        %v2749 = vsel %vm1578, %v2746, 0.0
        %2750 = vadd.xlane.f32.xlu0 %v2749
        %v2751 = vpop.xlane.xlu0 %2750
        %v2752 = vsel %vm1578, %v2748, 0.0
        %2753 = vadd.xlane.f32.xlu0 %v2752
        %v2754 = vpop.xlane.xlu0 %2753
        %v2755 = vrcp.pop %v2751
        %v2756 = vrcp.pop %v2754
        %v2757 = vmul.f32 %v2746, %v2755
        %v2758 = vmul.f32 %v2748, %v2756
        %v2759 = vpack.c.bf16 %v2758, %v2757
        %2760 = vrot.lane.b32.xlu0 %v2684, 64
        %v2761 = vpop.permute.xlu0 %2760
        %v2764 = vsel %vm1578, %v2759, 0
        %2766 = vmatprep.subr.bf16.mxu0 0
        %2767 = vmatpush1.bf16.msra.mxu0 %v2761
        %2768 = vmatprep.subr.bf16.mxu0 0
        %2769 = vmatpush1.bf16.msra.mxu0 0
        %2770 = vmatprep.subr.bf16.mxu0 0
        %2771 = vmatpush1.bf16.msra.mxu0 0
        %2772 = vmatprep.subr.bf16.mxu0 0
        %2773 = vmatpush1.bf16.msra.mxu0 0
        %2774 = vmatprep.subr.bf16.mxu0 0
        %2775 = vmatpush1.bf16.msra.mxu0 0
        %2776 = vmatprep.subr.bf16.mxu0 0
        %2777 = vmatpush1.bf16.msra.mxu0 0
        %2778 = vmatprep.subr.bf16.mxu0 0
        %2779 = vmatpush1.bf16.msra.mxu0 0
        %2780 = vmatprep.subr.bf16.mxu0 0
        %2781 = vmatpush1.bf16.msra.mxu0 0
        %2782 = vmatprep.subr.bf16.mxu0 0
        %2783 = vmatpush1.bf16.msra.mxu0 0
        %2784 = vmatprep.subr.bf16.mxu0 0
        %2785 = vmatpush1.bf16.msra.mxu0 0
        %2786 = vmatprep.subr.bf16.mxu0 0
        %2787 = vmatpush1.bf16.msra.mxu0 0
        %2788 = vmatprep.subr.bf16.mxu0 0
        %2789 = vmatpush1.bf16.msra.mxu0 0
        %2790 = vmatprep.subr.bf16.mxu0 0
        %2791 = vmatpush1.bf16.msra.mxu0 0
        %2792 = vmatprep.subr.bf16.mxu0 0
        %2793 = vmatpush1.bf16.msra.mxu0 0
        %2794 = vmatprep.subr.bf16.mxu0 0
        %2795 = vmatpush1.bf16.msra.mxu0 0
        %2796 = vmatprep.subr.bf16.mxu0 0
        %2797 = vmatpush1.bf16.msra.mxu0 0
        %2798 = vmatprep.mubr.bf16.mxu0 0
        %2799 = vmatmul.mubr.bf16.gmra.mrb[0].mxu0 %v2764
        %v2800 = vpop.f32.mrb[0].mxu0
        %v2801 = vadd.f32 0.0, %v2800
        %v2802 = vpop.f32.mrb[0].mxu0
        %v2803 = vpop.f32.mrb[0].mxu0
        %v2804 = vadd.f32 0.0, %v2803
        %v2805 = vpop.f32.mrb[0].mxu0
        %2806 = vdwg.mxu0
        %2807 = vrot.lane.b32.xlu0 %v2684, 112
        %v2808 = vpop.permute.xlu0 %2807
        %2809 = vrot.lane.b32.xlu0 %v2684, 80
        %v2810 = vpop.permute.xlu0 %2809
        %v2812 = vsel %vm1578, %v2808, 0
        %v2815 = vsel %vm1578, %v2810, 0
        %2817 = vmatprep.subr.bf16.mxu0 0
        %2818 = vmatpush1.bf16.xpose.msra.mxu0 %v2815
        %2819 = vmatprep.subr.bf16.mxu0 0
        %2820 = vmatpush1.bf16.xpose.msra.mxu0 0
        %2821 = vmatprep.subr.bf16.mxu0 0
        %2822 = vmatpush1.bf16.xpose.msra.mxu0 0
        %2823 = vmatprep.subr.bf16.mxu0 0
        %2824 = vmatpush1.bf16.xpose.msra.mxu0 0
        %2825 = vmatprep.subr.bf16.mxu0 0
        %2826 = vmatpush1.bf16.xpose.msra.mxu0 0
        %2827 = vmatprep.subr.bf16.mxu0 0
        %2828 = vmatpush1.bf16.xpose.msra.mxu0 0
        %2829 = vmatprep.subr.bf16.mxu0 0
        %2830 = vmatpush1.bf16.xpose.msra.mxu0 0
        %2831 = vmatprep.subr.bf16.mxu0 0
        %2832 = vmatpush1.bf16.xpose.msra.mxu0 0
        %2833 = vmatprep.subr.bf16.mxu0 0
        %2834 = vmatpush1.bf16.xpose.msra.mxu0 0
        %2835 = vmatprep.subr.bf16.mxu0 0
        %2836 = vmatpush1.bf16.xpose.msra.mxu0 0
        %2837 = vmatprep.subr.bf16.mxu0 0
        %2838 = vmatpush1.bf16.xpose.msra.mxu0 0
        %2839 = vmatprep.subr.bf16.mxu0 0
        %2840 = vmatpush1.bf16.xpose.msra.mxu0 0
        %2841 = vmatprep.subr.bf16.mxu0 0
        %2842 = vmatpush1.bf16.xpose.msra.mxu0 0
        %2843 = vmatprep.subr.bf16.mxu0 0
        %2844 = vmatpush1.bf16.xpose.msra.mxu0 0
        %2845 = vmatprep.subr.bf16.mxu0 0
        %2846 = vmatpush1.bf16.xpose.msra.mxu0 0
        %2847 = vmatprep.subr.bf16.mxu0 0
        %2848 = vmatpush1.bf16.xpose.msra.mxu0 0
        %2849 = vmatprep.mubr.bf16.mxu0 0
        %2850 = vmatmul.mubr.bf16.gmra.mrb[0].mxu0 %v2812
        %v2851 = vpop.f32.mrb[0].mxu0
        %v2852 = vadd.f32 0.0, %v2851
        %v2853 = vpop.f32.mrb[0].mxu0
        %v2854 = vpop.f32.mrb[0].mxu0
        %v2855 = vadd.f32 0.0, %v2854
        %v2856 = vpop.f32.mrb[0].mxu0
        %2857 = vdwg.mxu0
        %v2858 = vmul.f32 %v2852, 0.25
        %v2859 = vmul.f32 %v2855, 0.25
        %v2860 = vsel %vm1578, %v2858, -inf
        %2861 = vmax.xlane.f32.xlu0 %v2860
        %v2862 = vpop.xlane.xlu0 %2861
        %v2863 = vsel %vm1578, %v2859, -inf
        %2864 = vmax.xlane.f32.xlu0 %v2863
        %v2865 = vpop.xlane.xlu0 %2864
        %v2866 = vsub.f32 %v2858, %v2862
        %v2867 = vsub.f32 %v2859, %v2865
        %v2868 = vmul.f32 %v2866, 1.442695
        %v2869 = vpow.pop %v2868
        %v2870 = vmul.f32 %v2867, 1.442695
        %v2871 = vpow.pop %v2870
        %v2872 = vsel %vm1578, %v2869, 0.0
        %2873 = vadd.xlane.f32.xlu0 %v2872
        %v2874 = vpop.xlane.xlu0 %2873
        %v2875 = vsel %vm1578, %v2871, 0.0
        %2876 = vadd.xlane.f32.xlu0 %v2875
        %v2877 = vpop.xlane.xlu0 %2876
        %v2878 = vrcp.pop %v2874
        %v2879 = vrcp.pop %v2877
        %v2880 = vmul.f32 %v2869, %v2878
        %v2881 = vmul.f32 %v2871, %v2879
        %v2882 = vpack.c.bf16 %v2881, %v2880
        %2883 = vrot.lane.b32.xlu0 %v2684, 48
        %v2884 = vpop.permute.xlu0 %2883
        %v2887 = vsel %vm1578, %v2882, 0
        %2889 = vmatprep.subr.bf16.mxu0 0
        %2890 = vmatpush1.bf16.msra.mxu0 %v2884
        %2891 = vmatprep.subr.bf16.mxu0 0
        %2892 = vmatpush1.bf16.msra.mxu0 0
        %2893 = vmatprep.subr.bf16.mxu0 0
        %2894 = vmatpush1.bf16.msra.mxu0 0
        %2895 = vmatprep.subr.bf16.mxu0 0
        %2896 = vmatpush1.bf16.msra.mxu0 0
        %2897 = vmatprep.subr.bf16.mxu0 0
        %2898 = vmatpush1.bf16.msra.mxu0 0
        %2899 = vmatprep.subr.bf16.mxu0 0
        %2900 = vmatpush1.bf16.msra.mxu0 0
        %2901 = vmatprep.subr.bf16.mxu0 0
        %2902 = vmatpush1.bf16.msra.mxu0 0
        %2903 = vmatprep.subr.bf16.mxu0 0
        %2904 = vmatpush1.bf16.msra.mxu0 0
        %2905 = vmatprep.subr.bf16.mxu0 0
        %2906 = vmatpush1.bf16.msra.mxu0 0
        %2907 = vmatprep.subr.bf16.mxu0 0
        %2908 = vmatpush1.bf16.msra.mxu0 0
        %2909 = vmatprep.subr.bf16.mxu0 0
        %2910 = vmatpush1.bf16.msra.mxu0 0
        %2911 = vmatprep.subr.bf16.mxu0 0
        %2912 = vmatpush1.bf16.msra.mxu0 0
        %2913 = vmatprep.subr.bf16.mxu0 0
        %2914 = vmatpush1.bf16.msra.mxu0 0
        %2915 = vmatprep.subr.bf16.mxu0 0
        %2916 = vmatpush1.bf16.msra.mxu0 0
        %2917 = vmatprep.subr.bf16.mxu0 0
        %2918 = vmatpush1.bf16.msra.mxu0 0
        %2919 = vmatprep.subr.bf16.mxu0 0
        %2920 = vmatpush1.bf16.msra.mxu0 0
        %2921 = vmatprep.mubr.bf16.mxu0 0
        %2922 = vmatmul.mubr.bf16.gmra.mrb[0].mxu0 %v2887
        %v2923 = vpop.f32.mrb[0].mxu0
        %v2924 = vadd.f32 0.0, %v2923
        %v2925 = vpop.f32.mrb[0].mxu0
        %v2926 = vpop.f32.mrb[0].mxu0
        %v2927 = vadd.f32 0.0, %v2926
        %v2928 = vpop.f32.mrb[0].mxu0
        %2929 = vdwg.mxu0
        %2932 = vrot.lane.b32.xlu0 %v2924, 16
        %v2933 = vpop.permute.xlu0 %2932
        %2934 = vrot.lane.b32.xlu0 %v2927, 16
        %v2935 = vpop.permute.xlu0 %2934
        %v2938 = vsel %vm1578, %v2801, %v2933
        %v2939 = vsel %vm1578, %v2804, %v2935
        %v2940 = vpack.c.bf16 %v2683, %v2682
        %v2941 = vpack.c.bf16 %v2939, %v2938
        %v2943 = vlaneseq
        %v2944 = vshrl.u32 %v2943, 7
        %v2945 = vsub.s32 0, %v2944
        %v2946 = vrot.slane %v2284, %v2945
        %v2952 = vunpack.c.l.b16 %v2280
        %v2953 = vunpack.c.l.b16 %v2281
        %v2954 = vunpack.c.l.b16 %v2282
        %v2955 = vunpack.c.l.b16 %v2283
        %v2956 = vpack.c.b16 %v2953, %v2952
        %v2957 = vpack.c.b16 %v2955, %v2954
        %v2961 = vsel %vm1368, %v2940, 0
        %v2964 = vsel %vm1368, %v2941, 0
        %2966 = vmatprep.subr.bf16.mxu0 0
        %2967 = vmatpush1.bf16.msra.mxu0 %v2956
        %2968 = vmatprep.subr.bf16.mxu0 0
        %2969 = vmatpush1.bf16.msra.mxu0 %v2957
        %2970 = vmatprep.subr.bf16.mxu0 0
        %2971 = vmatpush1.bf16.msra.mxu0 0
        %2972 = vmatprep.subr.bf16.mxu0 0
        %2973 = vmatpush1.bf16.msra.mxu0 0
        %2974 = vmatprep.subr.bf16.mxu0 0
        %2975 = vmatpush1.bf16.msra.mxu0 0
        %2976 = vmatprep.subr.bf16.mxu0 0
        %2977 = vmatpush1.bf16.msra.mxu0 0
        %2978 = vmatprep.subr.bf16.mxu0 0
        %2979 = vmatpush1.bf16.msra.mxu0 0
        %2980 = vmatprep.subr.bf16.mxu0 0
        %2981 = vmatpush1.bf16.msra.mxu0 0
        %2982 = vmatprep.subr.bf16.mxu0 0
        %2983 = vmatpush1.bf16.msra.mxu0 0
        %2984 = vmatprep.subr.bf16.mxu0 0
        %2985 = vmatpush1.bf16.msra.mxu0 0
        %2986 = vmatprep.subr.bf16.mxu0 0
        %2987 = vmatpush1.bf16.msra.mxu0 0
        %2988 = vmatprep.subr.bf16.mxu0 0
        %2989 = vmatpush1.bf16.msra.mxu0 0
        %2990 = vmatprep.subr.bf16.mxu0 0
        %2991 = vmatpush1.bf16.msra.mxu0 0
        %2992 = vmatprep.subr.bf16.mxu0 0
        %2993 = vmatpush1.bf16.msra.mxu0 0
        %2994 = vmatprep.subr.bf16.mxu0 0
        %2995 = vmatpush1.bf16.msra.mxu0 0
        %2996 = vmatprep.subr.bf16.mxu0 0
        %2997 = vmatpush1.bf16.msra.mxu0 0
        %2998 = vmatprep.mubr.bf16.mxu0 0
        %2999 = vmatmul.mubr.bf16.gmra.mrb[0].mxu0 %v2961
        %v3000 = vpop.f32.mrb[0].mxu0
        %v3001 = vadd.f32 %v2946, %v3000
        %v3002 = vpop.f32.mrb[0].mxu0
        %v3003 = vpop.f32.mrb[0].mxu0
        %v3004 = vadd.f32 %v2946, %v3003
        %v3005 = vpop.f32.mrb[0].mxu0
        %3006 = vmatprep.mubr.bf16.mxu0 0
        %3007 = vmatmul.mubr.bf16.gmra.mrb[0].mxu0 %v2964
        %v3008 = vpop.f32.mrb[0].mxu0
        %v3009 = vadd.f32 %v2946, %v3008
        %v3010 = vpop.f32.mrb[0].mxu0
        %v3011 = vpop.f32.mrb[0].mxu0
        %v3012 = vadd.f32 %v2946, %v3011
        %v3013 = vpop.f32.mrb[0].mxu0
        %3014 = vdwg.mxu0
        %v3015 = vadd.f32 %v2272, %v3001
        %v3016 = vadd.f32 %v2273, %v3004
        %v3017 = vadd.f32 %v2274, %v3009
        %v3018 = vadd.f32 %v2275, %v3012
        %v3019 = vld [vmem:[%s45] sm:$0xf]
        %v3020 = vld [vmem:[%s45 + $0x4] sm:$0xf]
        %v3021 = vld [vmem:[%s45 + $0x8] sm:$0xf]
        %v3022 = vld [vmem:[%s45 + $0xc] sm:$0xf]
        %v3023 = vld [vmem:[%s45 + $0x10] sm:$0xf]
        %v3024 = vld [vmem:[%s45 + $0x14] sm:$0xf]
        %v3025 = vld [vmem:[%s45 + $0x18] sm:$0xf]
        %v3026 = vld [vmem:[%s45 + $0x1c] sm:$0xf]
        %v3027 = vld [vmem:[%s47] sm:$0x1]
        %v3028 = vld [vmem:[%s47 + $0x1] sm:$0x1]
        %v3029 = vld [vmem:[%s49] sm:$0xf]
        %v3030 = vld [vmem:[%s49 + $0x4] sm:$0xf]
        %v3031 = vld [vmem:[%s49 + $0x8] sm:$0xf]
        %v3032 = vld [vmem:[%s49 + $0xc] sm:$0xf]
        %v3033 = vld [vmem:[%s49 + $0x10] sm:$0xf]
        %v3034 = vld [vmem:[%s49 + $0x14] sm:$0xf]
        %v3035 = vld [vmem:[%s49 + $0x18] sm:$0xf]
        %v3036 = vld [vmem:[%s49 + $0x1c] sm:$0xf]
        %v3037 = vld [vmem:[%s49 + $0x20] sm:$0xf]
        %v3038 = vld [vmem:[%s49 + $0x24] sm:$0xf]
        %v3039 = vld [vmem:[%s49 + $0x28] sm:$0xf]
        %v3040 = vld [vmem:[%s49 + $0x2c] sm:$0xf]
        %v3041 = vld [vmem:[%s49 + $0x30] sm:$0xf]
        %v3042 = vld [vmem:[%s49 + $0x34] sm:$0xf]
        %v3043 = vld [vmem:[%s49 + $0x38] sm:$0xf]
        %v3044 = vld [vmem:[%s49 + $0x3c] sm:$0xf]
        %v3045 = vld [vmem:[%s51] sm:$0x1]
        %v3046 = vld [vmem:[%s53] sm:$0x1]
        %v3047 = vld [vmem:[%s55] sm:$0x1]
        %v3048 = vsel %vm1368, %v3015, 0.0
        %3049 = vadd.xlane.f32.xlu0 %v3048
        %v3050 = vpop.xlane.xlu0 %3049
        %v3051 = vsel %vm1368, %v3016, 0.0
        %3052 = vadd.xlane.f32.xlu0 %v3051
        %v3053 = vpop.xlane.xlu0 %3052
        %v3054 = vsel %vm1368, %v3017, 0.0
        %3055 = vadd.xlane.f32.xlu0 %v3054
        %v3056 = vpop.xlane.xlu0 %3055
        %v3057 = vsel %vm1368, %v3018, 0.0
        %3058 = vadd.xlane.f32.xlu0 %v3057
        %v3059 = vpop.xlane.xlu0 %3058
        %v3060 = vmul.f32 %v3050, %v1375
        %v3061 = vmul.f32 %v3053, %v1375
        %v3062 = vmul.f32 %v3056, %v1375
        %v3063 = vmul.f32 %v3059, %v1375
        %v3064 = vsub.f32 %v3015, %v3060
        %v3065 = vsub.f32 %v3016, %v3061
        %v3066 = vsub.f32 %v3017, %v3062
        %v3067 = vsub.f32 %v3018, %v3063
        %v3068 = vmul.f32 %v3064, %v3064
        %v3069 = vmul.f32 %v3065, %v3065
        %v3070 = vmul.f32 %v3066, %v3066
        %v3071 = vmul.f32 %v3067, %v3067
        %v3072 = vsel %vm1368, %v3068, 0.0
        %3073 = vadd.xlane.f32.xlu0 %v3072
        %v3074 = vpop.xlane.xlu0 %3073
        %v3075 = vsel %vm1368, %v3069, 0.0
        %3076 = vadd.xlane.f32.xlu0 %v3075
        %v3077 = vpop.xlane.xlu0 %3076
        %v3078 = vsel %vm1368, %v3070, 0.0
        %3079 = vadd.xlane.f32.xlu0 %v3078
        %v3080 = vpop.xlane.xlu0 %3079
        %v3081 = vsel %vm1368, %v3071, 0.0
        %3082 = vadd.xlane.f32.xlu0 %v3081
        %v3083 = vpop.xlane.xlu0 %3082
        %v3084 = vmul.f32 %v3074, %v1375
        %v3085 = vmul.f32 %v3077, %v1375
        %v3086 = vmul.f32 %v3080, %v1375
        %v3087 = vmul.f32 %v3083, %v1375
        %v3088 = vadd.f32 %v3084, 1e-05
        %v3089 = vadd.f32 %v3085, 1e-05
        %v3090 = vadd.f32 %v3086, 1e-05
        %v3091 = vadd.f32 %v3087, 1e-05
        %v3092 = vrsqrt.pop %v3088
        %v3093 = vrsqrt.pop %v3089
        %v3094 = vrsqrt.pop %v3090
        %v3095 = vrsqrt.pop %v3091
        %v3096 = vmul.f32 %v3064, %v3092
        %v3097 = vmul.f32 %v3065, %v3093
        %v3098 = vmul.f32 %v3066, %v3094
        %v3099 = vmul.f32 %v3067, %v3095
        %v3101 = vlaneseq
        %v3102 = vshrl.u32 %v3101, 7
        %v3103 = vsub.s32 0, %v3102
        %v3104 = vrot.slane %v3046, %v3103
        %v3106 = vmul.f32 %v3096, %v3104
        %v3107 = vmul.f32 %v3097, %v3104
        %v3108 = vmul.f32 %v3098, %v3104
        %v3109 = vmul.f32 %v3099, %v3104
        %v3111 = vlaneseq
        %v3112 = vshrl.u32 %v3111, 7
        %v3113 = vsub.s32 0, %v3112
        %v3114 = vrot.slane %v3047, %v3113
        %v3116 = vadd.f32 %v3106, %v3114
        %v3117 = vadd.f32 %v3107, %v3114
        %v3118 = vadd.f32 %v3108, %v3114
        %v3119 = vadd.f32 %v3109, %v3114
        %v3120 = vpack.c.bf16 %v3117, %v3116
        %v3121 = vpack.c.bf16 %v3119, %v3118
        %v3123 = vlaneseq
        %v3124 = vshrl.u32 %v3123, 7
        %v3125 = vsub.s32 0, %v3124
        %v3126 = vrot.slane %v3027, %v3125
        %v3132 = vunpack.c.l.b16 %v3019
        %v3133 = vunpack.c.l.b16 %v3020
        %v3134 = vunpack.c.l.b16 %v3021
        %v3135 = vunpack.c.l.b16 %v3022
        %v3136 = vpack.c.b16 %v3133, %v3132
        %v3137 = vpack.c.b16 %v3135, %v3134
        %v3141 = vsel %vm1368, %v3120, 0
        %v3144 = vsel %vm1368, %v3121, 0
        %3146 = vmatprep.subr.bf16.mxu0 0
        %3147 = vmatpush1.bf16.msra.mxu0 %v3136
        %3148 = vmatprep.subr.bf16.mxu0 0
        %3149 = vmatpush1.bf16.msra.mxu0 %v3137
        %3150 = vmatprep.subr.bf16.mxu0 0
        %3151 = vmatpush1.bf16.msra.mxu0 0
        %3152 = vmatprep.subr.bf16.mxu0 0
        %3153 = vmatpush1.bf16.msra.mxu0 0
        %3154 = vmatprep.subr.bf16.mxu0 0
        %3155 = vmatpush1.bf16.msra.mxu0 0
        %3156 = vmatprep.subr.bf16.mxu0 0
        %3157 = vmatpush1.bf16.msra.mxu0 0
        %3158 = vmatprep.subr.bf16.mxu0 0
        %3159 = vmatpush1.bf16.msra.mxu0 0
        %3160 = vmatprep.subr.bf16.mxu0 0
        %3161 = vmatpush1.bf16.msra.mxu0 0
        %3162 = vmatprep.subr.bf16.mxu0 0
        %3163 = vmatpush1.bf16.msra.mxu0 0
        %3164 = vmatprep.subr.bf16.mxu0 0
        %3165 = vmatpush1.bf16.msra.mxu0 0
        %3166 = vmatprep.subr.bf16.mxu0 0
        %3167 = vmatpush1.bf16.msra.mxu0 0
        %3168 = vmatprep.subr.bf16.mxu0 0
        %3169 = vmatpush1.bf16.msra.mxu0 0
        %3170 = vmatprep.subr.bf16.mxu0 0
        %3171 = vmatpush1.bf16.msra.mxu0 0
        %3172 = vmatprep.subr.bf16.mxu0 0
        %3173 = vmatpush1.bf16.msra.mxu0 0
        %3174 = vmatprep.subr.bf16.mxu0 0
        %3175 = vmatpush1.bf16.msra.mxu0 0
        %3176 = vmatprep.subr.bf16.mxu0 0
        %3177 = vmatpush1.bf16.msra.mxu0 0
        %3178 = vmatprep.mubr.bf16.mxu0 0
        %3179 = vmatmul.mubr.bf16.gmra.mrb[0].mxu0 %v3141
        %v3180 = vpop.f32.mrb[0].mxu0
        %v3181 = vadd.f32 %v3126, %v3180
        %v3182 = vpop.f32.mrb[0].mxu0
        %v3183 = vpop.f32.mrb[0].mxu0
        %v3184 = vadd.f32 %v3126, %v3183
        %v3185 = vpop.f32.mrb[0].mxu0
        %3186 = vmatprep.mubr.bf16.mxu0 0
        %3187 = vmatmul.mubr.bf16.gmra.mrb[0].mxu0 %v3144
        %v3188 = vpop.f32.mrb[0].mxu0
        %v3189 = vadd.f32 %v3126, %v3188
        %v3190 = vpop.f32.mrb[0].mxu0
        %v3191 = vpop.f32.mrb[0].mxu0
        %v3192 = vadd.f32 %v3126, %v3191
        %v3193 = vpop.f32.mrb[0].mxu0
        %3194 = vdwg.mxu0
        %v3196 = vlaneseq
        %v3197 = vshrl.u32 %v3196, 7
        %v3198 = vsub.s32 0, %v3197
        %v3199 = vrot.slane %v3028, %v3198
        %v3205 = vunpack.c.l.b16 %v3023
        %v3206 = vunpack.c.l.b16 %v3024
        %v3207 = vunpack.c.l.b16 %v3025
        %v3208 = vunpack.c.l.b16 %v3026
        %v3209 = vpack.c.b16 %v3206, %v3205
        %v3210 = vpack.c.b16 %v3208, %v3207
        %3213 = vmatprep.subr.bf16.mxu0 0
        %3214 = vmatpush1.bf16.msra.mxu0 %v3209
        %3215 = vmatprep.subr.bf16.mxu0 0
        %3216 = vmatpush1.bf16.msra.mxu0 %v3210
        %3217 = vmatprep.subr.bf16.mxu0 0
        %3218 = vmatpush1.bf16.msra.mxu0 0
        %3219 = vmatprep.subr.bf16.mxu0 0
        %3220 = vmatpush1.bf16.msra.mxu0 0
        %3221 = vmatprep.subr.bf16.mxu0 0
        %3222 = vmatpush1.bf16.msra.mxu0 0
        %3223 = vmatprep.subr.bf16.mxu0 0
        %3224 = vmatpush1.bf16.msra.mxu0 0
        %3225 = vmatprep.subr.bf16.mxu0 0
        %3226 = vmatpush1.bf16.msra.mxu0 0
        %3227 = vmatprep.subr.bf16.mxu0 0
        %3228 = vmatpush1.bf16.msra.mxu0 0
        %3229 = vmatprep.subr.bf16.mxu0 0
        %3230 = vmatpush1.bf16.msra.mxu0 0
        %3231 = vmatprep.subr.bf16.mxu0 0
        %3232 = vmatpush1.bf16.msra.mxu0 0
        %3233 = vmatprep.subr.bf16.mxu0 0
        %3234 = vmatpush1.bf16.msra.mxu0 0
        %3235 = vmatprep.subr.bf16.mxu0 0
        %3236 = vmatpush1.bf16.msra.mxu0 0
        %3237 = vmatprep.subr.bf16.mxu0 0
        %3238 = vmatpush1.bf16.msra.mxu0 0
        %3239 = vmatprep.subr.bf16.mxu0 0
        %3240 = vmatpush1.bf16.msra.mxu0 0
        %3241 = vmatprep.subr.bf16.mxu0 0
        %3242 = vmatpush1.bf16.msra.mxu0 0
        %3243 = vmatprep.subr.bf16.mxu0 0
        %3244 = vmatpush1.bf16.msra.mxu0 0
        %3245 = vmatprep.mubr.bf16.mxu0 0
        %3246 = vmatmul.mubr.bf16.gmra.mrb[0].mxu0 %v3141
        %v3247 = vpop.f32.mrb[0].mxu0
        %v3248 = vadd.f32 %v3199, %v3247
        %v3249 = vpop.f32.mrb[0].mxu0
        %v3250 = vpop.f32.mrb[0].mxu0
        %v3251 = vadd.f32 %v3199, %v3250
        %v3252 = vpop.f32.mrb[0].mxu0
        %3253 = vmatprep.mubr.bf16.mxu0 0
        %3254 = vmatmul.mubr.bf16.gmra.mrb[0].mxu0 %v3144
        %v3255 = vpop.f32.mrb[0].mxu0
        %v3256 = vadd.f32 %v3199, %v3255
        %v3257 = vpop.f32.mrb[0].mxu0
        %v3258 = vpop.f32.mrb[0].mxu0
        %v3259 = vadd.f32 %v3199, %v3258
        %v3260 = vpop.f32.mrb[0].mxu0
        %3261 = vdwg.mxu0
        %v3262 = vmul.f32 %v3248, 0.5
        %v3263 = vmul.f32 %v3251, 0.5
        %v3264 = vmul.f32 %v3256, 0.5
        %v3265 = vmul.f32 %v3259, 0.5
        %v3266 = vmul.f32 %v3248, 0.70710677
        %v3267 = vmul.f32 %v3251, 0.70710677
        %v3268 = vmul.f32 %v3256, 0.70710677
        %v3269 = vmul.f32 %v3259, 0.70710677
        %v3270 = verf.f32.pop %v3266
        %v3271 = verf.f32.pop %v3267
        %v3272 = verf.f32.pop %v3268
        %v3273 = verf.f32.pop %v3269
        %v3274 = vadd.f32 %v3270, 1.0
        %v3275 = vadd.f32 %v3271, 1.0
        %v3276 = vadd.f32 %v3272, 1.0
        %v3277 = vadd.f32 %v3273, 1.0
        %v3278 = vmul.f32 %v3262, %v3274
        %v3279 = vmul.f32 %v3263, %v3275
        %v3280 = vmul.f32 %v3264, %v3276
        %v3281 = vmul.f32 %v3265, %v3277
        %v3282 = vmul.f32 %v3181, %v3278
        %v3283 = vmul.f32 %v3184, %v3279
        %v3284 = vmul.f32 %v3189, %v3280
        %v3285 = vmul.f32 %v3192, %v3281
        %v3286 = vpack.c.bf16 %v3283, %v3282
        %v3287 = vpack.c.bf16 %v3285, %v3284
        %v3289 = vlaneseq
        %v3290 = vshrl.u32 %v3289, 7
        %v3291 = vsub.s32 0, %v3290
        %v3292 = vrot.slane %v3045, %v3291
        %v3310 = vunpack.c.l.b16 %v3029
        %v3311 = vunpack.c.l.b16 %v3030
        %v3312 = vunpack.c.l.b16 %v3031
        %v3313 = vunpack.c.l.b16 %v3032
        %v3314 = vunpack.c.l.b16 %v3033
        %v3315 = vunpack.c.l.b16 %v3034
        %v3316 = vunpack.c.l.b16 %v3035
        %v3317 = vunpack.c.l.b16 %v3036
        %v3318 = vunpack.c.l.b16 %v3037
        %v3319 = vunpack.c.l.b16 %v3038
        %v3320 = vunpack.c.l.b16 %v3039
        %v3321 = vunpack.c.l.b16 %v3040
        %v3322 = vunpack.c.l.b16 %v3041
        %v3323 = vunpack.c.l.b16 %v3042
        %v3324 = vunpack.c.l.b16 %v3043
        %v3325 = vunpack.c.l.b16 %v3044
        %v3326 = vpack.c.b16 %v3311, %v3310
        %v3327 = vpack.c.b16 %v3313, %v3312
        %v3328 = vpack.c.b16 %v3315, %v3314
        %v3329 = vpack.c.b16 %v3317, %v3316
        %v3330 = vpack.c.b16 %v3319, %v3318
        %v3331 = vpack.c.b16 %v3321, %v3320
        %v3332 = vpack.c.b16 %v3323, %v3322
        %v3333 = vpack.c.b16 %v3325, %v3324
        %3342 = vmatprep.subr.bf16.mxu0 0
        %3343 = vmatpush1.bf16.msra.mxu0 %v3326
        %3344 = vmatprep.subr.bf16.mxu0 0
        %3345 = vmatpush1.bf16.msra.mxu0 %v3327
        %3346 = vmatprep.subr.bf16.mxu0 0
        %3347 = vmatpush1.bf16.msra.mxu0 %v3328
        %3348 = vmatprep.subr.bf16.mxu0 0
        %3349 = vmatpush1.bf16.msra.mxu0 %v3329
        %3350 = vmatprep.subr.bf16.mxu0 0
        %3351 = vmatpush1.bf16.msra.mxu0 %v3330
        %3352 = vmatprep.subr.bf16.mxu0 0
        %3353 = vmatpush1.bf16.msra.mxu0 %v3331
        %3354 = vmatprep.subr.bf16.mxu0 0
        %3355 = vmatpush1.bf16.msra.mxu0 %v3332
        %3356 = vmatprep.subr.bf16.mxu0 0
        %3357 = vmatpush1.bf16.msra.mxu0 %v3333
        %3358 = vmatprep.subr.bf16.mxu0 0
        %3359 = vmatpush1.bf16.msra.mxu0 0
        %3360 = vmatprep.subr.bf16.mxu0 0
        %3361 = vmatpush1.bf16.msra.mxu0 0
        %3362 = vmatprep.subr.bf16.mxu0 0
        %3363 = vmatpush1.bf16.msra.mxu0 0
        %3364 = vmatprep.subr.bf16.mxu0 0
        %3365 = vmatpush1.bf16.msra.mxu0 0
        %3366 = vmatprep.subr.bf16.mxu0 0
        %3367 = vmatpush1.bf16.msra.mxu0 0
        %3368 = vmatprep.subr.bf16.mxu0 0
        %3369 = vmatpush1.bf16.msra.mxu0 0
        %3370 = vmatprep.subr.bf16.mxu0 0
        %3371 = vmatpush1.bf16.msra.mxu0 0
        %3372 = vmatprep.subr.bf16.mxu0 0
        %3373 = vmatpush1.bf16.msra.mxu0 0
        %3374 = vmatprep.mubr.bf16.mxu0 0
        %3375 = vmatmul.mubr.bf16.gmra.mrb[0].mxu0 %v3286
        %v3376 = vpop.f32.mrb[0].mxu0
        %v3377 = vadd.f32 %v3292, %v3376
        %v3378 = vpop.f32.mrb[0].mxu0
        %v3379 = vpop.f32.mrb[0].mxu0
        %v3380 = vadd.f32 %v3292, %v3379
        %v3381 = vpop.f32.mrb[0].mxu0
        %3382 = vmatprep.mubr.bf16.mxu0 0
        %3383 = vmatmul.mubr.bf16.gmra.mrb[0].mxu0 %v3287
        %v3384 = vpop.f32.mrb[0].mxu0
        %v3385 = vadd.f32 %v3292, %v3384
        %v3386 = vpop.f32.mrb[0].mxu0
        %v3387 = vpop.f32.mrb[0].mxu0
        %v3388 = vadd.f32 %v3292, %v3387
        %v3389 = vpop.f32.mrb[0].mxu0
        %3390 = vdwg.mxu0
        %v3391 = vadd.f32 %v3015, %v3377
        %v3392 = vadd.f32 %v3016, %v3380
        %v3393 = vadd.f32 %v3017, %v3385
        %v3394 = vadd.f32 %v3018, %v3388
        %s3395 = scalar_lea.vmem %s35, 16
        %v3396 = vld [vmem:[%s3395] sm:$0xf]
        %v3397 = vld [vmem:[%s3395 + $0x4] sm:$0xf]
        %v3398 = vld [vmem:[%s3395 + $0x8] sm:$0xf]
        %v3399 = vld [vmem:[%s3395 + $0xc] sm:$0xf]
        %s3400 = scalar_lea.vmem %s37, 16
        %v3401 = vld [vmem:[%s3400] sm:$0xf]
        %v3402 = vld [vmem:[%s3400 + $0x4] sm:$0xf]
        %v3403 = vld [vmem:[%s3400 + $0x8] sm:$0xf]
        %v3404 = vld [vmem:[%s3400 + $0xc] sm:$0xf]
        %s3405 = scalar_lea.vmem %s39, 1
        %v3406 = vld [vmem:[%s3405] sm:$0x1]
        %s3407 = scalar_lea.vmem %s41, 1
        %v3408 = vld [vmem:[%s3407] sm:$0x1]
        %s3409 = scalar_lea.vmem %s43, 1
        %v3410 = vld [vmem:[%s3409] sm:$0x1]
        %v3411 = vsel %vm1368, %v3391, 0.0
        %3412 = vadd.xlane.f32.xlu0 %v3411
        %v3413 = vpop.xlane.xlu0 %3412
        %v3414 = vsel %vm1368, %v3392, 0.0
        %3415 = vadd.xlane.f32.xlu0 %v3414
        %v3416 = vpop.xlane.xlu0 %3415
        %v3417 = vsel %vm1368, %v3393, 0.0
        %3418 = vadd.xlane.f32.xlu0 %v3417
        %v3419 = vpop.xlane.xlu0 %3418
        %v3420 = vsel %vm1368, %v3394, 0.0
        %3421 = vadd.xlane.f32.xlu0 %v3420
        %v3422 = vpop.xlane.xlu0 %3421
        %v3423 = vmul.f32 %v3413, %v1375
        %v3424 = vmul.f32 %v3416, %v1375
        %v3425 = vmul.f32 %v3419, %v1375
        %v3426 = vmul.f32 %v3422, %v1375
        %v3427 = vsub.f32 %v3391, %v3423
        %v3428 = vsub.f32 %v3392, %v3424
        %v3429 = vsub.f32 %v3393, %v3425
        %v3430 = vsub.f32 %v3394, %v3426
        %v3431 = vmul.f32 %v3427, %v3427
        %v3432 = vmul.f32 %v3428, %v3428
        %v3433 = vmul.f32 %v3429, %v3429
        %v3434 = vmul.f32 %v3430, %v3430
        %v3435 = vsel %vm1368, %v3431, 0.0
        %3436 = vadd.xlane.f32.xlu0 %v3435
        %v3437 = vpop.xlane.xlu0 %3436
        %v3438 = vsel %vm1368, %v3432, 0.0
        %3439 = vadd.xlane.f32.xlu0 %v3438
        %v3440 = vpop.xlane.xlu0 %3439
        %v3441 = vsel %vm1368, %v3433, 0.0
        %3442 = vadd.xlane.f32.xlu0 %v3441
        %v3443 = vpop.xlane.xlu0 %3442
        %v3444 = vsel %vm1368, %v3434, 0.0
        %3445 = vadd.xlane.f32.xlu0 %v3444
        %v3446 = vpop.xlane.xlu0 %3445
        %v3447 = vmul.f32 %v3437, %v1375
        %v3448 = vmul.f32 %v3440, %v1375
        %v3449 = vmul.f32 %v3443, %v1375
        %v3450 = vmul.f32 %v3446, %v1375
        %v3451 = vadd.f32 %v3447, 1e-05
        %v3452 = vadd.f32 %v3448, 1e-05
        %v3453 = vadd.f32 %v3449, 1e-05
        %v3454 = vadd.f32 %v3450, 1e-05
        %v3455 = vrsqrt.pop %v3451
        %v3456 = vrsqrt.pop %v3452
        %v3457 = vrsqrt.pop %v3453
        %v3458 = vrsqrt.pop %v3454
        %v3459 = vmul.f32 %v3427, %v3455
        %v3460 = vmul.f32 %v3428, %v3456
        %v3461 = vmul.f32 %v3429, %v3457
        %v3462 = vmul.f32 %v3430, %v3458
        %v3464 = vlaneseq
        %v3465 = vshrl.u32 %v3464, 7
        %v3466 = vsub.s32 0, %v3465
        %v3467 = vrot.slane %v3408, %v3466
        %v3469 = vmul.f32 %v3459, %v3467
        %v3470 = vmul.f32 %v3460, %v3467
        %v3471 = vmul.f32 %v3461, %v3467
        %v3472 = vmul.f32 %v3462, %v3467
        %v3474 = vlaneseq
        %v3475 = vshrl.u32 %v3474, 7
        %v3476 = vsub.s32 0, %v3475
        %v3477 = vrot.slane %v3410, %v3476
        %v3479 = vadd.f32 %v3469, %v3477
        %v3480 = vadd.f32 %v3470, %v3477
        %v3481 = vadd.f32 %v3471, %v3477
        %v3482 = vadd.f32 %v3472, %v3477
        %v3483 = vpack.c.bf16 %v3480, %v3479
        %v3484 = vpack.c.bf16 %v3482, %v3481
        %v3489 = vunpack.c.l.b16 %v3396
        %v3490 = vunpack.c.l.b16 %v3397
        %v3491 = vunpack.c.l.b16 %v3398
        %v3492 = vunpack.c.l.b16 %v3399
        %v3493 = vpack.c.b16 %v3490, %v3489
        %v3494 = vpack.c.b16 %v3492, %v3491
        %v3498 = vsel %vm1368, %v3483, 0
        %v3501 = vsel %vm1368, %v3484, 0
        %3503 = vmatprep.subr.bf16.mxu0 0
        %3504 = vmatpush1.bf16.msra.mxu0 %v3493
        %3505 = vmatprep.subr.bf16.mxu0 0
        %3506 = vmatpush1.bf16.msra.mxu0 %v3494
        %3507 = vmatprep.subr.bf16.mxu0 0
        %3508 = vmatpush1.bf16.msra.mxu0 0
        %3509 = vmatprep.subr.bf16.mxu0 0
        %3510 = vmatpush1.bf16.msra.mxu0 0
        %3511 = vmatprep.subr.bf16.mxu0 0
        %3512 = vmatpush1.bf16.msra.mxu0 0
        %3513 = vmatprep.subr.bf16.mxu0 0
        %3514 = vmatpush1.bf16.msra.mxu0 0
        %3515 = vmatprep.subr.bf16.mxu0 0
        %3516 = vmatpush1.bf16.msra.mxu0 0
        %3517 = vmatprep.subr.bf16.mxu0 0
        %3518 = vmatpush1.bf16.msra.mxu0 0
        %3519 = vmatprep.subr.bf16.mxu0 0
        %3520 = vmatpush1.bf16.msra.mxu0 0
        %3521 = vmatprep.subr.bf16.mxu0 0
        %3522 = vmatpush1.bf16.msra.mxu0 0
        %3523 = vmatprep.subr.bf16.mxu0 0
        %3524 = vmatpush1.bf16.msra.mxu0 0
        %3525 = vmatprep.subr.bf16.mxu0 0
        %3526 = vmatpush1.bf16.msra.mxu0 0
        %3527 = vmatprep.subr.bf16.mxu0 0
        %3528 = vmatpush1.bf16.msra.mxu0 0
        %3529 = vmatprep.subr.bf16.mxu0 0
        %3530 = vmatpush1.bf16.msra.mxu0 0
        %3531 = vmatprep.subr.bf16.mxu0 0
        %3532 = vmatpush1.bf16.msra.mxu0 0
        %3533 = vmatprep.subr.bf16.mxu0 0
        %3534 = vmatpush1.bf16.msra.mxu0 0
        %3535 = vmatprep.mubr.bf16.mxu0 0
        %3536 = vmatmul.mubr.bf16.gmra.mrb[0].mxu0 %v3498
        %v3537 = vpop.f32.mrb[0].mxu0
        %v3538 = vadd.f32 0.0, %v3537
        %v3539 = vpop.f32.mrb[0].mxu0
        %v3540 = vpop.f32.mrb[0].mxu0
        %v3541 = vadd.f32 0.0, %v3540
        %v3542 = vpop.f32.mrb[0].mxu0
        %3543 = vmatprep.mubr.bf16.mxu0 0
        %3544 = vmatmul.mubr.bf16.gmra.mrb[0].mxu0 %v3501
        %v3545 = vpop.f32.mrb[0].mxu0
        %v3546 = vadd.f32 0.0, %v3545
        %v3547 = vpop.f32.mrb[0].mxu0
        %v3548 = vpop.f32.mrb[0].mxu0
        %v3549 = vadd.f32 0.0, %v3548
        %v3550 = vpop.f32.mrb[0].mxu0
        %3551 = vdwg.mxu0
        %v3552 = vpack.c.bf16 %v3541, %v3538
        %3554 = vrot.lane.b32.xlu0 %v3552, 96
        %v3555 = vpop.permute.xlu0 %3554
        %v3557 = vsel %vm1578, %v3552, 0
        %v3560 = vsel %vm1578, %v3555, 0
        %3562 = vmatprep.subr.bf16.mxu0 0
        %3563 = vmatpush1.bf16.xpose.msra.mxu0 %v3560
        %3564 = vmatprep.subr.bf16.mxu0 0
        %3565 = vmatpush1.bf16.xpose.msra.mxu0 0
        %3566 = vmatprep.subr.bf16.mxu0 0
        %3567 = vmatpush1.bf16.xpose.msra.mxu0 0
        %3568 = vmatprep.subr.bf16.mxu0 0
        %3569 = vmatpush1.bf16.xpose.msra.mxu0 0
        %3570 = vmatprep.subr.bf16.mxu0 0
        %3571 = vmatpush1.bf16.xpose.msra.mxu0 0
        %3572 = vmatprep.subr.bf16.mxu0 0
        %3573 = vmatpush1.bf16.xpose.msra.mxu0 0
        %3574 = vmatprep.subr.bf16.mxu0 0
        %3575 = vmatpush1.bf16.xpose.msra.mxu0 0
        %3576 = vmatprep.subr.bf16.mxu0 0
        %3577 = vmatpush1.bf16.xpose.msra.mxu0 0
        %3578 = vmatprep.subr.bf16.mxu0 0
        %3579 = vmatpush1.bf16.xpose.msra.mxu0 0
        %3580 = vmatprep.subr.bf16.mxu0 0
        %3581 = vmatpush1.bf16.xpose.msra.mxu0 0
        %3582 = vmatprep.subr.bf16.mxu0 0
        %3583 = vmatpush1.bf16.xpose.msra.mxu0 0
        %3584 = vmatprep.subr.bf16.mxu0 0
        %3585 = vmatpush1.bf16.xpose.msra.mxu0 0
        %3586 = vmatprep.subr.bf16.mxu0 0
        %3587 = vmatpush1.bf16.xpose.msra.mxu0 0
        %3588 = vmatprep.subr.bf16.mxu0 0
        %3589 = vmatpush1.bf16.xpose.msra.mxu0 0
        %3590 = vmatprep.subr.bf16.mxu0 0
        %3591 = vmatpush1.bf16.xpose.msra.mxu0 0
        %3592 = vmatprep.subr.bf16.mxu0 0
        %3593 = vmatpush1.bf16.xpose.msra.mxu0 0
        %3594 = vmatprep.mubr.bf16.mxu0 0
        %3595 = vmatmul.mubr.bf16.gmra.mrb[0].mxu0 %v3557
        %v3596 = vpop.f32.mrb[0].mxu0
        %v3597 = vadd.f32 0.0, %v3596
        %v3598 = vpop.f32.mrb[0].mxu0
        %v3599 = vpop.f32.mrb[0].mxu0
        %v3600 = vadd.f32 0.0, %v3599
        %v3601 = vpop.f32.mrb[0].mxu0
        %3602 = vdwg.mxu0
        %v3603 = vmul.f32 %v3597, 0.25
        %v3604 = vmul.f32 %v3600, 0.25
        %v3605 = vsel %vm1578, %v3603, -inf
        %3606 = vmax.xlane.f32.xlu0 %v3605
        %v3607 = vpop.xlane.xlu0 %3606
        %v3608 = vsel %vm1578, %v3604, -inf
        %3609 = vmax.xlane.f32.xlu0 %v3608
        %v3610 = vpop.xlane.xlu0 %3609
        %v3611 = vsub.f32 %v3603, %v3607
        %v3612 = vsub.f32 %v3604, %v3610
        %v3613 = vmul.f32 %v3611, 1.442695
        %v3614 = vpow.pop %v3613
        %v3615 = vmul.f32 %v3612, 1.442695
        %v3616 = vpow.pop %v3615
        %v3617 = vsel %vm1578, %v3614, 0.0
        %3618 = vadd.xlane.f32.xlu0 %v3617
        %v3619 = vpop.xlane.xlu0 %3618
        %v3620 = vsel %vm1578, %v3616, 0.0
        %3621 = vadd.xlane.f32.xlu0 %v3620
        %v3622 = vpop.xlane.xlu0 %3621
        %v3623 = vrcp.pop %v3619
        %v3624 = vrcp.pop %v3622
        %v3625 = vmul.f32 %v3614, %v3623
        %v3626 = vmul.f32 %v3616, %v3624
        %v3627 = vpack.c.bf16 %v3626, %v3625
        %3628 = vrot.lane.b32.xlu0 %v3552, 64
        %v3629 = vpop.permute.xlu0 %3628
        %v3632 = vsel %vm1578, %v3627, 0
        %3634 = vmatprep.subr.bf16.mxu0 0
        %3635 = vmatpush1.bf16.msra.mxu0 %v3629
        %3636 = vmatprep.subr.bf16.mxu0 0
        %3637 = vmatpush1.bf16.msra.mxu0 0
        %3638 = vmatprep.subr.bf16.mxu0 0
        %3639 = vmatpush1.bf16.msra.mxu0 0
        %3640 = vmatprep.subr.bf16.mxu0 0
        %3641 = vmatpush1.bf16.msra.mxu0 0
        %3642 = vmatprep.subr.bf16.mxu0 0
        %3643 = vmatpush1.bf16.msra.mxu0 0
        %3644 = vmatprep.subr.bf16.mxu0 0
        %3645 = vmatpush1.bf16.msra.mxu0 0
        %3646 = vmatprep.subr.bf16.mxu0 0
        %3647 = vmatpush1.bf16.msra.mxu0 0
        %3648 = vmatprep.subr.bf16.mxu0 0
        %3649 = vmatpush1.bf16.msra.mxu0 0
        %3650 = vmatprep.subr.bf16.mxu0 0
        %3651 = vmatpush1.bf16.msra.mxu0 0
        %3652 = vmatprep.subr.bf16.mxu0 0
        %3653 = vmatpush1.bf16.msra.mxu0 0
        %3654 = vmatprep.subr.bf16.mxu0 0
        %3655 = vmatpush1.bf16.msra.mxu0 0
        %3656 = vmatprep.subr.bf16.mxu0 0
        %3657 = vmatpush1.bf16.msra.mxu0 0
        %3658 = vmatprep.subr.bf16.mxu0 0
        %3659 = vmatpush1.bf16.msra.mxu0 0
        %3660 = vmatprep.subr.bf16.mxu0 0
        %3661 = vmatpush1.bf16.msra.mxu0 0
        %3662 = vmatprep.subr.bf16.mxu0 0
        %3663 = vmatpush1.bf16.msra.mxu0 0
        %3664 = vmatprep.subr.bf16.mxu0 0
        %3665 = vmatpush1.bf16.msra.mxu0 0
        %3666 = vmatprep.mubr.bf16.mxu0 0
        %3667 = vmatmul.mubr.bf16.gmra.mrb[0].mxu0 %v3632
        %v3668 = vpop.f32.mrb[0].mxu0
        %v3669 = vadd.f32 0.0, %v3668
        %v3670 = vpop.f32.mrb[0].mxu0
        %v3671 = vpop.f32.mrb[0].mxu0
        %v3672 = vadd.f32 0.0, %v3671
        %v3673 = vpop.f32.mrb[0].mxu0
        %3674 = vdwg.mxu0
        %3675 = vrot.lane.b32.xlu0 %v3552, 112
        %v3676 = vpop.permute.xlu0 %3675
        %3677 = vrot.lane.b32.xlu0 %v3552, 80
        %v3678 = vpop.permute.xlu0 %3677
        %v3680 = vsel %vm1578, %v3676, 0
        %v3683 = vsel %vm1578, %v3678, 0
        %3685 = vmatprep.subr.bf16.mxu0 0
        %3686 = vmatpush1.bf16.xpose.msra.mxu0 %v3683
        %3687 = vmatprep.subr.bf16.mxu0 0
        %3688 = vmatpush1.bf16.xpose.msra.mxu0 0
        %3689 = vmatprep.subr.bf16.mxu0 0
        %3690 = vmatpush1.bf16.xpose.msra.mxu0 0
        %3691 = vmatprep.subr.bf16.mxu0 0
        %3692 = vmatpush1.bf16.xpose.msra.mxu0 0
        %3693 = vmatprep.subr.bf16.mxu0 0
        %3694 = vmatpush1.bf16.xpose.msra.mxu0 0
        %3695 = vmatprep.subr.bf16.mxu0 0
        %3696 = vmatpush1.bf16.xpose.msra.mxu0 0
        %3697 = vmatprep.subr.bf16.mxu0 0
        %3698 = vmatpush1.bf16.xpose.msra.mxu0 0
        %3699 = vmatprep.subr.bf16.mxu0 0
        %3700 = vmatpush1.bf16.xpose.msra.mxu0 0
        %3701 = vmatprep.subr.bf16.mxu0 0
        %3702 = vmatpush1.bf16.xpose.msra.mxu0 0
        %3703 = vmatprep.subr.bf16.mxu0 0
        %3704 = vmatpush1.bf16.xpose.msra.mxu0 0
        %3705 = vmatprep.subr.bf16.mxu0 0
        %3706 = vmatpush1.bf16.xpose.msra.mxu0 0
        %3707 = vmatprep.subr.bf16.mxu0 0
        %3708 = vmatpush1.bf16.xpose.msra.mxu0 0
        %3709 = vmatprep.subr.bf16.mxu0 0
        %3710 = vmatpush1.bf16.xpose.msra.mxu0 0
        %3711 = vmatprep.subr.bf16.mxu0 0
        %3712 = vmatpush1.bf16.xpose.msra.mxu0 0
        %3713 = vmatprep.subr.bf16.mxu0 0
        %3714 = vmatpush1.bf16.xpose.msra.mxu0 0
        %3715 = vmatprep.subr.bf16.mxu0 0
        %3716 = vmatpush1.bf16.xpose.msra.mxu0 0
        %3717 = vmatprep.mubr.bf16.mxu0 0
        %3718 = vmatmul.mubr.bf16.gmra.mrb[0].mxu0 %v3680
        %v3719 = vpop.f32.mrb[0].mxu0
        %v3720 = vadd.f32 0.0, %v3719
        %v3721 = vpop.f32.mrb[0].mxu0
        %v3722 = vpop.f32.mrb[0].mxu0
        %v3723 = vadd.f32 0.0, %v3722
        %v3724 = vpop.f32.mrb[0].mxu0
        %3725 = vdwg.mxu0
        %v3726 = vmul.f32 %v3720, 0.25
        %v3727 = vmul.f32 %v3723, 0.25
        %v3728 = vsel %vm1578, %v3726, -inf
        %3729 = vmax.xlane.f32.xlu0 %v3728
        %v3730 = vpop.xlane.xlu0 %3729
        %v3731 = vsel %vm1578, %v3727, -inf
        %3732 = vmax.xlane.f32.xlu0 %v3731
        %v3733 = vpop.xlane.xlu0 %3732
        %v3734 = vsub.f32 %v3726, %v3730
        %v3735 = vsub.f32 %v3727, %v3733
        %v3736 = vmul.f32 %v3734, 1.442695
        %v3737 = vpow.pop %v3736
        %v3738 = vmul.f32 %v3735, 1.442695
        %v3739 = vpow.pop %v3738
        %v3740 = vsel %vm1578, %v3737, 0.0
        %3741 = vadd.xlane.f32.xlu0 %v3740
        %v3742 = vpop.xlane.xlu0 %3741
        %v3743 = vsel %vm1578, %v3739, 0.0
        %3744 = vadd.xlane.f32.xlu0 %v3743
        %v3745 = vpop.xlane.xlu0 %3744
        %v3746 = vrcp.pop %v3742
        %v3747 = vrcp.pop %v3745
        %v3748 = vmul.f32 %v3737, %v3746
        %v3749 = vmul.f32 %v3739, %v3747
        %v3750 = vpack.c.bf16 %v3749, %v3748
        %3751 = vrot.lane.b32.xlu0 %v3552, 48
        %v3752 = vpop.permute.xlu0 %3751
        %v3755 = vsel %vm1578, %v3750, 0
        %3757 = vmatprep.subr.bf16.mxu0 0
        %3758 = vmatpush1.bf16.msra.mxu0 %v3752
        %3759 = vmatprep.subr.bf16.mxu0 0
        %3760 = vmatpush1.bf16.msra.mxu0 0
        %3761 = vmatprep.subr.bf16.mxu0 0
        %3762 = vmatpush1.bf16.msra.mxu0 0
        %3763 = vmatprep.subr.bf16.mxu0 0
        %3764 = vmatpush1.bf16.msra.mxu0 0
        %3765 = vmatprep.subr.bf16.mxu0 0
        %3766 = vmatpush1.bf16.msra.mxu0 0
        %3767 = vmatprep.subr.bf16.mxu0 0
        %3768 = vmatpush1.bf16.msra.mxu0 0
        %3769 = vmatprep.subr.bf16.mxu0 0
        %3770 = vmatpush1.bf16.msra.mxu0 0
        %3771 = vmatprep.subr.bf16.mxu0 0
        %3772 = vmatpush1.bf16.msra.mxu0 0
        %3773 = vmatprep.subr.bf16.mxu0 0
        %3774 = vmatpush1.bf16.msra.mxu0 0
        %3775 = vmatprep.subr.bf16.mxu0 0
        %3776 = vmatpush1.bf16.msra.mxu0 0
        %3777 = vmatprep.subr.bf16.mxu0 0
        %3778 = vmatpush1.bf16.msra.mxu0 0
        %3779 = vmatprep.subr.bf16.mxu0 0
        %3780 = vmatpush1.bf16.msra.mxu0 0
        %3781 = vmatprep.subr.bf16.mxu0 0
        %3782 = vmatpush1.bf16.msra.mxu0 0
        %3783 = vmatprep.subr.bf16.mxu0 0
        %3784 = vmatpush1.bf16.msra.mxu0 0
        %3785 = vmatprep.subr.bf16.mxu0 0
        %3786 = vmatpush1.bf16.msra.mxu0 0
        %3787 = vmatprep.subr.bf16.mxu0 0
        %3788 = vmatpush1.bf16.msra.mxu0 0
        %3789 = vmatprep.mubr.bf16.mxu0 0
        %3790 = vmatmul.mubr.bf16.gmra.mrb[0].mxu0 %v3755
        %v3791 = vpop.f32.mrb[0].mxu0
        %v3792 = vadd.f32 0.0, %v3791
        %v3793 = vpop.f32.mrb[0].mxu0
        %v3794 = vpop.f32.mrb[0].mxu0
        %v3795 = vadd.f32 0.0, %v3794
        %v3796 = vpop.f32.mrb[0].mxu0
        %3797 = vdwg.mxu0
        %3800 = vrot.lane.b32.xlu0 %v3792, 16
        %v3801 = vpop.permute.xlu0 %3800
        %3802 = vrot.lane.b32.xlu0 %v3795, 16
        %v3803 = vpop.permute.xlu0 %3802
        %v3806 = vsel %vm1578, %v3669, %v3801
        %v3807 = vsel %vm1578, %v3672, %v3803
        %v3808 = vpack.c.bf16 %v3549, %v3546
        %3810 = vrot.lane.b32.xlu0 %v3808, 96
        %v3811 = vpop.permute.xlu0 %3810
        %v3813 = vsel %vm1578, %v3808, 0
        %v3816 = vsel %vm1578, %v3811, 0
        %3818 = vmatprep.subr.bf16.mxu0 0
        %3819 = vmatpush1.bf16.xpose.msra.mxu0 %v3816
        %3820 = vmatprep.subr.bf16.mxu0 0
        %3821 = vmatpush1.bf16.xpose.msra.mxu0 0
        %3822 = vmatprep.subr.bf16.mxu0 0
        %3823 = vmatpush1.bf16.xpose.msra.mxu0 0
        %3824 = vmatprep.subr.bf16.mxu0 0
        %3825 = vmatpush1.bf16.xpose.msra.mxu0 0
        %3826 = vmatprep.subr.bf16.mxu0 0
        %3827 = vmatpush1.bf16.xpose.msra.mxu0 0
        %3828 = vmatprep.subr.bf16.mxu0 0
        %3829 = vmatpush1.bf16.xpose.msra.mxu0 0
        %3830 = vmatprep.subr.bf16.mxu0 0
        %3831 = vmatpush1.bf16.xpose.msra.mxu0 0
        %3832 = vmatprep.subr.bf16.mxu0 0
        %3833 = vmatpush1.bf16.xpose.msra.mxu0 0
        %3834 = vmatprep.subr.bf16.mxu0 0
        %3835 = vmatpush1.bf16.xpose.msra.mxu0 0
        %3836 = vmatprep.subr.bf16.mxu0 0
        %3837 = vmatpush1.bf16.xpose.msra.mxu0 0
        %3838 = vmatprep.subr.bf16.mxu0 0
        %3839 = vmatpush1.bf16.xpose.msra.mxu0 0
        %3840 = vmatprep.subr.bf16.mxu0 0
        %3841 = vmatpush1.bf16.xpose.msra.mxu0 0
        %3842 = vmatprep.subr.bf16.mxu0 0
        %3843 = vmatpush1.bf16.xpose.msra.mxu0 0
        %3844 = vmatprep.subr.bf16.mxu0 0
        %3845 = vmatpush1.bf16.xpose.msra.mxu0 0
        %3846 = vmatprep.subr.bf16.mxu0 0
        %3847 = vmatpush1.bf16.xpose.msra.mxu0 0
        %3848 = vmatprep.subr.bf16.mxu0 0
        %3849 = vmatpush1.bf16.xpose.msra.mxu0 0
        %3850 = vmatprep.mubr.bf16.mxu0 0
        %3851 = vmatmul.mubr.bf16.gmra.mrb[0].mxu0 %v3813
        %v3852 = vpop.f32.mrb[0].mxu0
        %v3853 = vadd.f32 0.0, %v3852
        %v3854 = vpop.f32.mrb[0].mxu0
        %v3855 = vpop.f32.mrb[0].mxu0
        %v3856 = vadd.f32 0.0, %v3855
        %v3857 = vpop.f32.mrb[0].mxu0
        %3858 = vdwg.mxu0
        %v3859 = vmul.f32 %v3853, 0.25
        %v3860 = vmul.f32 %v3856, 0.25
        %v3861 = vsel %vm1578, %v3859, -inf
        %3862 = vmax.xlane.f32.xlu0 %v3861
        %v3863 = vpop.xlane.xlu0 %3862
        %v3864 = vsel %vm1578, %v3860, -inf
        %3865 = vmax.xlane.f32.xlu0 %v3864
        %v3866 = vpop.xlane.xlu0 %3865
        %v3867 = vsub.f32 %v3859, %v3863
        %v3868 = vsub.f32 %v3860, %v3866
        %v3869 = vmul.f32 %v3867, 1.442695
        %v3870 = vpow.pop %v3869
        %v3871 = vmul.f32 %v3868, 1.442695
        %v3872 = vpow.pop %v3871
        %v3873 = vsel %vm1578, %v3870, 0.0
        %3874 = vadd.xlane.f32.xlu0 %v3873
        %v3875 = vpop.xlane.xlu0 %3874
        %v3876 = vsel %vm1578, %v3872, 0.0
        %3877 = vadd.xlane.f32.xlu0 %v3876
        %v3878 = vpop.xlane.xlu0 %3877
        %v3879 = vrcp.pop %v3875
        %v3880 = vrcp.pop %v3878
        %v3881 = vmul.f32 %v3870, %v3879
        %v3882 = vmul.f32 %v3872, %v3880
        %v3883 = vpack.c.bf16 %v3882, %v3881
        %3884 = vrot.lane.b32.xlu0 %v3808, 64
        %v3885 = vpop.permute.xlu0 %3884
        %v3888 = vsel %vm1578, %v3883, 0
        %3890 = vmatprep.subr.bf16.mxu0 0
        %3891 = vmatpush1.bf16.msra.mxu0 %v3885
        %3892 = vmatprep.subr.bf16.mxu0 0
        %3893 = vmatpush1.bf16.msra.mxu0 0
        %3894 = vmatprep.subr.bf16.mxu0 0
        %3895 = vmatpush1.bf16.msra.mxu0 0
        %3896 = vmatprep.subr.bf16.mxu0 0
        %3897 = vmatpush1.bf16.msra.mxu0 0
        %3898 = vmatprep.subr.bf16.mxu0 0
        %3899 = vmatpush1.bf16.msra.mxu0 0
        %3900 = vmatprep.subr.bf16.mxu0 0
        %3901 = vmatpush1.bf16.msra.mxu0 0
        %3902 = vmatprep.subr.bf16.mxu0 0
        %3903 = vmatpush1.bf16.msra.mxu0 0
        %3904 = vmatprep.subr.bf16.mxu0 0
        %3905 = vmatpush1.bf16.msra.mxu0 0
        %3906 = vmatprep.subr.bf16.mxu0 0
        %3907 = vmatpush1.bf16.msra.mxu0 0
        %3908 = vmatprep.subr.bf16.mxu0 0
        %3909 = vmatpush1.bf16.msra.mxu0 0
        %3910 = vmatprep.subr.bf16.mxu0 0
        %3911 = vmatpush1.bf16.msra.mxu0 0
        %3912 = vmatprep.subr.bf16.mxu0 0
        %3913 = vmatpush1.bf16.msra.mxu0 0
        %3914 = vmatprep.subr.bf16.mxu0 0
        %3915 = vmatpush1.bf16.msra.mxu0 0
        %3916 = vmatprep.subr.bf16.mxu0 0
        %3917 = vmatpush1.bf16.msra.mxu0 0
        %3918 = vmatprep.subr.bf16.mxu0 0
        %3919 = vmatpush1.bf16.msra.mxu0 0
        %3920 = vmatprep.subr.bf16.mxu0 0
        %3921 = vmatpush1.bf16.msra.mxu0 0
        %3922 = vmatprep.mubr.bf16.mxu0 0
        %3923 = vmatmul.mubr.bf16.gmra.mrb[0].mxu0 %v3888
        %v3924 = vpop.f32.mrb[0].mxu0
        %v3925 = vadd.f32 0.0, %v3924
        %v3926 = vpop.f32.mrb[0].mxu0
        %v3927 = vpop.f32.mrb[0].mxu0
        %v3928 = vadd.f32 0.0, %v3927
        %v3929 = vpop.f32.mrb[0].mxu0
        %3930 = vdwg.mxu0
        %3931 = vrot.lane.b32.xlu0 %v3808, 112
        %v3932 = vpop.permute.xlu0 %3931
        %3933 = vrot.lane.b32.xlu0 %v3808, 80
        %v3934 = vpop.permute.xlu0 %3933
        %v3936 = vsel %vm1578, %v3932, 0
        %v3939 = vsel %vm1578, %v3934, 0
        %3941 = vmatprep.subr.bf16.mxu0 0
        %3942 = vmatpush1.bf16.xpose.msra.mxu0 %v3939
        %3943 = vmatprep.subr.bf16.mxu0 0
        %3944 = vmatpush1.bf16.xpose.msra.mxu0 0
        %3945 = vmatprep.subr.bf16.mxu0 0
        %3946 = vmatpush1.bf16.xpose.msra.mxu0 0
        %3947 = vmatprep.subr.bf16.mxu0 0
        %3948 = vmatpush1.bf16.xpose.msra.mxu0 0
        %3949 = vmatprep.subr.bf16.mxu0 0
        %3950 = vmatpush1.bf16.xpose.msra.mxu0 0
        %3951 = vmatprep.subr.bf16.mxu0 0
        %3952 = vmatpush1.bf16.xpose.msra.mxu0 0
        %3953 = vmatprep.subr.bf16.mxu0 0
        %3954 = vmatpush1.bf16.xpose.msra.mxu0 0
        %3955 = vmatprep.subr.bf16.mxu0 0
        %3956 = vmatpush1.bf16.xpose.msra.mxu0 0
        %3957 = vmatprep.subr.bf16.mxu0 0
        %3958 = vmatpush1.bf16.xpose.msra.mxu0 0
        %3959 = vmatprep.subr.bf16.mxu0 0
        %3960 = vmatpush1.bf16.xpose.msra.mxu0 0
        %3961 = vmatprep.subr.bf16.mxu0 0
        %3962 = vmatpush1.bf16.xpose.msra.mxu0 0
        %3963 = vmatprep.subr.bf16.mxu0 0
        %3964 = vmatpush1.bf16.xpose.msra.mxu0 0
        %3965 = vmatprep.subr.bf16.mxu0 0
        %3966 = vmatpush1.bf16.xpose.msra.mxu0 0
        %3967 = vmatprep.subr.bf16.mxu0 0
        %3968 = vmatpush1.bf16.xpose.msra.mxu0 0
        %3969 = vmatprep.subr.bf16.mxu0 0
        %3970 = vmatpush1.bf16.xpose.msra.mxu0 0
        %3971 = vmatprep.subr.bf16.mxu0 0
        %3972 = vmatpush1.bf16.xpose.msra.mxu0 0
        %3973 = vmatprep.mubr.bf16.mxu0 0
        %3974 = vmatmul.mubr.bf16.gmra.mrb[0].mxu0 %v3936
        %v3975 = vpop.f32.mrb[0].mxu0
        %v3976 = vadd.f32 0.0, %v3975
        %v3977 = vpop.f32.mrb[0].mxu0
        %v3978 = vpop.f32.mrb[0].mxu0
        %v3979 = vadd.f32 0.0, %v3978
        %v3980 = vpop.f32.mrb[0].mxu0
        %3981 = vdwg.mxu0
        %v3982 = vmul.f32 %v3976, 0.25
        %v3983 = vmul.f32 %v3979, 0.25
        %v3984 = vsel %vm1578, %v3982, -inf
        %3985 = vmax.xlane.f32.xlu0 %v3984
        %v3986 = vpop.xlane.xlu0 %3985
        %v3987 = vsel %vm1578, %v3983, -inf
        %3988 = vmax.xlane.f32.xlu0 %v3987
        %v3989 = vpop.xlane.xlu0 %3988
        %v3990 = vsub.f32 %v3982, %v3986
        %v3991 = vsub.f32 %v3983, %v3989
        %v3992 = vmul.f32 %v3990, 1.442695
        %v3993 = vpow.pop %v3992
        %v3994 = vmul.f32 %v3991, 1.442695
        %v3995 = vpow.pop %v3994
        %v3996 = vsel %vm1578, %v3993, 0.0
        %3997 = vadd.xlane.f32.xlu0 %v3996
        %v3998 = vpop.xlane.xlu0 %3997
        %v3999 = vsel %vm1578, %v3995, 0.0
        %4000 = vadd.xlane.f32.xlu0 %v3999
        %v4001 = vpop.xlane.xlu0 %4000
        %v4002 = vrcp.pop %v3998
        %v4003 = vrcp.pop %v4001
        %v4004 = vmul.f32 %v3993, %v4002
        %v4005 = vmul.f32 %v3995, %v4003
        %v4006 = vpack.c.bf16 %v4005, %v4004
        %4007 = vrot.lane.b32.xlu0 %v3808, 48
        %v4008 = vpop.permute.xlu0 %4007
        %v4011 = vsel %vm1578, %v4006, 0
        %4013 = vmatprep.subr.bf16.mxu0 0
        %4014 = vmatpush1.bf16.msra.mxu0 %v4008
        %4015 = vmatprep.subr.bf16.mxu0 0
        %4016 = vmatpush1.bf16.msra.mxu0 0
        %4017 = vmatprep.subr.bf16.mxu0 0
        %4018 = vmatpush1.bf16.msra.mxu0 0
        %4019 = vmatprep.subr.bf16.mxu0 0
        %4020 = vmatpush1.bf16.msra.mxu0 0
        %4021 = vmatprep.subr.bf16.mxu0 0
        %4022 = vmatpush1.bf16.msra.mxu0 0
        %4023 = vmatprep.subr.bf16.mxu0 0
        %4024 = vmatpush1.bf16.msra.mxu0 0
        %4025 = vmatprep.subr.bf16.mxu0 0
        %4026 = vmatpush1.bf16.msra.mxu0 0
        %4027 = vmatprep.subr.bf16.mxu0 0
        %4028 = vmatpush1.bf16.msra.mxu0 0
        %4029 = vmatprep.subr.bf16.mxu0 0
        %4030 = vmatpush1.bf16.msra.mxu0 0
        %4031 = vmatprep.subr.bf16.mxu0 0
        %4032 = vmatpush1.bf16.msra.mxu0 0
        %4033 = vmatprep.subr.bf16.mxu0 0
        %4034 = vmatpush1.bf16.msra.mxu0 0
        %4035 = vmatprep.subr.bf16.mxu0 0
        %4036 = vmatpush1.bf16.msra.mxu0 0
        %4037 = vmatprep.subr.bf16.mxu0 0
        %4038 = vmatpush1.bf16.msra.mxu0 0
        %4039 = vmatprep.subr.bf16.mxu0 0
        %4040 = vmatpush1.bf16.msra.mxu0 0
        %4041 = vmatprep.subr.bf16.mxu0 0
        %4042 = vmatpush1.bf16.msra.mxu0 0
        %4043 = vmatprep.subr.bf16.mxu0 0
        %4044 = vmatpush1.bf16.msra.mxu0 0
        %4045 = vmatprep.mubr.bf16.mxu0 0
        %4046 = vmatmul.mubr.bf16.gmra.mrb[0].mxu0 %v4011
        %v4047 = vpop.f32.mrb[0].mxu0
        %v4048 = vadd.f32 0.0, %v4047
        %v4049 = vpop.f32.mrb[0].mxu0
        %v4050 = vpop.f32.mrb[0].mxu0
        %v4051 = vadd.f32 0.0, %v4050
        %v4052 = vpop.f32.mrb[0].mxu0
        %4053 = vdwg.mxu0
        %4056 = vrot.lane.b32.xlu0 %v4048, 16
        %v4057 = vpop.permute.xlu0 %4056
        %4058 = vrot.lane.b32.xlu0 %v4051, 16
        %v4059 = vpop.permute.xlu0 %4058
        %v4062 = vsel %vm1578, %v3925, %v4057
        %v4063 = vsel %vm1578, %v3928, %v4059
        %v4064 = vpack.c.bf16 %v3807, %v3806
        %v4065 = vpack.c.bf16 %v4063, %v4062
        %v4067 = vlaneseq
        %v4068 = vshrl.u32 %v4067, 7
        %v4069 = vsub.s32 0, %v4068
        %v4070 = vrot.slane %v3406, %v4069
        %v4076 = vunpack.c.l.b16 %v3401
        %v4077 = vunpack.c.l.b16 %v3402
        %v4078 = vunpack.c.l.b16 %v3403
        %v4079 = vunpack.c.l.b16 %v3404
        %v4080 = vpack.c.b16 %v4077, %v4076
        %v4081 = vpack.c.b16 %v4079, %v4078
        %v4085 = vsel %vm1368, %v4064, 0
        %v4088 = vsel %vm1368, %v4065, 0
        %4090 = vmatprep.subr.bf16.mxu0 0
        %4091 = vmatpush1.bf16.msra.mxu0 %v4080
        %4092 = vmatprep.subr.bf16.mxu0 0
        %4093 = vmatpush1.bf16.msra.mxu0 %v4081
        %4094 = vmatprep.subr.bf16.mxu0 0
        %4095 = vmatpush1.bf16.msra.mxu0 0
        %4096 = vmatprep.subr.bf16.mxu0 0
        %4097 = vmatpush1.bf16.msra.mxu0 0
        %4098 = vmatprep.subr.bf16.mxu0 0
        %4099 = vmatpush1.bf16.msra.mxu0 0
        %4100 = vmatprep.subr.bf16.mxu0 0
        %4101 = vmatpush1.bf16.msra.mxu0 0
        %4102 = vmatprep.subr.bf16.mxu0 0
        %4103 = vmatpush1.bf16.msra.mxu0 0
        %4104 = vmatprep.subr.bf16.mxu0 0
        %4105 = vmatpush1.bf16.msra.mxu0 0
        %4106 = vmatprep.subr.bf16.mxu0 0
        %4107 = vmatpush1.bf16.msra.mxu0 0
        %4108 = vmatprep.subr.bf16.mxu0 0
        %4109 = vmatpush1.bf16.msra.mxu0 0
        %4110 = vmatprep.subr.bf16.mxu0 0
        %4111 = vmatpush1.bf16.msra.mxu0 0
        %4112 = vmatprep.subr.bf16.mxu0 0
        %4113 = vmatpush1.bf16.msra.mxu0 0
        %4114 = vmatprep.subr.bf16.mxu0 0
        %4115 = vmatpush1.bf16.msra.mxu0 0
        %4116 = vmatprep.subr.bf16.mxu0 0
        %4117 = vmatpush1.bf16.msra.mxu0 0
        %4118 = vmatprep.subr.bf16.mxu0 0
        %4119 = vmatpush1.bf16.msra.mxu0 0
        %4120 = vmatprep.subr.bf16.mxu0 0
        %4121 = vmatpush1.bf16.msra.mxu0 0
        %4122 = vmatprep.mubr.bf16.mxu0 0
        %4123 = vmatmul.mubr.bf16.gmra.mrb[0].mxu0 %v4085
        %v4124 = vpop.f32.mrb[0].mxu0
        %v4125 = vadd.f32 %v4070, %v4124
        %v4126 = vpop.f32.mrb[0].mxu0
        %v4127 = vpop.f32.mrb[0].mxu0
        %v4128 = vadd.f32 %v4070, %v4127
        %v4129 = vpop.f32.mrb[0].mxu0
        %4130 = vmatprep.mubr.bf16.mxu0 0
        %4131 = vmatmul.mubr.bf16.gmra.mrb[0].mxu0 %v4088
        %v4132 = vpop.f32.mrb[0].mxu0
        %v4133 = vadd.f32 %v4070, %v4132
        %v4134 = vpop.f32.mrb[0].mxu0
        %v4135 = vpop.f32.mrb[0].mxu0
        %v4136 = vadd.f32 %v4070, %v4135
        %v4137 = vpop.f32.mrb[0].mxu0
        %4138 = vdwg.mxu0
        %v4139 = vadd.f32 %v3391, %v4125
        %v4140 = vadd.f32 %v3392, %v4128
        %v4141 = vadd.f32 %v3393, %v4133
        %v4142 = vadd.f32 %v3394, %v4136
        %s4143 = scalar_lea.vmem %s45, 32
        %v4144 = vld [vmem:[%s4143] sm:$0xf]
        %v4145 = vld [vmem:[%s4143 + $0x4] sm:$0xf]
        %v4146 = vld [vmem:[%s4143 + $0x8] sm:$0xf]
        %v4147 = vld [vmem:[%s4143 + $0xc] sm:$0xf]
        %v4148 = vld [vmem:[%s4143 + $0x10] sm:$0xf]
        %v4149 = vld [vmem:[%s4143 + $0x14] sm:$0xf]
        %v4150 = vld [vmem:[%s4143 + $0x18] sm:$0xf]
        %v4151 = vld [vmem:[%s4143 + $0x1c] sm:$0xf]
        %s4152 = scalar_lea.vmem %s47, 2
        %v4153 = vld [vmem:[%s4152] sm:$0x1]
        %v4154 = vld [vmem:[%s4152 + $0x1] sm:$0x1]
        %s4155 = scalar_lea.vmem %s49, 64
        %v4156 = vld [vmem:[%s4155] sm:$0xf]
        %v4157 = vld [vmem:[%s4155 + $0x4] sm:$0xf]
        %v4158 = vld [vmem:[%s4155 + $0x8] sm:$0xf]
        %v4159 = vld [vmem:[%s4155 + $0xc] sm:$0xf]
        %v4160 = vld [vmem:[%s4155 + $0x10] sm:$0xf]
        %v4161 = vld [vmem:[%s4155 + $0x14] sm:$0xf]
        %v4162 = vld [vmem:[%s4155 + $0x18] sm:$0xf]
        %v4163 = vld [vmem:[%s4155 + $0x1c] sm:$0xf]
        %v4164 = vld [vmem:[%s4155 + $0x20] sm:$0xf]
        %v4165 = vld [vmem:[%s4155 + $0x24] sm:$0xf]
        %v4166 = vld [vmem:[%s4155 + $0x28] sm:$0xf]
        %v4167 = vld [vmem:[%s4155 + $0x2c] sm:$0xf]
        %v4168 = vld [vmem:[%s4155 + $0x30] sm:$0xf]
        %v4169 = vld [vmem:[%s4155 + $0x34] sm:$0xf]
        %v4170 = vld [vmem:[%s4155 + $0x38] sm:$0xf]
        %v4171 = vld [vmem:[%s4155 + $0x3c] sm:$0xf]
        %s4172 = scalar_lea.vmem %s51, 1
        %v4173 = vld [vmem:[%s4172] sm:$0x1]
        %s4174 = scalar_lea.vmem %s53, 1
        %v4175 = vld [vmem:[%s4174] sm:$0x1]
        %s4176 = scalar_lea.vmem %s55, 1
        %v4177 = vld [vmem:[%s4176] sm:$0x1]
        %v4178 = vsel %vm1368, %v4139, 0.0
        %4179 = vadd.xlane.f32.xlu0 %v4178
        %v4180 = vpop.xlane.xlu0 %4179
        %v4181 = vsel %vm1368, %v4140, 0.0
        %4182 = vadd.xlane.f32.xlu0 %v4181
        %v4183 = vpop.xlane.xlu0 %4182
        %v4184 = vsel %vm1368, %v4141, 0.0
        %4185 = vadd.xlane.f32.xlu0 %v4184
        %v4186 = vpop.xlane.xlu0 %4185
        %v4187 = vsel %vm1368, %v4142, 0.0
        %4188 = vadd.xlane.f32.xlu0 %v4187
        %v4189 = vpop.xlane.xlu0 %4188
        %v4190 = vmul.f32 %v4180, %v1375
        %v4191 = vmul.f32 %v4183, %v1375
        %v4192 = vmul.f32 %v4186, %v1375
        %v4193 = vmul.f32 %v4189, %v1375
        %v4194 = vsub.f32 %v4139, %v4190
        %v4195 = vsub.f32 %v4140, %v4191
        %v4196 = vsub.f32 %v4141, %v4192
        %v4197 = vsub.f32 %v4142, %v4193
        %v4198 = vmul.f32 %v4194, %v4194
        %v4199 = vmul.f32 %v4195, %v4195
        %v4200 = vmul.f32 %v4196, %v4196
        %v4201 = vmul.f32 %v4197, %v4197
        %v4202 = vsel %vm1368, %v4198, 0.0
        %4203 = vadd.xlane.f32.xlu0 %v4202
        %v4204 = vpop.xlane.xlu0 %4203
        %v4205 = vsel %vm1368, %v4199, 0.0
        %4206 = vadd.xlane.f32.xlu0 %v4205
        %v4207 = vpop.xlane.xlu0 %4206
        %v4208 = vsel %vm1368, %v4200, 0.0
        %4209 = vadd.xlane.f32.xlu0 %v4208
        %v4210 = vpop.xlane.xlu0 %4209
        %v4211 = vsel %vm1368, %v4201, 0.0
        %4212 = vadd.xlane.f32.xlu0 %v4211
        %v4213 = vpop.xlane.xlu0 %4212
        %v4214 = vmul.f32 %v4204, %v1375
        %v4215 = vmul.f32 %v4207, %v1375
        %v4216 = vmul.f32 %v4210, %v1375
        %v4217 = vmul.f32 %v4213, %v1375
        %v4218 = vadd.f32 %v4214, 1e-05
        %v4219 = vadd.f32 %v4215, 1e-05
        %v4220 = vadd.f32 %v4216, 1e-05
        %v4221 = vadd.f32 %v4217, 1e-05
        %v4222 = vrsqrt.pop %v4218
        %v4223 = vrsqrt.pop %v4219
        %v4224 = vrsqrt.pop %v4220
        %v4225 = vrsqrt.pop %v4221
        %v4226 = vmul.f32 %v4194, %v4222
        %v4227 = vmul.f32 %v4195, %v4223
        %v4228 = vmul.f32 %v4196, %v4224
        %v4229 = vmul.f32 %v4197, %v4225
        %v4231 = vlaneseq
        %v4232 = vshrl.u32 %v4231, 7
        %v4233 = vsub.s32 0, %v4232
        %v4234 = vrot.slane %v4175, %v4233
        %v4236 = vmul.f32 %v4226, %v4234
        %v4237 = vmul.f32 %v4227, %v4234
        %v4238 = vmul.f32 %v4228, %v4234
        %v4239 = vmul.f32 %v4229, %v4234
        %v4241 = vlaneseq
        %v4242 = vshrl.u32 %v4241, 7
        %v4243 = vsub.s32 0, %v4242
        %v4244 = vrot.slane %v4177, %v4243
        %v4246 = vadd.f32 %v4236, %v4244
        %v4247 = vadd.f32 %v4237, %v4244
        %v4248 = vadd.f32 %v4238, %v4244
        %v4249 = vadd.f32 %v4239, %v4244
        %v4250 = vpack.c.bf16 %v4247, %v4246
        %v4251 = vpack.c.bf16 %v4249, %v4248
        %v4253 = vlaneseq
        %v4254 = vshrl.u32 %v4253, 7
        %v4255 = vsub.s32 0, %v4254
        %v4256 = vrot.slane %v4153, %v4255
        %v4262 = vunpack.c.l.b16 %v4144
        %v4263 = vunpack.c.l.b16 %v4145
        %v4264 = vunpack.c.l.b16 %v4146
        %v4265 = vunpack.c.l.b16 %v4147
        %v4266 = vpack.c.b16 %v4263, %v4262
        %v4267 = vpack.c.b16 %v4265, %v4264
        %v4271 = vsel %vm1368, %v4250, 0
        %v4274 = vsel %vm1368, %v4251, 0
        %4276 = vmatprep.subr.bf16.mxu0 0
        %4277 = vmatpush1.bf16.msra.mxu0 %v4266
        %4278 = vmatprep.subr.bf16.mxu0 0
        %4279 = vmatpush1.bf16.msra.mxu0 %v4267
        %4280 = vmatprep.subr.bf16.mxu0 0
        %4281 = vmatpush1.bf16.msra.mxu0 0
        %4282 = vmatprep.subr.bf16.mxu0 0
        %4283 = vmatpush1.bf16.msra.mxu0 0
        %4284 = vmatprep.subr.bf16.mxu0 0
        %4285 = vmatpush1.bf16.msra.mxu0 0
        %4286 = vmatprep.subr.bf16.mxu0 0
        %4287 = vmatpush1.bf16.msra.mxu0 0
        %4288 = vmatprep.subr.bf16.mxu0 0
        %4289 = vmatpush1.bf16.msra.mxu0 0
        %4290 = vmatprep.subr.bf16.mxu0 0
        %4291 = vmatpush1.bf16.msra.mxu0 0
        %4292 = vmatprep.subr.bf16.mxu0 0
        %4293 = vmatpush1.bf16.msra.mxu0 0
        %4294 = vmatprep.subr.bf16.mxu0 0
        %4295 = vmatpush1.bf16.msra.mxu0 0
        %4296 = vmatprep.subr.bf16.mxu0 0
        %4297 = vmatpush1.bf16.msra.mxu0 0
        %4298 = vmatprep.subr.bf16.mxu0 0
        %4299 = vmatpush1.bf16.msra.mxu0 0
        %4300 = vmatprep.subr.bf16.mxu0 0
        %4301 = vmatpush1.bf16.msra.mxu0 0
        %4302 = vmatprep.subr.bf16.mxu0 0
        %4303 = vmatpush1.bf16.msra.mxu0 0
        %4304 = vmatprep.subr.bf16.mxu0 0
        %4305 = vmatpush1.bf16.msra.mxu0 0
        %4306 = vmatprep.subr.bf16.mxu0 0
        %4307 = vmatpush1.bf16.msra.mxu0 0
        %4308 = vmatprep.mubr.bf16.mxu0 0
        %4309 = vmatmul.mubr.bf16.gmra.mrb[0].mxu0 %v4271
        %v4310 = vpop.f32.mrb[0].mxu0
        %v4311 = vadd.f32 %v4256, %v4310
        %v4312 = vpop.f32.mrb[0].mxu0
        %v4313 = vpop.f32.mrb[0].mxu0
        %v4314 = vadd.f32 %v4256, %v4313
        %v4315 = vpop.f32.mrb[0].mxu0
        %4316 = vmatprep.mubr.bf16.mxu0 0
        %4317 = vmatmul.mubr.bf16.gmra.mrb[0].mxu0 %v4274
        %v4318 = vpop.f32.mrb[0].mxu0
        %v4319 = vadd.f32 %v4256, %v4318
        %v4320 = vpop.f32.mrb[0].mxu0
        %v4321 = vpop.f32.mrb[0].mxu0
        %v4322 = vadd.f32 %v4256, %v4321
        %v4323 = vpop.f32.mrb[0].mxu0
        %4324 = vdwg.mxu0
        %v4326 = vlaneseq
        %v4327 = vshrl.u32 %v4326, 7
        %v4328 = vsub.s32 0, %v4327
        %v4329 = vrot.slane %v4154, %v4328
        %v4335 = vunpack.c.l.b16 %v4148
        %v4336 = vunpack.c.l.b16 %v4149
        %v4337 = vunpack.c.l.b16 %v4150
        %v4338 = vunpack.c.l.b16 %v4151
        %v4339 = vpack.c.b16 %v4336, %v4335
        %v4340 = vpack.c.b16 %v4338, %v4337
        %4343 = vmatprep.subr.bf16.mxu0 0
        %4344 = vmatpush1.bf16.msra.mxu0 %v4339
        %4345 = vmatprep.subr.bf16.mxu0 0
        %4346 = vmatpush1.bf16.msra.mxu0 %v4340
        %4347 = vmatprep.subr.bf16.mxu0 0
        %4348 = vmatpush1.bf16.msra.mxu0 0
        %4349 = vmatprep.subr.bf16.mxu0 0
        %4350 = vmatpush1.bf16.msra.mxu0 0
        %4351 = vmatprep.subr.bf16.mxu0 0
        %4352 = vmatpush1.bf16.msra.mxu0 0
        %4353 = vmatprep.subr.bf16.mxu0 0
        %4354 = vmatpush1.bf16.msra.mxu0 0
        %4355 = vmatprep.subr.bf16.mxu0 0
        %4356 = vmatpush1.bf16.msra.mxu0 0
        %4357 = vmatprep.subr.bf16.mxu0 0
        %4358 = vmatpush1.bf16.msra.mxu0 0
        %4359 = vmatprep.subr.bf16.mxu0 0
        %4360 = vmatpush1.bf16.msra.mxu0 0
        %4361 = vmatprep.subr.bf16.mxu0 0
        %4362 = vmatpush1.bf16.msra.mxu0 0
        %4363 = vmatprep.subr.bf16.mxu0 0
        %4364 = vmatpush1.bf16.msra.mxu0 0
        %4365 = vmatprep.subr.bf16.mxu0 0
        %4366 = vmatpush1.bf16.msra.mxu0 0
        %4367 = vmatprep.subr.bf16.mxu0 0
        %4368 = vmatpush1.bf16.msra.mxu0 0
        %4369 = vmatprep.subr.bf16.mxu0 0
        %4370 = vmatpush1.bf16.msra.mxu0 0
        %4371 = vmatprep.subr.bf16.mxu0 0
        %4372 = vmatpush1.bf16.msra.mxu0 0
        %4373 = vmatprep.subr.bf16.mxu0 0
        %4374 = vmatpush1.bf16.msra.mxu0 0
        %4375 = vmatprep.mubr.bf16.mxu0 0
        %4376 = vmatmul.mubr.bf16.gmra.mrb[0].mxu0 %v4271
        %v4377 = vpop.f32.mrb[0].mxu0
        %v4378 = vadd.f32 %v4329, %v4377
        %v4379 = vpop.f32.mrb[0].mxu0
        %v4380 = vpop.f32.mrb[0].mxu0
        %v4381 = vadd.f32 %v4329, %v4380
        %v4382 = vpop.f32.mrb[0].mxu0
        %4383 = vmatprep.mubr.bf16.mxu0 0
        %4384 = vmatmul.mubr.bf16.gmra.mrb[0].mxu0 %v4274
        %v4385 = vpop.f32.mrb[0].mxu0
        %v4386 = vadd.f32 %v4329, %v4385
        %v4387 = vpop.f32.mrb[0].mxu0
        %v4388 = vpop.f32.mrb[0].mxu0
        %v4389 = vadd.f32 %v4329, %v4388
        %v4390 = vpop.f32.mrb[0].mxu0
        %4391 = vdwg.mxu0
        %v4392 = vmul.f32 %v4378, 0.5
        %v4393 = vmul.f32 %v4381, 0.5
        %v4394 = vmul.f32 %v4386, 0.5
        %v4395 = vmul.f32 %v4389, 0.5
        %v4396 = vmul.f32 %v4378, 0.70710677
        %v4397 = vmul.f32 %v4381, 0.70710677
        %v4398 = vmul.f32 %v4386, 0.70710677
        %v4399 = vmul.f32 %v4389, 0.70710677
        %v4400 = verf.f32.pop %v4396
        %v4401 = verf.f32.pop %v4397
        %v4402 = verf.f32.pop %v4398
        %v4403 = verf.f32.pop %v4399
        %v4404 = vadd.f32 %v4400, 1.0
        %v4405 = vadd.f32 %v4401, 1.0
        %v4406 = vadd.f32 %v4402, 1.0
        %v4407 = vadd.f32 %v4403, 1.0
        %v4408 = vmul.f32 %v4392, %v4404
        %v4409 = vmul.f32 %v4393, %v4405
        %v4410 = vmul.f32 %v4394, %v4406
        %v4411 = vmul.f32 %v4395, %v4407
        %v4412 = vmul.f32 %v4311, %v4408
        %v4413 = vmul.f32 %v4314, %v4409
        %v4414 = vmul.f32 %v4319, %v4410
        %v4415 = vmul.f32 %v4322, %v4411
        %v4416 = vpack.c.bf16 %v4413, %v4412
        %v4417 = vpack.c.bf16 %v4415, %v4414
        %v4419 = vlaneseq
        %v4420 = vshrl.u32 %v4419, 7
        %v4421 = vsub.s32 0, %v4420
        %v4422 = vrot.slane %v4173, %v4421
        %v4440 = vunpack.c.l.b16 %v4156
        %v4441 = vunpack.c.l.b16 %v4157
        %v4442 = vunpack.c.l.b16 %v4158
        %v4443 = vunpack.c.l.b16 %v4159
        %v4444 = vunpack.c.l.b16 %v4160
        %v4445 = vunpack.c.l.b16 %v4161
        %v4446 = vunpack.c.l.b16 %v4162
        %v4447 = vunpack.c.l.b16 %v4163
        %v4448 = vunpack.c.l.b16 %v4164
        %v4449 = vunpack.c.l.b16 %v4165
        %v4450 = vunpack.c.l.b16 %v4166
        %v4451 = vunpack.c.l.b16 %v4167
        %v4452 = vunpack.c.l.b16 %v4168
        %v4453 = vunpack.c.l.b16 %v4169
        %v4454 = vunpack.c.l.b16 %v4170
        %v4455 = vunpack.c.l.b16 %v4171
        %v4456 = vpack.c.b16 %v4441, %v4440
        %v4457 = vpack.c.b16 %v4443, %v4442
        %v4458 = vpack.c.b16 %v4445, %v4444
        %v4459 = vpack.c.b16 %v4447, %v4446
        %v4460 = vpack.c.b16 %v4449, %v4448
        %v4461 = vpack.c.b16 %v4451, %v4450
        %v4462 = vpack.c.b16 %v4453, %v4452
        %v4463 = vpack.c.b16 %v4455, %v4454
        %4472 = vmatprep.subr.bf16.mxu0 0
        %4473 = vmatpush1.bf16.msra.mxu0 %v4456
        %4474 = vmatprep.subr.bf16.mxu0 0
        %4475 = vmatpush1.bf16.msra.mxu0 %v4457
        %4476 = vmatprep.subr.bf16.mxu0 0
        %4477 = vmatpush1.bf16.msra.mxu0 %v4458
        %4478 = vmatprep.subr.bf16.mxu0 0
        %4479 = vmatpush1.bf16.msra.mxu0 %v4459
        %4480 = vmatprep.subr.bf16.mxu0 0
        %4481 = vmatpush1.bf16.msra.mxu0 %v4460
        %4482 = vmatprep.subr.bf16.mxu0 0
        %4483 = vmatpush1.bf16.msra.mxu0 %v4461
        %4484 = vmatprep.subr.bf16.mxu0 0
        %4485 = vmatpush1.bf16.msra.mxu0 %v4462
        %4486 = vmatprep.subr.bf16.mxu0 0
        %4487 = vmatpush1.bf16.msra.mxu0 %v4463
        %4488 = vmatprep.subr.bf16.mxu0 0
        %4489 = vmatpush1.bf16.msra.mxu0 0
        %4490 = vmatprep.subr.bf16.mxu0 0
        %4491 = vmatpush1.bf16.msra.mxu0 0
        %4492 = vmatprep.subr.bf16.mxu0 0
        %4493 = vmatpush1.bf16.msra.mxu0 0
        %4494 = vmatprep.subr.bf16.mxu0 0
        %4495 = vmatpush1.bf16.msra.mxu0 0
        %4496 = vmatprep.subr.bf16.mxu0 0
        %4497 = vmatpush1.bf16.msra.mxu0 0
        %4498 = vmatprep.subr.bf16.mxu0 0
        %4499 = vmatpush1.bf16.msra.mxu0 0
        %4500 = vmatprep.subr.bf16.mxu0 0
        %4501 = vmatpush1.bf16.msra.mxu0 0
        %4502 = vmatprep.subr.bf16.mxu0 0
        %4503 = vmatpush1.bf16.msra.mxu0 0
        %4504 = vmatprep.mubr.bf16.mxu0 0
        %4505 = vmatmul.mubr.bf16.gmra.mrb[0].mxu0 %v4416
        %v4506 = vpop.f32.mrb[0].mxu0
        %v4507 = vadd.f32 %v4422, %v4506
        %v4508 = vpop.f32.mrb[0].mxu0
        %v4509 = vpop.f32.mrb[0].mxu0
        %v4510 = vadd.f32 %v4422, %v4509
        %v4511 = vpop.f32.mrb[0].mxu0
        %4512 = vmatprep.mubr.bf16.mxu0 0
        %4513 = vmatmul.mubr.bf16.gmra.mrb[0].mxu0 %v4417
        %v4514 = vpop.f32.mrb[0].mxu0
        %v4515 = vadd.f32 %v4422, %v4514
        %v4516 = vpop.f32.mrb[0].mxu0
        %v4517 = vpop.f32.mrb[0].mxu0
        %v4518 = vadd.f32 %v4422, %v4517
        %v4519 = vpop.f32.mrb[0].mxu0
        %4520 = vdwg.mxu0
        %v4521 = vadd.f32 %v4139, %v4507
        %v4522 = vadd.f32 %v4140, %v4510
        %v4523 = vadd.f32 %v4141, %v4515
        %v4524 = vadd.f32 %v4142, %v4518
        %v4525 = vld [vmem:[%s57] sm:$0xf]
        %v4526 = vld [vmem:[%s57 + $0x4] sm:$0xf]
        %v4527 = vld [vmem:[%s57 + $0x8] sm:$0xf]
        %v4528 = vld [vmem:[%s57 + $0xc] sm:$0xf]
        %v4529 = vld [vmem:[%s59] sm:$0xf]
        %v4530 = vld [vmem:[%s59 + $0x4] sm:$0xf]
        %v4531 = vld [vmem:[%s59 + $0x8] sm:$0xf]
        %v4532 = vld [vmem:[%s59 + $0xc] sm:$0xf]
        %v4533 = vld [vmem:[%s61] sm:$0xf]
        %v4534 = vld [vmem:[%s61 + $0x4] sm:$0xf]
        %v4535 = vld [vmem:[%s63] sm:$0x1]
        %v4536 = vld [vmem:[%s65] sm:$0x1]
        %v4537 = vld [vmem:[%s67] sm:$0x1]
        %v4538 = vld [vmem:[%s69] sm:$0x1]
        %v4539 = vld [vmem:[%s71] sm:$0x1]
        %v4540 = vsel %vm1368, %v1349, 0.0
        %4541 = vadd.xlane.f32.xlu0 %v4540
        %v4542 = vpop.xlane.xlu0 %4541
        %v4543 = vsel %vm1368, %v1350, 0.0
        %4544 = vadd.xlane.f32.xlu0 %v4543
        %v4545 = vpop.xlane.xlu0 %4544
        %v4546 = vmul.f32 %v4542, %v1375
        %v4547 = vmul.f32 %v4545, %v1375
        %v4548 = vsub.f32 %v1349, %v4546
        %v4549 = vsub.f32 %v1350, %v4547
        %v4550 = vmul.f32 %v4548, %v4548
        %v4551 = vmul.f32 %v4549, %v4549
        %v4552 = vsel %vm1368, %v4550, 0.0
        %4553 = vadd.xlane.f32.xlu0 %v4552
        %v4554 = vpop.xlane.xlu0 %4553
        %v4555 = vsel %vm1368, %v4551, 0.0
        %4556 = vadd.xlane.f32.xlu0 %v4555
        %v4557 = vpop.xlane.xlu0 %4556
        %v4558 = vmul.f32 %v4554, %v1375
        %v4559 = vmul.f32 %v4557, %v1375
        %v4560 = vadd.f32 %v4558, 1e-05
        %v4561 = vadd.f32 %v4559, 1e-05
        %v4562 = vrsqrt.pop %v4560
        %v4563 = vrsqrt.pop %v4561
        %v4564 = vmul.f32 %v4548, %v4562
        %v4565 = vmul.f32 %v4549, %v4563
        %v4567 = vlaneseq
        %v4568 = vshrl.u32 %v4567, 7
        %v4569 = vsub.s32 0, %v4568
        %v4570 = vrot.slane %v4536, %v4569
        %v4572 = vmul.f32 %v4564, %v4570
        %v4573 = vmul.f32 %v4565, %v4570
        %v4575 = vlaneseq
        %v4576 = vshrl.u32 %v4575, 7
        %v4577 = vsub.s32 0, %v4576
        %v4578 = vrot.slane %v4537, %v4577
        %v4580 = vadd.f32 %v4572, %v4578
        %v4581 = vadd.f32 %v4573, %v4578
        %v4582 = vsel %vm1368, %v4521, 0.0
        %4583 = vadd.xlane.f32.xlu0 %v4582
        %v4584 = vpop.xlane.xlu0 %4583
        %v4585 = vsel %vm1368, %v4522, 0.0
        %4586 = vadd.xlane.f32.xlu0 %v4585
        %v4587 = vpop.xlane.xlu0 %4586
        %v4588 = vsel %vm1368, %v4523, 0.0
        %4589 = vadd.xlane.f32.xlu0 %v4588
        %v4590 = vpop.xlane.xlu0 %4589
        %v4591 = vsel %vm1368, %v4524, 0.0
        %4592 = vadd.xlane.f32.xlu0 %v4591
        %v4593 = vpop.xlane.xlu0 %4592
        %v4594 = vmul.f32 %v4584, %v1375
        %v4595 = vmul.f32 %v4587, %v1375
        %v4596 = vmul.f32 %v4590, %v1375
        %v4597 = vmul.f32 %v4593, %v1375
        %v4598 = vsub.f32 %v4521, %v4594
        %v4599 = vsub.f32 %v4522, %v4595
        %v4600 = vsub.f32 %v4523, %v4596
        %v4601 = vsub.f32 %v4524, %v4597
        %v4602 = vmul.f32 %v4598, %v4598
        %v4603 = vmul.f32 %v4599, %v4599
        %v4604 = vmul.f32 %v4600, %v4600
        %v4605 = vmul.f32 %v4601, %v4601
        %v4606 = vsel %vm1368, %v4602, 0.0
        %4607 = vadd.xlane.f32.xlu0 %v4606
        %v4608 = vpop.xlane.xlu0 %4607
        %v4609 = vsel %vm1368, %v4603, 0.0
        %4610 = vadd.xlane.f32.xlu0 %v4609
        %v4611 = vpop.xlane.xlu0 %4610
        %v4612 = vsel %vm1368, %v4604, 0.0
        %4613 = vadd.xlane.f32.xlu0 %v4612
        %v4614 = vpop.xlane.xlu0 %4613
        %v4615 = vsel %vm1368, %v4605, 0.0
        %4616 = vadd.xlane.f32.xlu0 %v4615
        %v4617 = vpop.xlane.xlu0 %4616
        %v4618 = vmul.f32 %v4608, %v1375
        %v4619 = vmul.f32 %v4611, %v1375
        %v4620 = vmul.f32 %v4614, %v1375
        %v4621 = vmul.f32 %v4617, %v1375
        %v4622 = vadd.f32 %v4618, 1e-05
        %v4623 = vadd.f32 %v4619, 1e-05
        %v4624 = vadd.f32 %v4620, 1e-05
        %v4625 = vadd.f32 %v4621, 1e-05
        %v4626 = vrsqrt.pop %v4622
        %v4627 = vrsqrt.pop %v4623
        %v4628 = vrsqrt.pop %v4624
        %v4629 = vrsqrt.pop %v4625
        %v4630 = vmul.f32 %v4598, %v4626
        %v4631 = vmul.f32 %v4599, %v4627
        %v4632 = vmul.f32 %v4600, %v4628
        %v4633 = vmul.f32 %v4601, %v4629
        %v4635 = vlaneseq
        %v4636 = vshrl.u32 %v4635, 7
        %v4637 = vsub.s32 0, %v4636
        %v4638 = vrot.slane %v4538, %v4637
        %v4640 = vmul.f32 %v4630, %v4638
        %v4641 = vmul.f32 %v4631, %v4638
        %v4642 = vmul.f32 %v4632, %v4638
        %v4643 = vmul.f32 %v4633, %v4638
        %v4645 = vlaneseq
        %v4646 = vshrl.u32 %v4645, 7
        %v4647 = vsub.s32 0, %v4646
        %v4648 = vrot.slane %v4539, %v4647
        %v4650 = vadd.f32 %v4640, %v4648
        %v4651 = vadd.f32 %v4641, %v4648
        %v4652 = vadd.f32 %v4642, %v4648
        %v4653 = vadd.f32 %v4643, %v4648
        %v4654 = vpack.c.bf16 %v4581, %v4580
        %v4659 = vunpack.c.l.b16 %v4525
        %v4660 = vunpack.c.l.b16 %v4526
        %v4661 = vunpack.c.l.b16 %v4527
        %v4662 = vunpack.c.l.b16 %v4528
        %v4663 = vpack.c.b16 %v4660, %v4659
        %v4664 = vpack.c.b16 %v4662, %v4661
        %v4668 = vsel %vm1368, %v4654, 0
        %4670 = vmatprep.subr.bf16.mxu0 0
        %4671 = vmatpush1.bf16.msra.mxu0 %v4663
        %4672 = vmatprep.subr.bf16.mxu0 0
        %4673 = vmatpush1.bf16.msra.mxu0 %v4664
        %4674 = vmatprep.subr.bf16.mxu0 0
        %4675 = vmatpush1.bf16.msra.mxu0 0
        %4676 = vmatprep.subr.bf16.mxu0 0
        %4677 = vmatpush1.bf16.msra.mxu0 0
        %4678 = vmatprep.subr.bf16.mxu0 0
        %4679 = vmatpush1.bf16.msra.mxu0 0
        %4680 = vmatprep.subr.bf16.mxu0 0
        %4681 = vmatpush1.bf16.msra.mxu0 0
        %4682 = vmatprep.subr.bf16.mxu0 0
        %4683 = vmatpush1.bf16.msra.mxu0 0
        %4684 = vmatprep.subr.bf16.mxu0 0
        %4685 = vmatpush1.bf16.msra.mxu0 0
        %4686 = vmatprep.subr.bf16.mxu0 0
        %4687 = vmatpush1.bf16.msra.mxu0 0
        %4688 = vmatprep.subr.bf16.mxu0 0
        %4689 = vmatpush1.bf16.msra.mxu0 0
        %4690 = vmatprep.subr.bf16.mxu0 0
        %4691 = vmatpush1.bf16.msra.mxu0 0
        %4692 = vmatprep.subr.bf16.mxu0 0
        %4693 = vmatpush1.bf16.msra.mxu0 0
        %4694 = vmatprep.subr.bf16.mxu0 0
        %4695 = vmatpush1.bf16.msra.mxu0 0
        %4696 = vmatprep.subr.bf16.mxu0 0
        %4697 = vmatpush1.bf16.msra.mxu0 0
        %4698 = vmatprep.subr.bf16.mxu0 0
        %4699 = vmatpush1.bf16.msra.mxu0 0
        %4700 = vmatprep.subr.bf16.mxu0 0
        %4701 = vmatpush1.bf16.msra.mxu0 0
        %4702 = vmatprep.mubr.bf16.mxu0 0
        %4703 = vmatmul.mubr.bf16.gmra.mrb[0].mxu0 %v4668
        %v4704 = vpop.f32.mrb[0].mxu0
        %v4705 = vadd.f32 0.0, %v4704
        %v4706 = vpop.f32.mrb[0].mxu0
        %v4707 = vpop.f32.mrb[0].mxu0
        %v4708 = vadd.f32 0.0, %v4707
        %v4709 = vpop.f32.mrb[0].mxu0
        %4710 = vdwg.mxu0
        %v4711 = vpack.c.bf16 %v4651, %v4650
        %v4712 = vpack.c.bf16 %v4653, %v4652
        %v4717 = vunpack.c.l.b16 %v4529
        %v4718 = vunpack.c.l.b16 %v4530
        %v4719 = vunpack.c.l.b16 %v4531
        %v4720 = vunpack.c.l.b16 %v4532
        %v4721 = vpack.c.b16 %v4718, %v4717
        %v4722 = vpack.c.b16 %v4720, %v4719
        %v4726 = vsel %vm1368, %v4711, 0
        %v4729 = vsel %vm1368, %v4712, 0
        %4731 = vmatprep.subr.bf16.mxu0 0
        %4732 = vmatpush1.bf16.msra.mxu0 %v4721
        %4733 = vmatprep.subr.bf16.mxu0 0
        %4734 = vmatpush1.bf16.msra.mxu0 %v4722
        %4735 = vmatprep.subr.bf16.mxu0 0
        %4736 = vmatpush1.bf16.msra.mxu0 0
        %4737 = vmatprep.subr.bf16.mxu0 0
        %4738 = vmatpush1.bf16.msra.mxu0 0
        %4739 = vmatprep.subr.bf16.mxu0 0
        %4740 = vmatpush1.bf16.msra.mxu0 0
        %4741 = vmatprep.subr.bf16.mxu0 0
        %4742 = vmatpush1.bf16.msra.mxu0 0
        %4743 = vmatprep.subr.bf16.mxu0 0
        %4744 = vmatpush1.bf16.msra.mxu0 0
        %4745 = vmatprep.subr.bf16.mxu0 0
        %4746 = vmatpush1.bf16.msra.mxu0 0
        %4747 = vmatprep.subr.bf16.mxu0 0
        %4748 = vmatpush1.bf16.msra.mxu0 0
        %4749 = vmatprep.subr.bf16.mxu0 0
        %4750 = vmatpush1.bf16.msra.mxu0 0
        %4751 = vmatprep.subr.bf16.mxu0 0
        %4752 = vmatpush1.bf16.msra.mxu0 0
        %4753 = vmatprep.subr.bf16.mxu0 0
        %4754 = vmatpush1.bf16.msra.mxu0 0
        %4755 = vmatprep.subr.bf16.mxu0 0
        %4756 = vmatpush1.bf16.msra.mxu0 0
        %4757 = vmatprep.subr.bf16.mxu0 0
        %4758 = vmatpush1.bf16.msra.mxu0 0
        %4759 = vmatprep.subr.bf16.mxu0 0
        %4760 = vmatpush1.bf16.msra.mxu0 0
        %4761 = vmatprep.subr.bf16.mxu0 0
        %4762 = vmatpush1.bf16.msra.mxu0 0
        %4763 = vmatprep.mubr.bf16.mxu0 0
        %4764 = vmatmul.mubr.bf16.gmra.mrb[0].mxu0 %v4726
        %v4765 = vpop.f32.mrb[0].mxu0
        %v4766 = vadd.f32 0.0, %v4765
        %v4767 = vpop.f32.mrb[0].mxu0
        %v4768 = vpop.f32.mrb[0].mxu0
        %v4769 = vadd.f32 0.0, %v4768
        %v4770 = vpop.f32.mrb[0].mxu0
        %4771 = vmatprep.mubr.bf16.mxu0 0
        %4772 = vmatmul.mubr.bf16.gmra.mrb[0].mxu0 %v4729
        %v4773 = vpop.f32.mrb[0].mxu0
        %v4774 = vadd.f32 0.0, %v4773
        %v4775 = vpop.f32.mrb[0].mxu0
        %v4776 = vpop.f32.mrb[0].mxu0
        %v4777 = vadd.f32 0.0, %v4776
        %v4778 = vpop.f32.mrb[0].mxu0
        %4779 = vdwg.mxu0
        %v4780 = vpack.c.bf16 %v4705, %v4705
        %v4781 = vpack.c.bf16 %v4769, %v4766
        %v4783 = vsel %vm1578, %v4780, 0
        %v4786 = vsel %vm1578, %v4781, 0
        %4788 = vmatprep.subr.bf16.mxu0 0
        %4789 = vmatpush1.bf16.xpose.msra.mxu0 %v4786
        %4790 = vmatprep.subr.bf16.mxu0 0
        %4791 = vmatpush1.bf16.xpose.msra.mxu0 0
        %4792 = vmatprep.subr.bf16.mxu0 0
        %4793 = vmatpush1.bf16.xpose.msra.mxu0 0
        %4794 = vmatprep.subr.bf16.mxu0 0
        %4795 = vmatpush1.bf16.xpose.msra.mxu0 0
        %4796 = vmatprep.subr.bf16.mxu0 0
        %4797 = vmatpush1.bf16.xpose.msra.mxu0 0
        %4798 = vmatprep.subr.bf16.mxu0 0
        %4799 = vmatpush1.bf16.xpose.msra.mxu0 0
        %4800 = vmatprep.subr.bf16.mxu0 0
        %4801 = vmatpush1.bf16.xpose.msra.mxu0 0
        %4802 = vmatprep.subr.bf16.mxu0 0
        %4803 = vmatpush1.bf16.xpose.msra.mxu0 0
        %4804 = vmatprep.subr.bf16.mxu0 0
        %4805 = vmatpush1.bf16.xpose.msra.mxu0 0
        %4806 = vmatprep.subr.bf16.mxu0 0
        %4807 = vmatpush1.bf16.xpose.msra.mxu0 0
        %4808 = vmatprep.subr.bf16.mxu0 0
        %4809 = vmatpush1.bf16.xpose.msra.mxu0 0
        %4810 = vmatprep.subr.bf16.mxu0 0
        %4811 = vmatpush1.bf16.xpose.msra.mxu0 0
        %4812 = vmatprep.subr.bf16.mxu0 0
        %4813 = vmatpush1.bf16.xpose.msra.mxu0 0
        %4814 = vmatprep.subr.bf16.mxu0 0
        %4815 = vmatpush1.bf16.xpose.msra.mxu0 0
        %4816 = vmatprep.subr.bf16.mxu0 0
        %4817 = vmatpush1.bf16.xpose.msra.mxu0 0
        %4818 = vmatprep.subr.bf16.mxu0 0
        %4819 = vmatpush1.bf16.xpose.msra.mxu0 0
        %4820 = vmatprep.mubr.bf16.mxu0 0
        %4821 = vmatmul.mubr.bf16.gmra.mrb[0].mxu0 %v4783
        %v4822 = vpop.f32.mrb[0].mxu0
        %v4823 = vadd.f32 0.0, %v4822
        %v4824 = vpop.f32.mrb[0].mxu0
        %v4825 = vpop.f32.mrb[0].mxu0
        %v4826 = vpop.f32.mrb[0].mxu0
        %4827 = vdwg.mxu0
        %v4828 = vmul.f32 %v4823, 0.25
        %v4829 = vsel %vm1578, %v4828, -inf
        %4830 = vmax.xlane.f32.xlu0 %v4829
        %v4831 = vpop.xlane.xlu0 %4830
        %v4832 = vsub.f32 %v4828, %v4831
        %v4833 = vmul.f32 %v4832, 1.442695
        %v4834 = vpow.pop %v4833
        %v4835 = vsel %vm1578, %v4834, 0.0
        %4836 = vadd.xlane.f32.xlu0 %v4835
        %v4837 = vpop.xlane.xlu0 %4836
        %v4838 = vrcp.pop %v4837
        %v4839 = vmul.f32 %v4834, %v4838
        %v4840 = vpack.c.bf16 %v4839, %v4839
        %4842 = vrot.lane.b32.xlu0 %v4781, 112
        %v4843 = vpop.permute.xlu0 %4842
        %v4846 = vsel %vm1578, %v4840, 0
        %4848 = vmatprep.subr.bf16.mxu0 0
        %4849 = vmatpush1.bf16.msra.mxu0 %v4843
        %4850 = vmatprep.subr.bf16.mxu0 0
        %4851 = vmatpush1.bf16.msra.mxu0 0
        %4852 = vmatprep.subr.bf16.mxu0 0
        %4853 = vmatpush1.bf16.msra.mxu0 0
        %4854 = vmatprep.subr.bf16.mxu0 0
        %4855 = vmatpush1.bf16.msra.mxu0 0
        %4856 = vmatprep.subr.bf16.mxu0 0
        %4857 = vmatpush1.bf16.msra.mxu0 0
        %4858 = vmatprep.subr.bf16.mxu0 0
        %4859 = vmatpush1.bf16.msra.mxu0 0
        %4860 = vmatprep.subr.bf16.mxu0 0
        %4861 = vmatpush1.bf16.msra.mxu0 0
        %4862 = vmatprep.subr.bf16.mxu0 0
        %4863 = vmatpush1.bf16.msra.mxu0 0
        %4864 = vmatprep.subr.bf16.mxu0 0
        %4865 = vmatpush1.bf16.msra.mxu0 0
        %4866 = vmatprep.subr.bf16.mxu0 0
        %4867 = vmatpush1.bf16.msra.mxu0 0
        %4868 = vmatprep.subr.bf16.mxu0 0
        %4869 = vmatpush1.bf16.msra.mxu0 0
        %4870 = vmatprep.subr.bf16.mxu0 0
        %4871 = vmatpush1.bf16.msra.mxu0 0
        %4872 = vmatprep.subr.bf16.mxu0 0
        %4873 = vmatpush1.bf16.msra.mxu0 0
        %4874 = vmatprep.subr.bf16.mxu0 0
        %4875 = vmatpush1.bf16.msra.mxu0 0
        %4876 = vmatprep.subr.bf16.mxu0 0
        %4877 = vmatpush1.bf16.msra.mxu0 0
        %4878 = vmatprep.subr.bf16.mxu0 0
        %4879 = vmatpush1.bf16.msra.mxu0 0
        %4880 = vmatprep.mubr.bf16.mxu0 0
        %4881 = vmatmul.mubr.bf16.gmra.mrb[0].mxu0 %v4846
        %v4882 = vpop.f32.mrb[0].mxu0
        %v4883 = vadd.f32 0.0, %v4882
        %v4884 = vpop.f32.mrb[0].mxu0
        %v4885 = vpop.f32.mrb[0].mxu0
        %v4886 = vpop.f32.mrb[0].mxu0
        %4887 = vdwg.mxu0
        %v4888 = vpack.c.bf16 %v4708, %v4708
        %v4889 = vpack.c.bf16 %v4777, %v4774
        %v4891 = vsel %vm1578, %v4888, 0
        %v4894 = vsel %vm1578, %v4889, 0
        %4896 = vmatprep.subr.bf16.mxu0 0
        %4897 = vmatpush1.bf16.xpose.msra.mxu0 %v4894
        %4898 = vmatprep.subr.bf16.mxu0 0
        %4899 = vmatpush1.bf16.xpose.msra.mxu0 0
        %4900 = vmatprep.subr.bf16.mxu0 0
        %4901 = vmatpush1.bf16.xpose.msra.mxu0 0
        %4902 = vmatprep.subr.bf16.mxu0 0
        %4903 = vmatpush1.bf16.xpose.msra.mxu0 0
        %4904 = vmatprep.subr.bf16.mxu0 0
        %4905 = vmatpush1.bf16.xpose.msra.mxu0 0
        %4906 = vmatprep.subr.bf16.mxu0 0
        %4907 = vmatpush1.bf16.xpose.msra.mxu0 0
        %4908 = vmatprep.subr.bf16.mxu0 0
        %4909 = vmatpush1.bf16.xpose.msra.mxu0 0
        %4910 = vmatprep.subr.bf16.mxu0 0
        %4911 = vmatpush1.bf16.xpose.msra.mxu0 0
        %4912 = vmatprep.subr.bf16.mxu0 0
        %4913 = vmatpush1.bf16.xpose.msra.mxu0 0
        %4914 = vmatprep.subr.bf16.mxu0 0
        %4915 = vmatpush1.bf16.xpose.msra.mxu0 0
        %4916 = vmatprep.subr.bf16.mxu0 0
        %4917 = vmatpush1.bf16.xpose.msra.mxu0 0
        %4918 = vmatprep.subr.bf16.mxu0 0
        %4919 = vmatpush1.bf16.xpose.msra.mxu0 0
        %4920 = vmatprep.subr.bf16.mxu0 0
        %4921 = vmatpush1.bf16.xpose.msra.mxu0 0
        %4922 = vmatprep.subr.bf16.mxu0 0
        %4923 = vmatpush1.bf16.xpose.msra.mxu0 0
        %4924 = vmatprep.subr.bf16.mxu0 0
        %4925 = vmatpush1.bf16.xpose.msra.mxu0 0
        %4926 = vmatprep.subr.bf16.mxu0 0
        %4927 = vmatpush1.bf16.xpose.msra.mxu0 0
        %4928 = vmatprep.mubr.bf16.mxu0 0
        %4929 = vmatmul.mubr.bf16.gmra.mrb[0].mxu0 %v4891
        %v4930 = vpop.f32.mrb[0].mxu0
        %v4931 = vadd.f32 0.0, %v4930
        %v4932 = vpop.f32.mrb[0].mxu0
        %v4933 = vpop.f32.mrb[0].mxu0
        %v4934 = vpop.f32.mrb[0].mxu0
        %4935 = vdwg.mxu0
        %v4936 = vmul.f32 %v4931, 0.25
        %v4937 = vsel %vm1578, %v4936, -inf
        %4938 = vmax.xlane.f32.xlu0 %v4937
        %v4939 = vpop.xlane.xlu0 %4938
        %v4940 = vsub.f32 %v4936, %v4939
        %v4941 = vmul.f32 %v4940, 1.442695
        %v4942 = vpow.pop %v4941
        %v4943 = vsel %vm1578, %v4942, 0.0
        %4944 = vadd.xlane.f32.xlu0 %v4943
        %v4945 = vpop.xlane.xlu0 %4944
        %v4946 = vrcp.pop %v4945
        %v4947 = vmul.f32 %v4942, %v4946
        %v4948 = vpack.c.bf16 %v4947, %v4947
        %4950 = vrot.lane.b32.xlu0 %v4889, 112
        %v4951 = vpop.permute.xlu0 %4950
        %v4954 = vsel %vm1578, %v4948, 0
        %4956 = vmatprep.subr.bf16.mxu0 0
        %4957 = vmatpush1.bf16.msra.mxu0 %v4951
        %4958 = vmatprep.subr.bf16.mxu0 0
        %4959 = vmatpush1.bf16.msra.mxu0 0
        %4960 = vmatprep.subr.bf16.mxu0 0
        %4961 = vmatpush1.bf16.msra.mxu0 0
        %4962 = vmatprep.subr.bf16.mxu0 0
        %4963 = vmatpush1.bf16.msra.mxu0 0
        %4964 = vmatprep.subr.bf16.mxu0 0
        %4965 = vmatpush1.bf16.msra.mxu0 0
        %4966 = vmatprep.subr.bf16.mxu0 0
        %4967 = vmatpush1.bf16.msra.mxu0 0
        %4968 = vmatprep.subr.bf16.mxu0 0
        %4969 = vmatpush1.bf16.msra.mxu0 0
        %4970 = vmatprep.subr.bf16.mxu0 0
        %4971 = vmatpush1.bf16.msra.mxu0 0
        %4972 = vmatprep.subr.bf16.mxu0 0
        %4973 = vmatpush1.bf16.msra.mxu0 0
        %4974 = vmatprep.subr.bf16.mxu0 0
        %4975 = vmatpush1.bf16.msra.mxu0 0
        %4976 = vmatprep.subr.bf16.mxu0 0
        %4977 = vmatpush1.bf16.msra.mxu0 0
        %4978 = vmatprep.subr.bf16.mxu0 0
        %4979 = vmatpush1.bf16.msra.mxu0 0
        %4980 = vmatprep.subr.bf16.mxu0 0
        %4981 = vmatpush1.bf16.msra.mxu0 0
        %4982 = vmatprep.subr.bf16.mxu0 0
        %4983 = vmatpush1.bf16.msra.mxu0 0
        %4984 = vmatprep.subr.bf16.mxu0 0
        %4985 = vmatpush1.bf16.msra.mxu0 0
        %4986 = vmatprep.subr.bf16.mxu0 0
        %4987 = vmatpush1.bf16.msra.mxu0 0
        %4988 = vmatprep.mubr.bf16.mxu0 0
        %4989 = vmatmul.mubr.bf16.gmra.mrb[0].mxu0 %v4954
        %v4990 = vpop.f32.mrb[0].mxu0
        %v4991 = vadd.f32 0.0, %v4990
        %v4992 = vpop.f32.mrb[0].mxu0
        %v4993 = vpop.f32.mrb[0].mxu0
        %v4994 = vpop.f32.mrb[0].mxu0
        %4995 = vdwg.mxu0
        %v4996 = vpack.c.bf16 %v4991, %v4883
        %v4998 = vlaneseq
        %v4999 = vshrl.u32 %v4998, 7
        %v5000 = vsub.s32 0, %v4999
        %v5001 = vrot.slane %v4535, %v5000
        %v5005 = vunpack.c.l.b16 %v4533
        %v5006 = vunpack.c.l.b16 %v4534
        %v5007 = vpack.c.b16 %v5006, %v5005
        %v5010 = vsel %vm1578, %v4996, 0
        %5012 = vmatprep.subr.bf16.mxu0 0
        %5013 = vmatpush1.bf16.msra.mxu0 %v5007
        %5014 = vmatprep.subr.bf16.mxu0 0
        %5015 = vmatpush1.bf16.msra.mxu0 0
        %5016 = vmatprep.subr.bf16.mxu0 0
        %5017 = vmatpush1.bf16.msra.mxu0 0
        %5018 = vmatprep.subr.bf16.mxu0 0
        %5019 = vmatpush1.bf16.msra.mxu0 0
        %5020 = vmatprep.subr.bf16.mxu0 0
        %5021 = vmatpush1.bf16.msra.mxu0 0
        %5022 = vmatprep.subr.bf16.mxu0 0
        %5023 = vmatpush1.bf16.msra.mxu0 0
        %5024 = vmatprep.subr.bf16.mxu0 0
        %5025 = vmatpush1.bf16.msra.mxu0 0
        %5026 = vmatprep.subr.bf16.mxu0 0
        %5027 = vmatpush1.bf16.msra.mxu0 0
        %5028 = vmatprep.subr.bf16.mxu0 0
        %5029 = vmatpush1.bf16.msra.mxu0 0
        %5030 = vmatprep.subr.bf16.mxu0 0
        %5031 = vmatpush1.bf16.msra.mxu0 0
        %5032 = vmatprep.subr.bf16.mxu0 0
        %5033 = vmatpush1.bf16.msra.mxu0 0
        %5034 = vmatprep.subr.bf16.mxu0 0
        %5035 = vmatpush1.bf16.msra.mxu0 0
        %5036 = vmatprep.subr.bf16.mxu0 0
        %5037 = vmatpush1.bf16.msra.mxu0 0
        %5038 = vmatprep.subr.bf16.mxu0 0
        %5039 = vmatpush1.bf16.msra.mxu0 0
        %5040 = vmatprep.subr.bf16.mxu0 0
        %5041 = vmatpush1.bf16.msra.mxu0 0
        %5042 = vmatprep.subr.bf16.mxu0 0
        %5043 = vmatpush1.bf16.msra.mxu0 0
        %5044 = vmatprep.mubr.bf16.mxu0 0
        %5045 = vmatmul.mubr.bf16.gmra.mrb[0].mxu0 %v5010
        %v5046 = vpop.f32.mrb[0].mxu0
        %v5047 = vadd.f32 %v5001, %v5046
        %v5048 = vpop.f32.mrb[0].mxu0
        %v5049 = vpop.f32.mrb[0].mxu0
        %v5050 = vadd.f32 %v5001, %v5049
        %v5051 = vpop.f32.mrb[0].mxu0
        %5052 = vdwg.mxu0
        %v5053 = vld [vmem:[%s73] sm:$0xf]
        %v5054 = vld [vmem:[%s73 + $0x4] sm:$0xf]
        %v5055 = vld [vmem:[%s73 + $0x8] sm:$0xf]
        %v5056 = vld [vmem:[%s73 + $0xc] sm:$0xf]
        %v5057 = vld [vmem:[%s73 + $0x10] sm:$0xf]
        %v5058 = vld [vmem:[%s73 + $0x14] sm:$0xf]
        %v5059 = vld [vmem:[%s73 + $0x18] sm:$0xf]
        %v5060 = vld [vmem:[%s73 + $0x1c] sm:$0xf]
        %v5061 = vld [vmem:[%s75] sm:$0x1]
        %v5062 = vld [vmem:[%s75 + $0x1] sm:$0x1]
        %v5063 = vld [vmem:[%s77] sm:$0xf]
        %v5064 = vld [vmem:[%s77 + $0x4] sm:$0xf]
        %v5065 = vld [vmem:[%s77 + $0x8] sm:$0xf]
        %v5066 = vld [vmem:[%s77 + $0xc] sm:$0xf]
        %v5067 = vld [vmem:[%s77 + $0x10] sm:$0xf]
        %v5068 = vld [vmem:[%s77 + $0x14] sm:$0xf]
        %v5069 = vld [vmem:[%s77 + $0x18] sm:$0xf]
        %v5070 = vld [vmem:[%s77 + $0x1c] sm:$0xf]
        %v5071 = vld [vmem:[%s77 + $0x20] sm:$0xf]
        %v5072 = vld [vmem:[%s77 + $0x24] sm:$0xf]
        %v5073 = vld [vmem:[%s77 + $0x28] sm:$0xf]
        %v5074 = vld [vmem:[%s77 + $0x2c] sm:$0xf]
        %v5075 = vld [vmem:[%s77 + $0x30] sm:$0xf]
        %v5076 = vld [vmem:[%s77 + $0x34] sm:$0xf]
        %v5077 = vld [vmem:[%s77 + $0x38] sm:$0xf]
        %v5078 = vld [vmem:[%s77 + $0x3c] sm:$0xf]
        %v5079 = vld [vmem:[%s79] sm:$0x1]
        %v5080 = vld [vmem:[%s81] sm:$0x1]
        %v5081 = vld [vmem:[%s83] sm:$0x1]
        %v5082 = vsel %vm1368, %v5047, 0.0
        %5083 = vadd.xlane.f32.xlu0 %v5082
        %v5084 = vpop.xlane.xlu0 %5083
        %v5085 = vsel %vm1368, %v5050, 0.0
        %5086 = vadd.xlane.f32.xlu0 %v5085
        %v5087 = vpop.xlane.xlu0 %5086
        %v5088 = vmul.f32 %v5084, %v1375
        %v5089 = vmul.f32 %v5087, %v1375
        %v5090 = vsub.f32 %v5047, %v5088
        %v5091 = vsub.f32 %v5050, %v5089
        %v5092 = vmul.f32 %v5090, %v5090
        %v5093 = vmul.f32 %v5091, %v5091
        %v5094 = vsel %vm1368, %v5092, 0.0
        %5095 = vadd.xlane.f32.xlu0 %v5094
        %v5096 = vpop.xlane.xlu0 %5095
        %v5097 = vsel %vm1368, %v5093, 0.0
        %5098 = vadd.xlane.f32.xlu0 %v5097
        %v5099 = vpop.xlane.xlu0 %5098
        %v5100 = vmul.f32 %v5096, %v1375
        %v5101 = vmul.f32 %v5099, %v1375
        %v5102 = vadd.f32 %v5100, 1e-05
        %v5103 = vadd.f32 %v5101, 1e-05
        %v5104 = vrsqrt.pop %v5102
        %v5105 = vrsqrt.pop %v5103
        %v5106 = vmul.f32 %v5090, %v5104
        %v5107 = vmul.f32 %v5091, %v5105
        %v5109 = vlaneseq
        %v5110 = vshrl.u32 %v5109, 7
        %v5111 = vsub.s32 0, %v5110
        %v5112 = vrot.slane %v5080, %v5111
        %v5114 = vmul.f32 %v5106, %v5112
        %v5115 = vmul.f32 %v5107, %v5112
        %v5117 = vlaneseq
        %v5118 = vshrl.u32 %v5117, 7
        %v5119 = vsub.s32 0, %v5118
        %v5120 = vrot.slane %v5081, %v5119
        %v5122 = vadd.f32 %v5114, %v5120
        %v5123 = vadd.f32 %v5115, %v5120
        %v5124 = vpack.c.bf16 %v5123, %v5122
        %v5126 = vlaneseq
        %v5127 = vshrl.u32 %v5126, 7
        %v5128 = vsub.s32 0, %v5127
        %v5129 = vrot.slane %v5061, %v5128
        %v5135 = vunpack.c.l.b16 %v5053
        %v5136 = vunpack.c.l.b16 %v5054
        %v5137 = vunpack.c.l.b16 %v5055
        %v5138 = vunpack.c.l.b16 %v5056
        %v5139 = vpack.c.b16 %v5136, %v5135
        %v5140 = vpack.c.b16 %v5138, %v5137
        %v5144 = vsel %vm1368, %v5124, 0
        %5146 = vmatprep.subr.bf16.mxu0 0
        %5147 = vmatpush1.bf16.msra.mxu0 %v5139
        %5148 = vmatprep.subr.bf16.mxu0 0
        %5149 = vmatpush1.bf16.msra.mxu0 %v5140
        %5150 = vmatprep.subr.bf16.mxu0 0
        %5151 = vmatpush1.bf16.msra.mxu0 0
        %5152 = vmatprep.subr.bf16.mxu0 0
        %5153 = vmatpush1.bf16.msra.mxu0 0
        %5154 = vmatprep.subr.bf16.mxu0 0
        %5155 = vmatpush1.bf16.msra.mxu0 0
        %5156 = vmatprep.subr.bf16.mxu0 0
        %5157 = vmatpush1.bf16.msra.mxu0 0
        %5158 = vmatprep.subr.bf16.mxu0 0
        %5159 = vmatpush1.bf16.msra.mxu0 0
        %5160 = vmatprep.subr.bf16.mxu0 0
        %5161 = vmatpush1.bf16.msra.mxu0 0
        %5162 = vmatprep.subr.bf16.mxu0 0
        %5163 = vmatpush1.bf16.msra.mxu0 0
        %5164 = vmatprep.subr.bf16.mxu0 0
        %5165 = vmatpush1.bf16.msra.mxu0 0
        %5166 = vmatprep.subr.bf16.mxu0 0
        %5167 = vmatpush1.bf16.msra.mxu0 0
        %5168 = vmatprep.subr.bf16.mxu0 0
        %5169 = vmatpush1.bf16.msra.mxu0 0
        %5170 = vmatprep.subr.bf16.mxu0 0
        %5171 = vmatpush1.bf16.msra.mxu0 0
        %5172 = vmatprep.subr.bf16.mxu0 0
        %5173 = vmatpush1.bf16.msra.mxu0 0
        %5174 = vmatprep.subr.bf16.mxu0 0
        %5175 = vmatpush1.bf16.msra.mxu0 0
        %5176 = vmatprep.subr.bf16.mxu0 0
        %5177 = vmatpush1.bf16.msra.mxu0 0
        %5178 = vmatprep.mubr.bf16.mxu0 0
        %5179 = vmatmul.mubr.bf16.gmra.mrb[0].mxu0 %v5144
        %v5180 = vpop.f32.mrb[0].mxu0
        %v5181 = vadd.f32 %v5129, %v5180
        %v5182 = vpop.f32.mrb[0].mxu0
        %v5183 = vpop.f32.mrb[0].mxu0
        %v5184 = vadd.f32 %v5129, %v5183
        %v5185 = vpop.f32.mrb[0].mxu0
        %5186 = vdwg.mxu0
        %v5188 = vlaneseq
        %v5189 = vshrl.u32 %v5188, 7
        %v5190 = vsub.s32 0, %v5189
        %v5191 = vrot.slane %v5062, %v5190
        %v5197 = vunpack.c.l.b16 %v5057
        %v5198 = vunpack.c.l.b16 %v5058
        %v5199 = vunpack.c.l.b16 %v5059
        %v5200 = vunpack.c.l.b16 %v5060
        %v5201 = vpack.c.b16 %v5198, %v5197
        %v5202 = vpack.c.b16 %v5200, %v5199
        %5205 = vmatprep.subr.bf16.mxu0 0
        %5206 = vmatpush1.bf16.msra.mxu0 %v5201
        %5207 = vmatprep.subr.bf16.mxu0 0
        %5208 = vmatpush1.bf16.msra.mxu0 %v5202
        %5209 = vmatprep.subr.bf16.mxu0 0
        %5210 = vmatpush1.bf16.msra.mxu0 0
        %5211 = vmatprep.subr.bf16.mxu0 0
        %5212 = vmatpush1.bf16.msra.mxu0 0
        %5213 = vmatprep.subr.bf16.mxu0 0
        %5214 = vmatpush1.bf16.msra.mxu0 0
        %5215 = vmatprep.subr.bf16.mxu0 0
        %5216 = vmatpush1.bf16.msra.mxu0 0
        %5217 = vmatprep.subr.bf16.mxu0 0
        %5218 = vmatpush1.bf16.msra.mxu0 0
        %5219 = vmatprep.subr.bf16.mxu0 0
        %5220 = vmatpush1.bf16.msra.mxu0 0
        %5221 = vmatprep.subr.bf16.mxu0 0
        %5222 = vmatpush1.bf16.msra.mxu0 0
        %5223 = vmatprep.subr.bf16.mxu0 0
        %5224 = vmatpush1.bf16.msra.mxu0 0
        %5225 = vmatprep.subr.bf16.mxu0 0
        %5226 = vmatpush1.bf16.msra.mxu0 0
        %5227 = vmatprep.subr.bf16.mxu0 0
        %5228 = vmatpush1.bf16.msra.mxu0 0
        %5229 = vmatprep.subr.bf16.mxu0 0
        %5230 = vmatpush1.bf16.msra.mxu0 0
        %5231 = vmatprep.subr.bf16.mxu0 0
        %5232 = vmatpush1.bf16.msra.mxu0 0
        %5233 = vmatprep.subr.bf16.mxu0 0
        %5234 = vmatpush1.bf16.msra.mxu0 0
        %5235 = vmatprep.subr.bf16.mxu0 0
        %5236 = vmatpush1.bf16.msra.mxu0 0
        %5237 = vmatprep.mubr.bf16.mxu0 0
        %5238 = vmatmul.mubr.bf16.gmra.mrb[0].mxu0 %v5144
        %v5239 = vpop.f32.mrb[0].mxu0
        %v5240 = vadd.f32 %v5191, %v5239
        %v5241 = vpop.f32.mrb[0].mxu0
        %v5242 = vpop.f32.mrb[0].mxu0
        %v5243 = vadd.f32 %v5191, %v5242
        %v5244 = vpop.f32.mrb[0].mxu0
        %5245 = vdwg.mxu0
        %v5246 = vmul.f32 %v5240, 0.5
        %v5247 = vmul.f32 %v5243, 0.5
        %v5248 = vmul.f32 %v5240, 0.70710677
        %v5249 = vmul.f32 %v5243, 0.70710677
        %v5250 = verf.f32.pop %v5248
        %v5251 = verf.f32.pop %v5249
        %v5252 = vadd.f32 %v5250, 1.0
        %v5253 = vadd.f32 %v5251, 1.0
        %v5254 = vmul.f32 %v5246, %v5252
        %v5255 = vmul.f32 %v5247, %v5253
        %v5256 = vmul.f32 %v5181, %v5254
        %v5257 = vmul.f32 %v5184, %v5255
        %v5258 = vpack.c.bf16 %v5257, %v5256
        %v5260 = vlaneseq
        %v5261 = vshrl.u32 %v5260, 7
        %v5262 = vsub.s32 0, %v5261
        %v5263 = vrot.slane %v5079, %v5262
        %v5281 = vunpack.c.l.b16 %v5063
        %v5282 = vunpack.c.l.b16 %v5064
        %v5283 = vunpack.c.l.b16 %v5065
        %v5284 = vunpack.c.l.b16 %v5066
        %v5285 = vunpack.c.l.b16 %v5067
        %v5286 = vunpack.c.l.b16 %v5068
        %v5287 = vunpack.c.l.b16 %v5069
        %v5288 = vunpack.c.l.b16 %v5070
        %v5289 = vunpack.c.l.b16 %v5071
        %v5290 = vunpack.c.l.b16 %v5072
        %v5291 = vunpack.c.l.b16 %v5073
        %v5292 = vunpack.c.l.b16 %v5074
        %v5293 = vunpack.c.l.b16 %v5075
        %v5294 = vunpack.c.l.b16 %v5076
        %v5295 = vunpack.c.l.b16 %v5077
        %v5296 = vunpack.c.l.b16 %v5078
        %v5297 = vpack.c.b16 %v5282, %v5281
        %v5298 = vpack.c.b16 %v5284, %v5283
        %v5299 = vpack.c.b16 %v5286, %v5285
        %v5300 = vpack.c.b16 %v5288, %v5287
        %v5301 = vpack.c.b16 %v5290, %v5289
        %v5302 = vpack.c.b16 %v5292, %v5291
        %v5303 = vpack.c.b16 %v5294, %v5293
        %v5304 = vpack.c.b16 %v5296, %v5295
        %5313 = vmatprep.subr.bf16.mxu0 0
        %5314 = vmatpush1.bf16.msra.mxu0 %v5297
        %5315 = vmatprep.subr.bf16.mxu0 0
        %5316 = vmatpush1.bf16.msra.mxu0 %v5298
        %5317 = vmatprep.subr.bf16.mxu0 0
        %5318 = vmatpush1.bf16.msra.mxu0 %v5299
        %5319 = vmatprep.subr.bf16.mxu0 0
        %5320 = vmatpush1.bf16.msra.mxu0 %v5300
        %5321 = vmatprep.subr.bf16.mxu0 0
        %5322 = vmatpush1.bf16.msra.mxu0 %v5301
        %5323 = vmatprep.subr.bf16.mxu0 0
        %5324 = vmatpush1.bf16.msra.mxu0 %v5302
        %5325 = vmatprep.subr.bf16.mxu0 0
        %5326 = vmatpush1.bf16.msra.mxu0 %v5303
        %5327 = vmatprep.subr.bf16.mxu0 0
        %5328 = vmatpush1.bf16.msra.mxu0 %v5304
        %5329 = vmatprep.subr.bf16.mxu0 0
        %5330 = vmatpush1.bf16.msra.mxu0 0
        %5331 = vmatprep.subr.bf16.mxu0 0
        %5332 = vmatpush1.bf16.msra.mxu0 0
        %5333 = vmatprep.subr.bf16.mxu0 0
        %5334 = vmatpush1.bf16.msra.mxu0 0
        %5335 = vmatprep.subr.bf16.mxu0 0
        %5336 = vmatpush1.bf16.msra.mxu0 0
        %5337 = vmatprep.subr.bf16.mxu0 0
        %5338 = vmatpush1.bf16.msra.mxu0 0
        %5339 = vmatprep.subr.bf16.mxu0 0
        %5340 = vmatpush1.bf16.msra.mxu0 0
        %5341 = vmatprep.subr.bf16.mxu0 0
        %5342 = vmatpush1.bf16.msra.mxu0 0
        %5343 = vmatprep.subr.bf16.mxu0 0
        %5344 = vmatpush1.bf16.msra.mxu0 0
        %5345 = vmatprep.mubr.bf16.mxu0 0
        %5346 = vmatmul.mubr.bf16.gmra.mrb[0].mxu0 %v5258
        %v5347 = vpop.f32.mrb[0].mxu0
        %v5348 = vadd.f32 %v5263, %v5347
        %v5349 = vpop.f32.mrb[0].mxu0
        %v5350 = vpop.f32.mrb[0].mxu0
        %v5351 = vadd.f32 %v5263, %v5350
        %v5352 = vpop.f32.mrb[0].mxu0
        %5353 = vdwg.mxu0
        %v5354 = vadd.f32 %v5047, %v5348
        %v5355 = vadd.f32 %v5050, %v5351
        %v5356 = vld [vmem:[%s85] sm:$0xf]
        %v5357 = vld [vmem:[%s85 + $0x4] sm:$0xf]
        %v5358 = vld [vmem:[%s85 + $0x8] sm:$0xf]
        %v5359 = vld [vmem:[%s85 + $0xc] sm:$0xf]
        %v5360 = vpack.c.bf16 %v5355, %v5354
        %v5361 = vld [vmem:[%s87] sm:$0x1]
        %v5363 = vlaneseq
        %v5364 = vshrl.u32 %v5363, 7
        %v5365 = vsub.s32 0, %v5364
        %v5366 = vrot.slane %v5361, %v5365
        %v5372 = vunpack.c.l.b16 %v5356
        %v5373 = vunpack.c.l.b16 %v5357
        %v5374 = vunpack.c.l.b16 %v5358
        %v5375 = vunpack.c.l.b16 %v5359
        %v5376 = vpack.c.b16 %v5373, %v5372
        %v5377 = vpack.c.b16 %v5375, %v5374
        %v5381 = vsel %vm1368, %v5360, 0
        %5383 = vmatprep.subr.bf16.mxu0 0
        %5384 = vmatpush1.bf16.msra.mxu0 %v5376
        %5385 = vmatprep.subr.bf16.mxu0 0
        %5386 = vmatpush1.bf16.msra.mxu0 %v5377
        %5387 = vmatprep.subr.bf16.mxu0 0
        %5388 = vmatpush1.bf16.msra.mxu0 0
        %5389 = vmatprep.subr.bf16.mxu0 0
        %5390 = vmatpush1.bf16.msra.mxu0 0
        %5391 = vmatprep.subr.bf16.mxu0 0
        %5392 = vmatpush1.bf16.msra.mxu0 0
        %5393 = vmatprep.subr.bf16.mxu0 0
        %5394 = vmatpush1.bf16.msra.mxu0 0
        %5395 = vmatprep.subr.bf16.mxu0 0
        %5396 = vmatpush1.bf16.msra.mxu0 0
        %5397 = vmatprep.subr.bf16.mxu0 0
        %5398 = vmatpush1.bf16.msra.mxu0 0
        %5399 = vmatprep.subr.bf16.mxu0 0
        %5400 = vmatpush1.bf16.msra.mxu0 0
        %5401 = vmatprep.subr.bf16.mxu0 0
        %5402 = vmatpush1.bf16.msra.mxu0 0
        %5403 = vmatprep.subr.bf16.mxu0 0
        %5404 = vmatpush1.bf16.msra.mxu0 0
        %5405 = vmatprep.subr.bf16.mxu0 0
        %5406 = vmatpush1.bf16.msra.mxu0 0
        %5407 = vmatprep.subr.bf16.mxu0 0
        %5408 = vmatpush1.bf16.msra.mxu0 0
        %5409 = vmatprep.subr.bf16.mxu0 0
        %5410 = vmatpush1.bf16.msra.mxu0 0
        %5411 = vmatprep.subr.bf16.mxu0 0
        %5412 = vmatpush1.bf16.msra.mxu0 0
        %5413 = vmatprep.subr.bf16.mxu0 0
        %5414 = vmatpush1.bf16.msra.mxu0 0
        %5415 = vmatprep.mubr.bf16.mxu0 0
        %5416 = vmatmul.mubr.bf16.gmra.mrb[0].mxu0 %v5381
        %v5417 = vpop.f32.mrb[0].mxu0
        %v5418 = vadd.f32 %v5366, %v5417
        %v5419 = vpop.f32.mrb[0].mxu0
        %v5420 = vpop.f32.mrb[0].mxu0
        %v5421 = vadd.f32 %v5366, %v5420
        %v5422 = vpop.f32.mrb[0].mxu0
        %5423 = vdwg.mxu0
        %5424 = vst.msk [vmem:[%s1332] sm:$0xff] %vm1578, %v5418
        %5425 = vst.msk [vmem:[%s1332 + $0x8] sm:$0xff] %vm1578, %v5421
        %s5426 = sand.u32 %s1045, 1
        %s5427 = scalar_lea.sflag [#allocation3], %s5426
        %s5428 = sand.u32 %s1045, 1
        %s5429 = smul.addr %s5428, 16
        %s5430 = scalar_lea.vmem [#allocation2], %s5429
        // Predicated region
        $region197: #{_lambda_.1} parent=195 // pred_check
          %p5431 = pneg %p1055
        $region198: #{_lambda_.1} parent=195 // pred_check_branch
          %5433 = sbr.rel (%p5431) target = $region200
        $region199: #{_lambda_.1} parent=195 // pred_region
          %s5434 = smul.u32 2, %s103
          %s5436 = ssub.s32 256, 256
          %5437 = vsyncadd %s5427, %s5436
          %s5438 = smul.addr %s5434, 128
          %s5439 = scalar_lea.hbm %s89, %s5438
          %s5440 = sshll.u32 %s5430, 4
          %s5441 = int_to_ptr.vmem [resolvable:$true] %s5440
          %5446 = dma.vmem_to_hbm [thread:$0]  %s5441, 256, %s5439, %s5427, 128, 128, 8
        $region200: #{_lambda_.1} parent=195 // pred_fallthru
          _
      $region196: #{_lambda_.1} parent=5 // pred_fallthru
        _
      %p5447 = scmp.le.s32.totalorder 2, %s98
      // Predicated region
      $region201: #{_lambda_.1} parent=5 // pred_check
        %p5448 = pneg %p5447
      $region202: #{_lambda_.1} parent=5 // pred_check_branch
        %5450 = sbr.rel (%p5448) target = $region204
      $region203: #{_lambda_.1} parent=5 // pred_region
        %s5451 = ssub.s32 %s98, 2
        // Predicated region
        $region205: #{_lambda_.1} parent=203 // pred_check
          %p5452 = pneg %p1061
        $region206: #{_lambda_.1} parent=203 // pred_check_branch
          %5454 = sbr.rel (%p5452) target = $region208
        $region207: #{_lambda_.1} parent=203 // pred_region
          %s5455 = sand.u32 %s1046, 1
          %s5456 = scalar_lea.sflag [#allocation3], %s5455
          %s5457 = sand.u32 %s1046, 1
          %s5458 = smul.addr %s5457, 16
          %s5459 = scalar_lea.vmem [#allocation2], %s5458
          %5460 = dma.done %s5456, 256
        $region208: #{_lambda_.1} parent=203 // pred_fallthru
          _
      $region204: #{_lambda_.1} parent=5 // pred_fallthru
        _
    $region6: #{_lambda_.1} parent=1 // loop_footer
      %s102 = sadd.s32 1, %s98
    $region7: #{_lambda_.1} parent=1 // loop_footer_branch
      %97 = sbr.rel target = $region3
    $region8: #{_lambda_.1} parent=1 // loop_exit
      _
    %5461 = vsyncpa [#allocation3], 1
    %s5462 = scalar_lea.sflag [#allocation3], 1
    %5463 = vsyncpa %s5462, 1

</llo_original>
